<compile_context>
chip_gen: v6e
topology: v6e:2x2x1
jax: 0.10.0
libtpu: 0.0.40
codegen_flags: <defaults>
</compile_context>

<pallas_src>
import functools

import jax
import jax.numpy as jnp
from jax.experimental import pallas as pl
from jax.experimental.pallas import tpu as pltpu


def _kernel2_vmem_limit(default_bytes=48 * 1024 * 1024):
    """Per-generation VMEM budget: ~96 MiB on v5e/v6e (128 MiB physical),
    ~48 MiB on v7x (64 MiB physical).  Conservative fallback if the query fails."""
    try:
        cap = pltpu.get_tpu_info().vmem_capacity_bytes
        return int(min(96 * 1024 * 1024, max(32 * 1024 * 1024, cap - 16 * 1024 * 1024)))
    except Exception:
        return int(default_bytes)


# ============================================================================
# Kernel 1: fused qkv 1x1 conv  ==  one (tm, C) @ (C, 3C) matmul per token tile
# ============================================================================
def _qkv_proj_kernel(x_ref, w_ref, b_ref, q_ref, k_ref, v_ref):
    c = q_ref.shape[-1]
    y = jnp.dot(x_ref[...], w_ref[...],
                preferred_element_type=jnp.float32) + b_ref[...]
    # 128-lane-aligned static slices of the fused result -> no lane relayout.
    q_ref[...] = y[:, 0 * c:1 * c].astype(q_ref.dtype)
    k_ref[...] = y[:, 1 * c:2 * c].astype(k_ref.dtype)
    v_ref[...] = y[:, 2 * c:3 * c].astype(v_ref.dtype)


def _qkv_projection(x_nchw, w_t, bias2d, *, out_dtype, token_block=1024):
    """1x1 conv on NCHW input as a flattened (B*H*W, C) matmul; returns NHWC maps."""
    b, c, h, w = x_nchw.shape
    tokens = x_nchw.transpose(0, 2, 3, 1).reshape(b * h * w, c).astype(w_t.dtype)
    m = tokens.shape[0]
    tm = max(8, min(token_block, -(-m // 8) * 8))
    mp = -(-m // tm) * tm
    if mp != m:
        tokens = jnp.pad(tokens, ((0, mp - m), (0, 0)))

    grid = (mp // tm,)
    q_o, k_o, v_o = pl.pallas_call(
        _qkv_proj_kernel,
        out_shape=tuple(jax.ShapeDtypeStruct((mp, c), out_dtype) for _ in range(3)),
        grid_spec=pltpu.PrefetchScalarGridSpec(
            num_scalar_prefetch=0,
            grid=grid,
            in_specs=[
                pl.BlockSpec((tm, c), lambda i: (i, 0)),
                pl.BlockSpec((c, 3 * c), lambda i: (0, 0)),
                pl.BlockSpec((1, 3 * c), lambda i: (0, 0)),
            ],
            out_specs=(
                pl.BlockSpec((tm, c), lambda i: (i, 0)),
                pl.BlockSpec((tm, c), lambda i: (i, 0)),
                pl.BlockSpec((tm, c), lambda i: (i, 0)),
            ),
        ),
        compiler_params=pltpu.CompilerParams(
            dimension_semantics=("parallel",),
            vmem_limit_bytes=32 * 1024 * 1024),
    )(tokens, w_t, bias2d)

    def unflat(t):
        return t[:m].reshape(b, h, w, c)          # NHWC

    return unflat(q_o), unflat(k_o), unflat(v_o)


# ============================================================================
# Kernel 2: packed windowed attention (+ output projection), TB groups per step
# ============================================================================
def _deform_window_attn_kernel(qg_ref, kg_ref, vg_ref, bias_ref, wp_ref, bp_ref,
                               o_ref, *, scale):
    # qg_ref: (H, TB, GN, hd)  G windows packed into one 128-row query tile (bf16)
    # kg_ref: (H, TB, GM, hd)  packed deformably-sampled keys (bf16)
    # vg_ref: (H, TB, GM, hd)  packed deformably-sampled values (bf16)
    # bias_ref: (H, GN, GM)    block-diag rel-pos bias + (-1e9) off-block mask (f32)
    # wp_ref: (C, C)           proj weight transposed, input channels head-major (bf16)
    # bp_ref: (1, C)           proj bias (f32)
    # o_ref:  (TB, GN, C)      lane-dense output tile
    nh, tb, gn, hd = qg_ref.shape
    gm = kg_ref.shape[2]
    c = o_ref.shape[-1]

    # merge (head, group) into one leading batch dim -> single-batch-dim einsums
    q = qg_ref[...].reshape(nh * tb, gn, hd)
    k = kg_ref[...].reshape(nh * tb, gm, hd)
    v = vg_ref[...].reshape(nh * tb, gm, hd)

    # packed QK^T on the MXU (bf16 operands, f32 accumulation)
    s = jnp.einsum('gnd,gmd->gnm', q, k,
                   preferred_element_type=jnp.float32) * scale
    # bias + block-diagonal mask added once to the whole (H, TB, GN, GM) block;
    # off-block entries get -1e9 so exp() underflows to exactly 0 -> windows stay
    # independent and attn @ V_stack is exact.
    s = s.reshape(nh, tb, gn, gm) + bias_ref[...][:, None, :, :]

    # numerically stable softmax in f32; divide goes to the EUP (approx reciprocal)
    s = s - jnp.max(s, axis=-1, keepdims=True)
    p = jnp.exp(s)
    attn = p * pl.reciprocal(jnp.sum(p, axis=-1, keepdims=True), approx=True)
    attn = attn.reshape(nh * tb, gn, gm).astype(v.dtype)

    ctx = jnp.einsum('gnm,gmd->gnd', attn, v,
                     preferred_element_type=jnp.float32)        # (H*TB, GN, hd)
    # one-time head relayout into the lane/channel dim (XLU has slack here), then a
    # single K=C output-projection matmul (instead of an nh-way K=hd split loop).
    ctx = ctx.reshape(nh, tb * gn, hd).astype(wp_ref.dtype)
    ctx_cat = jnp.concatenate([ctx[hh] for hh in range(nh)], axis=-1)  # (TB*GN, C)
    out = jnp.dot(ctx_cat, wp_ref[...],
                  preferred_element_type=jnp.float32) + bp_ref[...]
    o_ref[...] = out.reshape(tb, gn, c).astype(o_ref.dtype)


# ============================================================================
# JAX glue (coordinates, grid_sample, relative position bias)
# ============================================================================
def _relative_position_bias(table, attn_ws, num_heads):
    """table: ((2*attn_ws-1)**2, num_heads) -> (num_heads, attn_ws^2, attn_ws^2)."""
    n = attn_ws * attn_ws
    coords = jnp.stack(jnp.meshgrid(jnp.arange(attn_ws), jnp.arange(attn_ws),
                                    indexing='ij'))
    cf = coords.reshape(2, -1)
    rel = cf[:, :, None] - cf[:, None, :]
    rel = rel.transpose(1, 2, 0)
    rel = rel.at[:, :, 0].add(attn_ws - 1)
    rel = rel.at[:, :, 1].add(attn_ws - 1)
    rel = rel.at[:, :, 0].multiply(2 * attn_ws - 1)
    idx = rel.sum(-1)
    bias = table[idx.reshape(-1)].reshape(n, n, num_heads)
    return bias.transpose(2, 0, 1).astype(jnp.float32)


def _grid_sample_zeros_align(img, grid, *, channels_last=False):
    """F.grid_sample(img, grid, mode='bilinear', padding_mode='zeros',
    align_corners=True) in plain JAX.
    channels_last=False: img (B,C,H,W) -> (B,C,Ho,Wo);  True: (B,H,W,C) -> (B,Ho,Wo,C).
    grid: (B, Ho, Wo, 2) normalized (x, y) in [-1, 1]."""
    # TODO(synk): data-dependent bilinear gather; no clean Pallas equivalent, kept in XLA.
    if channels_last:
        B, H, W, C = img.shape
    else:
        B, C, H, W = img.shape
    x = (grid[..., 0] + 1.0) * 0.5 * (W - 1)
    y = (grid[..., 1] + 1.0) * 0.5 * (H - 1)
    x0 = jnp.floor(x)
    y0 = jnp.floor(y)
    x1 = x0 + 1.0
    y1 = y0 + 1.0
    wa = (x1 - x) * (y1 - y)
    wb = (x1 - x) * (y - y0)
    wc = (x - x0) * (y1 - y)
    wd = (x - x0) * (y - y0)

    def corner(xi, yi):
        valid = (xi >= 0) & (xi <= W - 1) & (yi >= 0) & (yi <= H - 1)
        xi_c = jnp.clip(xi, 0, W - 1).astype(jnp.int32)
        yi_c = jnp.clip(yi, 0, H - 1).astype(jnp.int32)
        if channels_last:
            def one(imb, yb, xb):
                return imb[yb, xb]                       # (Ho, Wo, C)
            vals = jax.vmap(one)(img, yi_c, xi_c)        # (B, Ho, Wo, C)
            return jnp.where(valid[..., None], vals, 0.0)
        else:
            def one(imb, yb, xb):
                return imb[:, yb, xb]                    # (C, Ho, Wo)
            vals = jax.vmap(one)(img, yi_c, xi_c)        # (B, C, Ho, Wo)
            return jnp.where(valid[:, None, :, :], vals, 0.0)

    if channels_last:
        wa_, wb_, wc_, wd_ = (t[..., None] for t in (wa, wb, wc, wd))
    else:
        wa_, wb_, wc_, wd_ = (t[:, None] for t in (wa, wb, wc, wd))
    return (corner(x0, y0) * wa_ + corner(x0, y1) * wb_
            + corner(x1, y0) * wc_ + corner(x1, y1) * wd_)


def _deformable_sample_coords(x_pad, w_off, b_off, w_scale, b_scale, *, b, num_heads,
                              ws, attn_ws, h, w, expand_h, expand_w, wnh, wnw,
                              learnable=True):
    """Mirrors the torch coordinate bookkeeping (restart_regression=True)."""
    ref_h = jnp.linspace(-1.0, 1.0, expand_h, dtype=jnp.float32)
    ref_w = jnp.linspace(-1.0, 1.0, expand_w, dtype=jnp.float32)
    gw, gh = jnp.meshgrid(ref_w, ref_h, indexing='ij')          # (Wp, Hp)
    image_reference = jnp.stack([gw, gh], 0).transpose(0, 2, 1)  # (2, Hp, Wp)
    base_coords = image_reference.reshape(1, 2, wnh, ws, wnw, ws)

    bch = jnp.arange(attn_ws, dtype=jnp.float32) * 2.0 * ws / attn_ws / (expand_h - 1)
    bch = bch - bch.mean()
    bcw = jnp.arange(attn_ws, dtype=jnp.float32) * 2.0 * ws / attn_ws / (expand_w - 1)
    bcw = bcw - bcw.mean()
    ebch = jnp.tile(bch[None, :], (wnh, 1)).reshape(-1)
    ebcw = jnp.tile(bcw[None, :], (wnw, 1)).reshape(-1)
    wcw, wch = jnp.meshgrid(ebcw, ebch, indexing='ij')
    window_coords = jnp.stack([wcw, wch], 0).transpose(0, 2, 1)
    window_coords = window_coords.reshape(1, 2, wnh, attn_ws, wnw, attn_ws)

    coords = jnp.broadcast_to(base_coords, (b * num_heads, 2, wnh, ws, wnw, ws))

    if learnable:
        # sampling_offsets / sampling_scales: AvgPool(ws) -> LeakyReLU -> 1x1 conv.
        # TODO(synk): tiny (wnh*wnw spatial, 2*num_heads channels) -> kept as JAX glue.
        pooled = x_pad.reshape(b, -1, wnh, ws, wnw, ws).mean(axis=(3, 5))
        act = jax.nn.leaky_relu(pooled, negative_slope=0.01)
        off = jnp.einsum('oc,bchw->bohw', w_off, act) + b_off[None, :, None, None]
        off = off.reshape(b * num_heads, 2, wnh, wnw)
        off = off.at[:, 0].divide(float(h // ws))
        off = off.at[:, 1].divide(float(w // ws))
        scl = jnp.einsum('oc,bchw->bohw', w_scale, act) + b_scale[None, :, None, None]
        scl = scl.reshape(b * num_heads, 2, wnh, wnw)
        coords = (coords
                  + window_coords * scl[:, :, :, None, :, None]
                  + off[:, :, :, None, :, None])

    sample_coords = coords.transpose(0, 2, 3, 4, 5, 1).reshape(
        b * num_heads, wnh * attn_ws, wnw * attn_ws, 2)
    return coords, sample_coords


# ============================================================================
# Public forward (Pallas)
# ============================================================================
def deformable_window_attention_forward(x, params, *, num_heads, window_size,
                                         attn_window_size=None, qk_scale=None,
                                         relative_pos_embedding=False,
                                         learnable=True, window_block=16,
                                         token_block=1024, min_grid_steps=4):
    """Forward pass of DeformableWindowAttention (restart_regression=True,
    dropout p=0).  Returns (out, coords) like the PyTorch module."""
    b, c, h, w = x.shape
    ws = window_size
    attn_ws = attn_window_size or ws
    assert attn_ws == ws, "learnable deformable path requires attn_window_size == window_size"
    assert c % num_heads == 0
    hd = c // num_heads
    scale = qk_scale if qk_scale is not None else hd ** (-0.5)
    mm_dtype = jnp.bfloat16          # MXU operand dtype; accumulation stays f32

    padding_td = (ws - h % ws) % ws
    padding_lr = (ws - w % ws) % ws
    pt, pd_ = padding_td // 2, padding_td - padding_td // 2
    pleft, pright = padding_lr // 2, padding_lr - padding_lr // 2
    expand_h, expand_w = h + padding_td, w + padding_lr
    wnh, wnw = expand_h // ws, expand_w // ws
    n_tok = ws * ws
    m_tok = attn_ws * attn_ws

    x_pad = jnp.pad(x, ((0, 0), (0, 0), (pt, pd_), (pleft, pright)))

    # ---- deformable sampling coordinates (tiny mini-nets, JAX glue) ----------
    coords, sample_coords = _deformable_sample_coords(
        x_pad, params['w_off'], params['b_off'], params['w_scale'], params['b_scale'],
        b=b, num_heads=num_heads, ws=ws, attn_ws=attn_ws, h=h, w=w,
        expand_h=expand_h, expand_w=expand_w, wnh=wnh, wnw=wnw, learnable=learnable)

    # ---- qkv 1x1 conv (Pallas kernel #1, fused q/k/v matmul, bf16 operands) ---
    wqkv_t = params['wqkv'].T.astype(mm_dtype)                  # (C, 3C)
    bqkv2 = params['bqkv'].reshape(1, 3 * c).astype(jnp.float32)
    q_map, k_map, v_map = _qkv_projection(x, wqkv_t, bqkv2, out_dtype=mm_dtype,
                                          token_block=token_block)   # NHWC bf16

    # TODO(synk): the spatial pad + window-partition relayouts below are still XLA
    # passes over q/k/v; folding them into kernel index_maps needs Element-offset
    # BlockSpecs and is left for a later iteration.
    spad = ((0, 0), (pt, pd_), (pleft, pright), (0, 0))
    q_pad = jnp.pad(q_map, spad)
    k_pad = jnp.pad(k_map, spad)
    v_pad = jnp.pad(v_map, spad)

    # ---- deformable sampling of K/V (bilinear gather, plain JAX, NHWC) --------
    def _heads_last(t):
        t = t.reshape(b, expand_h, expand_w, num_heads, hd)
        return t.transpose(0, 3, 1, 2, 4).reshape(b * num_heads, expand_h, expand_w, hd)

    k_sel = _grid_sample_zeros_align(_heads_last(k_pad), sample_coords,
                                     channels_last=True).astype(mm_dtype)
    v_sel = _grid_sample_zeros_align(_heads_last(v_pad), sample_coords,
                                     channels_last=True).astype(mm_dtype)

    # ---- window partition -> head-major (H, nw, tokens, hd) -------------------
    qh = q_pad.reshape(b, wnh, ws, wnw, ws, num_heads, hd)
    qh = qh.transpose(5, 0, 1, 3, 2, 4, 6).reshape(num_heads, b * wnh * wnw, n_tok, hd)

    def _kv_windows(t):
        t = t.reshape(b, num_heads, wnh, attn_ws, wnw, attn_ws, hd)
        return t.transpose(1, 0, 2, 4, 3, 5, 6).reshape(num_heads, b * wnh * wnw,
                                                        m_tok, hd)

    kh = _kv_windows(k_sel)
    vh = _kv_windows(v_sel)

    # ---- pack G windows per 128-lane attention tile; choose TB so the grid has
    # >= min_grid_steps steps (>= 2 per v7x core); pad with zero windows ----------
    lane = 128
    G = max(1, lane // m_tok)
    nw = b * wnh * wnw
    ngroups = -(-nw // G)
    tb = max(1, min(window_block, -(-ngroups // min_grid_steps)))
    ngroups_p = -(-ngroups // tb) * tb
    nwp = ngroups_p * G
    if nwp != nw:
        pad_cfg = ((0, 0), (0, nwp - nw), (0, 0), (0, 0))
        qh = jnp.pad(qh, pad_cfg)
        kh = jnp.pad(kh, pad_cfg)
        vh = jnp.pad(vh, pad_cfg)
    gn, gm = G * n_tok, G * m_tok
    qg = qh.reshape(num_heads, ngroups_p, gn, hd)
    kg = kh.reshape(num_heads, ngroups_p, gm, hd)
    vg = vh.reshape(num_heads, ngroups_p, gm, hd)

    # ---- block-diagonal bias + mask (H, GN, GM), precomputed once in f32 ------
    if relative_pos_embedding:
        bias = _relative_position_bias(params['rel_pos_table'], attn_ws, num_heads)
    else:
        bias = jnp.zeros((num_heads, n_tok, m_tok), jnp.float32)
    eyeg = jnp.eye(G, dtype=jnp.float32)
    bias_diag = eyeg[None, :, None, :, None] * bias[:, None, :, None, :]
    off_mask = (1.0 - eyeg)[None, :, None, :, None] * jnp.float32(-1e9)
    bias_mask = (bias_diag + off_mask).reshape(num_heads, gn, gm)

    wproj_t = params['wproj'].T.astype(mm_dtype)                 # (C, C), head-major rows
    bproj2 = params['bproj'].reshape(1, c).astype(jnp.float32)

    grid = (ngroups_p // tb,)
    kernel = functools.partial(_deform_window_attn_kernel, scale=scale)
    out_g = pl.pallas_call(
        kernel,
        out_shape=jax.ShapeDtypeStruct((ngroups_p, gn, c), x.dtype),
        grid_spec=pltpu.PrefetchScalarGridSpec(
            num_scalar_prefetch=0,
            grid=grid,
            in_specs=[
                pl.BlockSpec((num_heads, tb, gn, hd), lambda i: (0, i, 0, 0)),
                pl.BlockSpec((num_heads, tb, gm, hd), lambda i: (0, i, 0, 0)),
                pl.BlockSpec((num_heads, tb, gm, hd), lambda i: (0, i, 0, 0)),
                pl.BlockSpec((num_heads, gn, gm), lambda i: (0, 0, 0)),
                pl.BlockSpec((c, c), lambda i: (0, 0)),
                pl.BlockSpec((1, c), lambda i: (0, 0)),
            ],
            out_specs=pl.BlockSpec((tb, gn, c), lambda i: (i, 0, 0)),
        ),
        compiler_params=pltpu.CompilerParams(
            dimension_semantics=("parallel",),
            vmem_limit_bytes=_kernel2_vmem_limit()),
    )(qg, kg, vg, bias_mask, wproj_t, bproj2)

    # ---- unpack windows, merge, crop, back to NCHW ----------------------------
    out_win = out_g.reshape(ngroups_p * G, n_tok, c)[:nw]
    out = out_win.reshape(b, wnh, wnw, ws, ws, c).transpose(0, 1, 3, 2, 4, 5)
    out = out.reshape(b, expand_h, expand_w, c)
    out = out[:, pt:pt + h, pleft:pleft + w, :].transpose(0, 3, 1, 2)
    return out, coords


# ============================================================================
# Pure-JAX reference (mirrors the PyTorch forward op-by-op, f32 HIGHEST)
# ============================================================================
def deformable_window_attention_reference(x, params, *, num_heads, window_size,
                                           attn_window_size=None, qk_scale=None,
                                           relative_pos_embedding=False,
                                           learnable=True):
    b, c, h, w = x.shape
    ws = window_size
    attn_ws = attn_window_size or ws
    hd = c // num_heads
    scale = qk_scale if qk_scale is not None else hd ** (-0.5)
    padding_td = (ws - h % ws) % ws
    padding_lr = (ws - w % ws) % ws
    pt, pd_ = padding_td // 2, padding_td - padding_td // 2
    pleft, pright = padding_lr // 2, padding_lr - padding_lr // 2
    expand_h, expand_w = h + padding_td, w + padding_lr
    wnh, wnw = expand_h // ws, expand_w // ws

    x_pad = jnp.pad(x, ((0, 0), (0, 0), (pt, pd_), (pleft, pright)))
    _, sample_coords = _deformable_sample_coords(
        x_pad, params['w_off'], params['b_off'], params['w_scale'], params['b_scale'],
        b=b, num_heads=num_heads, ws=ws, attn_ws=attn_ws, h=h, w=w,
        expand_h=expand_h, expand_w=expand_w, wnh=wnh, wnw=wnw, learnable=learnable)

    hp = jax.lax.Precision.HIGHEST
    qkv = jnp.einsum('oc,bchw->bohw', params['wqkv'], x, precision=hp) \
        + params['bqkv'][None, :, None, None]
    qkv = qkv.reshape(b, 3, num_heads, hd, h, w)
    qkv = jnp.pad(qkv, ((0, 0), (0, 0), (0, 0), (0, 0), (pt, pd_), (pleft, pright)))
    q, k, v = qkv[:, 0], qkv[:, 1], qkv[:, 2]
    k = k.reshape(b * num_heads, hd, expand_h, expand_w)
    v = v.reshape(b * num_heads, hd, expand_h, expand_w)
    k_sel = _grid_sample_zeros_align(k, sample_coords)
    v_sel = _grid_sample_zeros_align(v, sample_coords)

    def winq(t):
        t = t.reshape(b, num_heads, hd, wnh, ws, wnw, ws)
        return t.transpose(0, 3, 5, 1, 4, 6, 2).reshape(b * wnh * wnw, num_heads,
                                                        ws * ws, hd)

    def winkv(t):
        t = t.reshape(b, num_heads, hd, wnh, attn_ws, wnw, attn_ws)
        return t.transpose(0, 3, 5, 1, 4, 6, 2).reshape(b * wnh * wnw, num_heads,
                                                        attn_ws * attn_ws, hd)

    qw, kw, vw = winq(q), winkv(k_sel), winkv(v_sel)
    dots = jnp.einsum('whnd,whmd->whnm', qw, kw, precision=hp) * scale
    if relative_pos_embedding:
        dots = dots + _relative_position_bias(params['rel_pos_table'], attn_ws,
                                              num_heads)[None]
    attn = jax.nn.softmax(dots, axis=-1)
    out = jnp.einsum('whnm,whmd->whnd', attn, vw, precision=hp)
    out = out.reshape(b, wnh, wnw, num_heads, ws, ws, hd)
    out = out.transpose(0, 3, 6, 1, 4, 2, 5).reshape(b, c, expand_h, expand_w)
    out = out[:, :, pt:pt + h, pleft:pleft + w]
    out = jnp.einsum('oc,bchw->bohw', params['wproj'], out, precision=hp) \
        + params['bproj'][None, :, None, None]
    return out


# ============================================================================
# main
# ============================================================================
if __name__ == "__main__":
    # dim=128 (lane-dense channel axis), heads=4, ws=attn_ws=4 (so G=8 windows pack
    # into one 128-lane attention tile), 14x14 image (exercises the pad-to-window
    # path), batch=2, relative position bias + learnable deformable sampling.
    B, DIM, H, W = 2, 128, 14, 14
    NUM_HEADS, WS = 4, 4
    REL_POS = True

    key = jax.random.PRNGKey(0)
    ks = jax.random.split(key, 10)
    x = jax.random.normal(ks[0], (B, DIM, H, W), jnp.float32)

    params = {
        # qkv = nn.Conv2d(dim, 3*dim, 1, bias=True)
        'wqkv': jax.random.normal(ks[1], (3 * DIM, DIM), jnp.float32) * 0.05,
        'bqkv': jax.random.normal(ks[2], (3 * DIM,), jnp.float32) * 0.05,
        # proj = nn.Conv2d(dim, dim, 1)
        'wproj': jax.random.normal(ks[3], (DIM, DIM), jnp.float32) * 0.05,
        'bproj': jax.random.normal(ks[4], (DIM,), jnp.float32) * 0.05,
        # sampling_offsets / sampling_scales final 1x1 convs (dim -> 2*num_heads)
        'w_off': jax.random.normal(ks[5], (2 * NUM_HEADS, DIM), jnp.float32) * 0.05,
        'b_off': jax.random.normal(ks[6], (2 * NUM_HEADS,), jnp.float32) * 0.05,
        'w_scale': jax.random.normal(ks[7], (2 * NUM_HEADS, DIM), jnp.float32) * 0.05,
        'b_scale': jax.random.normal(ks[8], (2 * NUM_HEADS,), jnp.float32) * 0.05,
        # TODO(synk): plain normal init instead of trunc_normal_(std=0.02) (synthetic weights).
        'rel_pos_table': jax.random.normal(
            ks[9], ((2 * WS - 1) ** 2, NUM_HEADS), jnp.float32) * 0.02,
    }

    fwd = jax.jit(functools.partial(
        deformable_window_attention_forward,
        num_heads=NUM_HEADS, window_size=WS,
        relative_pos_embedding=REL_POS, learnable=True))
    out, coords = fwd(x, params)
    out = jax.block_until_ready(out)
    coords = jax.block_until_ready(coords)

    ref = deformable_window_attention_reference(
        x, params, num_heads=NUM_HEADS, window_size=WS,
        relative_pos_embedding=REL_POS, learnable=True)
    ref = jax.block_until_ready(ref)

    assert out.shape == (B, DIM, H, W), out.shape
    assert coords.shape == (B * NUM_HEADS, 2, 4, WS, 4, WS), coords.shape
    max_err = float(jnp.max(jnp.abs(out - ref)))
    # tolerance covers bf16 MXU operands (vs f32 HIGHEST reference) and the approx
    # (EUP) softmax reciprocal; structural bugs would show up as O(0.3+) errors.
    assert jnp.allclose(out, ref, atol=8e-2, rtol=8e-2), max_err
    print("KERNEL_OK")
</pallas_src>

<mosaic_0001>
module attributes {stable_mosaic.version = 11 : i64} {
  func.func @_qkv_proj_kernel(%arg0: i32, %arg1: memref<392x128xbf16, #tpu.memory_space<vmem>>, %arg2: memref<128x384xbf16, #tpu.memory_space<vmem>>, %arg3: memref<1x384xf32, #tpu.memory_space<vmem>>, %arg4: memref<392x128xbf16, #tpu.memory_space<vmem>>, %arg5: memref<392x128xbf16, #tpu.memory_space<vmem>>, %arg6: memref<392x128xbf16, #tpu.memory_space<vmem>>) attributes {dimension_semantics = [#tpu.dimension_semantics<parallel>], iteration_bounds = array<i64: 1>, scalar_prefetch = 0 : i64, scratch_operands = 0 : i64, tpu.core_type = #tpu.core_type<tc>, window_params = [{transform_indices = @transform_0, window_bounds = array<i64: 392, 128>}, {pipeline_mode = #tpu.pipeline_mode<synchronous>, transform_indices = @transform_1, window_bounds = array<i64: 128, 384>}, {pipeline_mode = #tpu.pipeline_mode<synchronous>, transform_indices = @transform_2, window_bounds = array<i64: 1, 384>}, {transform_indices = @transform_3, window_bounds = array<i64: 392, 128>}, {transform_indices = @transform_4, window_bounds = array<i64: 392, 128>}, {transform_indices = @transform_5, window_bounds = array<i64: 392, 128>}]} {
    %c0 = arith.constant 0 : index
    %c0_0 = arith.constant 0 : index
    %0 = vector.load %arg1[%c0, %c0_0] : memref<392x128xbf16, #tpu.memory_space<vmem>>, vector<392x128xbf16>
    %c0_1 = arith.constant 0 : index
    %c0_2 = arith.constant 0 : index
    %1 = vector.load %arg2[%c0_1, %c0_2] : memref<128x384xbf16, #tpu.memory_space<vmem>>, vector<128x384xbf16>
    %cst = arith.constant dense<0.000000e+00> : vector<392x384xf32>
    %2 = tpu.matmul %0, %1, %cst {dimension_numbers = #tpu.dot_dimension_numbers<[1], [0], [0], [1], [0, 0, 1, 1], [], []>} : vector<392x128xbf16>, vector<128x384xbf16>, vector<392x384xf32> -> vector<392x384xf32>
    %c0_3 = arith.constant 0 : index
    %c0_4 = arith.constant 0 : index
    %3 = vector.load %arg3[%c0_3, %c0_4] : memref<1x384xf32, #tpu.memory_space<vmem>>, vector<1x384xf32>
    %4 = vector.broadcast %3 : vector<1x384xf32> to vector<392x384xf32>
    %5 = arith.addf %2, %4 : vector<392x384xf32>
    %6 = vector.extract_strided_slice %5 {offsets = [0, 0], sizes = [392, 128], strides = [1, 1]} : vector<392x384xf32> to vector<392x128xf32>
    %7 = arith.truncf %6 : vector<392x128xf32> to vector<392x128xbf16>
    %c0_5 = arith.constant 0 : index
    %c0_6 = arith.constant 0 : index
    %8 = vector.load %arg4[%c0_5, %c0_6] : memref<392x128xbf16, #tpu.memory_space<vmem>>, vector<392x128xbf16>
    tpu.vector_store %arg4[%c0_5, %c0_6], %7 {strides = array<i32>} : memref<392x128xbf16, #tpu.memory_space<vmem>>, vector<392x128xbf16>,
    %9 = vector.extract_strided_slice %5 {offsets = [0, 128], sizes = [392, 128], strides = [1, 1]} : vector<392x384xf32> to vector<392x128xf32>
    %10 = arith.truncf %9 : vector<392x128xf32> to vector<392x128xbf16>
    %c0_7 = arith.constant 0 : index
    %c0_8 = arith.constant 0 : index
    %11 = vector.load %arg5[%c0_7, %c0_8] : memref<392x128xbf16, #tpu.memory_space<vmem>>, vector<392x128xbf16>
    tpu.vector_store %arg5[%c0_7, %c0_8], %10 {strides = array<i32>} : memref<392x128xbf16, #tpu.memory_space<vmem>>, vector<392x128xbf16>,
    %12 = vector.extract_strided_slice %5 {offsets = [0, 256], sizes = [392, 128], strides = [1, 1]} : vector<392x384xf32> to vector<392x128xf32>
    %13 = arith.truncf %12 : vector<392x128xf32> to vector<392x128xbf16>
    %c0_9 = arith.constant 0 : index
    %c0_10 = arith.constant 0 : index
    %14 = vector.load %arg6[%c0_9, %c0_10] : memref<392x128xbf16, #tpu.memory_space<vmem>>, vector<392x128xbf16>
    tpu.vector_store %arg6[%c0_9, %c0_10], %13 {strides = array<i32>} : memref<392x128xbf16, #tpu.memory_space<vmem>>, vector<392x128xbf16>,
    return
  }
  func.func @transform_0(%arg0: i32) -> (i32, i32) {
    %c0_i32 = arith.constant 0 : i32
    %c0_i32_0 = arith.constant 0 : i32
    return %arg0, %c0_i32 : i32, i32
  }
  func.func @transform_1(%arg0: i32) -> (i32, i32) {
    %c0_i32 = arith.constant 0 : i32
    %c0_i32_0 = arith.constant 0 : i32
    %c0_i32_1 = arith.constant 0 : i32
    return %c0_i32, %c0_i32_0 : i32, i32
  }
  func.func @transform_2(%arg0: i32) -> (i32, i32) {
    %c0_i32 = arith.constant 0 : i32
    %c0_i32_0 = arith.constant 0 : i32
    %c0_i32_1 = arith.constant 0 : i32
    return %c0_i32, %c0_i32_0 : i32, i32
  }
  func.func @transform_3(%arg0: i32) -> (i32, i32) {
    %c0_i32 = arith.constant 0 : i32
    %c0_i32_0 = arith.constant 0 : i32
    return %arg0, %c0_i32 : i32, i32
  }
  func.func @transform_4(%arg0: i32) -> (i32, i32) {
    %c0_i32 = arith.constant 0 : i32
    %c0_i32_0 = arith.constant 0 : i32
    return %arg0, %c0_i32 : i32, i32
  }
  func.func @transform_5(%arg0: i32) -> (i32, i32) {
    %c0_i32 = arith.constant 0 : i32
    %c0_i32_0 = arith.constant 0 : i32
    return %arg0, %c0_i32 : i32, i32
  }
}

module attributes {stable_mosaic.version = 11 : i64} {
  func.func @_deform_window_attn_kernel(%arg0: i32, %arg1: memref<4x1x128x32xbf16, #tpu.memory_space<vmem>>, %arg2: memref<4x1x128x32xbf16, #tpu.memory_space<vmem>>, %arg3: memref<4x1x128x32xbf16, #tpu.memory_space<vmem>>, %arg4: memref<4x128x128xf32, #tpu.memory_space<vmem>>, %arg5: memref<128x128xbf16, #tpu.memory_space<vmem>>, %arg6: memref<1x128xf32, #tpu.memory_space<vmem>>, %arg7: memref<1x128x128xf32, #tpu.memory_space<vmem>>) attributes {dimension_semantics = [#tpu.dimension_semantics<parallel>], iteration_bounds = array<i64: 4>, scalar_prefetch = 0 : i64, scratch_operands = 0 : i64, tpu.core_type = #tpu.core_type<tc>, window_params = [{transform_indices = @transform_0, window_bounds = array<i64: 4, 1, 128, 32>}, {transform_indices = @transform_1, window_bounds = array<i64: 4, 1, 128, 32>}, {transform_indices = @transform_2, window_bounds = array<i64: 4, 1, 128, 32>}, {pipeline_mode = #tpu.pipeline_mode<synchronous>, transform_indices = @transform_3, window_bounds = array<i64: 4, 128, 128>}, {pipeline_mode = #tpu.pipeline_mode<synchronous>, transform_indices = @transform_4, window_bounds = array<i64: 128, 128>}, {pipeline_mode = #tpu.pipeline_mode<synchronous>, transform_indices = @transform_5, window_bounds = array<i64: 1, 128>}, {transform_indices = @transform_6, window_bounds = array<i64: 1, 128, 128>}]} {
    %c0 = arith.constant 0 : index
    %c0_0 = arith.constant 0 : index
    %c0_1 = arith.constant 0 : index
    %c0_2 = arith.constant 0 : index
    %0 = vector.load %arg1[%c0, %c0_0, %c0_1, %c0_2] : memref<4x1x128x32xbf16, #tpu.memory_space<vmem>>, vector<4x1x128x32xbf16>
    %1 = vector.shape_cast %0 : vector<4x1x128x32xbf16> to vector<4x128x32xbf16>
    %c0_3 = arith.constant 0 : index
    %c0_4 = arith.constant 0 : index
    %c0_5 = arith.constant 0 : index
    %c0_6 = arith.constant 0 : index
    %2 = vector.load %arg2[%c0_3, %c0_4, %c0_5, %c0_6] : memref<4x1x128x32xbf16, #tpu.memory_space<vmem>>, vector<4x1x128x32xbf16>
    %3 = vector.shape_cast %2 : vector<4x1x128x32xbf16> to vector<4x128x32xbf16>
    %c0_7 = arith.constant 0 : index
    %c0_8 = arith.constant 0 : index
    %c0_9 = arith.constant 0 : index
    %c0_10 = arith.constant 0 : index
    %4 = vector.load %arg3[%c0_7, %c0_8, %c0_9, %c0_10] : memref<4x1x128x32xbf16, #tpu.memory_space<vmem>>, vector<4x1x128x32xbf16>
    %5 = vector.shape_cast %4 : vector<4x1x128x32xbf16> to vector<4x128x32xbf16>
    "tpu.trace_start"() <{level = 10 : i32, message = "gnd,gmd->gnm"}> : () -> ()
    %cst = arith.constant dense<0.000000e+00> : vector<4x128x128xf32>
    %6 = tpu.matmul %1, %3, %cst {dimension_numbers = #tpu.dot_dimension_numbers<[2], [2], [1], [1], [0, 0, 0, 1, 1, 1], [0], [0]>} : vector<4x128x32xbf16>, vector<4x128x32xbf16>, vector<4x128x128xf32> -> vector<4x128x128xf32>
    "tpu.trace_stop"() : () -> ()
    %cst_11 = arith.constant 0.176776692 : f32
    %7 = vector.broadcast %cst_11 : f32 to vector<4x128x128xf32>
    %8 = arith.mulf %6, %7 : vector<4x128x128xf32>
    %9 = vector.shape_cast %8 : vector<4x128x128xf32> to vector<4x1x128x128xf32>
    %c0_12 = arith.constant 0 : index
    %c0_13 = arith.constant 0 : index
    %c0_14 = arith.constant 0 : index
    %10 = vector.load %arg4[%c0_12, %c0_13, %c0_14] : memref<4x128x128xf32, #tpu.memory_space<vmem>>, vector<4x128x128xf32>
    %11 = vector.shape_cast %10 : vector<4x128x128xf32> to vector<4x1x128x128xf32>
    %12 = arith.addf %9, %11 : vector<4x1x128x128xf32>
    %cst_15 = arith.constant dense<0xFF800000> : vector<4x1x128xf32>
    %13 = vector.multi_reduction <maximumf>, %12, %cst_15 [3] : vector<4x1x128x128xf32> to vector<4x1x128xf32>
    %14 = vector.shape_cast %13 : vector<4x1x128xf32> to vector<4x1x128x1xf32>
    %15 = vector.broadcast %14 : vector<4x1x128x1xf32> to vector<4x1x128x128xf32>
    %16 = arith.subf %12, %15 : vector<4x1x128x128xf32>
    %17 = math.exp %16 : vector<4x1x128x128xf32>
    %cst_16 = arith.constant dense<0.000000e+00> : vector<4x1x128xf32>
    %18 = vector.multi_reduction <add>, %17, %cst_16 [3] : vector<4x1x128x128xf32> to vector<4x1x128xf32>
    %19 = vector.shape_cast %18 : vector<4x1x128xf32> to vector<4x1x128x1xf32>
    %20 = tpu.reciprocal %19 {approx = true} : vector<4x1x128x1xf32> -> vector<4x1x128x1xf32>
    %21 = vector.broadcast %20 : vector<4x1x128x1xf32> to vector<4x1x128x128xf32>
    %22 = arith.mulf %17, %21 : vector<4x1x128x128xf32>
    %23 = vector.shape_cast %22 : vector<4x1x128x128xf32> to vector<4x128x128xf32>
    %24 = arith.truncf %23 : vector<4x128x128xf32> to vector<4x128x128xbf16>
    "tpu.trace_start"() <{level = 10 : i32, message = "gnm,gmd->gnd"}> : () -> ()
    %cst_17 = arith.constant dense<0.000000e+00> : vector<4x128x32xf32>
    %25 = tpu.matmul %24, %5, %cst_17 {dimension_numbers = #tpu.dot_dimension_numbers<[2], [1], [1], [2], [0, 0, 0, 1, 1, 2], [0], [0]>} : vector<4x128x128xbf16>, vector<4x128x32xbf16>, vector<4x128x32xf32> -> vector<4x128x32xf32>
    "tpu.trace_stop"() : () -> ()
    %26 = arith.truncf %25 : vector<4x128x32xf32> to vector<4x128x32xbf16>
    %27 = vector.extract_strided_slice %26 {offsets = [0, 0, 0], sizes = [1, 128, 32], strides = [1, 1, 1]} : vector<4x128x32xbf16> to vector<1x128x32xbf16>
    %28 = vector.shape_cast %27 : vector<1x128x32xbf16> to vector<128x32xbf16>
    %29 = vector.extract_strided_slice %26 {offsets = [1, 0, 0], sizes = [1, 128, 32], strides = [1, 1, 1]} : vector<4x128x32xbf16> to vector<1x128x32xbf16>
    %30 = vector.shape_cast %29 : vector<1x128x32xbf16> to vector<128x32xbf16>
    %31 = vector.extract_strided_slice %26 {offsets = [2, 0, 0], sizes = [1, 128, 32], strides = [1, 1, 1]} : vector<4x128x32xbf16> to vector<1x128x32xbf16>
    %32 = vector.shape_cast %31 : vector<1x128x32xbf16> to vector<128x32xbf16>
    %33 = vector.extract_strided_slice %26 {offsets = [3, 0, 0], sizes = [1, 128, 32], strides = [1, 1, 1]} : vector<4x128x32xbf16> to vector<1x128x32xbf16>
    %34 = vector.shape_cast %33 : vector<1x128x32xbf16> to vector<128x32xbf16>
    %35 = tpu.concatenate %28, %30, %32, %34 in 1 : vector<128x32xbf16>, vector<128x32xbf16>, vector<128x32xbf16>, vector<128x32xbf16> -> vector<128x128xbf16>
    %c0_18 = arith.constant 0 : index
    %c0_19 = arith.constant 0 : index
    %36 = vector.load %arg5[%c0_18, %c0_19] : memref<128x128xbf16, #tpu.memory_space<vmem>>, vector<128x128xbf16>
    %cst_20 = arith.constant dense<0.000000e+00> : vector<128x128xf32>
    %37 = tpu.matmul %35, %36, %cst_20 {dimension_numbers = #tpu.dot_dimension_numbers<[1], [0], [0], [1], [0, 0, 1, 1], [], []>} : vector<128x128xbf16>, vector<128x128xbf16>, vector<128x128xf32> -> vector<128x128xf32>
    %c0_21 = arith.constant 0 : index
    %c0_22 = arith.constant 0 : index
    %38 = vector.load %arg6[%c0_21, %c0_22] : memref<1x128xf32, #tpu.memory_space<vmem>>, vector<1x128xf32>
    %39 = vector.broadcast %38 : vector<1x128xf32> to vector<128x128xf32>
    %40 = arith.addf %37, %39 : vector<128x128xf32>
    %41 = vector.shape_cast %40 : vector<128x128xf32> to vector<1x128x128xf32>
    %c0_23 = arith.constant 0 : index
    %c0_24 = arith.constant 0 : index
    %c0_25 = arith.constant 0 : index
    %42 = vector.load %arg7[%c0_23, %c0_24, %c0_25] : memref<1x128x128xf32, #tpu.memory_space<vmem>>, vector<1x128x128xf32>
    tpu.vector_store %arg7[%c0_23, %c0_24, %c0_25], %41 {strides = array<i32>} : memref<1x128x128xf32, #tpu.memory_space<vmem>>, vector<1x128x128xf32>,
    return
  }
  func.func @transform_0(%arg0: i32) -> (i32, i32, i32, i32) {
    %c0_i32 = arith.constant 0 : i32
    %c0_i32_0 = arith.constant 0 : i32
    %c0_i32_1 = arith.constant 0 : i32
    %c0_i32_2 = arith.constant 0 : i32
    return %c0_i32, %arg0, %c0_i32_0, %c0_i32_1 : i32, i32, i32, i32
  }
  func.func @transform_1(%arg0: i32) -> (i32, i32, i32, i32) {
    %c0_i32 = arith.constant 0 : i32
    %c0_i32_0 = arith.constant 0 : i32
    %c0_i32_1 = arith.constant 0 : i32
    %c0_i32_2 = arith.constant 0 : i32
    return %c0_i32, %arg0, %c0_i32_0, %c0_i32_1 : i32, i32, i32, i32
  }
  func.func @transform_2(%arg0: i32) -> (i32, i32, i32, i32) {
    %c0_i32 = arith.constant 0 : i32
    %c0_i32_0 = arith.constant 0 : i32
    %c0_i32_1 = arith.constant 0 : i32
    %c0_i32_2 = arith.constant 0 : i32
    return %c0_i32, %arg0, %c0_i32_0, %c0_i32_1 : i32, i32, i32, i32
  }
  func.func @transform_3(%arg0: i32) -> (i32, i32, i32) {
    %c0_i32 = arith.constant 0 : i32
    %c0_i32_0 = arith.constant 0 : i32
    %c0_i32_1 = arith.constant 0 : i32
    %c0_i32_2 = arith.constant 0 : i32
    return %c0_i32, %c0_i32_0, %c0_i32_1 : i32, i32, i32
  }
  func.func @transform_4(%arg0: i32) -> (i32, i32) {
    %c0_i32 = arith.constant 0 : i32
    %c0_i32_0 = arith.constant 0 : i32
    %c0_i32_1 = arith.constant 0 : i32
    return %c0_i32, %c0_i32_0 : i32, i32
  }
  func.func @transform_5(%arg0: i32) -> (i32, i32) {
    %c0_i32 = arith.constant 0 : i32
    %c0_i32_0 = arith.constant 0 : i32
    %c0_i32_1 = arith.constant 0 : i32
    return %c0_i32, %c0_i32_0 : i32, i32
  }
  func.func @transform_6(%arg0: i32) -> (i32, i32, i32) {
    %c0_i32 = arith.constant 0 : i32
    %c0_i32_0 = arith.constant 0 : i32
    %c0_i32_1 = arith.constant 0 : i32
    return %arg0, %c0_i32, %c0_i32_0 : i32, i32, i32
  }
}

</mosaic_0001>

<llo_original>
// kernel: tile.14
$region0: #{tile.14}
  #allocation0 [shape = 's32[1]{0}', space=sflag, size = 0x4, scoped, tag = 'scoped memory for tile.14']
  %s0 = inlined_call_operand.vmem [shape: f32[4], index: 0, kind: input, shape index: {}]
  %s1 = inlined_call_operand.vmem [shape: f32[4,1,1,4], index: 1, kind: output, shape index: {}]
  // Predicated region
  $region2: #{tile.14} parent=0 // pred_check
    _
  $region3: #{tile.14} parent=0 // pred_check_branch
    %3 = sbr.rel (0) target = $region5
  $region4: #{tile.14} parent=0 // pred_region
    _
  $region5: #{tile.14} parent=0 // pred_fallthru
    _
  %v4 = vld [vmem:[%s0] ss:$0 sm:$0xff]
  %5 = vst [vmem:[%s1] sm:$0xf] %v4

// kernel: tile.15
$region0: #{tile.15}
  %s0 = inlined_call_operand.vmem [shape: f32[4,1,1,4], index: 0, kind: input, shape index: {}]
  %s1 = inlined_call_operand.vmem [shape: f32[16], index: 1, kind: output, shape index: {}]
  $region1: #{tile.15} parent=0
    #allocation0 [shape = 'u8[4096]{0}', space=vmem, size = 0x1000, scoped, tag = 'scoped mem for output reshape']
    #allocation1 [shape = 'u8[4096]{0}', space=vmem, size = 0x1000, scoped, tag = 'scoped mem for input reshape']
    %s3 = sshll.u32 1, 4
    %s4 = ssub.s32 %s3, 1
    %v5 = vld [vmem:[%s0] sm:%s4]
    %6 = vst [vmem:[#allocation1] sm:%s4] %v5
    %v7 = vld [vmem:[#allocation1] sm:$0x1]
    %vm8 = vcmask 31744
    %9 = vst.msk [vmem:[#allocation0] sm:$0x1] %vm8, %v7
    %s10 = scalar_lea.vmem [#allocation1], 3
    %v11 = vld [vmem:[%s10] sm:$0x1]
    %12 = vrot.lane.b32.xlu0 %v11, 12
    %v13 = vpop.permute.xlu0 %12
    %vm14 = vcmask 130144
    %15 = vst.msk [vmem:[#allocation0] sm:$0x1] %vm14, %v13
    %s16 = scalar_lea.vmem [#allocation1], 2
    %v17 = vld [vmem:[%s16] sm:$0x1]
    %18 = vrot.lane.b32.xlu0 %v17, 8
    %v19 = vpop.permute.xlu0 %18
    %vm20 = vcmask 97344
    %21 = vst.msk [vmem:[#allocation0] sm:$0x1] %vm20, %v19
    %s22 = scalar_lea.vmem [#allocation1], 1
    %v23 = vld [vmem:[%s22] sm:$0x1]
    %24 = vrot.lane.b32.xlu0 %v23, 4
    %v25 = vpop.permute.xlu0 %24
    %vm26 = vcmask 64544
    %27 = vst.msk [vmem:[#allocation0] sm:$0x1] %vm26, %v25
    %s29 = sshll.u32 1, 1
    %s30 = ssub.s32 %s29, 1
    %v32 = vld [vmem:[#allocation0] sm:%s30]
    %s33 = sshll.u32 1, 1
    %s34 = ssub.s32 %s33, 1
    %35 = vst [vmem:[%s1] sm:%s34] %v32

// kernel: mul.100
$region0: #{mul.100}
  %s0 = inlined_call_operand.vmem [shape: f32[2,16,16], index: 0, kind: input, shape index: {}]
  %s1 = inlined_call_operand.vmem [shape: f32[2,4,4,4,4], index: 1, kind: output, shape index: {}]
  $region1: #{mul.100} parent=0
    #allocation0 [shape = 'u8[131072]{0}', space=vmem, size = 0x20000, scoped, tag = 'scoped mem for output reshape']
    %v2 = vld [vmem:[%s0] sm:$0xff]
    %vm3 = vcmask 31744
    %4 = vst.msk [vmem:[#allocation0] ss:$8 sm:$0xf] %vm3, %v2
    %5 = vst.msk [vmem:[#allocation0] ss:$8 sm:$0xf0] %vm3, %v2
    %s6 = scalar_lea.vmem %s0, 8
    %v7 = vld [vmem:[%s6] sm:$0xff]
    %vm8 = vcmask 31744
    %s9 = scalar_lea.vmem [#allocation0], 64
    %10 = vst.msk [vmem:[%s9] ss:$8 sm:$0xf] %vm8, %v7
    %s11 = scalar_lea.vmem [#allocation0], 64
    %12 = vst.msk [vmem:[%s11] ss:$8 sm:$0xf0] %vm8, %v7
    %s13 = scalar_lea.vmem %s0, 16
    %v14 = vld [vmem:[%s13] sm:$0xff]
    %vm15 = vcmask 31744
    %s16 = scalar_lea.vmem [#allocation0], 128
    %17 = vst.msk [vmem:[%s16] ss:$8 sm:$0xf] %vm15, %v14
    %s18 = scalar_lea.vmem [#allocation0], 128
    %19 = vst.msk [vmem:[%s18] ss:$8 sm:$0xf0] %vm15, %v14
    %s20 = scalar_lea.vmem %s0, 24
    %v21 = vld [vmem:[%s20] sm:$0xff]
    %vm22 = vcmask 31744
    %s23 = scalar_lea.vmem [#allocation0], 192
    %24 = vst.msk [vmem:[%s23] ss:$8 sm:$0xf] %vm22, %v21
    %s25 = scalar_lea.vmem [#allocation0], 192
    %26 = vst.msk [vmem:[%s25] ss:$8 sm:$0xf0] %vm22, %v21
    %v27 = vld [vmem:[%s0] sm:$0xff]
    %28 = vrot.lane.b32.xlu0 %v27, 124
    %v29 = vpop.permute.xlu0 %28
    %vm30 = vcmask 31744
    %s31 = scalar_lea.vmem [#allocation0], 1
    %32 = vst.msk [vmem:[%s31] ss:$8 sm:$0xf] %vm30, %v29
    %s33 = scalar_lea.vmem [#allocation0], 1
    %34 = vst.msk [vmem:[%s33] ss:$8 sm:$0xf0] %vm30, %v29
    %s35 = scalar_lea.vmem %s0, 8
    %v36 = vld [vmem:[%s35] sm:$0xff]
    %37 = vrot.lane.b32.xlu0 %v36, 124
    %v38 = vpop.permute.xlu0 %37
    %vm39 = vcmask 31744
    %s40 = scalar_lea.vmem [#allocation0], 65
    %41 = vst.msk [vmem:[%s40] ss:$8 sm:$0xf] %vm39, %v38
    %s42 = scalar_lea.vmem [#allocation0], 65
    %43 = vst.msk [vmem:[%s42] ss:$8 sm:$0xf0] %vm39, %v38
    %s44 = scalar_lea.vmem %s0, 16
    %v45 = vld [vmem:[%s44] sm:$0xff]
    %46 = vrot.lane.b32.xlu0 %v45, 124
    %v47 = vpop.permute.xlu0 %46
    %vm48 = vcmask 31744
    %s49 = scalar_lea.vmem [#allocation0], 129
    %50 = vst.msk [vmem:[%s49] ss:$8 sm:$0xf] %vm48, %v47
    %s51 = scalar_lea.vmem [#allocation0], 129
    %52 = vst.msk [vmem:[%s51] ss:$8 sm:$0xf0] %vm48, %v47
    %s53 = scalar_lea.vmem %s0, 24
    %v54 = vld [vmem:[%s53] sm:$0xff]
    %55 = vrot.lane.b32.xlu0 %v54, 124
    %v56 = vpop.permute.xlu0 %55
    %vm57 = vcmask 31744
    %s58 = scalar_lea.vmem [#allocation0], 193
    %59 = vst.msk [vmem:[%s58] ss:$8 sm:$0xf] %vm57, %v56
    %s60 = scalar_lea.vmem [#allocation0], 193
    %61 = vst.msk [vmem:[%s60] ss:$8 sm:$0xf0] %vm57, %v56
    %v62 = vld [vmem:[%s0] sm:$0xff]
    %63 = vrot.lane.b32.xlu0 %v62, 120
    %v64 = vpop.permute.xlu0 %63
    %vm65 = vcmask 31744
    %s66 = scalar_lea.vmem [#allocation0], 2
    %67 = vst.msk [vmem:[%s66] ss:$8 sm:$0xf] %vm65, %v64
    %s68 = scalar_lea.vmem [#allocation0], 2
    %69 = vst.msk [vmem:[%s68] ss:$8 sm:$0xf0] %vm65, %v64
    %s70 = scalar_lea.vmem %s0, 8
    %v71 = vld [vmem:[%s70] sm:$0xff]
    %72 = vrot.lane.b32.xlu0 %v71, 120
    %v73 = vpop.permute.xlu0 %72
    %vm74 = vcmask 31744
    %s75 = scalar_lea.vmem [#allocation0], 66
    %76 = vst.msk [vmem:[%s75] ss:$8 sm:$0xf] %vm74, %v73
    %s77 = scalar_lea.vmem [#allocation0], 66
    %78 = vst.msk [vmem:[%s77] ss:$8 sm:$0xf0] %vm74, %v73
    %s79 = scalar_lea.vmem %s0, 16
    %v80 = vld [vmem:[%s79] sm:$0xff]
    %81 = vrot.lane.b32.xlu0 %v80, 120
    %v82 = vpop.permute.xlu0 %81
    %vm83 = vcmask 31744
    %s84 = scalar_lea.vmem [#allocation0], 130
    %85 = vst.msk [vmem:[%s84] ss:$8 sm:$0xf] %vm83, %v82
    %s86 = scalar_lea.vmem [#allocation0], 130
    %87 = vst.msk [vmem:[%s86] ss:$8 sm:$0xf0] %vm83, %v82
    %s88 = scalar_lea.vmem %s0, 24
    %v89 = vld [vmem:[%s88] sm:$0xff]
    %90 = vrot.lane.b32.xlu0 %v89, 120
    %v91 = vpop.permute.xlu0 %90
    %vm92 = vcmask 31744
    %s93 = scalar_lea.vmem [#allocation0], 194
    %94 = vst.msk [vmem:[%s93] ss:$8 sm:$0xf] %vm92, %v91
    %s95 = scalar_lea.vmem [#allocation0], 194
    %96 = vst.msk [vmem:[%s95] ss:$8 sm:$0xf0] %vm92, %v91
    %v97 = vld [vmem:[%s0] sm:$0xff]
    %98 = vrot.lane.b32.xlu0 %v97, 116
    %v99 = vpop.permute.xlu0 %98
    %vm100 = vcmask 31744
    %s101 = scalar_lea.vmem [#allocation0], 3
    %102 = vst.msk [vmem:[%s101] ss:$8 sm:$0xf] %vm100, %v99
    %s103 = scalar_lea.vmem [#allocation0], 3
    %104 = vst.msk [vmem:[%s103] ss:$8 sm:$0xf0] %vm100, %v99
    %s105 = scalar_lea.vmem %s0, 8
    %v106 = vld [vmem:[%s105] sm:$0xff]
    %107 = vrot.lane.b32.xlu0 %v106, 116
    %v108 = vpop.permute.xlu0 %107
    %vm109 = vcmask 31744
    %s110 = scalar_lea.vmem [#allocation0], 67
    %111 = vst.msk [vmem:[%s110] ss:$8 sm:$0xf] %vm109, %v108
    %s112 = scalar_lea.vmem [#allocation0], 67
    %113 = vst.msk [vmem:[%s112] ss:$8 sm:$0xf0] %vm109, %v108
    %s114 = scalar_lea.vmem %s0, 16
    %v115 = vld [vmem:[%s114] sm:$0xff]
    %116 = vrot.lane.b32.xlu0 %v115, 116
    %v117 = vpop.permute.xlu0 %116
    %vm118 = vcmask 31744
    %s119 = scalar_lea.vmem [#allocation0], 131
    %120 = vst.msk [vmem:[%s119] ss:$8 sm:$0xf] %vm118, %v117
    %s121 = scalar_lea.vmem [#allocation0], 131
    %122 = vst.msk [vmem:[%s121] ss:$8 sm:$0xf0] %vm118, %v117
    %s123 = scalar_lea.vmem %s0, 24
    %v124 = vld [vmem:[%s123] sm:$0xff]
    %125 = vrot.lane.b32.xlu0 %v124, 116
    %v126 = vpop.permute.xlu0 %125
    %vm127 = vcmask 31744
    %s128 = scalar_lea.vmem [#allocation0], 195
    %129 = vst.msk [vmem:[%s128] ss:$8 sm:$0xf] %vm127, %v126
    %s130 = scalar_lea.vmem [#allocation0], 195
    %131 = vst.msk [vmem:[%s130] ss:$8 sm:$0xf0] %vm127, %v126
    %s133 = sshll.u32 1, 4
    %s134 = ssub.s32 %s133, 1
    %v136 = vld [vmem:[#allocation0] sm:%s134]
    %s137 = sshll.u32 1, 4
    %s138 = ssub.s32 %s137, 1
    %139 = vst [vmem:[%s1] sm:%s138] %v136
    %s140 = scalar_lea.vmem [#allocation0], 8
    %v141 = vld [vmem:[%s140] sm:%s134]
    %s142 = sshll.u32 1, 4
    %s143 = ssub.s32 %s142, 1
    %s144 = scalar_lea.vmem %s1, 4
    %145 = vst [vmem:[%s144] sm:%s143] %v141
    %s146 = scalar_lea.vmem [#allocation0], 16
    %v147 = vld [vmem:[%s146] sm:%s134]
    %s148 = sshll.u32 1, 4
    %s149 = ssub.s32 %s148, 1
    %s150 = smul.addr 4, 2
    %s151 = scalar_lea.vmem %s1, %s150
    %152 = vst [vmem:[%s151] sm:%s149] %v147
    %s153 = scalar_lea.vmem [#allocation0], 24
    %v154 = vld [vmem:[%s153] sm:%s134]
    %s155 = sshll.u32 1, 4
    %s156 = ssub.s32 %s155, 1
    %s157 = smul.addr 4, 3
    %s158 = scalar_lea.vmem %s1, %s157
    %159 = vst [vmem:[%s158] sm:%s156] %v154
    %s160 = scalar_lea.vmem [#allocation0], 32
    %v161 = vld [vmem:[%s160] sm:%s134]
    %s162 = sshll.u32 1, 4
    %s163 = ssub.s32 %s162, 1
    %s164 = smul.addr 4, 4
    %s165 = scalar_lea.vmem %s1, %s164
    %166 = vst [vmem:[%s165] sm:%s163] %v161
    %s167 = scalar_lea.vmem [#allocation0], 40
    %v168 = vld [vmem:[%s167] sm:%s134]
    %s169 = sshll.u32 1, 4
    %s170 = ssub.s32 %s169, 1
    %s171 = smul.addr 4, 5
    %s172 = scalar_lea.vmem %s1, %s171
    %173 = vst [vmem:[%s172] sm:%s170] %v168
    %s174 = scalar_lea.vmem [#allocation0], 48
    %v175 = vld [vmem:[%s174] sm:%s134]
    %s176 = sshll.u32 1, 4
    %s177 = ssub.s32 %s176, 1
    %s178 = smul.addr 4, 6
    %s179 = scalar_lea.vmem %s1, %s178
    %180 = vst [vmem:[%s179] sm:%s177] %v175
    %s181 = scalar_lea.vmem [#allocation0], 56
    %v182 = vld [vmem:[%s181] sm:%s134]
    %s183 = sshll.u32 1, 4
    %s184 = ssub.s32 %s183, 1
    %s185 = smul.addr 4, 7
    %s186 = scalar_lea.vmem %s1, %s185
    %187 = vst [vmem:[%s186] sm:%s184] %v182
    %s188 = scalar_lea.vmem [#allocation0], 64
    %v189 = vld [vmem:[%s188] sm:%s134]
    %s190 = sshll.u32 1, 4
    %s191 = ssub.s32 %s190, 1
    %s192 = smul.addr 4, 8
    %s193 = scalar_lea.vmem %s1, %s192
    %194 = vst [vmem:[%s193] sm:%s191] %v189
    %s195 = scalar_lea.vmem [#allocation0], 72
    %v196 = vld [vmem:[%s195] sm:%s134]
    %s197 = sshll.u32 1, 4
    %s198 = ssub.s32 %s197, 1
    %s199 = smul.addr 4, 9
    %s200 = scalar_lea.vmem %s1, %s199
    %201 = vst [vmem:[%s200] sm:%s198] %v196
    %s202 = scalar_lea.vmem [#allocation0], 80
    %v203 = vld [vmem:[%s202] sm:%s134]
    %s204 = sshll.u32 1, 4
    %s205 = ssub.s32 %s204, 1
    %s206 = smul.addr 4, 10
    %s207 = scalar_lea.vmem %s1, %s206
    %208 = vst [vmem:[%s207] sm:%s205] %v203
    %s209 = scalar_lea.vmem [#allocation0], 88
    %v210 = vld [vmem:[%s209] sm:%s134]
    %s211 = sshll.u32 1, 4
    %s212 = ssub.s32 %s211, 1
    %s213 = smul.addr 4, 11
    %s214 = scalar_lea.vmem %s1, %s213
    %215 = vst [vmem:[%s214] sm:%s212] %v210
    %s216 = scalar_lea.vmem [#allocation0], 96
    %v217 = vld [vmem:[%s216] sm:%s134]
    %s218 = sshll.u32 1, 4
    %s219 = ssub.s32 %s218, 1
    %s220 = smul.addr 4, 12
    %s221 = scalar_lea.vmem %s1, %s220
    %222 = vst [vmem:[%s221] sm:%s219] %v217
    %s223 = scalar_lea.vmem [#allocation0], 104
    %v224 = vld [vmem:[%s223] sm:%s134]
    %s225 = sshll.u32 1, 4
    %s226 = ssub.s32 %s225, 1
    %s227 = smul.addr 4, 13
    %s228 = scalar_lea.vmem %s1, %s227
    %229 = vst [vmem:[%s228] sm:%s226] %v224
    %s230 = scalar_lea.vmem [#allocation0], 112
    %v231 = vld [vmem:[%s230] sm:%s134]
    %s232 = sshll.u32 1, 4
    %s233 = ssub.s32 %s232, 1
    %s234 = smul.addr 4, 14
    %s235 = scalar_lea.vmem %s1, %s234
    %236 = vst [vmem:[%s235] sm:%s233] %v231
    %s237 = scalar_lea.vmem [#allocation0], 120
    %v238 = vld [vmem:[%s237] sm:%s134]
    %s239 = sshll.u32 1, 4
    %s240 = ssub.s32 %s239, 1
    %s241 = smul.addr 4, 15
    %s242 = scalar_lea.vmem %s1, %s241
    %243 = vst [vmem:[%s242] sm:%s240] %v238
    %s244 = scalar_lea.vmem [#allocation0], 128
    %v245 = vld [vmem:[%s244] sm:%s134]
    %s246 = sshll.u32 1, 4
    %s247 = ssub.s32 %s246, 1
    %s248 = smul.addr 4, 16
    %s249 = scalar_lea.vmem %s1, %s248
    %250 = vst [vmem:[%s249] sm:%s247] %v245
    %s251 = scalar_lea.vmem [#allocation0], 136
    %v252 = vld [vmem:[%s251] sm:%s134]
    %s253 = sshll.u32 1, 4
    %s254 = ssub.s32 %s253, 1
    %s255 = smul.addr 4, 17
    %s256 = scalar_lea.vmem %s1, %s255
    %257 = vst [vmem:[%s256] sm:%s254] %v252
    %s258 = scalar_lea.vmem [#allocation0], 144
    %v259 = vld [vmem:[%s258] sm:%s134]
    %s260 = sshll.u32 1, 4
    %s261 = ssub.s32 %s260, 1
    %s262 = smul.addr 4, 18
    %s263 = scalar_lea.vmem %s1, %s262
    %264 = vst [vmem:[%s263] sm:%s261] %v259
    %s265 = scalar_lea.vmem [#allocation0], 152
    %v266 = vld [vmem:[%s265] sm:%s134]
    %s267 = sshll.u32 1, 4
    %s268 = ssub.s32 %s267, 1
    %s269 = smul.addr 4, 19
    %s270 = scalar_lea.vmem %s1, %s269
    %271 = vst [vmem:[%s270] sm:%s268] %v266
    %s272 = scalar_lea.vmem [#allocation0], 160
    %v273 = vld [vmem:[%s272] sm:%s134]
    %s274 = sshll.u32 1, 4
    %s275 = ssub.s32 %s274, 1
    %s276 = smul.addr 4, 20
    %s277 = scalar_lea.vmem %s1, %s276
    %278 = vst [vmem:[%s277] sm:%s275] %v273
    %s279 = scalar_lea.vmem [#allocation0], 168
    %v280 = vld [vmem:[%s279] sm:%s134]
    %s281 = sshll.u32 1, 4
    %s282 = ssub.s32 %s281, 1
    %s283 = smul.addr 4, 21
    %s284 = scalar_lea.vmem %s1, %s283
    %285 = vst [vmem:[%s284] sm:%s282] %v280
    %s286 = scalar_lea.vmem [#allocation0], 176
    %v287 = vld [vmem:[%s286] sm:%s134]
    %s288 = sshll.u32 1, 4
    %s289 = ssub.s32 %s288, 1
    %s290 = smul.addr 4, 22
    %s291 = scalar_lea.vmem %s1, %s290
    %292 = vst [vmem:[%s291] sm:%s289] %v287
    %s293 = scalar_lea.vmem [#allocation0], 184
    %v294 = vld [vmem:[%s293] sm:%s134]
    %s295 = sshll.u32 1, 4
    %s296 = ssub.s32 %s295, 1
    %s297 = smul.addr 4, 23
    %s298 = scalar_lea.vmem %s1, %s297
    %299 = vst [vmem:[%s298] sm:%s296] %v294
    %s300 = scalar_lea.vmem [#allocation0], 192
    %v301 = vld [vmem:[%s300] sm:%s134]
    %s302 = sshll.u32 1, 4
    %s303 = ssub.s32 %s302, 1
    %s304 = smul.addr 4, 24
    %s305 = scalar_lea.vmem %s1, %s304
    %306 = vst [vmem:[%s305] sm:%s303] %v301
    %s307 = scalar_lea.vmem [#allocation0], 200
    %v308 = vld [vmem:[%s307] sm:%s134]
    %s309 = sshll.u32 1, 4
    %s310 = ssub.s32 %s309, 1
    %s311 = smul.addr 4, 25
    %s312 = scalar_lea.vmem %s1, %s311
    %313 = vst [vmem:[%s312] sm:%s310] %v308
    %s314 = scalar_lea.vmem [#allocation0], 208
    %v315 = vld [vmem:[%s314] sm:%s134]
    %s316 = sshll.u32 1, 4
    %s317 = ssub.s32 %s316, 1
    %s318 = smul.addr 4, 26
    %s319 = scalar_lea.vmem %s1, %s318
    %320 = vst [vmem:[%s319] sm:%s317] %v315
    %s321 = scalar_lea.vmem [#allocation0], 216
    %v322 = vld [vmem:[%s321] sm:%s134]
    %s323 = sshll.u32 1, 4
    %s324 = ssub.s32 %s323, 1
    %s325 = smul.addr 4, 27
    %s326 = scalar_lea.vmem %s1, %s325
    %327 = vst [vmem:[%s326] sm:%s324] %v322
    %s328 = scalar_lea.vmem [#allocation0], 224
    %v329 = vld [vmem:[%s328] sm:%s134]
    %s330 = sshll.u32 1, 4
    %s331 = ssub.s32 %s330, 1
    %s332 = smul.addr 4, 28
    %s333 = scalar_lea.vmem %s1, %s332
    %334 = vst [vmem:[%s333] sm:%s331] %v329
    %s335 = scalar_lea.vmem [#allocation0], 232
    %v336 = vld [vmem:[%s335] sm:%s134]
    %s337 = sshll.u32 1, 4
    %s338 = ssub.s32 %s337, 1
    %s339 = smul.addr 4, 29
    %s340 = scalar_lea.vmem %s1, %s339
    %341 = vst [vmem:[%s340] sm:%s338] %v336
    %s342 = scalar_lea.vmem [#allocation0], 240
    %v343 = vld [vmem:[%s342] sm:%s134]
    %s344 = sshll.u32 1, 4
    %s345 = ssub.s32 %s344, 1
    %s346 = smul.addr 4, 30
    %s347 = scalar_lea.vmem %s1, %s346
    %348 = vst [vmem:[%s347] sm:%s345] %v343
    %s349 = scalar_lea.vmem [#allocation0], 248
    %v350 = vld [vmem:[%s349] sm:%s134]
    %s351 = sshll.u32 1, 4
    %s352 = ssub.s32 %s351, 1
    %s353 = smul.addr 4, 31
    %s354 = scalar_lea.vmem %s1, %s353
    %355 = vst [vmem:[%s354] sm:%s352] %v350

// kernel: deformable_window_attention_forward.2
$region0: #{deformable_window_attention_forward.2}
  #allocation0 [shape = 'u32[]', space=smem, size = 0x4, offset = 0x4, fixed_abs, tag = 'smem constant byte address 0x4 - core index']
  #allocation1 [shape = 'u32[144,128]{1,0:T(1,128)}', space=vmem, size = 0x12000, scoped, tag = 'internal scratch']
  %s0 = inlined_call_operand.vmem [shape: bf16[392,128], index: 0, kind: input, shape index: {}]
  %s1 = inlined_call_operand.vmem [shape: bf16[128,384], index: 1, kind: input, shape index: {}]
  %s2 = inlined_call_operand.vmem [shape: f32[1,384], index: 2, kind: input, shape index: {}]
  %s3 = inlined_call_operand.vmem [shape: bf16[392,128], index: 3, kind: output, shape index: {0}]
  %s4 = inlined_call_operand.vmem [shape: bf16[392,128], index: 4, kind: output, shape index: {1}]
  %s5 = inlined_call_operand.vmem [shape: bf16[392,128], index: 5, kind: output, shape index: {2}]
  %6 = xla_tuple %s3, %s4, %s5
  %s7 = sld [smem:[#allocation0]]
  $region38: #{deformable_window_attention_forward.2} parent=0
    _
  %s9 = ssub.s32 1, %s7
  %s10 = scalar_select 0, %s9, %s7
  // Predicated region
  $region2: #{deformable_window_attention_forward.2} parent=0 // pred_check
    _
  $region3: #{deformable_window_attention_forward.2} parent=0 // pred_check_branch
    %12 = sbr.rel (0) target = $region5
  $region4: #{deformable_window_attention_forward.2} parent=0 // pred_region
    _
  $region5: #{deformable_window_attention_forward.2} parent=0 // pred_fallthru
    _
  // Predicated region
  $region6: #{deformable_window_attention_forward.2} parent=0 // pred_check
    _
  $region7: #{deformable_window_attention_forward.2} parent=0 // pred_check_branch
    %14 = sbr.rel (0) target = $region9
  $region8: #{deformable_window_attention_forward.2} parent=0 // pred_region
    _
  $region9: #{deformable_window_attention_forward.2} parent=0 // pred_fallthru
    _
  // Predicated region
  $region10: #{deformable_window_attention_forward.2} parent=0 // pred_check
    _
  $region11: #{deformable_window_attention_forward.2} parent=0 // pred_check_branch
    %16 = sbr.rel (0) target = $region13
  $region12: #{deformable_window_attention_forward.2} parent=0 // pred_region
    _
  $region13: #{deformable_window_attention_forward.2} parent=0 // pred_fallthru
    _
  %v18 = vld [vmem:[%s0] sm:$0xf]
  %v19 = vld [vmem:[%s0 + $0x4] sm:$0xf]
  %v20 = vld [vmem:[%s0 + $0x8] sm:$0xf]
  %v21 = vld [vmem:[%s0 + $0xc] sm:$0xf]
  %v22 = vld [vmem:[%s0 + $0x10] sm:$0xf]
  %v23 = vld [vmem:[%s0 + $0x14] sm:$0xf]
  %v24 = vld [vmem:[%s0 + $0x18] sm:$0xf]
  %v25 = vld [vmem:[%s0 + $0x1c] sm:$0xf]
  %v26 = vld [vmem:[%s0 + $0x20] sm:$0xf]
  %v27 = vld [vmem:[%s0 + $0x24] sm:$0xf]
  %v28 = vld [vmem:[%s0 + $0x28] sm:$0xf]
  %v29 = vld [vmem:[%s0 + $0x2c] sm:$0xf]
  %v30 = vld [vmem:[%s0 + $0x30] sm:$0xf]
  %v31 = vld [vmem:[%s0 + $0x34] sm:$0xf]
  %v32 = vld [vmem:[%s0 + $0x38] sm:$0xf]
  %v33 = vld [vmem:[%s0 + $0x3c] sm:$0xf]
  %v34 = vld [vmem:[%s0 + $0x40] sm:$0xf]
  %v35 = vld [vmem:[%s0 + $0x44] sm:$0xf]
  %v36 = vld [vmem:[%s0 + $0x48] sm:$0xf]
  %v37 = vld [vmem:[%s0 + $0x4c] sm:$0xf]
  %v38 = vld [vmem:[%s0 + $0x50] sm:$0xf]
  %v39 = vld [vmem:[%s0 + $0x54] sm:$0xf]
  %v40 = vld [vmem:[%s0 + $0x58] sm:$0xf]
  %v41 = vld [vmem:[%s0 + $0x5c] sm:$0xf]
  %v42 = vld [vmem:[%s0 + $0x60] sm:$0xf]
  %v43 = vld [vmem:[%s0 + $0x64] sm:$0xf]
  %v44 = vld [vmem:[%s0 + $0x68] sm:$0xf]
  %v45 = vld [vmem:[%s0 + $0x6c] sm:$0xf]
  %v46 = vld [vmem:[%s0 + $0x70] sm:$0xf]
  %v47 = vld [vmem:[%s0 + $0x74] sm:$0xf]
  %v48 = vld [vmem:[%s0 + $0x78] sm:$0xf]
  %v49 = vld [vmem:[%s0 + $0x7c] sm:$0xf]
  %v50 = vld [vmem:[%s0 + $0x80] sm:$0xf]
  %v51 = vld [vmem:[%s0 + $0x84] sm:$0xf]
  %v52 = vld [vmem:[%s0 + $0x88] sm:$0xf]
  %v53 = vld [vmem:[%s0 + $0x8c] sm:$0xf]
  %v54 = vld [vmem:[%s0 + $0x90] sm:$0xf]
  %v55 = vld [vmem:[%s0 + $0x94] sm:$0xf]
  %v56 = vld [vmem:[%s0 + $0x98] sm:$0xf]
  %v57 = vld [vmem:[%s0 + $0x9c] sm:$0xf]
  %v58 = vld [vmem:[%s0 + $0xa0] sm:$0xf]
  %v59 = vld [vmem:[%s0 + $0xa4] sm:$0xf]
  %v60 = vld [vmem:[%s0 + $0xa8] sm:$0xf]
  %v61 = vld [vmem:[%s0 + $0xac] sm:$0xf]
  %v62 = vld [vmem:[%s0 + $0xb0] sm:$0xf]
  %v63 = vld [vmem:[%s0 + $0xb4] sm:$0xf]
  %v64 = vld [vmem:[%s0 + $0xb8] sm:$0xf]
  %v65 = vld [vmem:[%s0 + $0xbc] sm:$0xf]
  %v66 = vld [vmem:[%s0 + $0xc0] sm:$0xf]
  %v67 = vld [vmem:[%s1] sm:$0xff]
  %v68 = vld [vmem:[%s1 + $0x8] sm:$0xf]
  %v69 = vld [vmem:[%s1 + $0xc] sm:$0xff]
  %v70 = vld [vmem:[%s1 + $0x14] sm:$0xf]
  %v71 = vld [vmem:[%s1 + $0x18] sm:$0xff]
  %v72 = vld [vmem:[%s1 + $0x20] sm:$0xf]
  %v73 = vld [vmem:[%s1 + $0x24] sm:$0xff]
  %v74 = vld [vmem:[%s1 + $0x2c] sm:$0xf]
  %v75 = vld [vmem:[%s1 + $0x30] sm:$0xff]
  %v76 = vld [vmem:[%s1 + $0x38] sm:$0xf]
  %v77 = vld [vmem:[%s1 + $0x3c] sm:$0xff]
  %v78 = vld [vmem:[%s1 + $0x44] sm:$0xf]
  %v79 = vld [vmem:[%s1 + $0x48] sm:$0xff]
  %v80 = vld [vmem:[%s1 + $0x50] sm:$0xf]
  %v81 = vld [vmem:[%s1 + $0x54] sm:$0xff]
  %v82 = vld [vmem:[%s1 + $0x5c] sm:$0xf]
  %v83 = vld [vmem:[%s1 + $0x60] sm:$0xff]
  %v84 = vld [vmem:[%s1 + $0x68] sm:$0xf]
  %v85 = vld [vmem:[%s1 + $0x6c] sm:$0xff]
  %v86 = vld [vmem:[%s1 + $0x74] sm:$0xf]
  %v87 = vld [vmem:[%s1 + $0x78] sm:$0xff]
  %v88 = vld [vmem:[%s1 + $0x80] sm:$0xf]
  %v89 = vld [vmem:[%s1 + $0x84] sm:$0xff]
  %v90 = vld [vmem:[%s1 + $0x8c] sm:$0xf]
  %v91 = vld [vmem:[%s1 + $0x90] sm:$0xff]
  %v92 = vld [vmem:[%s1 + $0x98] sm:$0xf]
  %v93 = vld [vmem:[%s1 + $0x9c] sm:$0xff]
  %v94 = vld [vmem:[%s1 + $0xa4] sm:$0xf]
  %v95 = vld [vmem:[%s1 + $0xa8] sm:$0xff]
  %v96 = vld [vmem:[%s1 + $0xb0] sm:$0xf]
  %v97 = vld [vmem:[%s1 + $0xb4] sm:$0xff]
  %v98 = vld [vmem:[%s1 + $0xbc] sm:$0xf]
  %v99 = vld [vmem:[%s2] sm:$0x7]
  %v101 = vlaneseq
  %v102 = vshrl.u32 %v101, 7
  %v103 = vsub.s32 0, %v102
  %v104 = vrot.slane %v99, %v103
  %v105 = vlaneseq
  %v106 = vshrl.u32 %v105, 7
  %v107 = vsub.s32 1, %v106
  %v108 = vrot.slane %v99, %v107
  %v109 = vlaneseq
  %v110 = vshrl.u32 %v109, 7
  %v111 = vsub.s32 2, %v110
  %v112 = vrot.slane %v99, %v111
  %v165 = vunpack.c.l.b16 %v18
  %v166 = vunpack.c.l.b16 %v19
  %v167 = vunpack.c.l.b16 %v20
  %v168 = vunpack.c.l.b16 %v21
  %v169 = vunpack.c.l.b16 %v22
  %v170 = vunpack.c.l.b16 %v23
  %v171 = vunpack.c.l.b16 %v24
  %v172 = vunpack.c.l.b16 %v25
  %v173 = vunpack.c.l.b16 %v26
  %v174 = vunpack.c.l.b16 %v27
  %v175 = vunpack.c.l.b16 %v28
  %v176 = vunpack.c.l.b16 %v29
  %v177 = vunpack.c.l.b16 %v30
  %v178 = vunpack.c.l.b16 %v31
  %v179 = vunpack.c.l.b16 %v32
  %v180 = vunpack.c.l.b16 %v33
  %v181 = vunpack.c.l.b16 %v34
  %v182 = vunpack.c.l.b16 %v35
  %v183 = vunpack.c.l.b16 %v36
  %v184 = vunpack.c.l.b16 %v37
  %v185 = vunpack.c.l.b16 %v38
  %v186 = vunpack.c.l.b16 %v39
  %v187 = vunpack.c.l.b16 %v40
  %v188 = vunpack.c.l.b16 %v41
  %v189 = vunpack.c.l.b16 %v42
  %v190 = vunpack.c.l.b16 %v43
  %v191 = vunpack.c.l.b16 %v44
  %v192 = vunpack.c.l.b16 %v45
  %v193 = vunpack.c.l.b16 %v46
  %v194 = vunpack.c.l.b16 %v47
  %v195 = vunpack.c.l.b16 %v48
  %v196 = vunpack.c.l.b16 %v49
  %v197 = vunpack.c.l.b16 %v50
  %v198 = vunpack.c.l.b16 %v51
  %v199 = vunpack.c.l.b16 %v52
  %v200 = vunpack.c.l.b16 %v53
  %v201 = vunpack.c.l.b16 %v54
  %v202 = vunpack.c.l.b16 %v55
  %v203 = vunpack.c.l.b16 %v56
  %v204 = vunpack.c.l.b16 %v57
  %v205 = vunpack.c.l.b16 %v58
  %v206 = vunpack.c.l.b16 %v59
  %v207 = vunpack.c.l.b16 %v60
  %v208 = vunpack.c.l.b16 %v61
  %v209 = vunpack.c.l.b16 %v62
  %v210 = vunpack.c.l.b16 %v63
  %v211 = vunpack.c.l.b16 %v64
  %v212 = vunpack.c.l.b16 %v65
  %v213 = vunpack.c.l.b16 %v66
  %v214 = vpack.c.b16 %v166, %v165
  %v215 = vpack.c.b16 %v168, %v167
  %v216 = vpack.c.b16 %v170, %v169
  %v217 = vpack.c.b16 %v172, %v171
  %v218 = vpack.c.b16 %v174, %v173
  %v219 = vpack.c.b16 %v176, %v175
  %v220 = vpack.c.b16 %v178, %v177
  %v221 = vpack.c.b16 %v180, %v179
  %v222 = vpack.c.b16 %v182, %v181
  %v223 = vpack.c.b16 %v184, %v183
  %v224 = vpack.c.b16 %v186, %v185
  %v225 = vpack.c.b16 %v188, %v187
  %v226 = vpack.c.b16 %v190, %v189
  %v227 = vpack.c.b16 %v192, %v191
  %v228 = vpack.c.b16 %v194, %v193
  %v229 = vpack.c.b16 %v196, %v195
  %v230 = vpack.c.b16 %v198, %v197
  %v231 = vpack.c.b16 %v200, %v199
  %v232 = vpack.c.b16 %v202, %v201
  %v233 = vpack.c.b16 %v204, %v203
  %v234 = vpack.c.b16 %v206, %v205
  %v235 = vpack.c.b16 %v208, %v207
  %v236 = vpack.c.b16 %v210, %v209
  %v237 = vpack.c.b16 %v212, %v211
  %v238 = vpack.c.b16 %v213, %v213
  %v296 = vunpack.c.l.b16 %v67
  %v297 = vunpack.c.h.b16 %v67
  %v298 = vunpack.c.l.b16 %v68
  %v299 = vunpack.c.l.b16 %v69
  %v300 = vunpack.c.h.b16 %v69
  %v301 = vunpack.c.l.b16 %v70
  %v302 = vunpack.c.l.b16 %v71
  %v303 = vunpack.c.h.b16 %v71
  %v304 = vunpack.c.l.b16 %v72
  %v305 = vunpack.c.l.b16 %v73
  %v306 = vunpack.c.h.b16 %v73
  %v307 = vunpack.c.l.b16 %v74
  %v308 = vunpack.c.l.b16 %v75
  %v309 = vunpack.c.h.b16 %v75
  %v310 = vunpack.c.l.b16 %v76
  %v311 = vunpack.c.l.b16 %v77
  %v312 = vunpack.c.h.b16 %v77
  %v313 = vunpack.c.l.b16 %v78
  %v314 = vunpack.c.l.b16 %v79
  %v315 = vunpack.c.h.b16 %v79
  %v316 = vunpack.c.l.b16 %v80
  %v317 = vunpack.c.l.b16 %v81
  %v318 = vunpack.c.h.b16 %v81
  %v319 = vunpack.c.l.b16 %v82
  %v320 = vunpack.c.l.b16 %v83
  %v321 = vunpack.c.h.b16 %v83
  %v322 = vunpack.c.l.b16 %v84
  %v323 = vunpack.c.l.b16 %v85
  %v324 = vunpack.c.h.b16 %v85
  %v325 = vunpack.c.l.b16 %v86
  %v326 = vunpack.c.l.b16 %v87
  %v327 = vunpack.c.h.b16 %v87
  %v328 = vunpack.c.l.b16 %v88
  %v329 = vunpack.c.l.b16 %v89
  %v330 = vunpack.c.h.b16 %v89
  %v331 = vunpack.c.l.b16 %v90
  %v332 = vunpack.c.l.b16 %v91
  %v333 = vunpack.c.h.b16 %v91
  %v334 = vunpack.c.l.b16 %v92
  %v335 = vunpack.c.l.b16 %v93
  %v336 = vunpack.c.h.b16 %v93
  %v337 = vunpack.c.l.b16 %v94
  %v338 = vunpack.c.l.b16 %v95
  %v339 = vunpack.c.h.b16 %v95
  %v340 = vunpack.c.l.b16 %v96
  %v341 = vunpack.c.l.b16 %v97
  %v342 = vunpack.c.h.b16 %v97
  %v343 = vunpack.c.l.b16 %v98
  %v344 = vpack.c.b16 %v299, %v296
  %v345 = vpack.c.b16 %v300, %v297
  %v346 = vpack.c.b16 %v301, %v298
  %v347 = vpack.c.b16 %v305, %v302
  %v348 = vpack.c.b16 %v306, %v303
  %v349 = vpack.c.b16 %v307, %v304
  %v350 = vpack.c.b16 %v311, %v308
  %v351 = vpack.c.b16 %v312, %v309
  %v352 = vpack.c.b16 %v313, %v310
  %v353 = vpack.c.b16 %v317, %v314
  %v354 = vpack.c.b16 %v318, %v315
  %v355 = vpack.c.b16 %v319, %v316
  %v356 = vpack.c.b16 %v323, %v320
  %v357 = vpack.c.b16 %v324, %v321
  %v358 = vpack.c.b16 %v325, %v322
  %v359 = vpack.c.b16 %v329, %v326
  %v360 = vpack.c.b16 %v330, %v327
  %v361 = vpack.c.b16 %v331, %v328
  %v362 = vpack.c.b16 %v335, %v332
  %v363 = vpack.c.b16 %v336, %v333
  %v364 = vpack.c.b16 %v337, %v334
  %v365 = vpack.c.b16 %v341, %v338
  %v366 = vpack.c.b16 %v342, %v339
  %v367 = vpack.c.b16 %v343, %v340
  %392 = vmatprep.subr.bf16.mxu0 %v366
  %393 = vmatpush1.bf16.msra.mxu0 %v365
  %394 = vmatprep.subr.bf16.mxu0 %v363
  %395 = vmatpush1.bf16.msra.mxu0 %v362
  %396 = vmatprep.subr.bf16.mxu0 %v360
  %397 = vmatpush1.bf16.msra.mxu0 %v359
  %398 = vmatprep.subr.bf16.mxu0 %v357
  %399 = vmatpush1.bf16.msra.mxu0 %v356
  %400 = vmatprep.subr.bf16.mxu0 %v354
  %401 = vmatpush1.bf16.msra.mxu0 %v353
  %402 = vmatprep.subr.bf16.mxu0 %v351
  %403 = vmatpush1.bf16.msra.mxu0 %v350
  %404 = vmatprep.subr.bf16.mxu0 %v348
  %405 = vmatpush1.bf16.msra.mxu0 %v347
  %406 = vmatprep.subr.bf16.mxu0 %v345
  %407 = vmatpush1.bf16.msra.mxu0 %v344
  %408 = vmatprep.subr.bf16.mxu0 0
  %409 = vmatpush2.bf16.msra.mxu0 0
  %410 = vmatprep.subr.bf16.mxu0 0
  %411 = vmatpush2.bf16.msra.mxu0 0
  %412 = vmatprep.subr.bf16.mxu0 0
  %413 = vmatpush2.bf16.msra.mxu0 0
  %414 = vmatprep.subr.bf16.mxu0 0
  %415 = vmatpush2.bf16.msra.mxu0 0
  %416 = vmatprep.subr.bf16.mxu0 0
  %417 = vmatpush2.bf16.msra.mxu0 0
  %418 = vmatprep.subr.bf16.mxu0 0
  %419 = vmatpush2.bf16.msra.mxu0 0
  %420 = vmatprep.subr.bf16.mxu0 0
  %421 = vmatpush2.bf16.msra.mxu0 0
  %422 = vmatprep.subr.bf16.mxu0 0
  %423 = vmatpush2.bf16.msra.mxu0 0
  %424 = vmatprep.mubr.bf16.mxu0 0
  %425 = vmatmul.mubr.bf16.gmra.mxu0 %v214
  %v426 = vpop.f32.mrf.mxu0
  %v427 = vadd.f32 %v104, %v426
  %v428 = vpop.f32.mrf.mxu0
  %v429 = vadd.f32 %v108, %v428
  %v430 = vpop.f32.mrf.mxu0
  %v431 = vadd.f32 %v104, %v430
  %v432 = vpop.f32.mrf.mxu0
  %v433 = vadd.f32 %v108, %v432
  %434 = vmatprep.mubr.bf16.mxu0 0
  %435 = vmatmul.mubr.bf16.gmra.mxu0 %v215
  %v436 = vpop.f32.mrf.mxu0
  %v437 = vadd.f32 %v104, %v436
  %v438 = vpop.f32.mrf.mxu0
  %v439 = vadd.f32 %v108, %v438
  %v440 = vpop.f32.mrf.mxu0
  %v441 = vadd.f32 %v104, %v440
  %v442 = vpop.f32.mrf.mxu0
  %v443 = vadd.f32 %v108, %v442
  %444 = vmatprep.mubr.bf16.mxu0 0
  %445 = vmatmul.mubr.bf16.gmra.mxu0 %v216
  %v446 = vpop.f32.mrf.mxu0
  %v447 = vadd.f32 %v104, %v446
  %v448 = vpop.f32.mrf.mxu0
  %v449 = vadd.f32 %v108, %v448
  %v450 = vpop.f32.mrf.mxu0
  %v451 = vadd.f32 %v104, %v450
  %v452 = vpop.f32.mrf.mxu0
  %v453 = vadd.f32 %v108, %v452
  %454 = vmatprep.mubr.bf16.mxu0 0
  %455 = vmatmul.mubr.bf16.gmra.mxu0 %v217
  %v456 = vpop.f32.mrf.mxu0
  %v457 = vadd.f32 %v104, %v456
  %v458 = vpop.f32.mrf.mxu0
  %v459 = vadd.f32 %v108, %v458
  %v460 = vpop.f32.mrf.mxu0
  %v461 = vadd.f32 %v104, %v460
  %v462 = vpop.f32.mrf.mxu0
  %v463 = vadd.f32 %v108, %v462
  %464 = vmatprep.mubr.bf16.mxu0 0
  %465 = vmatmul.mubr.bf16.gmra.mxu0 %v218
  %v466 = vpop.f32.mrf.mxu0
  %v467 = vadd.f32 %v104, %v466
  %v468 = vpop.f32.mrf.mxu0
  %v469 = vadd.f32 %v108, %v468
  %v470 = vpop.f32.mrf.mxu0
  %v471 = vadd.f32 %v104, %v470
  %v472 = vpop.f32.mrf.mxu0
  %v473 = vadd.f32 %v108, %v472
  %474 = vmatprep.mubr.bf16.mxu0 0
  %475 = vmatmul.mubr.bf16.gmra.mxu0 %v219
  %v476 = vpop.f32.mrf.mxu0
  %v477 = vadd.f32 %v104, %v476
  %v478 = vpop.f32.mrf.mxu0
  %v479 = vadd.f32 %v108, %v478
  %v480 = vpop.f32.mrf.mxu0
  %v481 = vadd.f32 %v104, %v480
  %v482 = vpop.f32.mrf.mxu0
  %v483 = vadd.f32 %v108, %v482
  %484 = vmatprep.mubr.bf16.mxu0 0
  %485 = vmatmul.mubr.bf16.gmra.mxu0 %v220
  %v486 = vpop.f32.mrf.mxu0
  %v487 = vadd.f32 %v104, %v486
  %v488 = vpop.f32.mrf.mxu0
  %v489 = vadd.f32 %v108, %v488
  %v490 = vpop.f32.mrf.mxu0
  %v491 = vadd.f32 %v104, %v490
  %v492 = vpop.f32.mrf.mxu0
  %v493 = vadd.f32 %v108, %v492
  %494 = vmatprep.mubr.bf16.mxu0 0
  %495 = vmatmul.mubr.bf16.gmra.mxu0 %v221
  %v496 = vpop.f32.mrf.mxu0
  %v497 = vadd.f32 %v104, %v496
  %v498 = vpop.f32.mrf.mxu0
  %v499 = vadd.f32 %v108, %v498
  %v500 = vpop.f32.mrf.mxu0
  %v501 = vadd.f32 %v104, %v500
  %v502 = vpop.f32.mrf.mxu0
  %v503 = vadd.f32 %v108, %v502
  %504 = vmatprep.mubr.bf16.mxu0 0
  %505 = vmatmul.mubr.bf16.gmra.mxu0 %v222
  %v506 = vpop.f32.mrf.mxu0
  %v507 = vadd.f32 %v104, %v506
  %v508 = vpop.f32.mrf.mxu0
  %v509 = vadd.f32 %v108, %v508
  %v510 = vpop.f32.mrf.mxu0
  %v511 = vadd.f32 %v104, %v510
  %v512 = vpop.f32.mrf.mxu0
  %v513 = vadd.f32 %v108, %v512
  %514 = vmatprep.mubr.bf16.mxu0 0
  %515 = vmatmul.mubr.bf16.gmra.mxu0 %v223
  %v516 = vpop.f32.mrf.mxu0
  %v517 = vadd.f32 %v104, %v516
  %v518 = vpop.f32.mrf.mxu0
  %v519 = vadd.f32 %v108, %v518
  %v520 = vpop.f32.mrf.mxu0
  %v521 = vadd.f32 %v104, %v520
  %v522 = vpop.f32.mrf.mxu0
  %v523 = vadd.f32 %v108, %v522
  %524 = vmatprep.mubr.bf16.mxu0 0
  %525 = vmatmul.mubr.bf16.gmra.mxu0 %v224
  %v526 = vpop.f32.mrf.mxu0
  %v527 = vadd.f32 %v104, %v526
  %v528 = vpop.f32.mrf.mxu0
  %v529 = vadd.f32 %v108, %v528
  %v530 = vpop.f32.mrf.mxu0
  %v531 = vadd.f32 %v104, %v530
  %v532 = vpop.f32.mrf.mxu0
  %v533 = vadd.f32 %v108, %v532
  %534 = vmatprep.mubr.bf16.mxu0 0
  %535 = vmatmul.mubr.bf16.gmra.mxu0 %v225
  %v536 = vpop.f32.mrf.mxu0
  %v537 = vadd.f32 %v104, %v536
  %v538 = vpop.f32.mrf.mxu0
  %v539 = vadd.f32 %v108, %v538
  %v540 = vpop.f32.mrf.mxu0
  %v541 = vadd.f32 %v104, %v540
  %v542 = vpop.f32.mrf.mxu0
  %v543 = vadd.f32 %v108, %v542
  %544 = vmatprep.mubr.bf16.mxu0 0
  %545 = vmatmul.mubr.bf16.gmra.mxu0 %v226
  %v546 = vpop.f32.mrf.mxu0
  %v547 = vadd.f32 %v104, %v546
  %v548 = vpop.f32.mrf.mxu0
  %v549 = vadd.f32 %v108, %v548
  %v550 = vpop.f32.mrf.mxu0
  %v551 = vadd.f32 %v104, %v550
  %v552 = vpop.f32.mrf.mxu0
  %v553 = vadd.f32 %v108, %v552
  %554 = vmatprep.mubr.bf16.mxu0 0
  %555 = vmatmul.mubr.bf16.gmra.mxu0 %v227
  %v556 = vpop.f32.mrf.mxu0
  %v557 = vadd.f32 %v104, %v556
  %v558 = vpop.f32.mrf.mxu0
  %v559 = vadd.f32 %v108, %v558
  %v560 = vpop.f32.mrf.mxu0
  %v561 = vadd.f32 %v104, %v560
  %v562 = vpop.f32.mrf.mxu0
  %v563 = vadd.f32 %v108, %v562
  %564 = vmatprep.mubr.bf16.mxu0 0
  %565 = vmatmul.mubr.bf16.gmra.mxu0 %v228
  %v566 = vpop.f32.mrf.mxu0
  %v567 = vadd.f32 %v104, %v566
  %v568 = vpop.f32.mrf.mxu0
  %v569 = vadd.f32 %v108, %v568
  %v570 = vpop.f32.mrf.mxu0
  %v571 = vadd.f32 %v104, %v570
  %v572 = vpop.f32.mrf.mxu0
  %v573 = vadd.f32 %v108, %v572
  %574 = vmatprep.mubr.bf16.mxu0 0
  %575 = vmatmul.mubr.bf16.gmra.mxu0 %v229
  %v576 = vpop.f32.mrf.mxu0
  %v577 = vadd.f32 %v104, %v576
  %v578 = vpop.f32.mrf.mxu0
  %v579 = vadd.f32 %v108, %v578
  %v580 = vpop.f32.mrf.mxu0
  %v581 = vadd.f32 %v104, %v580
  %v582 = vpop.f32.mrf.mxu0
  %v583 = vadd.f32 %v108, %v582
  %584 = vmatprep.mubr.bf16.mxu0 0
  %585 = vmatmul.mubr.bf16.gmra.mxu0 %v230
  %v586 = vpop.f32.mrf.mxu0
  %v587 = vadd.f32 %v104, %v586
  %v588 = vpop.f32.mrf.mxu0
  %v589 = vadd.f32 %v108, %v588
  %v590 = vpop.f32.mrf.mxu0
  %v591 = vadd.f32 %v104, %v590
  %v592 = vpop.f32.mrf.mxu0
  %v593 = vadd.f32 %v108, %v592
  %594 = vmatprep.mubr.bf16.mxu0 0
  %595 = vmatmul.mubr.bf16.gmra.mxu0 %v231
  %v596 = vpop.f32.mrf.mxu0
  %v597 = vadd.f32 %v104, %v596
  %v598 = vpop.f32.mrf.mxu0
  %v599 = vadd.f32 %v108, %v598
  %v600 = vpop.f32.mrf.mxu0
  %v601 = vadd.f32 %v104, %v600
  %v602 = vpop.f32.mrf.mxu0
  %v603 = vadd.f32 %v108, %v602
  %604 = vmatprep.mubr.bf16.mxu0 0
  %605 = vmatmul.mubr.bf16.gmra.mxu0 %v232
  %v606 = vpop.f32.mrf.mxu0
  %v607 = vadd.f32 %v104, %v606
  %v608 = vpop.f32.mrf.mxu0
  %v609 = vadd.f32 %v108, %v608
  %v610 = vpop.f32.mrf.mxu0
  %v611 = vadd.f32 %v104, %v610
  %v612 = vpop.f32.mrf.mxu0
  %v613 = vadd.f32 %v108, %v612
  %614 = vmatprep.mubr.bf16.mxu0 0
  %615 = vmatmul.mubr.bf16.gmra.mxu0 %v233
  %v616 = vpop.f32.mrf.mxu0
  %v617 = vadd.f32 %v104, %v616
  %v618 = vpop.f32.mrf.mxu0
  %v619 = vadd.f32 %v108, %v618
  %v620 = vpop.f32.mrf.mxu0
  %v621 = vadd.f32 %v104, %v620
  %v622 = vpop.f32.mrf.mxu0
  %v623 = vadd.f32 %v108, %v622
  %624 = vmatprep.mubr.bf16.mxu0 0
  %625 = vmatmul.mubr.bf16.gmra.mxu0 %v234
  %v626 = vpop.f32.mrf.mxu0
  %v627 = vadd.f32 %v104, %v626
  %v628 = vpop.f32.mrf.mxu0
  %v629 = vadd.f32 %v108, %v628
  %v630 = vpop.f32.mrf.mxu0
  %v631 = vadd.f32 %v104, %v630
  %v632 = vpop.f32.mrf.mxu0
  %v633 = vadd.f32 %v108, %v632
  %634 = vmatprep.mubr.bf16.mxu0 0
  %635 = vmatmul.mubr.bf16.gmra.mxu0 %v235
  %v636 = vpop.f32.mrf.mxu0
  %v637 = vadd.f32 %v104, %v636
  %v638 = vpop.f32.mrf.mxu0
  %v639 = vadd.f32 %v108, %v638
  %v640 = vpop.f32.mrf.mxu0
  %v641 = vadd.f32 %v104, %v640
  %v642 = vpop.f32.mrf.mxu0
  %v643 = vadd.f32 %v108, %v642
  %644 = vmatprep.mubr.bf16.mxu0 0
  %645 = vmatmul.mubr.bf16.gmra.mxu0 %v236
  %v646 = vpop.f32.mrf.mxu0
  %v647 = vadd.f32 %v104, %v646
  %v648 = vpop.f32.mrf.mxu0
  %v649 = vadd.f32 %v108, %v648
  %v650 = vpop.f32.mrf.mxu0
  %v651 = vadd.f32 %v104, %v650
  %v652 = vpop.f32.mrf.mxu0
  %v653 = vadd.f32 %v108, %v652
  %654 = vmatprep.mubr.bf16.mxu0 0
  %655 = vmatmul.mubr.bf16.gmra.mxu0 %v237
  %v656 = vpop.f32.mrf.mxu0
  %v657 = vadd.f32 %v104, %v656
  %v658 = vpop.f32.mrf.mxu0
  %v659 = vadd.f32 %v108, %v658
  %v660 = vpop.f32.mrf.mxu0
  %v661 = vadd.f32 %v104, %v660
  %v662 = vpop.f32.mrf.mxu0
  %v663 = vadd.f32 %v108, %v662
  %664 = vmatprep.mubr.bf16.mxu0 0
  %665 = vmatmul.mubr.bf16.gmra.mxu0 %v238
  %v666 = vpop.f32.mrf.mxu0
  %v667 = vadd.f32 %v104, %v666
  %v668 = vpop.f32.mrf.mxu0
  %v669 = vadd.f32 %v108, %v668
  %v670 = vpop.f32.mrf.mxu0
  %v671 = vpop.f32.mrf.mxu0
  %672 = vdwg.mxu0
  %673 = vmatprep.subr.bf16.mxu0 0
  %674 = vmatpush1.bf16.msra.mxu0 %v367
  %675 = vmatprep.subr.bf16.mxu0 0
  %676 = vmatpush1.bf16.msra.mxu0 %v364
  %677 = vmatprep.subr.bf16.mxu0 0
  %678 = vmatpush1.bf16.msra.mxu0 %v361
  %679 = vmatprep.subr.bf16.mxu0 0
  %680 = vmatpush1.bf16.msra.mxu0 %v358
  %681 = vmatprep.subr.bf16.mxu0 0
  %682 = vmatpush1.bf16.msra.mxu0 %v355
  %683 = vmatprep.subr.bf16.mxu0 0
  %684 = vmatpush1.bf16.msra.mxu0 %v352
  %685 = vmatprep.subr.bf16.mxu0 0
  %686 = vmatpush1.bf16.msra.mxu0 %v349
  %687 = vmatprep.subr.bf16.mxu0 0
  %688 = vmatpush1.bf16.msra.mxu0 %v346
  %689 = vmatprep.subr.bf16.mxu0 0
  %690 = vmatpush2.bf16.msra.mxu0 0
  %691 = vmatprep.subr.bf16.mxu0 0
  %692 = vmatpush2.bf16.msra.mxu0 0
  %693 = vmatprep.subr.bf16.mxu0 0
  %694 = vmatpush2.bf16.msra.mxu0 0
  %695 = vmatprep.subr.bf16.mxu0 0
  %696 = vmatpush2.bf16.msra.mxu0 0
  %697 = vmatprep.subr.bf16.mxu0 0
  %698 = vmatpush2.bf16.msra.mxu0 0
  %699 = vmatprep.subr.bf16.mxu0 0
  %700 = vmatpush2.bf16.msra.mxu0 0
  %701 = vmatprep.subr.bf16.mxu0 0
  %702 = vmatpush2.bf16.msra.mxu0 0
  %703 = vmatprep.subr.bf16.mxu0 0
  %704 = vmatpush2.bf16.msra.mxu0 0
  %705 = vmatprep.mubr.bf16.mxu0 0
  %706 = vmatmul.mubr.bf16.gmra.mxu0 %v214
  %v707 = vpop.f32.mrf.mxu0
  %v708 = vadd.f32 %v112, %v707
  %v709 = vpop.f32.mrf.mxu0
  %v710 = vpop.f32.mrf.mxu0
  %v711 = vadd.f32 %v112, %v710
  %v712 = vpop.f32.mrf.mxu0
  %713 = vmatprep.mubr.bf16.mxu0 0
  %714 = vmatmul.mubr.bf16.gmra.mxu0 %v215
  %v715 = vpop.f32.mrf.mxu0
  %v716 = vadd.f32 %v112, %v715
  %v717 = vpop.f32.mrf.mxu0
  %v718 = vpop.f32.mrf.mxu0
  %v719 = vadd.f32 %v112, %v718
  %v720 = vpop.f32.mrf.mxu0
  %721 = vmatprep.mubr.bf16.mxu0 0
  %722 = vmatmul.mubr.bf16.gmra.mxu0 %v216
  %v723 = vpop.f32.mrf.mxu0
  %v724 = vadd.f32 %v112, %v723
  %v725 = vpop.f32.mrf.mxu0
  %v726 = vpop.f32.mrf.mxu0
  %v727 = vadd.f32 %v112, %v726
  %v728 = vpop.f32.mrf.mxu0
  %729 = vmatprep.mubr.bf16.mxu0 0
  %730 = vmatmul.mubr.bf16.gmra.mxu0 %v217
  %v731 = vpop.f32.mrf.mxu0
  %v732 = vadd.f32 %v112, %v731
  %v733 = vpop.f32.mrf.mxu0
  %v734 = vpop.f32.mrf.mxu0
  %v735 = vadd.f32 %v112, %v734
  %v736 = vpop.f32.mrf.mxu0
  %737 = vmatprep.mubr.bf16.mxu0 0
  %738 = vmatmul.mubr.bf16.gmra.mxu0 %v218
  %v739 = vpop.f32.mrf.mxu0
  %v740 = vadd.f32 %v112, %v739
  %v741 = vpop.f32.mrf.mxu0
  %v742 = vpop.f32.mrf.mxu0
  %v743 = vadd.f32 %v112, %v742
  %v744 = vpop.f32.mrf.mxu0
  %745 = vmatprep.mubr.bf16.mxu0 0
  %746 = vmatmul.mubr.bf16.gmra.mxu0 %v219
  %v747 = vpop.f32.mrf.mxu0
  %v748 = vadd.f32 %v112, %v747
  %v749 = vpop.f32.mrf.mxu0
  %v750 = vpop.f32.mrf.mxu0
  %v751 = vadd.f32 %v112, %v750
  %v752 = vpop.f32.mrf.mxu0
  %753 = vmatprep.mubr.bf16.mxu0 0
  %754 = vmatmul.mubr.bf16.gmra.mxu0 %v220
  %v755 = vpop.f32.mrf.mxu0
  %v756 = vadd.f32 %v112, %v755
  %v757 = vpop.f32.mrf.mxu0
  %v758 = vpop.f32.mrf.mxu0
  %v759 = vadd.f32 %v112, %v758
  %v760 = vpop.f32.mrf.mxu0
  %761 = vmatprep.mubr.bf16.mxu0 0
  %762 = vmatmul.mubr.bf16.gmra.mxu0 %v221
  %v763 = vpop.f32.mrf.mxu0
  %v764 = vadd.f32 %v112, %v763
  %v765 = vpop.f32.mrf.mxu0
  %v766 = vpop.f32.mrf.mxu0
  %v767 = vadd.f32 %v112, %v766
  %v768 = vpop.f32.mrf.mxu0
  %769 = vmatprep.mubr.bf16.mxu0 0
  %770 = vmatmul.mubr.bf16.gmra.mxu0 %v222
  %v771 = vpop.f32.mrf.mxu0
  %v772 = vadd.f32 %v112, %v771
  %v773 = vpop.f32.mrf.mxu0
  %v774 = vpop.f32.mrf.mxu0
  %v775 = vadd.f32 %v112, %v774
  %v776 = vpop.f32.mrf.mxu0
  %777 = vmatprep.mubr.bf16.mxu0 0
  %778 = vmatmul.mubr.bf16.gmra.mxu0 %v223
  %v779 = vpop.f32.mrf.mxu0
  %v780 = vadd.f32 %v112, %v779
  %v781 = vpop.f32.mrf.mxu0
  %v782 = vpop.f32.mrf.mxu0
  %v783 = vadd.f32 %v112, %v782
  %v784 = vpop.f32.mrf.mxu0
  %785 = vmatprep.mubr.bf16.mxu0 0
  %786 = vmatmul.mubr.bf16.gmra.mxu0 %v224
  %v787 = vpop.f32.mrf.mxu0
  %v788 = vadd.f32 %v112, %v787
  %v789 = vpop.f32.mrf.mxu0
  %v790 = vpop.f32.mrf.mxu0
  %v791 = vadd.f32 %v112, %v790
  %v792 = vpop.f32.mrf.mxu0
  %793 = vmatprep.mubr.bf16.mxu0 0
  %794 = vmatmul.mubr.bf16.gmra.mxu0 %v225
  %v795 = vpop.f32.mrf.mxu0
  %v796 = vadd.f32 %v112, %v795
  %v797 = vpop.f32.mrf.mxu0
  %v798 = vpop.f32.mrf.mxu0
  %v799 = vadd.f32 %v112, %v798
  %v800 = vpop.f32.mrf.mxu0
  %801 = vmatprep.mubr.bf16.mxu0 0
  %802 = vmatmul.mubr.bf16.gmra.mxu0 %v226
  %v803 = vpop.f32.mrf.mxu0
  %v804 = vadd.f32 %v112, %v803
  %v805 = vpop.f32.mrf.mxu0
  %v806 = vpop.f32.mrf.mxu0
  %v807 = vadd.f32 %v112, %v806
  %v808 = vpop.f32.mrf.mxu0
  %809 = vmatprep.mubr.bf16.mxu0 0
  %810 = vmatmul.mubr.bf16.gmra.mxu0 %v227
  %v811 = vpop.f32.mrf.mxu0
  %v812 = vadd.f32 %v112, %v811
  %v813 = vpop.f32.mrf.mxu0
  %v814 = vpop.f32.mrf.mxu0
  %v815 = vadd.f32 %v112, %v814
  %v816 = vpop.f32.mrf.mxu0
  %817 = vmatprep.mubr.bf16.mxu0 0
  %818 = vmatmul.mubr.bf16.gmra.mxu0 %v228
  %v819 = vpop.f32.mrf.mxu0
  %v820 = vadd.f32 %v112, %v819
  %v821 = vpop.f32.mrf.mxu0
  %v822 = vpop.f32.mrf.mxu0
  %v823 = vadd.f32 %v112, %v822
  %v824 = vpop.f32.mrf.mxu0
  %825 = vmatprep.mubr.bf16.mxu0 0
  %826 = vmatmul.mubr.bf16.gmra.mxu0 %v229
  %v827 = vpop.f32.mrf.mxu0
  %v828 = vadd.f32 %v112, %v827
  %v829 = vpop.f32.mrf.mxu0
  %v830 = vpop.f32.mrf.mxu0
  %v831 = vadd.f32 %v112, %v830
  %v832 = vpop.f32.mrf.mxu0
  %833 = vmatprep.mubr.bf16.mxu0 0
  %834 = vmatmul.mubr.bf16.gmra.mxu0 %v230
  %v835 = vpop.f32.mrf.mxu0
  %v836 = vadd.f32 %v112, %v835
  %v837 = vpop.f32.mrf.mxu0
  %v838 = vpop.f32.mrf.mxu0
  %v839 = vadd.f32 %v112, %v838
  %v840 = vpop.f32.mrf.mxu0
  %841 = vmatprep.mubr.bf16.mxu0 0
  %842 = vmatmul.mubr.bf16.gmra.mxu0 %v231
  %v843 = vpop.f32.mrf.mxu0
  %v844 = vadd.f32 %v112, %v843
  %v845 = vpop.f32.mrf.mxu0
  %v846 = vpop.f32.mrf.mxu0
  %v847 = vadd.f32 %v112, %v846
  %v848 = vpop.f32.mrf.mxu0
  %849 = vmatprep.mubr.bf16.mxu0 0
  %850 = vmatmul.mubr.bf16.gmra.mxu0 %v232
  %v851 = vpop.f32.mrf.mxu0
  %v852 = vadd.f32 %v112, %v851
  %v853 = vpop.f32.mrf.mxu0
  %v854 = vpop.f32.mrf.mxu0
  %v855 = vadd.f32 %v112, %v854
  %v856 = vpop.f32.mrf.mxu0
  %857 = vmatprep.mubr.bf16.mxu0 0
  %858 = vmatmul.mubr.bf16.gmra.mxu0 %v233
  %v859 = vpop.f32.mrf.mxu0
  %v860 = vadd.f32 %v112, %v859
  %v861 = vpop.f32.mrf.mxu0
  %v862 = vpop.f32.mrf.mxu0
  %v863 = vadd.f32 %v112, %v862
  %v864 = vpop.f32.mrf.mxu0
  %865 = vmatprep.mubr.bf16.mxu0 0
  %866 = vmatmul.mubr.bf16.gmra.mxu0 %v234
  %v867 = vpop.f32.mrf.mxu0
  %v868 = vadd.f32 %v112, %v867
  %v869 = vpop.f32.mrf.mxu0
  %v870 = vpop.f32.mrf.mxu0
  %v871 = vadd.f32 %v112, %v870
  %v872 = vpop.f32.mrf.mxu0
  %873 = vmatprep.mubr.bf16.mxu0 0
  %874 = vmatmul.mubr.bf16.gmra.mxu0 %v235
  %v875 = vpop.f32.mrf.mxu0
  %v876 = vadd.f32 %v112, %v875
  %v877 = vpop.f32.mrf.mxu0
  %v878 = vpop.f32.mrf.mxu0
  %v879 = vadd.f32 %v112, %v878
  %v880 = vpop.f32.mrf.mxu0
  %881 = vmatprep.mubr.bf16.mxu0 0
  %882 = vmatmul.mubr.bf16.gmra.mxu0 %v236
  %v883 = vpop.f32.mrf.mxu0
  %v884 = vadd.f32 %v112, %v883
  %v885 = vpop.f32.mrf.mxu0
  %v886 = vpop.f32.mrf.mxu0
  %v887 = vadd.f32 %v112, %v886
  %v888 = vpop.f32.mrf.mxu0
  %889 = vmatprep.mubr.bf16.mxu0 0
  %890 = vmatmul.mubr.bf16.gmra.mxu0 %v237
  %v891 = vpop.f32.mrf.mxu0
  %v892 = vadd.f32 %v112, %v891
  %v893 = vpop.f32.mrf.mxu0
  %v894 = vpop.f32.mrf.mxu0
  %v895 = vadd.f32 %v112, %v894
  %v896 = vpop.f32.mrf.mxu0
  %897 = vmatprep.mubr.bf16.mxu0 0
  %898 = vmatmul.mubr.bf16.gmra.mxu0 %v238
  %v899 = vpop.f32.mrf.mxu0
  %v900 = vadd.f32 %v112, %v899
  %v901 = vpop.f32.mrf.mxu0
  %v902 = vpop.f32.mrf.mxu0
  %v903 = vpop.f32.mrf.mxu0
  %904 = vdwg.mxu0
  %v905 = vpack.c.bf16 %v431, %v427
  %v906 = vpack.c.bf16 %v441, %v437
  %v907 = vpack.c.bf16 %v451, %v447
  %v908 = vpack.c.bf16 %v461, %v457
  %v909 = vpack.c.bf16 %v471, %v467
  %v910 = vpack.c.bf16 %v481, %v477
  %v911 = vpack.c.bf16 %v491, %v487
  %v912 = vpack.c.bf16 %v501, %v497
  %v913 = vpack.c.bf16 %v511, %v507
  %v914 = vpack.c.bf16 %v521, %v517
  %v915 = vpack.c.bf16 %v531, %v527
  %v916 = vpack.c.bf16 %v541, %v537
  %v917 = vpack.c.bf16 %v551, %v547
  %v918 = vpack.c.bf16 %v561, %v557
  %v919 = vpack.c.bf16 %v571, %v567
  %v920 = vpack.c.bf16 %v581, %v577
  %v921 = vpack.c.bf16 %v591, %v587
  %v922 = vpack.c.bf16 %v601, %v597
  %v923 = vpack.c.bf16 %v611, %v607
  %v924 = vpack.c.bf16 %v621, %v617
  %v925 = vpack.c.bf16 %v631, %v627
  %v926 = vpack.c.bf16 %v641, %v637
  %v927 = vpack.c.bf16 %v651, %v647
  %v928 = vpack.c.bf16 %v661, %v657
  %v929 = vpack.c.bf16 %v667, %v667
  %v955 = vunpack.c.l.b16 %v905
  %v956 = vunpack.c.h.b16 %v905
  %v957 = vunpack.c.l.b16 %v906
  %v958 = vunpack.c.h.b16 %v906
  %v959 = vunpack.c.l.b16 %v907
  %v960 = vunpack.c.h.b16 %v907
  %v961 = vunpack.c.l.b16 %v908
  %v962 = vunpack.c.h.b16 %v908
  %v963 = vunpack.c.l.b16 %v909
  %v964 = vunpack.c.h.b16 %v909
  %v965 = vunpack.c.l.b16 %v910
  %v966 = vunpack.c.h.b16 %v910
  %v967 = vunpack.c.l.b16 %v911
  %v968 = vunpack.c.h.b16 %v911
  %v969 = vunpack.c.l.b16 %v912
  %v970 = vunpack.c.h.b16 %v912
  %v971 = vunpack.c.l.b16 %v913
  %v972 = vunpack.c.h.b16 %v913
  %v973 = vunpack.c.l.b16 %v914
  %v974 = vunpack.c.h.b16 %v914
  %v975 = vunpack.c.l.b16 %v915
  %v976 = vunpack.c.h.b16 %v915
  %v977 = vunpack.c.l.b16 %v916
  %v978 = vunpack.c.h.b16 %v916
  %v979 = vunpack.c.l.b16 %v917
  %v980 = vunpack.c.h.b16 %v917
  %v981 = vunpack.c.l.b16 %v918
  %v982 = vunpack.c.h.b16 %v918
  %v983 = vunpack.c.l.b16 %v919
  %v984 = vunpack.c.h.b16 %v919
  %v985 = vunpack.c.l.b16 %v920
  %v986 = vunpack.c.h.b16 %v920
  %v987 = vunpack.c.l.b16 %v921
  %v988 = vunpack.c.h.b16 %v921
  %v989 = vunpack.c.l.b16 %v922
  %v990 = vunpack.c.h.b16 %v922
  %v991 = vunpack.c.l.b16 %v923
  %v992 = vunpack.c.h.b16 %v923
  %v993 = vunpack.c.l.b16 %v924
  %v994 = vunpack.c.h.b16 %v924
  %v995 = vunpack.c.l.b16 %v925
  %v996 = vunpack.c.h.b16 %v925
  %v997 = vunpack.c.l.b16 %v926
  %v998 = vunpack.c.h.b16 %v926
  %v999 = vunpack.c.l.b16 %v927
  %v1000 = vunpack.c.h.b16 %v927
  %v1001 = vunpack.c.l.b16 %v928
  %v1002 = vunpack.c.h.b16 %v928
  %v1003 = vunpack.c.l.b16 %v929
  %v1004 = vpack.c.b16 %v955, %v955
  %v1005 = vpack.c.b16 %v956, %v956
  %v1006 = vpack.c.b16 %v957, %v957
  %v1007 = vpack.c.b16 %v958, %v958
  %v1008 = vpack.c.b16 %v959, %v959
  %v1009 = vpack.c.b16 %v960, %v960
  %v1010 = vpack.c.b16 %v961, %v961
  %v1011 = vpack.c.b16 %v962, %v962
  %v1012 = vpack.c.b16 %v963, %v963
  %v1013 = vpack.c.b16 %v964, %v964
  %v1014 = vpack.c.b16 %v965, %v965
  %v1015 = vpack.c.b16 %v966, %v966
  %v1016 = vpack.c.b16 %v967, %v967
  %v1017 = vpack.c.b16 %v968, %v968
  %v1018 = vpack.c.b16 %v969, %v969
  %v1019 = vpack.c.b16 %v970, %v970
  %v1020 = vpack.c.b16 %v971, %v971
  %v1021 = vpack.c.b16 %v972, %v972
  %v1022 = vpack.c.b16 %v973, %v973
  %v1023 = vpack.c.b16 %v974, %v974
  %v1024 = vpack.c.b16 %v975, %v975
  %v1025 = vpack.c.b16 %v976, %v976
  %v1026 = vpack.c.b16 %v977, %v977
  %v1027 = vpack.c.b16 %v978, %v978
  %v1028 = vpack.c.b16 %v979, %v979
  %v1029 = vpack.c.b16 %v980, %v980
  %v1030 = vpack.c.b16 %v981, %v981
  %v1031 = vpack.c.b16 %v982, %v982
  %v1032 = vpack.c.b16 %v983, %v983
  %v1033 = vpack.c.b16 %v984, %v984
  %v1034 = vpack.c.b16 %v985, %v985
  %v1035 = vpack.c.b16 %v986, %v986
  %v1036 = vpack.c.b16 %v987, %v987
  %v1037 = vpack.c.b16 %v988, %v988
  %v1038 = vpack.c.b16 %v989, %v989
  %v1039 = vpack.c.b16 %v990, %v990
  %v1040 = vpack.c.b16 %v991, %v991
  %v1041 = vpack.c.b16 %v992, %v992
  %v1042 = vpack.c.b16 %v993, %v993
  %v1043 = vpack.c.b16 %v994, %v994
  %v1044 = vpack.c.b16 %v995, %v995
  %v1045 = vpack.c.b16 %v996, %v996
  %v1046 = vpack.c.b16 %v997, %v997
  %v1047 = vpack.c.b16 %v998, %v998
  %v1048 = vpack.c.b16 %v999, %v999
  %v1049 = vpack.c.b16 %v1000, %v1000
  %v1050 = vpack.c.b16 %v1001, %v1001
  %v1051 = vpack.c.b16 %v1002, %v1002
  %v1052 = vpack.c.b16 %v1003, %v1003
  %1102 = vst [vmem:[%s3] sm:$0xf] %v1004
  %1103 = vst [vmem:[%s3 + $0x4] sm:$0xf] %v1005
  %1104 = vst [vmem:[%s3 + $0x8] sm:$0xf] %v1006
  %1105 = vst [vmem:[%s3 + $0xc] sm:$0xf] %v1007
  %1106 = vst [vmem:[%s3 + $0x10] sm:$0xf] %v1008
  %1107 = vst [vmem:[%s3 + $0x14] sm:$0xf] %v1009
  %1108 = vst [vmem:[%s3 + $0x18] sm:$0xf] %v1010
  %1109 = vst [vmem:[%s3 + $0x1c] sm:$0xf] %v1011
  %1110 = vst [vmem:[%s3 + $0x20] sm:$0xf] %v1012
  %1111 = vst [vmem:[%s3 + $0x24] sm:$0xf] %v1013
  %1112 = vst [vmem:[%s3 + $0x28] sm:$0xf] %v1014
  %1113 = vst [vmem:[%s3 + $0x2c] sm:$0xf] %v1015
  %1114 = vst [vmem:[%s3 + $0x30] sm:$0xf] %v1016
  %1115 = vst [vmem:[%s3 + $0x34] sm:$0xf] %v1017
  %1116 = vst [vmem:[%s3 + $0x38] sm:$0xf] %v1018
  %1117 = vst [vmem:[%s3 + $0x3c] sm:$0xf] %v1019
  %1118 = vst [vmem:[%s3 + $0x40] sm:$0xf] %v1020
  %1119 = vst [vmem:[%s3 + $0x44] sm:$0xf] %v1021
  %1120 = vst [vmem:[%s3 + $0x48] sm:$0xf] %v1022
  %1121 = vst [vmem:[%s3 + $0x4c] sm:$0xf] %v1023
  %1122 = vst [vmem:[%s3 + $0x50] sm:$0xf] %v1024
  %1123 = vst [vmem:[%s3 + $0x54] sm:$0xf] %v1025
  %1124 = vst [vmem:[%s3 + $0x58] sm:$0xf] %v1026
  %1125 = vst [vmem:[%s3 + $0x5c] sm:$0xf] %v1027
  %1126 = vst [vmem:[%s3 + $0x60] sm:$0xf] %v1028
  %1127 = vst [vmem:[%s3 + $0x64] sm:$0xf] %v1029
  %1128 = vst [vmem:[%s3 + $0x68] sm:$0xf] %v1030
  %1129 = vst [vmem:[%s3 + $0x6c] sm:$0xf] %v1031
  %1130 = vst [vmem:[%s3 + $0x70] sm:$0xf] %v1032
  %1131 = vst [vmem:[%s3 + $0x74] sm:$0xf] %v1033
  %1132 = vst [vmem:[%s3 + $0x78] sm:$0xf] %v1034
  %1133 = vst [vmem:[%s3 + $0x7c] sm:$0xf] %v1035
  %1134 = vst [vmem:[%s3 + $0x80] sm:$0xf] %v1036
  %1135 = vst [vmem:[%s3 + $0x84] sm:$0xf] %v1037
  %1136 = vst [vmem:[%s3 + $0x88] sm:$0xf] %v1038
  %1137 = vst [vmem:[%s3 + $0x8c] sm:$0xf] %v1039
  %1138 = vst [vmem:[%s3 + $0x90] sm:$0xf] %v1040
  %1139 = vst [vmem:[%s3 + $0x94] sm:$0xf] %v1041
  %1140 = vst [vmem:[%s3 + $0x98] sm:$0xf] %v1042
  %1141 = vst [vmem:[%s3 + $0x9c] sm:$0xf] %v1043
  %1142 = vst [vmem:[%s3 + $0xa0] sm:$0xf] %v1044
  %1143 = vst [vmem:[%s3 + $0xa4] sm:$0xf] %v1045
  %1144 = vst [vmem:[%s3 + $0xa8] sm:$0xf] %v1046
  %1145 = vst [vmem:[%s3 + $0xac] sm:$0xf] %v1047
  %1146 = vst [vmem:[%s3 + $0xb0] sm:$0xf] %v1048
  %1147 = vst [vmem:[%s3 + $0xb4] sm:$0xf] %v1049
  %1148 = vst [vmem:[%s3 + $0xb8] sm:$0xf] %v1050
  %1149 = vst [vmem:[%s3 + $0xbc] sm:$0xf] %v1051
  %1150 = vst [vmem:[%s3 + $0xc0] sm:$0xf] %v1052
  %v1151 = vpack.c.bf16 %v433, %v429
  %v1152 = vpack.c.bf16 %v443, %v439
  %v1153 = vpack.c.bf16 %v453, %v449
  %v1154 = vpack.c.bf16 %v463, %v459
  %v1155 = vpack.c.bf16 %v473, %v469
  %v1156 = vpack.c.bf16 %v483, %v479
  %v1157 = vpack.c.bf16 %v493, %v489
  %v1158 = vpack.c.bf16 %v503, %v499
  %v1159 = vpack.c.bf16 %v513, %v509
  %v1160 = vpack.c.bf16 %v523, %v519
  %v1161 = vpack.c.bf16 %v533, %v529
  %v1162 = vpack.c.bf16 %v543, %v539
  %v1163 = vpack.c.bf16 %v553, %v549
  %v1164 = vpack.c.bf16 %v563, %v559
  %v1165 = vpack.c.bf16 %v573, %v569
  %v1166 = vpack.c.bf16 %v583, %v579
  %v1167 = vpack.c.bf16 %v593, %v589
  %v1168 = vpack.c.bf16 %v603, %v599
  %v1169 = vpack.c.bf16 %v613, %v609
  %v1170 = vpack.c.bf16 %v623, %v619
  %v1171 = vpack.c.bf16 %v633, %v629
  %v1172 = vpack.c.bf16 %v643, %v639
  %v1173 = vpack.c.bf16 %v653, %v649
  %v1174 = vpack.c.bf16 %v663, %v659
  %v1175 = vpack.c.bf16 %v669, %v669
  %v1201 = vunpack.c.l.b16 %v1151
  %v1202 = vunpack.c.h.b16 %v1151
  %v1203 = vunpack.c.l.b16 %v1152
  %v1204 = vunpack.c.h.b16 %v1152
  %v1205 = vunpack.c.l.b16 %v1153
  %v1206 = vunpack.c.h.b16 %v1153
  %v1207 = vunpack.c.l.b16 %v1154
  %v1208 = vunpack.c.h.b16 %v1154
  %v1209 = vunpack.c.l.b16 %v1155
  %v1210 = vunpack.c.h.b16 %v1155
  %v1211 = vunpack.c.l.b16 %v1156
  %v1212 = vunpack.c.h.b16 %v1156
  %v1213 = vunpack.c.l.b16 %v1157
  %v1214 = vunpack.c.h.b16 %v1157
  %v1215 = vunpack.c.l.b16 %v1158
  %v1216 = vunpack.c.h.b16 %v1158
  %v1217 = vunpack.c.l.b16 %v1159
  %v1218 = vunpack.c.h.b16 %v1159
  %v1219 = vunpack.c.l.b16 %v1160
  %v1220 = vunpack.c.h.b16 %v1160
  %v1221 = vunpack.c.l.b16 %v1161
  %v1222 = vunpack.c.h.b16 %v1161
  %v1223 = vunpack.c.l.b16 %v1162
  %v1224 = vunpack.c.h.b16 %v1162
  %v1225 = vunpack.c.l.b16 %v1163
  %v1226 = vunpack.c.h.b16 %v1163
  %v1227 = vunpack.c.l.b16 %v1164
  %v1228 = vunpack.c.h.b16 %v1164
  %v1229 = vunpack.c.l.b16 %v1165
  %v1230 = vunpack.c.h.b16 %v1165
  %v1231 = vunpack.c.l.b16 %v1166
  %v1232 = vunpack.c.h.b16 %v1166
  %v1233 = vunpack.c.l.b16 %v1167
  %v1234 = vunpack.c.h.b16 %v1167
  %v1235 = vunpack.c.l.b16 %v1168
  %v1236 = vunpack.c.h.b16 %v1168
  %v1237 = vunpack.c.l.b16 %v1169
  %v1238 = vunpack.c.h.b16 %v1169
  %v1239 = vunpack.c.l.b16 %v1170
  %v1240 = vunpack.c.h.b16 %v1170
  %v1241 = vunpack.c.l.b16 %v1171
  %v1242 = vunpack.c.h.b16 %v1171
  %v1243 = vunpack.c.l.b16 %v1172
  %v1244 = vunpack.c.h.b16 %v1172
  %v1245 = vunpack.c.l.b16 %v1173
  %v1246 = vunpack.c.h.b16 %v1173
  %v1247 = vunpack.c.l.b16 %v1174
  %v1248 = vunpack.c.h.b16 %v1174
  %v1249 = vunpack.c.l.b16 %v1175
  %v1250 = vpack.c.b16 %v1201, %v1201
  %v1251 = vpack.c.b16 %v1202, %v1202
  %v1252 = vpack.c.b16 %v1203, %v1203
  %v1253 = vpack.c.b16 %v1204, %v1204
  %v1254 = vpack.c.b16 %v1205, %v1205
  %v1255 = vpack.c.b16 %v1206, %v1206
  %v1256 = vpack.c.b16 %v1207, %v1207
  %v1257 = vpack.c.b16 %v1208, %v1208
  %v1258 = vpack.c.b16 %v1209, %v1209
  %v1259 = vpack.c.b16 %v1210, %v1210
  %v1260 = vpack.c.b16 %v1211, %v1211
  %v1261 = vpack.c.b16 %v1212, %v1212
  %v1262 = vpack.c.b16 %v1213, %v1213
  %v1263 = vpack.c.b16 %v1214, %v1214
  %v1264 = vpack.c.b16 %v1215, %v1215
  %v1265 = vpack.c.b16 %v1216, %v1216
  %v1266 = vpack.c.b16 %v1217, %v1217
  %v1267 = vpack.c.b16 %v1218, %v1218
  %v1268 = vpack.c.b16 %v1219, %v1219
  %v1269 = vpack.c.b16 %v1220, %v1220
  %v1270 = vpack.c.b16 %v1221, %v1221
  %v1271 = vpack.c.b16 %v1222, %v1222
  %v1272 = vpack.c.b16 %v1223, %v1223
  %v1273 = vpack.c.b16 %v1224, %v1224
  %v1274 = vpack.c.b16 %v1225, %v1225
  %v1275 = vpack.c.b16 %v1226, %v1226
  %v1276 = vpack.c.b16 %v1227, %v1227
  %v1277 = vpack.c.b16 %v1228, %v1228
  %v1278 = vpack.c.b16 %v1229, %v1229
  %v1279 = vpack.c.b16 %v1230, %v1230
  %v1280 = vpack.c.b16 %v1231, %v1231
  %v1281 = vpack.c.b16 %v1232, %v1232
  %v1282 = vpack.c.b16 %v1233, %v1233
  %v1283 = vpack.c.b16 %v1234, %v1234
  %v1284 = vpack.c.b16 %v1235, %v1235
  %v1285 = vpack.c.b16 %v1236, %v1236
  %v1286 = vpack.c.b16 %v1237, %v1237
  %v1287 = vpack.c.b16 %v1238, %v1238
  %v1288 = vpack.c.b16 %v1239, %v1239
  %v1289 = vpack.c.b16 %v1240, %v1240
  %v1290 = vpack.c.b16 %v1241, %v1241
  %v1291 = vpack.c.b16 %v1242, %v1242
  %v1292 = vpack.c.b16 %v1243, %v1243
  %v1293 = vpack.c.b16 %v1244, %v1244
  %v1294 = vpack.c.b16 %v1245, %v1245
  %v1295 = vpack.c.b16 %v1246, %v1246
  %v1296 = vpack.c.b16 %v1247, %v1247
  %v1297 = vpack.c.b16 %v1248, %v1248
  %v1298 = vpack.c.b16 %v1249, %v1249
  %1348 = vst [vmem:[%s4] sm:$0xf] %v1250
  %1349 = vst [vmem:[%s4 + $0x4] sm:$0xf] %v1251
  %1350 = vst [vmem:[%s4 + $0x8] sm:$0xf] %v1252
  %1351 = vst [vmem:[%s4 + $0xc] sm:$0xf] %v1253
  %1352 = vst [vmem:[%s4 + $0x10] sm:$0xf] %v1254
  %1353 = vst [vmem:[%s4 + $0x14] sm:$0xf] %v1255
  %1354 = vst [vmem:[%s4 + $0x18] sm:$0xf] %v1256
  %1355 = vst [vmem:[%s4 + $0x1c] sm:$0xf] %v1257
  %1356 = vst [vmem:[%s4 + $0x20] sm:$0xf] %v1258
  %1357 = vst [vmem:[%s4 + $0x24] sm:$0xf] %v1259
  %1358 = vst [vmem:[%s4 + $0x28] sm:$0xf] %v1260
  %1359 = vst [vmem:[%s4 + $0x2c] sm:$0xf] %v1261
  %1360 = vst [vmem:[%s4 + $0x30] sm:$0xf] %v1262
  %1361 = vst [vmem:[%s4 + $0x34] sm:$0xf] %v1263
  %1362 = vst [vmem:[%s4 + $0x38] sm:$0xf] %v1264
  %1363 = vst [vmem:[%s4 + $0x3c] sm:$0xf] %v1265
  %1364 = vst [vmem:[%s4 + $0x40] sm:$0xf] %v1266
  %1365 = vst [vmem:[%s4 + $0x44] sm:$0xf] %v1267
  %1366 = vst [vmem:[%s4 + $0x48] sm:$0xf] %v1268
  %1367 = vst [vmem:[%s4 + $0x4c] sm:$0xf] %v1269
  %1368 = vst [vmem:[%s4 + $0x50] sm:$0xf] %v1270
  %1369 = vst [vmem:[%s4 + $0x54] sm:$0xf] %v1271
  %1370 = vst [vmem:[%s4 + $0x58] sm:$0xf] %v1272
  %1371 = vst [vmem:[%s4 + $0x5c] sm:$0xf] %v1273
  %1372 = vst [vmem:[%s4 + $0x60] sm:$0xf] %v1274
  %1373 = vst [vmem:[%s4 + $0x64] sm:$0xf] %v1275
  %1374 = vst [vmem:[%s4 + $0x68] sm:$0xf] %v1276
  %1375 = vst [vmem:[%s4 + $0x6c] sm:$0xf] %v1277
  %1376 = vst [vmem:[%s4 + $0x70] sm:$0xf] %v1278
  %1377 = vst [vmem:[%s4 + $0x74] sm:$0xf] %v1279
  %1378 = vst [vmem:[%s4 + $0x78] sm:$0xf] %v1280
  %1379 = vst [vmem:[%s4 + $0x7c] sm:$0xf] %v1281
  %1380 = vst [vmem:[%s4 + $0x80] sm:$0xf] %v1282
  %1381 = vst [vmem:[%s4 + $0x84] sm:$0xf] %v1283
  %1382 = vst [vmem:[%s4 + $0x88] sm:$0xf] %v1284
  %1383 = vst [vmem:[%s4 + $0x8c] sm:$0xf] %v1285
  %1384 = vst [vmem:[%s4 + $0x90] sm:$0xf] %v1286
  %1385 = vst [vmem:[%s4 + $0x94] sm:$0xf] %v1287
  %1386 = vst [vmem:[%s4 + $0x98] sm:$0xf] %v1288
  %1387 = vst [vmem:[%s4 + $0x9c] sm:$0xf] %v1289
  %1388 = vst [vmem:[%s4 + $0xa0] sm:$0xf] %v1290
  %1389 = vst [vmem:[%s4 + $0xa4] sm:$0xf] %v1291
  %1390 = vst [vmem:[%s4 + $0xa8] sm:$0xf] %v1292
  %1391 = vst [vmem:[%s4 + $0xac] sm:$0xf] %v1293
  %1392 = vst [vmem:[%s4 + $0xb0] sm:$0xf] %v1294
  %1393 = vst [vmem:[%s4 + $0xb4] sm:$0xf] %v1295
  %1394 = vst [vmem:[%s4 + $0xb8] sm:$0xf] %v1296
  %1395 = vst [vmem:[%s4 + $0xbc] sm:$0xf] %v1297
  %1396 = vst [vmem:[%s4 + $0xc0] sm:$0xf] %v1298
  %v1397 = vpack.c.bf16 %v711, %v708
  %v1398 = vpack.c.bf16 %v719, %v716
  %v1399 = vpack.c.bf16 %v727, %v724
  %v1400 = vpack.c.bf16 %v735, %v732
  %v1401 = vpack.c.bf16 %v743, %v740
  %v1402 = vpack.c.bf16 %v751, %v748
  %v1403 = vpack.c.bf16 %v759, %v756
  %v1404 = vpack.c.bf16 %v767, %v764
  %v1405 = vpack.c.bf16 %v775, %v772
  %v1406 = vpack.c.bf16 %v783, %v780
  %v1407 = vpack.c.bf16 %v791, %v788
  %v1408 = vpack.c.bf16 %v799, %v796
  %v1409 = vpack.c.bf16 %v807, %v804
  %v1410 = vpack.c.bf16 %v815, %v812
  %v1411 = vpack.c.bf16 %v823, %v820
  %v1412 = vpack.c.bf16 %v831, %v828
  %v1413 = vpack.c.bf16 %v839, %v836
  %v1414 = vpack.c.bf16 %v847, %v844
  %v1415 = vpack.c.bf16 %v855, %v852
  %v1416 = vpack.c.bf16 %v863, %v860
  %v1417 = vpack.c.bf16 %v871, %v868
  %v1418 = vpack.c.bf16 %v879, %v876
  %v1419 = vpack.c.bf16 %v887, %v884
  %v1420 = vpack.c.bf16 %v895, %v892
  %v1421 = vpack.c.bf16 %v900, %v900
  %v1447 = vunpack.c.l.b16 %v1397
  %v1448 = vunpack.c.h.b16 %v1397
  %v1449 = vunpack.c.l.b16 %v1398
  %v1450 = vunpack.c.h.b16 %v1398
  %v1451 = vunpack.c.l.b16 %v1399
  %v1452 = vunpack.c.h.b16 %v1399
  %v1453 = vunpack.c.l.b16 %v1400
  %v1454 = vunpack.c.h.b16 %v1400
  %v1455 = vunpack.c.l.b16 %v1401
  %v1456 = vunpack.c.h.b16 %v1401
  %v1457 = vunpack.c.l.b16 %v1402
  %v1458 = vunpack.c.h.b16 %v1402
  %v1459 = vunpack.c.l.b16 %v1403
  %v1460 = vunpack.c.h.b16 %v1403
  %v1461 = vunpack.c.l.b16 %v1404
  %v1462 = vunpack.c.h.b16 %v1404
  %v1463 = vunpack.c.l.b16 %v1405
  %v1464 = vunpack.c.h.b16 %v1405
  %v1465 = vunpack.c.l.b16 %v1406
  %v1466 = vunpack.c.h.b16 %v1406
  %v1467 = vunpack.c.l.b16 %v1407
  %v1468 = vunpack.c.h.b16 %v1407
  %v1469 = vunpack.c.l.b16 %v1408
  %v1470 = vunpack.c.h.b16 %v1408
  %v1471 = vunpack.c.l.b16 %v1409
  %v1472 = vunpack.c.h.b16 %v1409
  %v1473 = vunpack.c.l.b16 %v1410
  %v1474 = vunpack.c.h.b16 %v1410
  %v1475 = vunpack.c.l.b16 %v1411
  %v1476 = vunpack.c.h.b16 %v1411
  %v1477 = vunpack.c.l.b16 %v1412
  %v1478 = vunpack.c.h.b16 %v1412
  %v1479 = vunpack.c.l.b16 %v1413
  %v1480 = vunpack.c.h.b16 %v1413
  %v1481 = vunpack.c.l.b16 %v1414
  %v1482 = vunpack.c.h.b16 %v1414
  %v1483 = vunpack.c.l.b16 %v1415
  %v1484 = vunpack.c.h.b16 %v1415
  %v1485 = vunpack.c.l.b16 %v1416
  %v1486 = vunpack.c.h.b16 %v1416
  %v1487 = vunpack.c.l.b16 %v1417
  %v1488 = vunpack.c.h.b16 %v1417
  %v1489 = vunpack.c.l.b16 %v1418
  %v1490 = vunpack.c.h.b16 %v1418
  %v1491 = vunpack.c.l.b16 %v1419
  %v1492 = vunpack.c.h.b16 %v1419
  %v1493 = vunpack.c.l.b16 %v1420
  %v1494 = vunpack.c.h.b16 %v1420
  %v1495 = vunpack.c.l.b16 %v1421
  %v1496 = vpack.c.b16 %v1447, %v1447
  %v1497 = vpack.c.b16 %v1448, %v1448
  %v1498 = vpack.c.b16 %v1449, %v1449
  %v1499 = vpack.c.b16 %v1450, %v1450
  %v1500 = vpack.c.b16 %v1451, %v1451
  %v1501 = vpack.c.b16 %v1452, %v1452
  %v1502 = vpack.c.b16 %v1453, %v1453
  %v1503 = vpack.c.b16 %v1454, %v1454
  %v1504 = vpack.c.b16 %v1455, %v1455
  %v1505 = vpack.c.b16 %v1456, %v1456
  %v1506 = vpack.c.b16 %v1457, %v1457
  %v1507 = vpack.c.b16 %v1458, %v1458
  %v1508 = vpack.c.b16 %v1459, %v1459
  %v1509 = vpack.c.b16 %v1460, %v1460
  %v1510 = vpack.c.b16 %v1461, %v1461
  %v1511 = vpack.c.b16 %v1462, %v1462
  %v1512 = vpack.c.b16 %v1463, %v1463
  %v1513 = vpack.c.b16 %v1464, %v1464
  %v1514 = vpack.c.b16 %v1465, %v1465
  %v1515 = vpack.c.b16 %v1466, %v1466
  %v1516 = vpack.c.b16 %v1467, %v1467
  %v1517 = vpack.c.b16 %v1468, %v1468
  %v1518 = vpack.c.b16 %v1469, %v1469
  %v1519 = vpack.c.b16 %v1470, %v1470
  %v1520 = vpack.c.b16 %v1471, %v1471
  %v1521 = vpack.c.b16 %v1472, %v1472
  %v1522 = vpack.c.b16 %v1473, %v1473
  %v1523 = vpack.c.b16 %v1474, %v1474
  %v1524 = vpack.c.b16 %v1475, %v1475
  %v1525 = vpack.c.b16 %v1476, %v1476
  %v1526 = vpack.c.b16 %v1477, %v1477
  %v1527 = vpack.c.b16 %v1478, %v1478
  %v1528 = vpack.c.b16 %v1479, %v1479
  %v1529 = vpack.c.b16 %v1480, %v1480
  %v1530 = vpack.c.b16 %v1481, %v1481
  %v1531 = vpack.c.b16 %v1482, %v1482
  %v1532 = vpack.c.b16 %v1483, %v1483
  %v1533 = vpack.c.b16 %v1484, %v1484
  %v1534 = vpack.c.b16 %v1485, %v1485
  %v1535 = vpack.c.b16 %v1486, %v1486
  %v1536 = vpack.c.b16 %v1487, %v1487
  %v1537 = vpack.c.b16 %v1488, %v1488
  %v1538 = vpack.c.b16 %v1489, %v1489
  %v1539 = vpack.c.b16 %v1490, %v1490
  %v1540 = vpack.c.b16 %v1491, %v1491
  %v1541 = vpack.c.b16 %v1492, %v1492
  %v1542 = vpack.c.b16 %v1493, %v1493
  %v1543 = vpack.c.b16 %v1494, %v1494
  %v1544 = vpack.c.b16 %v1495, %v1495
  %1594 = vst [vmem:[%s5] sm:$0xf] %v1496
  %1595 = vst [vmem:[%s5 + $0x4] sm:$0xf] %v1497
  %1596 = vst [vmem:[%s5 + $0x8] sm:$0xf] %v1498
  %1597 = vst [vmem:[%s5 + $0xc] sm:$0xf] %v1499
  %1598 = vst [vmem:[%s5 + $0x10] sm:$0xf] %v1500
  %1599 = vst [vmem:[%s5 + $0x14] sm:$0xf] %v1501
  %1600 = vst [vmem:[%s5 + $0x18] sm:$0xf] %v1502
  %1601 = vst [vmem:[%s5 + $0x1c] sm:$0xf] %v1503
  %1602 = vst [vmem:[%s5 + $0x20] sm:$0xf] %v1504
  %1603 = vst [vmem:[%s5 + $0x24] sm:$0xf] %v1505
  %1604 = vst [vmem:[%s5 + $0x28] sm:$0xf] %v1506
  %1605 = vst [vmem:[%s5 + $0x2c] sm:$0xf] %v1507
  %1606 = vst [vmem:[%s5 + $0x30] sm:$0xf] %v1508
  %1607 = vst [vmem:[%s5 + $0x34] sm:$0xf] %v1509
  %1608 = vst [vmem:[%s5 + $0x38] sm:$0xf] %v1510
  %1609 = vst [vmem:[%s5 + $0x3c] sm:$0xf] %v1511
  %1610 = vst [vmem:[%s5 + $0x40] sm:$0xf] %v1512
  %1611 = vst [vmem:[%s5 + $0x44] sm:$0xf] %v1513
  %1612 = vst [vmem:[%s5 + $0x48] sm:$0xf] %v1514
  %1613 = vst [vmem:[%s5 + $0x4c] sm:$0xf] %v1515
  %1614 = vst [vmem:[%s5 + $0x50] sm:$0xf] %v1516
  %1615 = vst [vmem:[%s5 + $0x54] sm:$0xf] %v1517
  %1616 = vst [vmem:[%s5 + $0x58] sm:$0xf] %v1518
  %1617 = vst [vmem:[%s5 + $0x5c] sm:$0xf] %v1519
  %1618 = vst [vmem:[%s5 + $0x60] sm:$0xf] %v1520
  %1619 = vst [vmem:[%s5 + $0x64] sm:$0xf] %v1521
  %1620 = vst [vmem:[%s5 + $0x68] sm:$0xf] %v1522
  %1621 = vst [vmem:[%s5 + $0x6c] sm:$0xf] %v1523
  %1622 = vst [vmem:[%s5 + $0x70] sm:$0xf] %v1524
  %1623 = vst [vmem:[%s5 + $0x74] sm:$0xf] %v1525
  %1624 = vst [vmem:[%s5 + $0x78] sm:$0xf] %v1526
  %1625 = vst [vmem:[%s5 + $0x7c] sm:$0xf] %v1527
  %1626 = vst [vmem:[%s5 + $0x80] sm:$0xf] %v1528
  %1627 = vst [vmem:[%s5 + $0x84] sm:$0xf] %v1529
  %1628 = vst [vmem:[%s5 + $0x88] sm:$0xf] %v1530
  %1629 = vst [vmem:[%s5 + $0x8c] sm:$0xf] %v1531
  %1630 = vst [vmem:[%s5 + $0x90] sm:$0xf] %v1532
  %1631 = vst [vmem:[%s5 + $0x94] sm:$0xf] %v1533
  %1632 = vst [vmem:[%s5 + $0x98] sm:$0xf] %v1534
  %1633 = vst [vmem:[%s5 + $0x9c] sm:$0xf] %v1535
  %1634 = vst [vmem:[%s5 + $0xa0] sm:$0xf] %v1536
  %1635 = vst [vmem:[%s5 + $0xa4] sm:$0xf] %v1537
  %1636 = vst [vmem:[%s5 + $0xa8] sm:$0xf] %v1538
  %1637 = vst [vmem:[%s5 + $0xac] sm:$0xf] %v1539
  %1638 = vst [vmem:[%s5 + $0xb0] sm:$0xf] %v1540
  %1639 = vst [vmem:[%s5 + $0xb4] sm:$0xf] %v1541
  %1640 = vst [vmem:[%s5 + $0xb8] sm:$0xf] %v1542
  %1641 = vst [vmem:[%s5 + $0xbc] sm:$0xf] %v1543
  %1642 = vst [vmem:[%s5 + $0xc0] sm:$0xf] %v1544
  // Predicated region
  $region14: #{deformable_window_attention_forward.2} parent=0 // pred_check
    _
  $region15: #{deformable_window_attention_forward.2} parent=0 // pred_check_branch
    %1644 = sbr.rel (0) target = $region17
  $region16: #{deformable_window_attention_forward.2} parent=0 // pred_region
    _
  $region17: #{deformable_window_attention_forward.2} parent=0 // pred_fallthru
    _
  // Predicated region
  $region18: #{deformable_window_attention_forward.2} parent=0 // pred_check
    _
  $region19: #{deformable_window_attention_forward.2} parent=0 // pred_check_branch
    %1646 = sbr.rel (0) target = $region21
  $region20: #{deformable_window_attention_forward.2} parent=0 // pred_region
    _
  $region21: #{deformable_window_attention_forward.2} parent=0 // pred_fallthru
    _
  // Predicated region
  $region22: #{deformable_window_attention_forward.2} parent=0 // pred_check
    _
  $region23: #{deformable_window_attention_forward.2} parent=0 // pred_check_branch
    %1648 = sbr.rel (0) target = $region25
  $region24: #{deformable_window_attention_forward.2} parent=0 // pred_region
    _
  $region25: #{deformable_window_attention_forward.2} parent=0 // pred_fallthru
    _
  // Predicated region
  $region26: #{deformable_window_attention_forward.2} parent=0 // pred_check
    _
  $region27: #{deformable_window_attention_forward.2} parent=0 // pred_check_branch
    %1650 = sbr.rel (0) target = $region29
  $region28: #{deformable_window_attention_forward.2} parent=0 // pred_region
    _
  $region29: #{deformable_window_attention_forward.2} parent=0 // pred_fallthru
    _
  // Predicated region
  $region30: #{deformable_window_attention_forward.2} parent=0 // pred_check
    _
  $region31: #{deformable_window_attention_forward.2} parent=0 // pred_check_branch
    %1652 = sbr.rel (0) target = $region33
  $region32: #{deformable_window_attention_forward.2} parent=0 // pred_region
    _
  $region33: #{deformable_window_attention_forward.2} parent=0 // pred_fallthru
    _
  // Predicated region
  $region34: #{deformable_window_attention_forward.2} parent=0 // pred_check
    _
  $region35: #{deformable_window_attention_forward.2} parent=0 // pred_check_branch
    %1654 = sbr.rel (0) target = $region37
  $region36: #{deformable_window_attention_forward.2} parent=0 // pred_region
    _
  $region37: #{deformable_window_attention_forward.2} parent=0 // pred_fallthru
    _

// kernel: sub.53
$region0: #{sub.53}
  %s0 = inlined_call_operand.vmem [shape: s32[2,4,4], index: 0, kind: input, shape index: {}]
  %s1 = inlined_call_operand.vmem [shape: s32[2,16], index: 1, kind: output, shape index: {}]
  $region1: #{sub.53} parent=0
    #allocation0 [shape = 'u8[4096]{0}', space=vmem, size = 0x1000, scoped, tag = 'scoped mem for output reshape']
    #allocation1 [shape = 'u8[8192]{0}', space=vmem, size = 0x2000, scoped, tag = 'scoped mem for input reshape']
    %s3 = sshll.u32 1, 4
    %s4 = ssub.s32 %s3, 1
    %s5 = scalar_lea.vmem %s0, 4
    %v6 = vld [vmem:[%s5] sm:%s4]
    %s7 = scalar_lea.vmem [#allocation1], 8
    %8 = vst [vmem:[%s7] sm:%s4] %v6
    %v9 = vld [vmem:[%s0] sm:%s4]
    %10 = vst [vmem:[#allocation1] sm:%s4] %v9
    %s11 = smov 3
    %v12 = vld [vmem:[#allocation1] ss:$8 sm:%s11]
    %vm13 = vcmask 31744
    %14 = vst.msk [vmem:[#allocation0] sm:$0x3] %vm13, %v12
    %s15 = scalar_lea.vmem [#allocation1], 3
    %s16 = smov 3
    %v17 = vld [vmem:[%s15] ss:$8 sm:%s16]
    %18 = vrot.lane.b32.xlu0 %v17, 12
    %v19 = vpop.permute.xlu0 %18
    %vm20 = vcmask 130144
    %21 = vst.msk [vmem:[#allocation0] sm:$0x3] %vm20, %v19
    %s22 = scalar_lea.vmem [#allocation1], 2
    %s23 = smov 3
    %v24 = vld [vmem:[%s22] ss:$8 sm:%s23]
    %25 = vrot.lane.b32.xlu0 %v24, 8
    %v26 = vpop.permute.xlu0 %25
    %vm27 = vcmask 97344
    %28 = vst.msk [vmem:[#allocation0] sm:$0x3] %vm27, %v26
    %s29 = scalar_lea.vmem [#allocation1], 1
    %s30 = smov 3
    %v31 = vld [vmem:[%s29] ss:$8 sm:%s30]
    %32 = vrot.lane.b32.xlu0 %v31, 4
    %v33 = vpop.permute.xlu0 %32
    %vm34 = vcmask 64544
    %35 = vst.msk [vmem:[#allocation0] sm:$0x3] %vm34, %v33
    %s37 = sshll.u32 1, 2
    %s38 = ssub.s32 %s37, 1
    %v40 = vld [vmem:[#allocation0] sm:%s38]
    %s41 = sshll.u32 1, 2
    %s42 = ssub.s32 %s41, 1
    %43 = vst [vmem:[%s1] sm:%s42] %v40

// kernel: deformable_window_attention_forward.3
$region0: #{deformable_window_attention_forward.3}
  #allocation0 [shape = 'u32[]', space=smem, size = 0x4, offset = 0x4, fixed_abs, tag = 'smem constant byte address 0x4 - core index']
  #allocation1 [shape = 'u32[144,128]{1,0:T(1,128)}', space=vmem, size = 0x12000, scoped, tag = 'internal scratch']
  %s0 = inlined_call_operand.vmem [shape: bf16[4,4,128,32], index: 0, kind: input, shape index: {}]
  %s1 = inlined_call_operand.vmem [shape: bf16[4,4,128,32], index: 1, kind: input, shape index: {}]
  %s2 = inlined_call_operand.vmem [shape: bf16[4,4,128,32], index: 2, kind: input, shape index: {}]
  %s3 = inlined_call_operand.vmem [shape: f32[4,128,128], index: 3, kind: input, shape index: {}]
  %s4 = inlined_call_operand.vmem [shape: bf16[128,128], index: 4, kind: input, shape index: {}]
  %s5 = inlined_call_operand.vmem [shape: f32[1,128], index: 5, kind: input, shape index: {}]
  %s6 = inlined_call_operand.vmem [shape: f32[4,128,128], index: 6, kind: output, shape index: {}]
  %s7 = sld [smem:[#allocation0]]
  $region180: #{deformable_window_attention_forward.3} parent=0
    _
  %s9 = ssub.s32 1, %s7
  %s10 = scalar_select 0, %s9, %s7
  $region1: #{deformable_window_attention_forward.3} parent=0
    #allocation2 [shape = 'u8[262144]{0}', space=vmem, size = 0x40000, scoped, tag = 'input window, operand 0']
    #allocation3 [shape = 'u8[262144]{0}', space=vmem, size = 0x40000, scoped, tag = 'input window, operand 1']
    #allocation4 [shape = 'u8[262144]{0}', space=vmem, size = 0x40000, scoped, tag = 'input window, operand 2']
    loop: start=0, step=1, limit=6
    $region2: #{deformable_window_attention_forward.3} parent=1 // loop_pre_header
      _
    $region3: #{deformable_window_attention_forward.3} parent=1 // loop_header
      %s12 = sphi 0, %s16
      %p13 = scmp.ge.s32.totalorder %s12, 6
      %s22 = sphi 0, %s24
      %s25 = sphi 0, %s22
      %s26 = sphi 0, %s25
      %s42 = sphi 0, %s26
      %s48 = sphi 0, %s50
      %s51 = sphi 0, %s48
      %s52 = sphi 0, %s51
      %s68 = sphi 0, %s52
      %s74 = sphi 0, %s76
      %s77 = sphi 0, %s74
      %s78 = sphi 0, %s77
      %s94 = sphi 0, %s78
      %s98 = sphi 0, %s98
      %s100 = sphi 0, %s98
      %s101 = sphi 0, %s100
      %s115 = sphi 0, %s101
      %s119 = sphi 0, %s119
      %s121 = sphi 0, %s119
      %s122 = sphi 0, %s121
      %s136 = sphi 0, %s122
      %s140 = sphi 0, %s140
      %s142 = sphi 0, %s140
      %s143 = sphi 0, %s142
      %s157 = sphi 0, %s143
      %s163 = sphi 0, %s165
      %s166 = sphi 0, %s163
      %s167 = sphi 0, %s166
      %s183 = sphi 0, %s167
    $region4: #{deformable_window_attention_forward.3} parent=1 // loop_header_branch
      %15 = sbr.rel (%p13) target = $region8
    $region5: #{deformable_window_attention_forward.3} parent=1 // loop_body
      %s17 = ssub.s32 %s12, 1
      %s18 = ssub.s32 %s12, 2
      %s19 = sadd.s32 %s12, 1
      %s20 = ssub.s32 %s12, %s19
      %p21 = scmp.eq.s32.totalorder %s20, 0
      %s23 = sadd.s32 %s22, 1
      %s24 = scalar_select %p21, %s22, %s23
      %p27 = pneg %p21
      %p28 = scmp.eq.s32.totalorder %s12, 3
      %p29 = por %p27, %p28
      %p30 = scmp.ne.s32.totalorder %s22, %s25
      %p31 = scmp.eq.s32.totalorder %s12, 0
      %p32 = por %p30, %p31
      %p33 = scmp.ne.s32.totalorder %s22, %s25
      %p34 = scmp.eq.s32.totalorder %s17, 3
      %p35 = por %p33, %p34
      %p36 = scmp.ne.s32.totalorder %s25, %s26
      %p37 = scmp.eq.s32.totalorder %s17, 0
      %p38 = por %p36, %p37
      %p39 = scmp.ne.s32.totalorder %s25, %s26
      %p40 = scmp.eq.s32.totalorder %s18, 3
      %p41 = por %p39, %p40
      %p43 = scmp.ne.s32.totalorder %s26, %s42
      %p44 = scmp.eq.s32.totalorder %s18, 0
      %p45 = por %p43, %p44
      %s46 = ssub.s32 %s12, %s19
      %p47 = scmp.eq.s32.totalorder %s46, 0
      %s49 = sadd.s32 %s48, 1
      %s50 = scalar_select %p47, %s48, %s49
      %p53 = pneg %p47
      %p54 = scmp.eq.s32.totalorder %s12, 3
      %p55 = por %p53, %p54
      %p56 = scmp.ne.s32.totalorder %s48, %s51
      %p57 = scmp.eq.s32.totalorder %s12, 0
      %p58 = por %p56, %p57
      %p59 = scmp.ne.s32.totalorder %s48, %s51
      %p60 = scmp.eq.s32.totalorder %s17, 3
      %p61 = por %p59, %p60
      %p62 = scmp.ne.s32.totalorder %s51, %s52
      %p63 = scmp.eq.s32.totalorder %s17, 0
      %p64 = por %p62, %p63
      %p65 = scmp.ne.s32.totalorder %s51, %s52
      %p66 = scmp.eq.s32.totalorder %s18, 3
      %p67 = por %p65, %p66
      %p69 = scmp.ne.s32.totalorder %s52, %s68
      %p70 = scmp.eq.s32.totalorder %s18, 0
      %p71 = por %p69, %p70
      %s72 = ssub.s32 %s12, %s19
      %p73 = scmp.eq.s32.totalorder %s72, 0
      %s75 = sadd.s32 %s74, 1
      %s76 = scalar_select %p73, %s74, %s75
      %p79 = pneg %p73
      %p80 = scmp.eq.s32.totalorder %s12, 3
      %p81 = por %p79, %p80
      %p82 = scmp.ne.s32.totalorder %s74, %s77
      %p83 = scmp.eq.s32.totalorder %s12, 0
      %p84 = por %p82, %p83
      %p85 = scmp.ne.s32.totalorder %s74, %s77
      %p86 = scmp.eq.s32.totalorder %s17, 3
      %p87 = por %p85, %p86
      %p88 = scmp.ne.s32.totalorder %s77, %s78
      %p89 = scmp.eq.s32.totalorder %s17, 0
      %p90 = por %p88, %p89
      %p91 = scmp.ne.s32.totalorder %s77, %s78
      %p92 = scmp.eq.s32.totalorder %s18, 3
      %p93 = por %p91, %p92
      %p95 = scmp.ne.s32.totalorder %s78, %s94
      %p96 = scmp.eq.s32.totalorder %s18, 0
      %p97 = por %p95, %p96
      %s99 = sadd.s32 %s98, 1
      %p102 = scmp.eq.s32.totalorder %s12, 3
      %p103 = scmp.ne.s32.totalorder %s98, %s100
      %p104 = scmp.eq.s32.totalorder %s12, 0
      %p105 = por %p103, %p104
      %p106 = scmp.ne.s32.totalorder %s98, %s100
      %p107 = scmp.eq.s32.totalorder %s17, 3
      %p108 = por %p106, %p107
      %p109 = scmp.ne.s32.totalorder %s100, %s101
      %p110 = scmp.eq.s32.totalorder %s17, 0
      %p111 = por %p109, %p110
      %p112 = scmp.ne.s32.totalorder %s100, %s101
      %p113 = scmp.eq.s32.totalorder %s18, 3
      %p114 = por %p112, %p113
      %p116 = scmp.ne.s32.totalorder %s101, %s115
      %p117 = scmp.eq.s32.totalorder %s18, 0
      %p118 = por %p116, %p117
      %s120 = sadd.s32 %s119, 1
      %p123 = scmp.eq.s32.totalorder %s12, 3
      %p124 = scmp.ne.s32.totalorder %s119, %s121
      %p125 = scmp.eq.s32.totalorder %s12, 0
      %p126 = por %p124, %p125
      %p127 = scmp.ne.s32.totalorder %s119, %s121
      %p128 = scmp.eq.s32.totalorder %s17, 3
      %p129 = por %p127, %p128
      %p130 = scmp.ne.s32.totalorder %s121, %s122
      %p131 = scmp.eq.s32.totalorder %s17, 0
      %p132 = por %p130, %p131
      %p133 = scmp.ne.s32.totalorder %s121, %s122
      %p134 = scmp.eq.s32.totalorder %s18, 3
      %p135 = por %p133, %p134
      %p137 = scmp.ne.s32.totalorder %s122, %s136
      %p138 = scmp.eq.s32.totalorder %s18, 0
      %p139 = por %p137, %p138
      %s141 = sadd.s32 %s140, 1
      %p144 = scmp.eq.s32.totalorder %s12, 3
      %p145 = scmp.ne.s32.totalorder %s140, %s142
      %p146 = scmp.eq.s32.totalorder %s12, 0
      %p147 = por %p145, %p146
      %p148 = scmp.ne.s32.totalorder %s140, %s142
      %p149 = scmp.eq.s32.totalorder %s17, 3
      %p150 = por %p148, %p149
      %p151 = scmp.ne.s32.totalorder %s142, %s143
      %p152 = scmp.eq.s32.totalorder %s17, 0
      %p153 = por %p151, %p152
      %p154 = scmp.ne.s32.totalorder %s142, %s143
      %p155 = scmp.eq.s32.totalorder %s18, 3
      %p156 = por %p154, %p155
      %p158 = scmp.ne.s32.totalorder %s143, %s157
      %p159 = scmp.eq.s32.totalorder %s18, 0
      %p160 = por %p158, %p159
      %s161 = ssub.s32 %s12, %s19
      %p162 = scmp.eq.s32.totalorder %s161, 0
      %s164 = sadd.s32 %s163, 1
      %s165 = scalar_select %p162, %s163, %s164
      %p168 = pneg %p162
      %p169 = scmp.eq.s32.totalorder %s12, 3
      %p170 = por %p168, %p169
      %p171 = scmp.ne.s32.totalorder %s163, %s166
      %p172 = scmp.eq.s32.totalorder %s12, 0
      %p173 = por %p171, %p172
      %p174 = scmp.ne.s32.totalorder %s163, %s166
      %p175 = scmp.eq.s32.totalorder %s17, 3
      %p176 = por %p174, %p175
      %p177 = scmp.ne.s32.totalorder %s166, %s167
      %p178 = scmp.eq.s32.totalorder %s17, 0
      %p179 = por %p177, %p178
      %p180 = scmp.ne.s32.totalorder %s166, %s167
      %p181 = scmp.eq.s32.totalorder %s18, 3
      %p182 = por %p180, %p181
      %p184 = scmp.ne.s32.totalorder %s167, %s183
      %p185 = scmp.eq.s32.totalorder %s18, 0
      %p186 = por %p184, %p185
      %p187 = scmp.le.s32.totalorder 1, %s12
      %p188 = scmp.lt.s32.totalorder %s12, 5
      %p189 = pnand %p187, %p188
      %p190 = pneg %p189
      // Predicated region
      $region9: #{deformable_window_attention_forward.3} parent=5 // pred_check
        _
      $region10: #{deformable_window_attention_forward.3} parent=5 // pred_check_branch
        %192 = sbr.rel (%p189) target = $region12
      $region11: #{deformable_window_attention_forward.3} parent=5 // pred_region
        %s193 = ssub.s32 %s12, 1
        // Predicated region
        $region13: #{deformable_window_attention_forward.3} parent=11 // pred_check
          %p194 = pneg %p111
        $region14: #{deformable_window_attention_forward.3} parent=11 // pred_check_branch
          %196 = sbr.rel (%p194) target = $region16
        $region15: #{deformable_window_attention_forward.3} parent=11 // pred_region
          _
        $region16: #{deformable_window_attention_forward.3} parent=11 // pred_fallthru
          _
        // Predicated region
        $region17: #{deformable_window_attention_forward.3} parent=11 // pred_check
          %p197 = pneg %p132
        $region18: #{deformable_window_attention_forward.3} parent=11 // pred_check_branch
          %199 = sbr.rel (%p197) target = $region20
        $region19: #{deformable_window_attention_forward.3} parent=11 // pred_region
          _
        $region20: #{deformable_window_attention_forward.3} parent=11 // pred_fallthru
          _
        // Predicated region
        $region21: #{deformable_window_attention_forward.3} parent=11 // pred_check
          %p200 = pneg %p153
        $region22: #{deformable_window_attention_forward.3} parent=11 // pred_check_branch
          %202 = sbr.rel (%p200) target = $region24
        $region23: #{deformable_window_attention_forward.3} parent=11 // pred_region
          _
        $region24: #{deformable_window_attention_forward.3} parent=11 // pred_fallthru
          _
      $region12: #{deformable_window_attention_forward.3} parent=5 // pred_fallthru
        _
      %p203 = scmp.lt.s32.totalorder %s12, 4
      // Predicated region
      $region25: #{deformable_window_attention_forward.3} parent=5 // pred_check
        %p204 = pneg %p203
      $region26: #{deformable_window_attention_forward.3} parent=5 // pred_check_branch
        %206 = sbr.rel (%p204) target = $region28
      $region27: #{deformable_window_attention_forward.3} parent=5 // pred_region
        // Predicated region
        $region29: #{deformable_window_attention_forward.3} parent=27 // pred_check
          %p207 = pneg %p32
        $region30: #{deformable_window_attention_forward.3} parent=27 // pred_check_branch
          %209 = sbr.rel (%p207) target = $region32
        $region31: #{deformable_window_attention_forward.3} parent=27 // pred_region
          %s210 = sand.u32 %s22, 1
          %s211 = sand.u32 %s22, 1
          %s212 = smul.addr %s211, 256
          %s213 = scalar_lea.vmem [#allocation2], %s212
          %s214 = smul.addr %s12, 16
          %s215 = smul.addr %s214, 4
          %s216 = scalar_lea.vmem %s0, %s215
          // Predicated region
          $region33: #{deformable_window_attention_forward.3} parent=31 // pred_check
            _
          $region34: #{deformable_window_attention_forward.3} parent=31 // pred_check_branch
            %218 = sbr.rel (0) target = $region36
          $region35: #{deformable_window_attention_forward.3} parent=31 // pred_region
            // Predicated region
            $region37: #{deformable_window_attention_forward.3} parent=35 // pred_check
              _
            $region38: #{deformable_window_attention_forward.3} parent=35 // pred_check_branch
              %220 = sbr.rel target = $region40
            $region39: #{deformable_window_attention_forward.3} parent=35 // pred_region
              // Predicated region
              $region52: #{deformable_window_attention_forward.3} parent=39 // pred_check
                _
              $region53: #{deformable_window_attention_forward.3} parent=39 // pred_check_branch
                %362 = sbr.rel (0) target = $region55
              $region54: #{deformable_window_attention_forward.3} parent=39 // pred_region
                loop: start=0, step=1, limit=1
                $region56: #{deformable_window_attention_forward.3} parent=54 // loop_pre_header
                  _
                $region57: #{deformable_window_attention_forward.3} parent=54 // loop_header
                  %s364 = sphi 0, %s368
                  %p365 = scmp.ge.s32.totalorder %s364, 1
                  %s369 = sphi %s216, %s216
                  %s370 = sphi %s213, %s213
                $region58: #{deformable_window_attention_forward.3} parent=54 // loop_header_branch
                  %367 = sbr.rel (%p365) target = $region62
                $region59: #{deformable_window_attention_forward.3} parent=54 // loop_body
                  _
                $region60: #{deformable_window_attention_forward.3} parent=54 // loop_footer
                  %s368 = sadd.s32 1, %s364
                $region61: #{deformable_window_attention_forward.3} parent=54 // loop_footer_branch
                  %363 = sbr.rel target = $region57
                $region62: #{deformable_window_attention_forward.3} parent=54 // loop_exit
                  _
                %s372 = ssub.s32 16, 1
                loop: start=0, step=1, limit=1
                $region63: #{deformable_window_attention_forward.3} parent=54 // loop_pre_header
                  _
                $region64: #{deformable_window_attention_forward.3} parent=54 // loop_header
                  %s374 = sphi 0, %s378
                  %p375 = scmp.ge.s32.totalorder %s374, 1
                  %s379 = sphi %s216, %s216
                  %s380 = sphi %s213, %s213
                $region65: #{deformable_window_attention_forward.3} parent=54 // loop_header_branch
                  %377 = sbr.rel (%p375) target = $region69
                $region66: #{deformable_window_attention_forward.3} parent=54 // loop_body
                  %v381 = vld [vmem:[%s379] sm:%s372]
                  %382 = vst [vmem:[%s380] sm:%s372] %v381
                  %v383 = vld [vmem:[%s379 + $0x4] sm:%s372]
                  %384 = vst [vmem:[%s380 + $0x4] sm:%s372] %v383
                  %v385 = vld [vmem:[%s379 + $0x8] sm:%s372]
                  %386 = vst [vmem:[%s380 + $0x8] sm:%s372] %v385
                  %v387 = vld [vmem:[%s379 + $0xc] sm:%s372]
                  %388 = vst [vmem:[%s380 + $0xc] sm:%s372] %v387
                  %v389 = vld [vmem:[%s379 + $0x10] sm:%s372]
                  %390 = vst [vmem:[%s380 + $0x10] sm:%s372] %v389
                  %v391 = vld [vmem:[%s379 + $0x14] sm:%s372]
                  %392 = vst [vmem:[%s380 + $0x14] sm:%s372] %v391
                  %v393 = vld [vmem:[%s379 + $0x18] sm:%s372]
                  %394 = vst [vmem:[%s380 + $0x18] sm:%s372] %v393
                  %v395 = vld [vmem:[%s379 + $0x1c] sm:%s372]
                  %396 = vst [vmem:[%s380 + $0x1c] sm:%s372] %v395
                  %v397 = vld [vmem:[%s379 + $0x20] sm:%s372]
                  %398 = vst [vmem:[%s380 + $0x20] sm:%s372] %v397
                  %v399 = vld [vmem:[%s379 + $0x24] sm:%s372]
                  %400 = vst [vmem:[%s380 + $0x24] sm:%s372] %v399
                  %v401 = vld [vmem:[%s379 + $0x28] sm:%s372]
                  %402 = vst [vmem:[%s380 + $0x28] sm:%s372] %v401
                  %v403 = vld [vmem:[%s379 + $0x2c] sm:%s372]
                  %404 = vst [vmem:[%s380 + $0x2c] sm:%s372] %v403
                  %v405 = vld [vmem:[%s379 + $0x30] sm:%s372]
                  %406 = vst [vmem:[%s380 + $0x30] sm:%s372] %v405
                  %v407 = vld [vmem:[%s379 + $0x34] sm:%s372]
                  %408 = vst [vmem:[%s380 + $0x34] sm:%s372] %v407
                  %v409 = vld [vmem:[%s379 + $0x38] sm:%s372]
                  %410 = vst [vmem:[%s380 + $0x38] sm:%s372] %v409
                  %v411 = vld [vmem:[%s379 + $0x3c] sm:%s372]
                  %412 = vst [vmem:[%s380 + $0x3c] sm:%s372] %v411
                  %v413 = vld [vmem:[%s379 + $0x100] sm:%s372]
                  %414 = vst [vmem:[%s380 + $0x40] sm:%s372] %v413
                  %v415 = vld [vmem:[%s379 + $0x104] sm:%s372]
                  %416 = vst [vmem:[%s380 + $0x44] sm:%s372] %v415
                  %v417 = vld [vmem:[%s379 + $0x108] sm:%s372]
                  %418 = vst [vmem:[%s380 + $0x48] sm:%s372] %v417
                  %v419 = vld [vmem:[%s379 + $0x10c] sm:%s372]
                  %420 = vst [vmem:[%s380 + $0x4c] sm:%s372] %v419
                  %v421 = vld [vmem:[%s379 + $0x110] sm:%s372]
                  %422 = vst [vmem:[%s380 + $0x50] sm:%s372] %v421
                  %v423 = vld [vmem:[%s379 + $0x114] sm:%s372]
                  %424 = vst [vmem:[%s380 + $0x54] sm:%s372] %v423
                  %v425 = vld [vmem:[%s379 + $0x118] sm:%s372]
                  %426 = vst [vmem:[%s380 + $0x58] sm:%s372] %v425
                  %v427 = vld [vmem:[%s379 + $0x11c] sm:%s372]
                  %428 = vst [vmem:[%s380 + $0x5c] sm:%s372] %v427
                  %v429 = vld [vmem:[%s379 + $0x120] sm:%s372]
                  %430 = vst [vmem:[%s380 + $0x60] sm:%s372] %v429
                  %v431 = vld [vmem:[%s379 + $0x124] sm:%s372]
                  %432 = vst [vmem:[%s380 + $0x64] sm:%s372] %v431
                  %v433 = vld [vmem:[%s379 + $0x128] sm:%s372]
                  %434 = vst [vmem:[%s380 + $0x68] sm:%s372] %v433
                  %v435 = vld [vmem:[%s379 + $0x12c] sm:%s372]
                  %436 = vst [vmem:[%s380 + $0x6c] sm:%s372] %v435
                  %v437 = vld [vmem:[%s379 + $0x130] sm:%s372]
                  %438 = vst [vmem:[%s380 + $0x70] sm:%s372] %v437
                  %v439 = vld [vmem:[%s379 + $0x134] sm:%s372]
                  %440 = vst [vmem:[%s380 + $0x74] sm:%s372] %v439
                  %v441 = vld [vmem:[%s379 + $0x138] sm:%s372]
                  %442 = vst [vmem:[%s380 + $0x78] sm:%s372] %v441
                  %v443 = vld [vmem:[%s379 + $0x13c] sm:%s372]
                  %444 = vst [vmem:[%s380 + $0x7c] sm:%s372] %v443
                  %v445 = vld [vmem:[%s379 + $0x200] sm:%s372]
                  %446 = vst [vmem:[%s380 + $0x80] sm:%s372] %v445
                  %v447 = vld [vmem:[%s379 + $0x204] sm:%s372]
                  %448 = vst [vmem:[%s380 + $0x84] sm:%s372] %v447
                  %v449 = vld [vmem:[%s379 + $0x208] sm:%s372]
                  %450 = vst [vmem:[%s380 + $0x88] sm:%s372] %v449
                  %v451 = vld [vmem:[%s379 + $0x20c] sm:%s372]
                  %452 = vst [vmem:[%s380 + $0x8c] sm:%s372] %v451
                  %v453 = vld [vmem:[%s379 + $0x210] sm:%s372]
                  %454 = vst [vmem:[%s380 + $0x90] sm:%s372] %v453
                  %v455 = vld [vmem:[%s379 + $0x214] sm:%s372]
                  %456 = vst [vmem:[%s380 + $0x94] sm:%s372] %v455
                  %v457 = vld [vmem:[%s379 + $0x218] sm:%s372]
                  %458 = vst [vmem:[%s380 + $0x98] sm:%s372] %v457
                  %v459 = vld [vmem:[%s379 + $0x21c] sm:%s372]
                  %460 = vst [vmem:[%s380 + $0x9c] sm:%s372] %v459
                  %v461 = vld [vmem:[%s379 + $0x220] sm:%s372]
                  %462 = vst [vmem:[%s380 + $0xa0] sm:%s372] %v461
                  %v463 = vld [vmem:[%s379 + $0x224] sm:%s372]
                  %464 = vst [vmem:[%s380 + $0xa4] sm:%s372] %v463
                  %v465 = vld [vmem:[%s379 + $0x228] sm:%s372]
                  %466 = vst [vmem:[%s380 + $0xa8] sm:%s372] %v465
                  %v467 = vld [vmem:[%s379 + $0x22c] sm:%s372]
                  %468 = vst [vmem:[%s380 + $0xac] sm:%s372] %v467
                  %v469 = vld [vmem:[%s379 + $0x230] sm:%s372]
                  %470 = vst [vmem:[%s380 + $0xb0] sm:%s372] %v469
                  %v471 = vld [vmem:[%s379 + $0x234] sm:%s372]
                  %472 = vst [vmem:[%s380 + $0xb4] sm:%s372] %v471
                  %v473 = vld [vmem:[%s379 + $0x238] sm:%s372]
                  %474 = vst [vmem:[%s380 + $0xb8] sm:%s372] %v473
                  %v475 = vld [vmem:[%s379 + $0x23c] sm:%s372]
                  %476 = vst [vmem:[%s380 + $0xbc] sm:%s372] %v475
                  %v477 = vld [vmem:[%s379 + $0x300] sm:%s372]
                  %478 = vst [vmem:[%s380 + $0xc0] sm:%s372] %v477
                  %v479 = vld [vmem:[%s379 + $0x304] sm:%s372]
                  %480 = vst [vmem:[%s380 + $0xc4] sm:%s372] %v479
                  %v481 = vld [vmem:[%s379 + $0x308] sm:%s372]
                  %482 = vst [vmem:[%s380 + $0xc8] sm:%s372] %v481
                  %v483 = vld [vmem:[%s379 + $0x30c] sm:%s372]
                  %484 = vst [vmem:[%s380 + $0xcc] sm:%s372] %v483
                  %v485 = vld [vmem:[%s379 + $0x310] sm:%s372]
                  %486 = vst [vmem:[%s380 + $0xd0] sm:%s372] %v485
                  %v487 = vld [vmem:[%s379 + $0x314] sm:%s372]
                  %488 = vst [vmem:[%s380 + $0xd4] sm:%s372] %v487
                  %v489 = vld [vmem:[%s379 + $0x318] sm:%s372]
                  %490 = vst [vmem:[%s380 + $0xd8] sm:%s372] %v489
                  %v491 = vld [vmem:[%s379 + $0x31c] sm:%s372]
                  %492 = vst [vmem:[%s380 + $0xdc] sm:%s372] %v491
                  %v493 = vld [vmem:[%s379 + $0x320] sm:%s372]
                  %494 = vst [vmem:[%s380 + $0xe0] sm:%s372] %v493
                  %v495 = vld [vmem:[%s379 + $0x324] sm:%s372]
                  %496 = vst [vmem:[%s380 + $0xe4] sm:%s372] %v495
                  %v497 = vld [vmem:[%s379 + $0x328] sm:%s372]
                  %498 = vst [vmem:[%s380 + $0xe8] sm:%s372] %v497
                  %v499 = vld [vmem:[%s379 + $0x32c] sm:%s372]
                  %500 = vst [vmem:[%s380 + $0xec] sm:%s372] %v499
                  %v501 = vld [vmem:[%s379 + $0x330] sm:%s372]
                  %502 = vst [vmem:[%s380 + $0xf0] sm:%s372] %v501
                  %v503 = vld [vmem:[%s379 + $0x334] sm:%s372]
                  %504 = vst [vmem:[%s380 + $0xf4] sm:%s372] %v503
                  %v505 = vld [vmem:[%s379 + $0x338] sm:%s372]
                  %506 = vst [vmem:[%s380 + $0xf8] sm:%s372] %v505
                  %v507 = vld [vmem:[%s379 + $0x33c] sm:%s372]
                  %508 = vst [vmem:[%s380 + $0xfc] sm:%s372] %v507
                $region67: #{deformable_window_attention_forward.3} parent=54 // loop_footer
                  %s378 = sadd.s32 1, %s374
                $region68: #{deformable_window_attention_forward.3} parent=54 // loop_footer_branch
                  %373 = sbr.rel target = $region64
                $region69: #{deformable_window_attention_forward.3} parent=54 // loop_exit
                  _
              $region55: #{deformable_window_attention_forward.3} parent=39 // pred_fallthru
                _
            $region40: #{deformable_window_attention_forward.3} parent=35 // pred_fallthru
              _
            // Predicated region
            $region41: #{deformable_window_attention_forward.3} parent=35 // pred_check
              _
            $region42: #{deformable_window_attention_forward.3} parent=35 // pred_check_branch
              %222 = sbr.rel (0) target = $region44
            $region43: #{deformable_window_attention_forward.3} parent=35 // pred_region
              %s224 = ssub.s32 16, 1
              loop: start=0, step=1, limit=1
              $region45: #{deformable_window_attention_forward.3} parent=43 // loop_pre_header
                _
              $region46: #{deformable_window_attention_forward.3} parent=43 // loop_header
                %s226 = sphi 0, %s230
                %p227 = scmp.ge.s32.totalorder %s226, 1
                %s231 = sphi %s216, %s216
                %s232 = sphi %s213, %s213
              $region47: #{deformable_window_attention_forward.3} parent=43 // loop_header_branch
                %229 = sbr.rel (%p227) target = $region51
              $region48: #{deformable_window_attention_forward.3} parent=43 // loop_body
                %v233 = vld [vmem:[%s231] sm:%s224]
                %234 = vst [vmem:[%s232] sm:%s224] %v233
                %v235 = vld [vmem:[%s231 + $0x4] sm:%s224]
                %236 = vst [vmem:[%s232 + $0x4] sm:%s224] %v235
                %v237 = vld [vmem:[%s231 + $0x8] sm:%s224]
                %238 = vst [vmem:[%s232 + $0x8] sm:%s224] %v237
                %v239 = vld [vmem:[%s231 + $0xc] sm:%s224]
                %240 = vst [vmem:[%s232 + $0xc] sm:%s224] %v239
                %v241 = vld [vmem:[%s231 + $0x10] sm:%s224]
                %242 = vst [vmem:[%s232 + $0x10] sm:%s224] %v241
                %v243 = vld [vmem:[%s231 + $0x14] sm:%s224]
                %244 = vst [vmem:[%s232 + $0x14] sm:%s224] %v243
                %v245 = vld [vmem:[%s231 + $0x18] sm:%s224]
                %246 = vst [vmem:[%s232 + $0x18] sm:%s224] %v245
                %v247 = vld [vmem:[%s231 + $0x1c] sm:%s224]
                %248 = vst [vmem:[%s232 + $0x1c] sm:%s224] %v247
                %v249 = vld [vmem:[%s231 + $0x20] sm:%s224]
                %250 = vst [vmem:[%s232 + $0x20] sm:%s224] %v249
                %v251 = vld [vmem:[%s231 + $0x24] sm:%s224]
                %252 = vst [vmem:[%s232 + $0x24] sm:%s224] %v251
                %v253 = vld [vmem:[%s231 + $0x28] sm:%s224]
                %254 = vst [vmem:[%s232 + $0x28] sm:%s224] %v253
                %v255 = vld [vmem:[%s231 + $0x2c] sm:%s224]
                %256 = vst [vmem:[%s232 + $0x2c] sm:%s224] %v255
                %v257 = vld [vmem:[%s231 + $0x30] sm:%s224]
                %258 = vst [vmem:[%s232 + $0x30] sm:%s224] %v257
                %v259 = vld [vmem:[%s231 + $0x34] sm:%s224]
                %260 = vst [vmem:[%s232 + $0x34] sm:%s224] %v259
                %v261 = vld [vmem:[%s231 + $0x38] sm:%s224]
                %262 = vst [vmem:[%s232 + $0x38] sm:%s224] %v261
                %v263 = vld [vmem:[%s231 + $0x3c] sm:%s224]
                %264 = vst [vmem:[%s232 + $0x3c] sm:%s224] %v263
                %v265 = vld [vmem:[%s231 + $0x100] sm:%s224]
                %266 = vst [vmem:[%s232 + $0x40] sm:%s224] %v265
                %v267 = vld [vmem:[%s231 + $0x104] sm:%s224]
                %268 = vst [vmem:[%s232 + $0x44] sm:%s224] %v267
                %v269 = vld [vmem:[%s231 + $0x108] sm:%s224]
                %270 = vst [vmem:[%s232 + $0x48] sm:%s224] %v269
                %v271 = vld [vmem:[%s231 + $0x10c] sm:%s224]
                %272 = vst [vmem:[%s232 + $0x4c] sm:%s224] %v271
                %v273 = vld [vmem:[%s231 + $0x110] sm:%s224]
                %274 = vst [vmem:[%s232 + $0x50] sm:%s224] %v273
                %v275 = vld [vmem:[%s231 + $0x114] sm:%s224]
                %276 = vst [vmem:[%s232 + $0x54] sm:%s224] %v275
                %v277 = vld [vmem:[%s231 + $0x118] sm:%s224]
                %278 = vst [vmem:[%s232 + $0x58] sm:%s224] %v277
                %v279 = vld [vmem:[%s231 + $0x11c] sm:%s224]
                %280 = vst [vmem:[%s232 + $0x5c] sm:%s224] %v279
                %v281 = vld [vmem:[%s231 + $0x120] sm:%s224]
                %282 = vst [vmem:[%s232 + $0x60] sm:%s224] %v281
                %v283 = vld [vmem:[%s231 + $0x124] sm:%s224]
                %284 = vst [vmem:[%s232 + $0x64] sm:%s224] %v283
                %v285 = vld [vmem:[%s231 + $0x128] sm:%s224]
                %286 = vst [vmem:[%s232 + $0x68] sm:%s224] %v285
                %v287 = vld [vmem:[%s231 + $0x12c] sm:%s224]
                %288 = vst [vmem:[%s232 + $0x6c] sm:%s224] %v287
                %v289 = vld [vmem:[%s231 + $0x130] sm:%s224]
                %290 = vst [vmem:[%s232 + $0x70] sm:%s224] %v289
                %v291 = vld [vmem:[%s231 + $0x134] sm:%s224]
                %292 = vst [vmem:[%s232 + $0x74] sm:%s224] %v291
                %v293 = vld [vmem:[%s231 + $0x138] sm:%s224]
                %294 = vst [vmem:[%s232 + $0x78] sm:%s224] %v293
                %v295 = vld [vmem:[%s231 + $0x13c] sm:%s224]
                %296 = vst [vmem:[%s232 + $0x7c] sm:%s224] %v295
                %v297 = vld [vmem:[%s231 + $0x200] sm:%s224]
                %298 = vst [vmem:[%s232 + $0x80] sm:%s224] %v297
                %v299 = vld [vmem:[%s231 + $0x204] sm:%s224]
                %300 = vst [vmem:[%s232 + $0x84] sm:%s224] %v299
                %v301 = vld [vmem:[%s231 + $0x208] sm:%s224]
                %302 = vst [vmem:[%s232 + $0x88] sm:%s224] %v301
                %v303 = vld [vmem:[%s231 + $0x20c] sm:%s224]
                %304 = vst [vmem:[%s232 + $0x8c] sm:%s224] %v303
                %v305 = vld [vmem:[%s231 + $0x210] sm:%s224]
                %306 = vst [vmem:[%s232 + $0x90] sm:%s224] %v305
                %v307 = vld [vmem:[%s231 + $0x214] sm:%s224]
                %308 = vst [vmem:[%s232 + $0x94] sm:%s224] %v307
                %v309 = vld [vmem:[%s231 + $0x218] sm:%s224]
                %310 = vst [vmem:[%s232 + $0x98] sm:%s224] %v309
                %v311 = vld [vmem:[%s231 + $0x21c] sm:%s224]
                %312 = vst [vmem:[%s232 + $0x9c] sm:%s224] %v311
                %v313 = vld [vmem:[%s231 + $0x220] sm:%s224]
                %314 = vst [vmem:[%s232 + $0xa0] sm:%s224] %v313
                %v315 = vld [vmem:[%s231 + $0x224] sm:%s224]
                %316 = vst [vmem:[%s232 + $0xa4] sm:%s224] %v315
                %v317 = vld [vmem:[%s231 + $0x228] sm:%s224]
                %318 = vst [vmem:[%s232 + $0xa8] sm:%s224] %v317
                %v319 = vld [vmem:[%s231 + $0x22c] sm:%s224]
                %320 = vst [vmem:[%s232 + $0xac] sm:%s224] %v319
                %v321 = vld [vmem:[%s231 + $0x230] sm:%s224]
                %322 = vst [vmem:[%s232 + $0xb0] sm:%s224] %v321
                %v323 = vld [vmem:[%s231 + $0x234] sm:%s224]
                %324 = vst [vmem:[%s232 + $0xb4] sm:%s224] %v323
                %v325 = vld [vmem:[%s231 + $0x238] sm:%s224]
                %326 = vst [vmem:[%s232 + $0xb8] sm:%s224] %v325
                %v327 = vld [vmem:[%s231 + $0x23c] sm:%s224]
                %328 = vst [vmem:[%s232 + $0xbc] sm:%s224] %v327
                %v329 = vld [vmem:[%s231 + $0x300] sm:%s224]
                %330 = vst [vmem:[%s232 + $0xc0] sm:%s224] %v329
                %v331 = vld [vmem:[%s231 + $0x304] sm:%s224]
                %332 = vst [vmem:[%s232 + $0xc4] sm:%s224] %v331
                %v333 = vld [vmem:[%s231 + $0x308] sm:%s224]
                %334 = vst [vmem:[%s232 + $0xc8] sm:%s224] %v333
                %v335 = vld [vmem:[%s231 + $0x30c] sm:%s224]
                %336 = vst [vmem:[%s232 + $0xcc] sm:%s224] %v335
                %v337 = vld [vmem:[%s231 + $0x310] sm:%s224]
                %338 = vst [vmem:[%s232 + $0xd0] sm:%s224] %v337
                %v339 = vld [vmem:[%s231 + $0x314] sm:%s224]
                %340 = vst [vmem:[%s232 + $0xd4] sm:%s224] %v339
                %v341 = vld [vmem:[%s231 + $0x318] sm:%s224]
                %342 = vst [vmem:[%s232 + $0xd8] sm:%s224] %v341
                %v343 = vld [vmem:[%s231 + $0x31c] sm:%s224]
                %344 = vst [vmem:[%s232 + $0xdc] sm:%s224] %v343
                %v345 = vld [vmem:[%s231 + $0x320] sm:%s224]
                %346 = vst [vmem:[%s232 + $0xe0] sm:%s224] %v345
                %v347 = vld [vmem:[%s231 + $0x324] sm:%s224]
                %348 = vst [vmem:[%s232 + $0xe4] sm:%s224] %v347
                %v349 = vld [vmem:[%s231 + $0x328] sm:%s224]
                %350 = vst [vmem:[%s232 + $0xe8] sm:%s224] %v349
                %v351 = vld [vmem:[%s231 + $0x32c] sm:%s224]
                %352 = vst [vmem:[%s232 + $0xec] sm:%s224] %v351
                %v353 = vld [vmem:[%s231 + $0x330] sm:%s224]
                %354 = vst [vmem:[%s232 + $0xf0] sm:%s224] %v353
                %v355 = vld [vmem:[%s231 + $0x334] sm:%s224]
                %356 = vst [vmem:[%s232 + $0xf4] sm:%s224] %v355
                %v357 = vld [vmem:[%s231 + $0x338] sm:%s224]
                %358 = vst [vmem:[%s232 + $0xf8] sm:%s224] %v357
                %v359 = vld [vmem:[%s231 + $0x33c] sm:%s224]
                %360 = vst [vmem:[%s232 + $0xfc] sm:%s224] %v359
              $region49: #{deformable_window_attention_forward.3} parent=43 // loop_footer
                %s230 = sadd.s32 1, %s226
              $region50: #{deformable_window_attention_forward.3} parent=43 // loop_footer_branch
                %225 = sbr.rel target = $region46
              $region51: #{deformable_window_attention_forward.3} parent=43 // loop_exit
                _
            $region44: #{deformable_window_attention_forward.3} parent=35 // pred_fallthru
              _
          $region36: #{deformable_window_attention_forward.3} parent=31 // pred_fallthru
            _
          %509 = vnop
        $region32: #{deformable_window_attention_forward.3} parent=27 // pred_fallthru
          _
        // Predicated region
        $region70: #{deformable_window_attention_forward.3} parent=27 // pred_check
          %p510 = pneg %p58
        $region71: #{deformable_window_attention_forward.3} parent=27 // pred_check_branch
          %512 = sbr.rel (%p510) target = $region73
        $region72: #{deformable_window_attention_forward.3} parent=27 // pred_region
          %s513 = sand.u32 %s48, 1
          %s514 = sand.u32 %s48, 1
          %s515 = smul.addr %s514, 256
          %s516 = scalar_lea.vmem [#allocation3], %s515
          %s517 = smul.addr %s12, 16
          %s518 = smul.addr %s517, 4
          %s519 = scalar_lea.vmem %s1, %s518
          // Predicated region
          $region74: #{deformable_window_attention_forward.3} parent=72 // pred_check
            _
          $region75: #{deformable_window_attention_forward.3} parent=72 // pred_check_branch
            %521 = sbr.rel (0) target = $region77
          $region76: #{deformable_window_attention_forward.3} parent=72 // pred_region
            // Predicated region
            $region78: #{deformable_window_attention_forward.3} parent=76 // pred_check
              _
            $region79: #{deformable_window_attention_forward.3} parent=76 // pred_check_branch
              %523 = sbr.rel target = $region81
            $region80: #{deformable_window_attention_forward.3} parent=76 // pred_region
              // Predicated region
              $region93: #{deformable_window_attention_forward.3} parent=80 // pred_check
                _
              $region94: #{deformable_window_attention_forward.3} parent=80 // pred_check_branch
                %665 = sbr.rel (0) target = $region96
              $region95: #{deformable_window_attention_forward.3} parent=80 // pred_region
                loop: start=0, step=1, limit=1
                $region97: #{deformable_window_attention_forward.3} parent=95 // loop_pre_header
                  _
                $region98: #{deformable_window_attention_forward.3} parent=95 // loop_header
                  %s667 = sphi 0, %s671
                  %p668 = scmp.ge.s32.totalorder %s667, 1
                  %s672 = sphi %s519, %s519
                  %s673 = sphi %s516, %s516
                $region99: #{deformable_window_attention_forward.3} parent=95 // loop_header_branch
                  %670 = sbr.rel (%p668) target = $region103
                $region100: #{deformable_window_attention_forward.3} parent=95 // loop_body
                  _
                $region101: #{deformable_window_attention_forward.3} parent=95 // loop_footer
                  %s671 = sadd.s32 1, %s667
                $region102: #{deformable_window_attention_forward.3} parent=95 // loop_footer_branch
                  %666 = sbr.rel target = $region98
                $region103: #{deformable_window_attention_forward.3} parent=95 // loop_exit
                  _
                %s675 = ssub.s32 16, 1
                loop: start=0, step=1, limit=1
                $region104: #{deformable_window_attention_forward.3} parent=95 // loop_pre_header
                  _
                $region105: #{deformable_window_attention_forward.3} parent=95 // loop_header
                  %s677 = sphi 0, %s681
                  %p678 = scmp.ge.s32.totalorder %s677, 1
                  %s682 = sphi %s519, %s519
                  %s683 = sphi %s516, %s516
                $region106: #{deformable_window_attention_forward.3} parent=95 // loop_header_branch
                  %680 = sbr.rel (%p678) target = $region110
                $region107: #{deformable_window_attention_forward.3} parent=95 // loop_body
                  %v684 = vld [vmem:[%s682] sm:%s675]
                  %685 = vst [vmem:[%s683] sm:%s675] %v684
                  %v686 = vld [vmem:[%s682 + $0x4] sm:%s675]
                  %687 = vst [vmem:[%s683 + $0x4] sm:%s675] %v686
                  %v688 = vld [vmem:[%s682 + $0x8] sm:%s675]
                  %689 = vst [vmem:[%s683 + $0x8] sm:%s675] %v688
                  %v690 = vld [vmem:[%s682 + $0xc] sm:%s675]
                  %691 = vst [vmem:[%s683 + $0xc] sm:%s675] %v690
                  %v692 = vld [vmem:[%s682 + $0x10] sm:%s675]
                  %693 = vst [vmem:[%s683 + $0x10] sm:%s675] %v692
                  %v694 = vld [vmem:[%s682 + $0x14] sm:%s675]
                  %695 = vst [vmem:[%s683 + $0x14] sm:%s675] %v694
                  %v696 = vld [vmem:[%s682 + $0x18] sm:%s675]
                  %697 = vst [vmem:[%s683 + $0x18] sm:%s675] %v696
                  %v698 = vld [vmem:[%s682 + $0x1c] sm:%s675]
                  %699 = vst [vmem:[%s683 + $0x1c] sm:%s675] %v698
                  %v700 = vld [vmem:[%s682 + $0x20] sm:%s675]
                  %701 = vst [vmem:[%s683 + $0x20] sm:%s675] %v700
                  %v702 = vld [vmem:[%s682 + $0x24] sm:%s675]
                  %703 = vst [vmem:[%s683 + $0x24] sm:%s675] %v702
                  %v704 = vld [vmem:[%s682 + $0x28] sm:%s675]
                  %705 = vst [vmem:[%s683 + $0x28] sm:%s675] %v704
                  %v706 = vld [vmem:[%s682 + $0x2c] sm:%s675]
                  %707 = vst [vmem:[%s683 + $0x2c] sm:%s675] %v706
                  %v708 = vld [vmem:[%s682 + $0x30] sm:%s675]
                  %709 = vst [vmem:[%s683 + $0x30] sm:%s675] %v708
                  %v710 = vld [vmem:[%s682 + $0x34] sm:%s675]
                  %711 = vst [vmem:[%s683 + $0x34] sm:%s675] %v710
                  %v712 = vld [vmem:[%s682 + $0x38] sm:%s675]
                  %713 = vst [vmem:[%s683 + $0x38] sm:%s675] %v712
                  %v714 = vld [vmem:[%s682 + $0x3c] sm:%s675]
                  %715 = vst [vmem:[%s683 + $0x3c] sm:%s675] %v714
                  %v716 = vld [vmem:[%s682 + $0x100] sm:%s675]
                  %717 = vst [vmem:[%s683 + $0x40] sm:%s675] %v716
                  %v718 = vld [vmem:[%s682 + $0x104] sm:%s675]
                  %719 = vst [vmem:[%s683 + $0x44] sm:%s675] %v718
                  %v720 = vld [vmem:[%s682 + $0x108] sm:%s675]
                  %721 = vst [vmem:[%s683 + $0x48] sm:%s675] %v720
                  %v722 = vld [vmem:[%s682 + $0x10c] sm:%s675]
                  %723 = vst [vmem:[%s683 + $0x4c] sm:%s675] %v722
                  %v724 = vld [vmem:[%s682 + $0x110] sm:%s675]
                  %725 = vst [vmem:[%s683 + $0x50] sm:%s675] %v724
                  %v726 = vld [vmem:[%s682 + $0x114] sm:%s675]
                  %727 = vst [vmem:[%s683 + $0x54] sm:%s675] %v726
                  %v728 = vld [vmem:[%s682 + $0x118] sm:%s675]
                  %729 = vst [vmem:[%s683 + $0x58] sm:%s675] %v728
                  %v730 = vld [vmem:[%s682 + $0x11c] sm:%s675]
                  %731 = vst [vmem:[%s683 + $0x5c] sm:%s675] %v730
                  %v732 = vld [vmem:[%s682 + $0x120] sm:%s675]
                  %733 = vst [vmem:[%s683 + $0x60] sm:%s675] %v732
                  %v734 = vld [vmem:[%s682 + $0x124] sm:%s675]
                  %735 = vst [vmem:[%s683 + $0x64] sm:%s675] %v734
                  %v736 = vld [vmem:[%s682 + $0x128] sm:%s675]
                  %737 = vst [vmem:[%s683 + $0x68] sm:%s675] %v736
                  %v738 = vld [vmem:[%s682 + $0x12c] sm:%s675]
                  %739 = vst [vmem:[%s683 + $0x6c] sm:%s675] %v738
                  %v740 = vld [vmem:[%s682 + $0x130] sm:%s675]
                  %741 = vst [vmem:[%s683 + $0x70] sm:%s675] %v740
                  %v742 = vld [vmem:[%s682 + $0x134] sm:%s675]
                  %743 = vst [vmem:[%s683 + $0x74] sm:%s675] %v742
                  %v744 = vld [vmem:[%s682 + $0x138] sm:%s675]
                  %745 = vst [vmem:[%s683 + $0x78] sm:%s675] %v744
                  %v746 = vld [vmem:[%s682 + $0x13c] sm:%s675]
                  %747 = vst [vmem:[%s683 + $0x7c] sm:%s675] %v746
                  %v748 = vld [vmem:[%s682 + $0x200] sm:%s675]
                  %749 = vst [vmem:[%s683 + $0x80] sm:%s675] %v748
                  %v750 = vld [vmem:[%s682 + $0x204] sm:%s675]
                  %751 = vst [vmem:[%s683 + $0x84] sm:%s675] %v750
                  %v752 = vld [vmem:[%s682 + $0x208] sm:%s675]
                  %753 = vst [vmem:[%s683 + $0x88] sm:%s675] %v752
                  %v754 = vld [vmem:[%s682 + $0x20c] sm:%s675]
                  %755 = vst [vmem:[%s683 + $0x8c] sm:%s675] %v754
                  %v756 = vld [vmem:[%s682 + $0x210] sm:%s675]
                  %757 = vst [vmem:[%s683 + $0x90] sm:%s675] %v756
                  %v758 = vld [vmem:[%s682 + $0x214] sm:%s675]
                  %759 = vst [vmem:[%s683 + $0x94] sm:%s675] %v758
                  %v760 = vld [vmem:[%s682 + $0x218] sm:%s675]
                  %761 = vst [vmem:[%s683 + $0x98] sm:%s675] %v760
                  %v762 = vld [vmem:[%s682 + $0x21c] sm:%s675]
                  %763 = vst [vmem:[%s683 + $0x9c] sm:%s675] %v762
                  %v764 = vld [vmem:[%s682 + $0x220] sm:%s675]
                  %765 = vst [vmem:[%s683 + $0xa0] sm:%s675] %v764
                  %v766 = vld [vmem:[%s682 + $0x224] sm:%s675]
                  %767 = vst [vmem:[%s683 + $0xa4] sm:%s675] %v766
                  %v768 = vld [vmem:[%s682 + $0x228] sm:%s675]
                  %769 = vst [vmem:[%s683 + $0xa8] sm:%s675] %v768
                  %v770 = vld [vmem:[%s682 + $0x22c] sm:%s675]
                  %771 = vst [vmem:[%s683 + $0xac] sm:%s675] %v770
                  %v772 = vld [vmem:[%s682 + $0x230] sm:%s675]
                  %773 = vst [vmem:[%s683 + $0xb0] sm:%s675] %v772
                  %v774 = vld [vmem:[%s682 + $0x234] sm:%s675]
                  %775 = vst [vmem:[%s683 + $0xb4] sm:%s675] %v774
                  %v776 = vld [vmem:[%s682 + $0x238] sm:%s675]
                  %777 = vst [vmem:[%s683 + $0xb8] sm:%s675] %v776
                  %v778 = vld [vmem:[%s682 + $0x23c] sm:%s675]
                  %779 = vst [vmem:[%s683 + $0xbc] sm:%s675] %v778
                  %v780 = vld [vmem:[%s682 + $0x300] sm:%s675]
                  %781 = vst [vmem:[%s683 + $0xc0] sm:%s675] %v780
                  %v782 = vld [vmem:[%s682 + $0x304] sm:%s675]
                  %783 = vst [vmem:[%s683 + $0xc4] sm:%s675] %v782
                  %v784 = vld [vmem:[%s682 + $0x308] sm:%s675]
                  %785 = vst [vmem:[%s683 + $0xc8] sm:%s675] %v784
                  %v786 = vld [vmem:[%s682 + $0x30c] sm:%s675]
                  %787 = vst [vmem:[%s683 + $0xcc] sm:%s675] %v786
                  %v788 = vld [vmem:[%s682 + $0x310] sm:%s675]
                  %789 = vst [vmem:[%s683 + $0xd0] sm:%s675] %v788
                  %v790 = vld [vmem:[%s682 + $0x314] sm:%s675]
                  %791 = vst [vmem:[%s683 + $0xd4] sm:%s675] %v790
                  %v792 = vld [vmem:[%s682 + $0x318] sm:%s675]
                  %793 = vst [vmem:[%s683 + $0xd8] sm:%s675] %v792
                  %v794 = vld [vmem:[%s682 + $0x31c] sm:%s675]
                  %795 = vst [vmem:[%s683 + $0xdc] sm:%s675] %v794
                  %v796 = vld [vmem:[%s682 + $0x320] sm:%s675]
                  %797 = vst [vmem:[%s683 + $0xe0] sm:%s675] %v796
                  %v798 = vld [vmem:[%s682 + $0x324] sm:%s675]
                  %799 = vst [vmem:[%s683 + $0xe4] sm:%s675] %v798
                  %v800 = vld [vmem:[%s682 + $0x328] sm:%s675]
                  %801 = vst [vmem:[%s683 + $0xe8] sm:%s675] %v800
                  %v802 = vld [vmem:[%s682 + $0x32c] sm:%s675]
                  %803 = vst [vmem:[%s683 + $0xec] sm:%s675] %v802
                  %v804 = vld [vmem:[%s682 + $0x330] sm:%s675]
                  %805 = vst [vmem:[%s683 + $0xf0] sm:%s675] %v804
                  %v806 = vld [vmem:[%s682 + $0x334] sm:%s675]
                  %807 = vst [vmem:[%s683 + $0xf4] sm:%s675] %v806
                  %v808 = vld [vmem:[%s682 + $0x338] sm:%s675]
                  %809 = vst [vmem:[%s683 + $0xf8] sm:%s675] %v808
                  %v810 = vld [vmem:[%s682 + $0x33c] sm:%s675]
                  %811 = vst [vmem:[%s683 + $0xfc] sm:%s675] %v810
                $region108: #{deformable_window_attention_forward.3} parent=95 // loop_footer
                  %s681 = sadd.s32 1, %s677
                $region109: #{deformable_window_attention_forward.3} parent=95 // loop_footer_branch
                  %676 = sbr.rel target = $region105
                $region110: #{deformable_window_attention_forward.3} parent=95 // loop_exit
                  _
              $region96: #{deformable_window_attention_forward.3} parent=80 // pred_fallthru
                _
            $region81: #{deformable_window_attention_forward.3} parent=76 // pred_fallthru
              _
            // Predicated region
            $region82: #{deformable_window_attention_forward.3} parent=76 // pred_check
              _
            $region83: #{deformable_window_attention_forward.3} parent=76 // pred_check_branch
              %525 = sbr.rel (0) target = $region85
            $region84: #{deformable_window_attention_forward.3} parent=76 // pred_region
              %s527 = ssub.s32 16, 1
              loop: start=0, step=1, limit=1
              $region86: #{deformable_window_attention_forward.3} parent=84 // loop_pre_header
                _
              $region87: #{deformable_window_attention_forward.3} parent=84 // loop_header
                %s529 = sphi 0, %s533
                %p530 = scmp.ge.s32.totalorder %s529, 1
                %s534 = sphi %s519, %s519
                %s535 = sphi %s516, %s516
              $region88: #{deformable_window_attention_forward.3} parent=84 // loop_header_branch
                %532 = sbr.rel (%p530) target = $region92
              $region89: #{deformable_window_attention_forward.3} parent=84 // loop_body
                %v536 = vld [vmem:[%s534] sm:%s527]
                %537 = vst [vmem:[%s535] sm:%s527] %v536
                %v538 = vld [vmem:[%s534 + $0x4] sm:%s527]
                %539 = vst [vmem:[%s535 + $0x4] sm:%s527] %v538
                %v540 = vld [vmem:[%s534 + $0x8] sm:%s527]
                %541 = vst [vmem:[%s535 + $0x8] sm:%s527] %v540
                %v542 = vld [vmem:[%s534 + $0xc] sm:%s527]
                %543 = vst [vmem:[%s535 + $0xc] sm:%s527] %v542
                %v544 = vld [vmem:[%s534 + $0x10] sm:%s527]
                %545 = vst [vmem:[%s535 + $0x10] sm:%s527] %v544
                %v546 = vld [vmem:[%s534 + $0x14] sm:%s527]
                %547 = vst [vmem:[%s535 + $0x14] sm:%s527] %v546
                %v548 = vld [vmem:[%s534 + $0x18] sm:%s527]
                %549 = vst [vmem:[%s535 + $0x18] sm:%s527] %v548
                %v550 = vld [vmem:[%s534 + $0x1c] sm:%s527]
                %551 = vst [vmem:[%s535 + $0x1c] sm:%s527] %v550
                %v552 = vld [vmem:[%s534 + $0x20] sm:%s527]
                %553 = vst [vmem:[%s535 + $0x20] sm:%s527] %v552
                %v554 = vld [vmem:[%s534 + $0x24] sm:%s527]
                %555 = vst [vmem:[%s535 + $0x24] sm:%s527] %v554
                %v556 = vld [vmem:[%s534 + $0x28] sm:%s527]
                %557 = vst [vmem:[%s535 + $0x28] sm:%s527] %v556
                %v558 = vld [vmem:[%s534 + $0x2c] sm:%s527]
                %559 = vst [vmem:[%s535 + $0x2c] sm:%s527] %v558
                %v560 = vld [vmem:[%s534 + $0x30] sm:%s527]
                %561 = vst [vmem:[%s535 + $0x30] sm:%s527] %v560
                %v562 = vld [vmem:[%s534 + $0x34] sm:%s527]
                %563 = vst [vmem:[%s535 + $0x34] sm:%s527] %v562
                %v564 = vld [vmem:[%s534 + $0x38] sm:%s527]
                %565 = vst [vmem:[%s535 + $0x38] sm:%s527] %v564
                %v566 = vld [vmem:[%s534 + $0x3c] sm:%s527]
                %567 = vst [vmem:[%s535 + $0x3c] sm:%s527] %v566
                %v568 = vld [vmem:[%s534 + $0x100] sm:%s527]
                %569 = vst [vmem:[%s535 + $0x40] sm:%s527] %v568
                %v570 = vld [vmem:[%s534 + $0x104] sm:%s527]
                %571 = vst [vmem:[%s535 + $0x44] sm:%s527] %v570
                %v572 = vld [vmem:[%s534 + $0x108] sm:%s527]
                %573 = vst [vmem:[%s535 + $0x48] sm:%s527] %v572
                %v574 = vld [vmem:[%s534 + $0x10c] sm:%s527]
                %575 = vst [vmem:[%s535 + $0x4c] sm:%s527] %v574
                %v576 = vld [vmem:[%s534 + $0x110] sm:%s527]
                %577 = vst [vmem:[%s535 + $0x50] sm:%s527] %v576
                %v578 = vld [vmem:[%s534 + $0x114] sm:%s527]
                %579 = vst [vmem:[%s535 + $0x54] sm:%s527] %v578
                %v580 = vld [vmem:[%s534 + $0x118] sm:%s527]
                %581 = vst [vmem:[%s535 + $0x58] sm:%s527] %v580
                %v582 = vld [vmem:[%s534 + $0x11c] sm:%s527]
                %583 = vst [vmem:[%s535 + $0x5c] sm:%s527] %v582
                %v584 = vld [vmem:[%s534 + $0x120] sm:%s527]
                %585 = vst [vmem:[%s535 + $0x60] sm:%s527] %v584
                %v586 = vld [vmem:[%s534 + $0x124] sm:%s527]
                %587 = vst [vmem:[%s535 + $0x64] sm:%s527] %v586
                %v588 = vld [vmem:[%s534 + $0x128] sm:%s527]
                %589 = vst [vmem:[%s535 + $0x68] sm:%s527] %v588
                %v590 = vld [vmem:[%s534 + $0x12c] sm:%s527]
                %591 = vst [vmem:[%s535 + $0x6c] sm:%s527] %v590
                %v592 = vld [vmem:[%s534 + $0x130] sm:%s527]
                %593 = vst [vmem:[%s535 + $0x70] sm:%s527] %v592
                %v594 = vld [vmem:[%s534 + $0x134] sm:%s527]
                %595 = vst [vmem:[%s535 + $0x74] sm:%s527] %v594
                %v596 = vld [vmem:[%s534 + $0x138] sm:%s527]
                %597 = vst [vmem:[%s535 + $0x78] sm:%s527] %v596
                %v598 = vld [vmem:[%s534 + $0x13c] sm:%s527]
                %599 = vst [vmem:[%s535 + $0x7c] sm:%s527] %v598
                %v600 = vld [vmem:[%s534 + $0x200] sm:%s527]
                %601 = vst [vmem:[%s535 + $0x80] sm:%s527] %v600
                %v602 = vld [vmem:[%s534 + $0x204] sm:%s527]
                %603 = vst [vmem:[%s535 + $0x84] sm:%s527] %v602
                %v604 = vld [vmem:[%s534 + $0x208] sm:%s527]
                %605 = vst [vmem:[%s535 + $0x88] sm:%s527] %v604
                %v606 = vld [vmem:[%s534 + $0x20c] sm:%s527]
                %607 = vst [vmem:[%s535 + $0x8c] sm:%s527] %v606
                %v608 = vld [vmem:[%s534 + $0x210] sm:%s527]
                %609 = vst [vmem:[%s535 + $0x90] sm:%s527] %v608
                %v610 = vld [vmem:[%s534 + $0x214] sm:%s527]
                %611 = vst [vmem:[%s535 + $0x94] sm:%s527] %v610
                %v612 = vld [vmem:[%s534 + $0x218] sm:%s527]
                %613 = vst [vmem:[%s535 + $0x98] sm:%s527] %v612
                %v614 = vld [vmem:[%s534 + $0x21c] sm:%s527]
                %615 = vst [vmem:[%s535 + $0x9c] sm:%s527] %v614
                %v616 = vld [vmem:[%s534 + $0x220] sm:%s527]
                %617 = vst [vmem:[%s535 + $0xa0] sm:%s527] %v616
                %v618 = vld [vmem:[%s534 + $0x224] sm:%s527]
                %619 = vst [vmem:[%s535 + $0xa4] sm:%s527] %v618
                %v620 = vld [vmem:[%s534 + $0x228] sm:%s527]
                %621 = vst [vmem:[%s535 + $0xa8] sm:%s527] %v620
                %v622 = vld [vmem:[%s534 + $0x22c] sm:%s527]
                %623 = vst [vmem:[%s535 + $0xac] sm:%s527] %v622
                %v624 = vld [vmem:[%s534 + $0x230] sm:%s527]
                %625 = vst [vmem:[%s535 + $0xb0] sm:%s527] %v624
                %v626 = vld [vmem:[%s534 + $0x234] sm:%s527]
                %627 = vst [vmem:[%s535 + $0xb4] sm:%s527] %v626
                %v628 = vld [vmem:[%s534 + $0x238] sm:%s527]
                %629 = vst [vmem:[%s535 + $0xb8] sm:%s527] %v628
                %v630 = vld [vmem:[%s534 + $0x23c] sm:%s527]
                %631 = vst [vmem:[%s535 + $0xbc] sm:%s527] %v630
                %v632 = vld [vmem:[%s534 + $0x300] sm:%s527]
                %633 = vst [vmem:[%s535 + $0xc0] sm:%s527] %v632
                %v634 = vld [vmem:[%s534 + $0x304] sm:%s527]
                %635 = vst [vmem:[%s535 + $0xc4] sm:%s527] %v634
                %v636 = vld [vmem:[%s534 + $0x308] sm:%s527]
                %637 = vst [vmem:[%s535 + $0xc8] sm:%s527] %v636
                %v638 = vld [vmem:[%s534 + $0x30c] sm:%s527]
                %639 = vst [vmem:[%s535 + $0xcc] sm:%s527] %v638
                %v640 = vld [vmem:[%s534 + $0x310] sm:%s527]
                %641 = vst [vmem:[%s535 + $0xd0] sm:%s527] %v640
                %v642 = vld [vmem:[%s534 + $0x314] sm:%s527]
                %643 = vst [vmem:[%s535 + $0xd4] sm:%s527] %v642
                %v644 = vld [vmem:[%s534 + $0x318] sm:%s527]
                %645 = vst [vmem:[%s535 + $0xd8] sm:%s527] %v644
                %v646 = vld [vmem:[%s534 + $0x31c] sm:%s527]
                %647 = vst [vmem:[%s535 + $0xdc] sm:%s527] %v646
                %v648 = vld [vmem:[%s534 + $0x320] sm:%s527]
                %649 = vst [vmem:[%s535 + $0xe0] sm:%s527] %v648
                %v650 = vld [vmem:[%s534 + $0x324] sm:%s527]
                %651 = vst [vmem:[%s535 + $0xe4] sm:%s527] %v650
                %v652 = vld [vmem:[%s534 + $0x328] sm:%s527]
                %653 = vst [vmem:[%s535 + $0xe8] sm:%s527] %v652
                %v654 = vld [vmem:[%s534 + $0x32c] sm:%s527]
                %655 = vst [vmem:[%s535 + $0xec] sm:%s527] %v654
                %v656 = vld [vmem:[%s534 + $0x330] sm:%s527]
                %657 = vst [vmem:[%s535 + $0xf0] sm:%s527] %v656
                %v658 = vld [vmem:[%s534 + $0x334] sm:%s527]
                %659 = vst [vmem:[%s535 + $0xf4] sm:%s527] %v658
                %v660 = vld [vmem:[%s534 + $0x338] sm:%s527]
                %661 = vst [vmem:[%s535 + $0xf8] sm:%s527] %v660
                %v662 = vld [vmem:[%s534 + $0x33c] sm:%s527]
                %663 = vst [vmem:[%s535 + $0xfc] sm:%s527] %v662
              $region90: #{deformable_window_attention_forward.3} parent=84 // loop_footer
                %s533 = sadd.s32 1, %s529
              $region91: #{deformable_window_attention_forward.3} parent=84 // loop_footer_branch
                %528 = sbr.rel target = $region87
              $region92: #{deformable_window_attention_forward.3} parent=84 // loop_exit
                _
            $region85: #{deformable_window_attention_forward.3} parent=76 // pred_fallthru
              _
          $region77: #{deformable_window_attention_forward.3} parent=72 // pred_fallthru
            _
          %812 = vnop
        $region73: #{deformable_window_attention_forward.3} parent=27 // pred_fallthru
          _
        // Predicated region
        $region111: #{deformable_window_attention_forward.3} parent=27 // pred_check
          %p813 = pneg %p84
        $region112: #{deformable_window_attention_forward.3} parent=27 // pred_check_branch
          %815 = sbr.rel (%p813) target = $region114
        $region113: #{deformable_window_attention_forward.3} parent=27 // pred_region
          %s816 = sand.u32 %s74, 1
          %s817 = sand.u32 %s74, 1
          %s818 = smul.addr %s817, 256
          %s819 = scalar_lea.vmem [#allocation4], %s818
          %s820 = smul.addr %s12, 16
          %s821 = smul.addr %s820, 4
          %s822 = scalar_lea.vmem %s2, %s821
          // Predicated region
          $region115: #{deformable_window_attention_forward.3} parent=113 // pred_check
            _
          $region116: #{deformable_window_attention_forward.3} parent=113 // pred_check_branch
            %824 = sbr.rel (0) target = $region118
          $region117: #{deformable_window_attention_forward.3} parent=113 // pred_region
            // Predicated region
            $region119: #{deformable_window_attention_forward.3} parent=117 // pred_check
              _
            $region120: #{deformable_window_attention_forward.3} parent=117 // pred_check_branch
              %826 = sbr.rel target = $region122
            $region121: #{deformable_window_attention_forward.3} parent=117 // pred_region
              // Predicated region
              $region134: #{deformable_window_attention_forward.3} parent=121 // pred_check
                _
              $region135: #{deformable_window_attention_forward.3} parent=121 // pred_check_branch
                %968 = sbr.rel (0) target = $region137
              $region136: #{deformable_window_attention_forward.3} parent=121 // pred_region
                loop: start=0, step=1, limit=1
                $region138: #{deformable_window_attention_forward.3} parent=136 // loop_pre_header
                  _
                $region139: #{deformable_window_attention_forward.3} parent=136 // loop_header
                  %s970 = sphi 0, %s974
                  %p971 = scmp.ge.s32.totalorder %s970, 1
                  %s975 = sphi %s822, %s822
                  %s976 = sphi %s819, %s819
                $region140: #{deformable_window_attention_forward.3} parent=136 // loop_header_branch
                  %973 = sbr.rel (%p971) target = $region144
                $region141: #{deformable_window_attention_forward.3} parent=136 // loop_body
                  _
                $region142: #{deformable_window_attention_forward.3} parent=136 // loop_footer
                  %s974 = sadd.s32 1, %s970
                $region143: #{deformable_window_attention_forward.3} parent=136 // loop_footer_branch
                  %969 = sbr.rel target = $region139
                $region144: #{deformable_window_attention_forward.3} parent=136 // loop_exit
                  _
                %s978 = ssub.s32 16, 1
                loop: start=0, step=1, limit=1
                $region145: #{deformable_window_attention_forward.3} parent=136 // loop_pre_header
                  _
                $region146: #{deformable_window_attention_forward.3} parent=136 // loop_header
                  %s980 = sphi 0, %s984
                  %p981 = scmp.ge.s32.totalorder %s980, 1
                  %s985 = sphi %s822, %s822
                  %s986 = sphi %s819, %s819
                $region147: #{deformable_window_attention_forward.3} parent=136 // loop_header_branch
                  %983 = sbr.rel (%p981) target = $region151
                $region148: #{deformable_window_attention_forward.3} parent=136 // loop_body
                  %v987 = vld [vmem:[%s985] sm:%s978]
                  %988 = vst [vmem:[%s986] sm:%s978] %v987
                  %v989 = vld [vmem:[%s985 + $0x4] sm:%s978]
                  %990 = vst [vmem:[%s986 + $0x4] sm:%s978] %v989
                  %v991 = vld [vmem:[%s985 + $0x8] sm:%s978]
                  %992 = vst [vmem:[%s986 + $0x8] sm:%s978] %v991
                  %v993 = vld [vmem:[%s985 + $0xc] sm:%s978]
                  %994 = vst [vmem:[%s986 + $0xc] sm:%s978] %v993
                  %v995 = vld [vmem:[%s985 + $0x10] sm:%s978]
                  %996 = vst [vmem:[%s986 + $0x10] sm:%s978] %v995
                  %v997 = vld [vmem:[%s985 + $0x14] sm:%s978]
                  %998 = vst [vmem:[%s986 + $0x14] sm:%s978] %v997
                  %v999 = vld [vmem:[%s985 + $0x18] sm:%s978]
                  %1000 = vst [vmem:[%s986 + $0x18] sm:%s978] %v999
                  %v1001 = vld [vmem:[%s985 + $0x1c] sm:%s978]
                  %1002 = vst [vmem:[%s986 + $0x1c] sm:%s978] %v1001
                  %v1003 = vld [vmem:[%s985 + $0x20] sm:%s978]
                  %1004 = vst [vmem:[%s986 + $0x20] sm:%s978] %v1003
                  %v1005 = vld [vmem:[%s985 + $0x24] sm:%s978]
                  %1006 = vst [vmem:[%s986 + $0x24] sm:%s978] %v1005
                  %v1007 = vld [vmem:[%s985 + $0x28] sm:%s978]
                  %1008 = vst [vmem:[%s986 + $0x28] sm:%s978] %v1007
                  %v1009 = vld [vmem:[%s985 + $0x2c] sm:%s978]
                  %1010 = vst [vmem:[%s986 + $0x2c] sm:%s978] %v1009
                  %v1011 = vld [vmem:[%s985 + $0x30] sm:%s978]
                  %1012 = vst [vmem:[%s986 + $0x30] sm:%s978] %v1011
                  %v1013 = vld [vmem:[%s985 + $0x34] sm:%s978]
                  %1014 = vst [vmem:[%s986 + $0x34] sm:%s978] %v1013
                  %v1015 = vld [vmem:[%s985 + $0x38] sm:%s978]
                  %1016 = vst [vmem:[%s986 + $0x38] sm:%s978] %v1015
                  %v1017 = vld [vmem:[%s985 + $0x3c] sm:%s978]
                  %1018 = vst [vmem:[%s986 + $0x3c] sm:%s978] %v1017
                  %v1019 = vld [vmem:[%s985 + $0x100] sm:%s978]
                  %1020 = vst [vmem:[%s986 + $0x40] sm:%s978] %v1019
                  %v1021 = vld [vmem:[%s985 + $0x104] sm:%s978]
                  %1022 = vst [vmem:[%s986 + $0x44] sm:%s978] %v1021
                  %v1023 = vld [vmem:[%s985 + $0x108] sm:%s978]
                  %1024 = vst [vmem:[%s986 + $0x48] sm:%s978] %v1023
                  %v1025 = vld [vmem:[%s985 + $0x10c] sm:%s978]
                  %1026 = vst [vmem:[%s986 + $0x4c] sm:%s978] %v1025
                  %v1027 = vld [vmem:[%s985 + $0x110] sm:%s978]
                  %1028 = vst [vmem:[%s986 + $0x50] sm:%s978] %v1027
                  %v1029 = vld [vmem:[%s985 + $0x114] sm:%s978]
                  %1030 = vst [vmem:[%s986 + $0x54] sm:%s978] %v1029
                  %v1031 = vld [vmem:[%s985 + $0x118] sm:%s978]
                  %1032 = vst [vmem:[%s986 + $0x58] sm:%s978] %v1031
                  %v1033 = vld [vmem:[%s985 + $0x11c] sm:%s978]
                  %1034 = vst [vmem:[%s986 + $0x5c] sm:%s978] %v1033
                  %v1035 = vld [vmem:[%s985 + $0x120] sm:%s978]
                  %1036 = vst [vmem:[%s986 + $0x60] sm:%s978] %v1035
                  %v1037 = vld [vmem:[%s985 + $0x124] sm:%s978]
                  %1038 = vst [vmem:[%s986 + $0x64] sm:%s978] %v1037
                  %v1039 = vld [vmem:[%s985 + $0x128] sm:%s978]
                  %1040 = vst [vmem:[%s986 + $0x68] sm:%s978] %v1039
                  %v1041 = vld [vmem:[%s985 + $0x12c] sm:%s978]
                  %1042 = vst [vmem:[%s986 + $0x6c] sm:%s978] %v1041
                  %v1043 = vld [vmem:[%s985 + $0x130] sm:%s978]
                  %1044 = vst [vmem:[%s986 + $0x70] sm:%s978] %v1043
                  %v1045 = vld [vmem:[%s985 + $0x134] sm:%s978]
                  %1046 = vst [vmem:[%s986 + $0x74] sm:%s978] %v1045
                  %v1047 = vld [vmem:[%s985 + $0x138] sm:%s978]
                  %1048 = vst [vmem:[%s986 + $0x78] sm:%s978] %v1047
                  %v1049 = vld [vmem:[%s985 + $0x13c] sm:%s978]
                  %1050 = vst [vmem:[%s986 + $0x7c] sm:%s978] %v1049
                  %v1051 = vld [vmem:[%s985 + $0x200] sm:%s978]
                  %1052 = vst [vmem:[%s986 + $0x80] sm:%s978] %v1051
                  %v1053 = vld [vmem:[%s985 + $0x204] sm:%s978]
                  %1054 = vst [vmem:[%s986 + $0x84] sm:%s978] %v1053
                  %v1055 = vld [vmem:[%s985 + $0x208] sm:%s978]
                  %1056 = vst [vmem:[%s986 + $0x88] sm:%s978] %v1055
                  %v1057 = vld [vmem:[%s985 + $0x20c] sm:%s978]
                  %1058 = vst [vmem:[%s986 + $0x8c] sm:%s978] %v1057
                  %v1059 = vld [vmem:[%s985 + $0x210] sm:%s978]
                  %1060 = vst [vmem:[%s986 + $0x90] sm:%s978] %v1059
                  %v1061 = vld [vmem:[%s985 + $0x214] sm:%s978]
                  %1062 = vst [vmem:[%s986 + $0x94] sm:%s978] %v1061
                  %v1063 = vld [vmem:[%s985 + $0x218] sm:%s978]
                  %1064 = vst [vmem:[%s986 + $0x98] sm:%s978] %v1063
                  %v1065 = vld [vmem:[%s985 + $0x21c] sm:%s978]
                  %1066 = vst [vmem:[%s986 + $0x9c] sm:%s978] %v1065
                  %v1067 = vld [vmem:[%s985 + $0x220] sm:%s978]
                  %1068 = vst [vmem:[%s986 + $0xa0] sm:%s978] %v1067
                  %v1069 = vld [vmem:[%s985 + $0x224] sm:%s978]
                  %1070 = vst [vmem:[%s986 + $0xa4] sm:%s978] %v1069
                  %v1071 = vld [vmem:[%s985 + $0x228] sm:%s978]
                  %1072 = vst [vmem:[%s986 + $0xa8] sm:%s978] %v1071
                  %v1073 = vld [vmem:[%s985 + $0x22c] sm:%s978]
                  %1074 = vst [vmem:[%s986 + $0xac] sm:%s978] %v1073
                  %v1075 = vld [vmem:[%s985 + $0x230] sm:%s978]
                  %1076 = vst [vmem:[%s986 + $0xb0] sm:%s978] %v1075
                  %v1077 = vld [vmem:[%s985 + $0x234] sm:%s978]
                  %1078 = vst [vmem:[%s986 + $0xb4] sm:%s978] %v1077
                  %v1079 = vld [vmem:[%s985 + $0x238] sm:%s978]
                  %1080 = vst [vmem:[%s986 + $0xb8] sm:%s978] %v1079
                  %v1081 = vld [vmem:[%s985 + $0x23c] sm:%s978]
                  %1082 = vst [vmem:[%s986 + $0xbc] sm:%s978] %v1081
                  %v1083 = vld [vmem:[%s985 + $0x300] sm:%s978]
                  %1084 = vst [vmem:[%s986 + $0xc0] sm:%s978] %v1083
                  %v1085 = vld [vmem:[%s985 + $0x304] sm:%s978]
                  %1086 = vst [vmem:[%s986 + $0xc4] sm:%s978] %v1085
                  %v1087 = vld [vmem:[%s985 + $0x308] sm:%s978]
                  %1088 = vst [vmem:[%s986 + $0xc8] sm:%s978] %v1087
                  %v1089 = vld [vmem:[%s985 + $0x30c] sm:%s978]
                  %1090 = vst [vmem:[%s986 + $0xcc] sm:%s978] %v1089
                  %v1091 = vld [vmem:[%s985 + $0x310] sm:%s978]
                  %1092 = vst [vmem:[%s986 + $0xd0] sm:%s978] %v1091
                  %v1093 = vld [vmem:[%s985 + $0x314] sm:%s978]
                  %1094 = vst [vmem:[%s986 + $0xd4] sm:%s978] %v1093
                  %v1095 = vld [vmem:[%s985 + $0x318] sm:%s978]
                  %1096 = vst [vmem:[%s986 + $0xd8] sm:%s978] %v1095
                  %v1097 = vld [vmem:[%s985 + $0x31c] sm:%s978]
                  %1098 = vst [vmem:[%s986 + $0xdc] sm:%s978] %v1097
                  %v1099 = vld [vmem:[%s985 + $0x320] sm:%s978]
                  %1100 = vst [vmem:[%s986 + $0xe0] sm:%s978] %v1099
                  %v1101 = vld [vmem:[%s985 + $0x324] sm:%s978]
                  %1102 = vst [vmem:[%s986 + $0xe4] sm:%s978] %v1101
                  %v1103 = vld [vmem:[%s985 + $0x328] sm:%s978]
                  %1104 = vst [vmem:[%s986 + $0xe8] sm:%s978] %v1103
                  %v1105 = vld [vmem:[%s985 + $0x32c] sm:%s978]
                  %1106 = vst [vmem:[%s986 + $0xec] sm:%s978] %v1105
                  %v1107 = vld [vmem:[%s985 + $0x330] sm:%s978]
                  %1108 = vst [vmem:[%s986 + $0xf0] sm:%s978] %v1107
                  %v1109 = vld [vmem:[%s985 + $0x334] sm:%s978]
                  %1110 = vst [vmem:[%s986 + $0xf4] sm:%s978] %v1109
                  %v1111 = vld [vmem:[%s985 + $0x338] sm:%s978]
                  %1112 = vst [vmem:[%s986 + $0xf8] sm:%s978] %v1111
                  %v1113 = vld [vmem:[%s985 + $0x33c] sm:%s978]
                  %1114 = vst [vmem:[%s986 + $0xfc] sm:%s978] %v1113
                $region149: #{deformable_window_attention_forward.3} parent=136 // loop_footer
                  %s984 = sadd.s32 1, %s980
                $region150: #{deformable_window_attention_forward.3} parent=136 // loop_footer_branch
                  %979 = sbr.rel target = $region146
                $region151: #{deformable_window_attention_forward.3} parent=136 // loop_exit
                  _
              $region137: #{deformable_window_attention_forward.3} parent=121 // pred_fallthru
                _
            $region122: #{deformable_window_attention_forward.3} parent=117 // pred_fallthru
              _
            // Predicated region
            $region123: #{deformable_window_attention_forward.3} parent=117 // pred_check
              _
            $region124: #{deformable_window_attention_forward.3} parent=117 // pred_check_branch
              %828 = sbr.rel (0) target = $region126
            $region125: #{deformable_window_attention_forward.3} parent=117 // pred_region
              %s830 = ssub.s32 16, 1
              loop: start=0, step=1, limit=1
              $region127: #{deformable_window_attention_forward.3} parent=125 // loop_pre_header
                _
              $region128: #{deformable_window_attention_forward.3} parent=125 // loop_header
                %s832 = sphi 0, %s836
                %p833 = scmp.ge.s32.totalorder %s832, 1
                %s837 = sphi %s822, %s822
                %s838 = sphi %s819, %s819
              $region129: #{deformable_window_attention_forward.3} parent=125 // loop_header_branch
                %835 = sbr.rel (%p833) target = $region133
              $region130: #{deformable_window_attention_forward.3} parent=125 // loop_body
                %v839 = vld [vmem:[%s837] sm:%s830]
                %840 = vst [vmem:[%s838] sm:%s830] %v839
                %v841 = vld [vmem:[%s837 + $0x4] sm:%s830]
                %842 = vst [vmem:[%s838 + $0x4] sm:%s830] %v841
                %v843 = vld [vmem:[%s837 + $0x8] sm:%s830]
                %844 = vst [vmem:[%s838 + $0x8] sm:%s830] %v843
                %v845 = vld [vmem:[%s837 + $0xc] sm:%s830]
                %846 = vst [vmem:[%s838 + $0xc] sm:%s830] %v845
                %v847 = vld [vmem:[%s837 + $0x10] sm:%s830]
                %848 = vst [vmem:[%s838 + $0x10] sm:%s830] %v847
                %v849 = vld [vmem:[%s837 + $0x14] sm:%s830]
                %850 = vst [vmem:[%s838 + $0x14] sm:%s830] %v849
                %v851 = vld [vmem:[%s837 + $0x18] sm:%s830]
                %852 = vst [vmem:[%s838 + $0x18] sm:%s830] %v851
                %v853 = vld [vmem:[%s837 + $0x1c] sm:%s830]
                %854 = vst [vmem:[%s838 + $0x1c] sm:%s830] %v853
                %v855 = vld [vmem:[%s837 + $0x20] sm:%s830]
                %856 = vst [vmem:[%s838 + $0x20] sm:%s830] %v855
                %v857 = vld [vmem:[%s837 + $0x24] sm:%s830]
                %858 = vst [vmem:[%s838 + $0x24] sm:%s830] %v857
                %v859 = vld [vmem:[%s837 + $0x28] sm:%s830]
                %860 = vst [vmem:[%s838 + $0x28] sm:%s830] %v859
                %v861 = vld [vmem:[%s837 + $0x2c] sm:%s830]
                %862 = vst [vmem:[%s838 + $0x2c] sm:%s830] %v861
                %v863 = vld [vmem:[%s837 + $0x30] sm:%s830]
                %864 = vst [vmem:[%s838 + $0x30] sm:%s830] %v863
                %v865 = vld [vmem:[%s837 + $0x34] sm:%s830]
                %866 = vst [vmem:[%s838 + $0x34] sm:%s830] %v865
                %v867 = vld [vmem:[%s837 + $0x38] sm:%s830]
                %868 = vst [vmem:[%s838 + $0x38] sm:%s830] %v867
                %v869 = vld [vmem:[%s837 + $0x3c] sm:%s830]
                %870 = vst [vmem:[%s838 + $0x3c] sm:%s830] %v869
                %v871 = vld [vmem:[%s837 + $0x100] sm:%s830]
                %872 = vst [vmem:[%s838 + $0x40] sm:%s830] %v871
                %v873 = vld [vmem:[%s837 + $0x104] sm:%s830]
                %874 = vst [vmem:[%s838 + $0x44] sm:%s830] %v873
                %v875 = vld [vmem:[%s837 + $0x108] sm:%s830]
                %876 = vst [vmem:[%s838 + $0x48] sm:%s830] %v875
                %v877 = vld [vmem:[%s837 + $0x10c] sm:%s830]
                %878 = vst [vmem:[%s838 + $0x4c] sm:%s830] %v877
                %v879 = vld [vmem:[%s837 + $0x110] sm:%s830]
                %880 = vst [vmem:[%s838 + $0x50] sm:%s830] %v879
                %v881 = vld [vmem:[%s837 + $0x114] sm:%s830]
                %882 = vst [vmem:[%s838 + $0x54] sm:%s830] %v881
                %v883 = vld [vmem:[%s837 + $0x118] sm:%s830]
                %884 = vst [vmem:[%s838 + $0x58] sm:%s830] %v883
                %v885 = vld [vmem:[%s837 + $0x11c] sm:%s830]
                %886 = vst [vmem:[%s838 + $0x5c] sm:%s830] %v885
                %v887 = vld [vmem:[%s837 + $0x120] sm:%s830]
                %888 = vst [vmem:[%s838 + $0x60] sm:%s830] %v887
                %v889 = vld [vmem:[%s837 + $0x124] sm:%s830]
                %890 = vst [vmem:[%s838 + $0x64] sm:%s830] %v889
                %v891 = vld [vmem:[%s837 + $0x128] sm:%s830]
                %892 = vst [vmem:[%s838 + $0x68] sm:%s830] %v891
                %v893 = vld [vmem:[%s837 + $0x12c] sm:%s830]
                %894 = vst [vmem:[%s838 + $0x6c] sm:%s830] %v893
                %v895 = vld [vmem:[%s837 + $0x130] sm:%s830]
                %896 = vst [vmem:[%s838 + $0x70] sm:%s830] %v895
                %v897 = vld [vmem:[%s837 + $0x134] sm:%s830]
                %898 = vst [vmem:[%s838 + $0x74] sm:%s830] %v897
                %v899 = vld [vmem:[%s837 + $0x138] sm:%s830]
                %900 = vst [vmem:[%s838 + $0x78] sm:%s830] %v899
                %v901 = vld [vmem:[%s837 + $0x13c] sm:%s830]
                %902 = vst [vmem:[%s838 + $0x7c] sm:%s830] %v901
                %v903 = vld [vmem:[%s837 + $0x200] sm:%s830]
                %904 = vst [vmem:[%s838 + $0x80] sm:%s830] %v903
                %v905 = vld [vmem:[%s837 + $0x204] sm:%s830]
                %906 = vst [vmem:[%s838 + $0x84] sm:%s830] %v905
                %v907 = vld [vmem:[%s837 + $0x208] sm:%s830]
                %908 = vst [vmem:[%s838 + $0x88] sm:%s830] %v907
                %v909 = vld [vmem:[%s837 + $0x20c] sm:%s830]
                %910 = vst [vmem:[%s838 + $0x8c] sm:%s830] %v909
                %v911 = vld [vmem:[%s837 + $0x210] sm:%s830]
                %912 = vst [vmem:[%s838 + $0x90] sm:%s830] %v911
                %v913 = vld [vmem:[%s837 + $0x214] sm:%s830]
                %914 = vst [vmem:[%s838 + $0x94] sm:%s830] %v913
                %v915 = vld [vmem:[%s837 + $0x218] sm:%s830]
                %916 = vst [vmem:[%s838 + $0x98] sm:%s830] %v915
                %v917 = vld [vmem:[%s837 + $0x21c] sm:%s830]
                %918 = vst [vmem:[%s838 + $0x9c] sm:%s830] %v917
                %v919 = vld [vmem:[%s837 + $0x220] sm:%s830]
                %920 = vst [vmem:[%s838 + $0xa0] sm:%s830] %v919
                %v921 = vld [vmem:[%s837 + $0x224] sm:%s830]
                %922 = vst [vmem:[%s838 + $0xa4] sm:%s830] %v921
                %v923 = vld [vmem:[%s837 + $0x228] sm:%s830]
                %924 = vst [vmem:[%s838 + $0xa8] sm:%s830] %v923
                %v925 = vld [vmem:[%s837 + $0x22c] sm:%s830]
                %926 = vst [vmem:[%s838 + $0xac] sm:%s830] %v925
                %v927 = vld [vmem:[%s837 + $0x230] sm:%s830]
                %928 = vst [vmem:[%s838 + $0xb0] sm:%s830] %v927
                %v929 = vld [vmem:[%s837 + $0x234] sm:%s830]
                %930 = vst [vmem:[%s838 + $0xb4] sm:%s830] %v929
                %v931 = vld [vmem:[%s837 + $0x238] sm:%s830]
                %932 = vst [vmem:[%s838 + $0xb8] sm:%s830] %v931
                %v933 = vld [vmem:[%s837 + $0x23c] sm:%s830]
                %934 = vst [vmem:[%s838 + $0xbc] sm:%s830] %v933
                %v935 = vld [vmem:[%s837 + $0x300] sm:%s830]
                %936 = vst [vmem:[%s838 + $0xc0] sm:%s830] %v935
                %v937 = vld [vmem:[%s837 + $0x304] sm:%s830]
                %938 = vst [vmem:[%s838 + $0xc4] sm:%s830] %v937
                %v939 = vld [vmem:[%s837 + $0x308] sm:%s830]
                %940 = vst [vmem:[%s838 + $0xc8] sm:%s830] %v939
                %v941 = vld [vmem:[%s837 + $0x30c] sm:%s830]
                %942 = vst [vmem:[%s838 + $0xcc] sm:%s830] %v941
                %v943 = vld [vmem:[%s837 + $0x310] sm:%s830]
                %944 = vst [vmem:[%s838 + $0xd0] sm:%s830] %v943
                %v945 = vld [vmem:[%s837 + $0x314] sm:%s830]
                %946 = vst [vmem:[%s838 + $0xd4] sm:%s830] %v945
                %v947 = vld [vmem:[%s837 + $0x318] sm:%s830]
                %948 = vst [vmem:[%s838 + $0xd8] sm:%s830] %v947
                %v949 = vld [vmem:[%s837 + $0x31c] sm:%s830]
                %950 = vst [vmem:[%s838 + $0xdc] sm:%s830] %v949
                %v951 = vld [vmem:[%s837 + $0x320] sm:%s830]
                %952 = vst [vmem:[%s838 + $0xe0] sm:%s830] %v951
                %v953 = vld [vmem:[%s837 + $0x324] sm:%s830]
                %954 = vst [vmem:[%s838 + $0xe4] sm:%s830] %v953
                %v955 = vld [vmem:[%s837 + $0x328] sm:%s830]
                %956 = vst [vmem:[%s838 + $0xe8] sm:%s830] %v955
                %v957 = vld [vmem:[%s837 + $0x32c] sm:%s830]
                %958 = vst [vmem:[%s838 + $0xec] sm:%s830] %v957
                %v959 = vld [vmem:[%s837 + $0x330] sm:%s830]
                %960 = vst [vmem:[%s838 + $0xf0] sm:%s830] %v959
                %v961 = vld [vmem:[%s837 + $0x334] sm:%s830]
                %962 = vst [vmem:[%s838 + $0xf4] sm:%s830] %v961
                %v963 = vld [vmem:[%s837 + $0x338] sm:%s830]
                %964 = vst [vmem:[%s838 + $0xf8] sm:%s830] %v963
                %v965 = vld [vmem:[%s837 + $0x33c] sm:%s830]
                %966 = vst [vmem:[%s838 + $0xfc] sm:%s830] %v965
              $region131: #{deformable_window_attention_forward.3} parent=125 // loop_footer
                %s836 = sadd.s32 1, %s832
              $region132: #{deformable_window_attention_forward.3} parent=125 // loop_footer_branch
                %831 = sbr.rel target = $region128
              $region133: #{deformable_window_attention_forward.3} parent=125 // loop_exit
                _
            $region126: #{deformable_window_attention_forward.3} parent=117 // pred_fallthru
              _
          $region118: #{deformable_window_attention_forward.3} parent=113 // pred_fallthru
            _
          %1115 = vnop
        $region114: #{deformable_window_attention_forward.3} parent=27 // pred_fallthru
          _
      $region28: #{deformable_window_attention_forward.3} parent=5 // pred_fallthru
        _
      %p1116 = scmp.le.s32.totalorder 1, %s12
      %p1117 = scmp.lt.s32.totalorder %s12, 5
      %p1118 = pnand %p1116, %p1117
      %p1119 = pneg %p1118
      // Predicated region
      $region152: #{deformable_window_attention_forward.3} parent=5 // pred_check
        _
      $region153: #{deformable_window_attention_forward.3} parent=5 // pred_check_branch
        %1121 = sbr.rel (%p1118) target = $region155
      $region154: #{deformable_window_attention_forward.3} parent=5 // pred_region
        %s1122 = ssub.s32 %s12, 1
        %s1123 = sand.u32 %s25, 1
        %s1124 = sand.u32 %s25, 1
        %s1125 = smul.addr %s1124, 256
        %s1126 = scalar_lea.vmem [#allocation2], %s1125
        // Predicated region
        $region156: #{deformable_window_attention_forward.3} parent=154 // pred_check
          %p1127 = pneg %p38
        $region157: #{deformable_window_attention_forward.3} parent=154 // pred_check_branch
          %1129 = sbr.rel (%p1127) target = $region159
        $region158: #{deformable_window_attention_forward.3} parent=154 // pred_region
          _
        $region159: #{deformable_window_attention_forward.3} parent=154 // pred_fallthru
          _
        %s1130 = sand.u32 %s51, 1
        %s1131 = sand.u32 %s51, 1
        %s1132 = smul.addr %s1131, 256
        %s1133 = scalar_lea.vmem [#allocation3], %s1132
        // Predicated region
        $region160: #{deformable_window_attention_forward.3} parent=154 // pred_check
          %p1134 = pneg %p64
        $region161: #{deformable_window_attention_forward.3} parent=154 // pred_check_branch
          %1136 = sbr.rel (%p1134) target = $region163
        $region162: #{deformable_window_attention_forward.3} parent=154 // pred_region
          _
        $region163: #{deformable_window_attention_forward.3} parent=154 // pred_fallthru
          _
        %s1137 = sand.u32 %s77, 1
        %s1138 = sand.u32 %s77, 1
        %s1139 = smul.addr %s1138, 256
        %s1140 = scalar_lea.vmem [#allocation4], %s1139
        // Predicated region
        $region164: #{deformable_window_attention_forward.3} parent=154 // pred_check
          %p1141 = pneg %p90
        $region165: #{deformable_window_attention_forward.3} parent=154 // pred_check_branch
          %1143 = sbr.rel (%p1141) target = $region167
        $region166: #{deformable_window_attention_forward.3} parent=154 // pred_region
          _
        $region167: #{deformable_window_attention_forward.3} parent=154 // pred_fallthru
          _
        %s1144 = sand.u32 %s25, 1
        %s1145 = sand.u32 %s25, 1
        %s1146 = smul.addr %s1145, 256
        %s1147 = scalar_lea.vmem [#allocation2], %s1146
        %p1148 = pneg %p38
        %p1149 = pneg %p35
        %s1150 = sand.u32 %s51, 1
        %s1151 = sand.u32 %s51, 1
        %s1152 = smul.addr %s1151, 256
        %s1153 = scalar_lea.vmem [#allocation3], %s1152
        %p1154 = pneg %p64
        %p1155 = pneg %p61
        %s1156 = sand.u32 %s77, 1
        %s1157 = sand.u32 %s77, 1
        %s1158 = smul.addr %s1157, 256
        %s1159 = scalar_lea.vmem [#allocation4], %s1158
        %p1160 = pneg %p90
        %p1161 = pneg %p87
        %p1162 = pneg %p111
        %p1163 = pneg %p108
        %p1164 = pneg %p132
        %p1165 = pneg %p129
        %p1166 = pneg %p153
        %p1167 = pneg %p150
        %p1168 = pneg %p179
        %p1169 = pneg %p176
        %p1170 = scmp.lt.s32.totalorder %s17, 3
        %s1171 = scalar_select %p1170, %s17, 3
        %s1172 = smul.addr %s1171, 16
        %s1173 = smul.addr %s1172, 8
        %s1174 = scalar_lea.vmem %s6, %s1173
        %p1175 = scmp.lt.s32.totalorder %s17, 3
        %s1176 = scalar_select %p1175, %s17, 3
        %s1177 = smul.addr %s1176, 16
        %s1178 = smul.addr %s1177, 8
        %s1179 = scalar_lea.vmem %s6, %s1178
        %v1181 = vld [vmem:[%s1126] sm:$0xf]
        %v1182 = vld [vmem:[%s1126 + $0x4] sm:$0xf]
        %v1183 = vld [vmem:[%s1126 + $0x8] sm:$0xf]
        %v1184 = vld [vmem:[%s1126 + $0xc] sm:$0xf]
        %v1185 = vld [vmem:[%s1126 + $0x10] sm:$0xf]
        %v1186 = vld [vmem:[%s1126 + $0x14] sm:$0xf]
        %v1187 = vld [vmem:[%s1126 + $0x18] sm:$0xf]
        %v1188 = vld [vmem:[%s1126 + $0x1c] sm:$0xf]
        %v1189 = vld [vmem:[%s1126 + $0x20] sm:$0xf]
        %v1190 = vld [vmem:[%s1126 + $0x24] sm:$0xf]
        %v1191 = vld [vmem:[%s1126 + $0x28] sm:$0xf]
        %v1192 = vld [vmem:[%s1126 + $0x2c] sm:$0xf]
        %v1193 = vld [vmem:[%s1126 + $0x30] sm:$0xf]
        %v1194 = vld [vmem:[%s1126 + $0x34] sm:$0xf]
        %v1195 = vld [vmem:[%s1126 + $0x38] sm:$0xf]
        %v1196 = vld [vmem:[%s1126 + $0x3c] sm:$0xf]
        %v1197 = vld [vmem:[%s1126 + $0x40] sm:$0xf]
        %v1198 = vld [vmem:[%s1126 + $0x44] sm:$0xf]
        %v1199 = vld [vmem:[%s1126 + $0x48] sm:$0xf]
        %v1200 = vld [vmem:[%s1126 + $0x4c] sm:$0xf]
        %v1201 = vld [vmem:[%s1126 + $0x50] sm:$0xf]
        %v1202 = vld [vmem:[%s1126 + $0x54] sm:$0xf]
        %v1203 = vld [vmem:[%s1126 + $0x58] sm:$0xf]
        %v1204 = vld [vmem:[%s1126 + $0x5c] sm:$0xf]
        %v1205 = vld [vmem:[%s1126 + $0x60] sm:$0xf]
        %v1206 = vld [vmem:[%s1126 + $0x64] sm:$0xf]
        %v1207 = vld [vmem:[%s1126 + $0x68] sm:$0xf]
        %v1208 = vld [vmem:[%s1126 + $0x6c] sm:$0xf]
        %v1209 = vld [vmem:[%s1126 + $0x70] sm:$0xf]
        %v1210 = vld [vmem:[%s1126 + $0x74] sm:$0xf]
        %v1211 = vld [vmem:[%s1126 + $0x78] sm:$0xf]
        %v1212 = vld [vmem:[%s1126 + $0x7c] sm:$0xf]
        %v1213 = vld [vmem:[%s1126 + $0x80] sm:$0xf]
        %v1214 = vld [vmem:[%s1126 + $0x84] sm:$0xf]
        %v1215 = vld [vmem:[%s1126 + $0x88] sm:$0xf]
        %v1216 = vld [vmem:[%s1126 + $0x8c] sm:$0xf]
        %v1217 = vld [vmem:[%s1126 + $0x90] sm:$0xf]
        %v1218 = vld [vmem:[%s1126 + $0x94] sm:$0xf]
        %v1219 = vld [vmem:[%s1126 + $0x98] sm:$0xf]
        %v1220 = vld [vmem:[%s1126 + $0x9c] sm:$0xf]
        %v1221 = vld [vmem:[%s1126 + $0xa0] sm:$0xf]
        %v1222 = vld [vmem:[%s1126 + $0xa4] sm:$0xf]
        %v1223 = vld [vmem:[%s1126 + $0xa8] sm:$0xf]
        %v1224 = vld [vmem:[%s1126 + $0xac] sm:$0xf]
        %v1225 = vld [vmem:[%s1126 + $0xb0] sm:$0xf]
        %v1226 = vld [vmem:[%s1126 + $0xb4] sm:$0xf]
        %v1227 = vld [vmem:[%s1126 + $0xb8] sm:$0xf]
        %v1228 = vld [vmem:[%s1126 + $0xbc] sm:$0xf]
        %v1229 = vld [vmem:[%s1126 + $0xc0] sm:$0xf]
        %v1230 = vld [vmem:[%s1126 + $0xc4] sm:$0xf]
        %v1231 = vld [vmem:[%s1126 + $0xc8] sm:$0xf]
        %v1232 = vld [vmem:[%s1126 + $0xcc] sm:$0xf]
        %v1233 = vld [vmem:[%s1126 + $0xd0] sm:$0xf]
        %v1234 = vld [vmem:[%s1126 + $0xd4] sm:$0xf]
        %v1235 = vld [vmem:[%s1126 + $0xd8] sm:$0xf]
        %v1236 = vld [vmem:[%s1126 + $0xdc] sm:$0xf]
        %v1237 = vld [vmem:[%s1126 + $0xe0] sm:$0xf]
        %v1238 = vld [vmem:[%s1126 + $0xe4] sm:$0xf]
        %v1239 = vld [vmem:[%s1126 + $0xe8] sm:$0xf]
        %v1240 = vld [vmem:[%s1126 + $0xec] sm:$0xf]
        %v1241 = vld [vmem:[%s1126 + $0xf0] sm:$0xf]
        %v1242 = vld [vmem:[%s1126 + $0xf4] sm:$0xf]
        %v1243 = vld [vmem:[%s1126 + $0xf8] sm:$0xf]
        %v1244 = vld [vmem:[%s1126 + $0xfc] sm:$0xf]
        %v1245 = vld [vmem:[%s1133] sm:$0xf]
        %v1246 = vld [vmem:[%s1133 + $0x4] sm:$0xf]
        %v1247 = vld [vmem:[%s1133 + $0x8] sm:$0xf]
        %v1248 = vld [vmem:[%s1133 + $0xc] sm:$0xf]
        %v1249 = vld [vmem:[%s1133 + $0x10] sm:$0xf]
        %v1250 = vld [vmem:[%s1133 + $0x14] sm:$0xf]
        %v1251 = vld [vmem:[%s1133 + $0x18] sm:$0xf]
        %v1252 = vld [vmem:[%s1133 + $0x1c] sm:$0xf]
        %v1253 = vld [vmem:[%s1133 + $0x20] sm:$0xf]
        %v1254 = vld [vmem:[%s1133 + $0x24] sm:$0xf]
        %v1255 = vld [vmem:[%s1133 + $0x28] sm:$0xf]
        %v1256 = vld [vmem:[%s1133 + $0x2c] sm:$0xf]
        %v1257 = vld [vmem:[%s1133 + $0x30] sm:$0xf]
        %v1258 = vld [vmem:[%s1133 + $0x34] sm:$0xf]
        %v1259 = vld [vmem:[%s1133 + $0x38] sm:$0xf]
        %v1260 = vld [vmem:[%s1133 + $0x3c] sm:$0xf]
        %v1261 = vld [vmem:[%s1133 + $0x40] sm:$0xf]
        %v1262 = vld [vmem:[%s1133 + $0x44] sm:$0xf]
        %v1263 = vld [vmem:[%s1133 + $0x48] sm:$0xf]
        %v1264 = vld [vmem:[%s1133 + $0x4c] sm:$0xf]
        %v1265 = vld [vmem:[%s1133 + $0x50] sm:$0xf]
        %v1266 = vld [vmem:[%s1133 + $0x54] sm:$0xf]
        %v1267 = vld [vmem:[%s1133 + $0x58] sm:$0xf]
        %v1268 = vld [vmem:[%s1133 + $0x5c] sm:$0xf]
        %v1269 = vld [vmem:[%s1133 + $0x60] sm:$0xf]
        %v1270 = vld [vmem:[%s1133 + $0x64] sm:$0xf]
        %v1271 = vld [vmem:[%s1133 + $0x68] sm:$0xf]
        %v1272 = vld [vmem:[%s1133 + $0x6c] sm:$0xf]
        %v1273 = vld [vmem:[%s1133 + $0x70] sm:$0xf]
        %v1274 = vld [vmem:[%s1133 + $0x74] sm:$0xf]
        %v1275 = vld [vmem:[%s1133 + $0x78] sm:$0xf]
        %v1276 = vld [vmem:[%s1133 + $0x7c] sm:$0xf]
        %v1277 = vld [vmem:[%s1133 + $0x80] sm:$0xf]
        %v1278 = vld [vmem:[%s1133 + $0x84] sm:$0xf]
        %v1279 = vld [vmem:[%s1133 + $0x88] sm:$0xf]
        %v1280 = vld [vmem:[%s1133 + $0x8c] sm:$0xf]
        %v1281 = vld [vmem:[%s1133 + $0x90] sm:$0xf]
        %v1282 = vld [vmem:[%s1133 + $0x94] sm:$0xf]
        %v1283 = vld [vmem:[%s1133 + $0x98] sm:$0xf]
        %v1284 = vld [vmem:[%s1133 + $0x9c] sm:$0xf]
        %v1285 = vld [vmem:[%s1133 + $0xa0] sm:$0xf]
        %v1286 = vld [vmem:[%s1133 + $0xa4] sm:$0xf]
        %v1287 = vld [vmem:[%s1133 + $0xa8] sm:$0xf]
        %v1288 = vld [vmem:[%s1133 + $0xac] sm:$0xf]
        %v1289 = vld [vmem:[%s1133 + $0xb0] sm:$0xf]
        %v1290 = vld [vmem:[%s1133 + $0xb4] sm:$0xf]
        %v1291 = vld [vmem:[%s1133 + $0xb8] sm:$0xf]
        %v1292 = vld [vmem:[%s1133 + $0xbc] sm:$0xf]
        %v1293 = vld [vmem:[%s1133 + $0xc0] sm:$0xf]
        %v1294 = vld [vmem:[%s1133 + $0xc4] sm:$0xf]
        %v1295 = vld [vmem:[%s1133 + $0xc8] sm:$0xf]
        %v1296 = vld [vmem:[%s1133 + $0xcc] sm:$0xf]
        %v1297 = vld [vmem:[%s1133 + $0xd0] sm:$0xf]
        %v1298 = vld [vmem:[%s1133 + $0xd4] sm:$0xf]
        %v1299 = vld [vmem:[%s1133 + $0xd8] sm:$0xf]
        %v1300 = vld [vmem:[%s1133 + $0xdc] sm:$0xf]
        %v1301 = vld [vmem:[%s1133 + $0xe0] sm:$0xf]
        %v1302 = vld [vmem:[%s1133 + $0xe4] sm:$0xf]
        %v1303 = vld [vmem:[%s1133 + $0xe8] sm:$0xf]
        %v1304 = vld [vmem:[%s1133 + $0xec] sm:$0xf]
        %v1305 = vld [vmem:[%s1133 + $0xf0] sm:$0xf]
        %v1306 = vld [vmem:[%s1133 + $0xf4] sm:$0xf]
        %v1307 = vld [vmem:[%s1133 + $0xf8] sm:$0xf]
        %v1308 = vld [vmem:[%s1133 + $0xfc] sm:$0xf]
        %v1309 = vld [vmem:[%s1140] sm:$0xf]
        %v1310 = vld [vmem:[%s1140 + $0x4] sm:$0xf]
        %v1311 = vld [vmem:[%s1140 + $0x8] sm:$0xf]
        %v1312 = vld [vmem:[%s1140 + $0xc] sm:$0xf]
        %v1313 = vld [vmem:[%s1140 + $0x10] sm:$0xf]
        %v1314 = vld [vmem:[%s1140 + $0x14] sm:$0xf]
        %v1315 = vld [vmem:[%s1140 + $0x18] sm:$0xf]
        %v1316 = vld [vmem:[%s1140 + $0x1c] sm:$0xf]
        %v1317 = vld [vmem:[%s1140 + $0x20] sm:$0xf]
        %v1318 = vld [vmem:[%s1140 + $0x24] sm:$0xf]
        %v1319 = vld [vmem:[%s1140 + $0x28] sm:$0xf]
        %v1320 = vld [vmem:[%s1140 + $0x2c] sm:$0xf]
        %v1321 = vld [vmem:[%s1140 + $0x30] sm:$0xf]
        %v1322 = vld [vmem:[%s1140 + $0x34] sm:$0xf]
        %v1323 = vld [vmem:[%s1140 + $0x38] sm:$0xf]
        %v1324 = vld [vmem:[%s1140 + $0x3c] sm:$0xf]
        %v1325 = vld [vmem:[%s1140 + $0x40] sm:$0xf]
        %v1326 = vld [vmem:[%s1140 + $0x44] sm:$0xf]
        %v1327 = vld [vmem:[%s1140 + $0x48] sm:$0xf]
        %v1328 = vld [vmem:[%s1140 + $0x4c] sm:$0xf]
        %v1329 = vld [vmem:[%s1140 + $0x50] sm:$0xf]
        %v1330 = vld [vmem:[%s1140 + $0x54] sm:$0xf]
        %v1331 = vld [vmem:[%s1140 + $0x58] sm:$0xf]
        %v1332 = vld [vmem:[%s1140 + $0x5c] sm:$0xf]
        %v1333 = vld [vmem:[%s1140 + $0x60] sm:$0xf]
        %v1334 = vld [vmem:[%s1140 + $0x64] sm:$0xf]
        %v1335 = vld [vmem:[%s1140 + $0x68] sm:$0xf]
        %v1336 = vld [vmem:[%s1140 + $0x6c] sm:$0xf]
        %v1337 = vld [vmem:[%s1140 + $0x70] sm:$0xf]
        %v1338 = vld [vmem:[%s1140 + $0x74] sm:$0xf]
        %v1339 = vld [vmem:[%s1140 + $0x78] sm:$0xf]
        %v1340 = vld [vmem:[%s1140 + $0x7c] sm:$0xf]
        %v1341 = vld [vmem:[%s1140 + $0x80] sm:$0xf]
        %v1342 = vld [vmem:[%s1140 + $0x84] sm:$0xf]
        %v1343 = vld [vmem:[%s1140 + $0x88] sm:$0xf]
        %v1344 = vld [vmem:[%s1140 + $0x8c] sm:$0xf]
        %v1345 = vld [vmem:[%s1140 + $0x90] sm:$0xf]
        %v1346 = vld [vmem:[%s1140 + $0x94] sm:$0xf]
        %v1347 = vld [vmem:[%s1140 + $0x98] sm:$0xf]
        %v1348 = vld [vmem:[%s1140 + $0x9c] sm:$0xf]
        %v1349 = vld [vmem:[%s1140 + $0xa0] sm:$0xf]
        %v1350 = vld [vmem:[%s1140 + $0xa4] sm:$0xf]
        %v1351 = vld [vmem:[%s1140 + $0xa8] sm:$0xf]
        %v1352 = vld [vmem:[%s1140 + $0xac] sm:$0xf]
        %v1353 = vld [vmem:[%s1140 + $0xb0] sm:$0xf]
        %v1354 = vld [vmem:[%s1140 + $0xb4] sm:$0xf]
        %v1355 = vld [vmem:[%s1140 + $0xb8] sm:$0xf]
        %v1356 = vld [vmem:[%s1140 + $0xbc] sm:$0xf]
        %v1357 = vld [vmem:[%s1140 + $0xc0] sm:$0xf]
        %v1358 = vld [vmem:[%s1140 + $0xc4] sm:$0xf]
        %v1359 = vld [vmem:[%s1140 + $0xc8] sm:$0xf]
        %v1360 = vld [vmem:[%s1140 + $0xcc] sm:$0xf]
        %v1361 = vld [vmem:[%s1140 + $0xd0] sm:$0xf]
        %v1362 = vld [vmem:[%s1140 + $0xd4] sm:$0xf]
        %v1363 = vld [vmem:[%s1140 + $0xd8] sm:$0xf]
        %v1364 = vld [vmem:[%s1140 + $0xdc] sm:$0xf]
        %v1365 = vld [vmem:[%s1140 + $0xe0] sm:$0xf]
        %v1366 = vld [vmem:[%s1140 + $0xe4] sm:$0xf]
        %v1367 = vld [vmem:[%s1140 + $0xe8] sm:$0xf]
        %v1368 = vld [vmem:[%s1140 + $0xec] sm:$0xf]
        %v1369 = vld [vmem:[%s1140 + $0xf0] sm:$0xf]
        %v1370 = vld [vmem:[%s1140 + $0xf4] sm:$0xf]
        %v1371 = vld [vmem:[%s1140 + $0xf8] sm:$0xf]
        %v1372 = vld [vmem:[%s1140 + $0xfc] sm:$0xf]
        %v1389 = vunpack.c.l.b16 %v1181
        %v1390 = vunpack.c.l.b16 %v1182
        %v1391 = vunpack.c.l.b16 %v1183
        %v1392 = vunpack.c.l.b16 %v1184
        %v1393 = vunpack.c.l.b16 %v1185
        %v1394 = vunpack.c.l.b16 %v1186
        %v1395 = vunpack.c.l.b16 %v1187
        %v1396 = vunpack.c.l.b16 %v1188
        %v1397 = vunpack.c.l.b16 %v1189
        %v1398 = vunpack.c.l.b16 %v1190
        %v1399 = vunpack.c.l.b16 %v1191
        %v1400 = vunpack.c.l.b16 %v1192
        %v1401 = vunpack.c.l.b16 %v1193
        %v1402 = vunpack.c.l.b16 %v1194
        %v1403 = vunpack.c.l.b16 %v1195
        %v1404 = vunpack.c.l.b16 %v1196
        %v1405 = vpack.c.b16 %v1390, %v1389
        %v1406 = vpack.c.b16 %v1392, %v1391
        %v1407 = vpack.c.b16 %v1394, %v1393
        %v1408 = vpack.c.b16 %v1396, %v1395
        %v1409 = vpack.c.b16 %v1398, %v1397
        %v1410 = vpack.c.b16 %v1400, %v1399
        %v1411 = vpack.c.b16 %v1402, %v1401
        %v1412 = vpack.c.b16 %v1404, %v1403
        %v1429 = vunpack.c.l.b16 %v1245
        %v1430 = vunpack.c.l.b16 %v1246
        %v1431 = vunpack.c.l.b16 %v1247
        %v1432 = vunpack.c.l.b16 %v1248
        %v1433 = vunpack.c.l.b16 %v1249
        %v1434 = vunpack.c.l.b16 %v1250
        %v1435 = vunpack.c.l.b16 %v1251
        %v1436 = vunpack.c.l.b16 %v1252
        %v1437 = vunpack.c.l.b16 %v1253
        %v1438 = vunpack.c.l.b16 %v1254
        %v1439 = vunpack.c.l.b16 %v1255
        %v1440 = vunpack.c.l.b16 %v1256
        %v1441 = vunpack.c.l.b16 %v1257
        %v1442 = vunpack.c.l.b16 %v1258
        %v1443 = vunpack.c.l.b16 %v1259
        %v1444 = vunpack.c.l.b16 %v1260
        %v1445 = vpack.c.b16 %v1430, %v1429
        %v1446 = vpack.c.b16 %v1432, %v1431
        %v1447 = vpack.c.b16 %v1434, %v1433
        %v1448 = vpack.c.b16 %v1436, %v1435
        %v1449 = vpack.c.b16 %v1438, %v1437
        %v1450 = vpack.c.b16 %v1440, %v1439
        %v1451 = vpack.c.b16 %v1442, %v1441
        %v1452 = vpack.c.b16 %v1444, %v1443
        %vm1453 = vcmask 261120
        %v1455 = vsel %vm1453, %v1405, 0
        %v1458 = vsel %vm1453, %v1406, 0
        %v1461 = vsel %vm1453, %v1407, 0
        %v1464 = vsel %vm1453, %v1408, 0
        %v1467 = vsel %vm1453, %v1409, 0
        %v1470 = vsel %vm1453, %v1410, 0
        %v1473 = vsel %vm1453, %v1411, 0
        %v1476 = vsel %vm1453, %v1412, 0
        %v1479 = vsel %vm1453, %v1445, 0
        %v1482 = vsel %vm1453, %v1446, 0
        %v1485 = vsel %vm1453, %v1447, 0
        %v1488 = vsel %vm1453, %v1448, 0
        %v1491 = vsel %vm1453, %v1449, 0
        %v1494 = vsel %vm1453, %v1450, 0
        %v1497 = vsel %vm1453, %v1451, 0
        %v1500 = vsel %vm1453, %v1452, 0
        %1502 = vmatprep.subr.bf16.mxu0 0
        %1503 = vmatpush1.bf16.xpose.msra.mxu0 %v1500
        %1504 = vmatprep.subr.bf16.mxu0 0
        %1505 = vmatpush1.bf16.xpose.msra.mxu0 %v1497
        %1506 = vmatprep.subr.bf16.mxu0 0
        %1507 = vmatpush1.bf16.xpose.msra.mxu0 %v1494
        %1508 = vmatprep.subr.bf16.mxu0 0
        %1509 = vmatpush1.bf16.xpose.msra.mxu0 %v1491
        %1510 = vmatprep.subr.bf16.mxu0 0
        %1511 = vmatpush1.bf16.xpose.msra.mxu0 %v1488
        %1512 = vmatprep.subr.bf16.mxu0 0
        %1513 = vmatpush1.bf16.xpose.msra.mxu0 %v1485
        %1514 = vmatprep.subr.bf16.mxu0 0
        %1515 = vmatpush1.bf16.xpose.msra.mxu0 %v1482
        %1516 = vmatprep.subr.bf16.mxu0 0
        %1517 = vmatpush1.bf16.xpose.msra.mxu0 %v1479
        %1518 = vmatprep.subr.bf16.mxu0 0
        %1519 = vmatpush2.bf16.xpose.msra.mxu0 0
        %1520 = vmatprep.subr.bf16.mxu0 0
        %1521 = vmatpush2.bf16.xpose.msra.mxu0 0
        %1522 = vmatprep.subr.bf16.mxu0 0
        %1523 = vmatpush2.bf16.xpose.msra.mxu0 0
        %1524 = vmatprep.subr.bf16.mxu0 0
        %1525 = vmatpush2.bf16.xpose.msra.mxu0 0
        %1526 = vmatprep.subr.bf16.mxu0 0
        %1527 = vmatpush2.bf16.xpose.msra.mxu0 0
        %1528 = vmatprep.subr.bf16.mxu0 0
        %1529 = vmatpush2.bf16.xpose.msra.mxu0 0
        %1530 = vmatprep.subr.bf16.mxu0 0
        %1531 = vmatpush2.bf16.xpose.msra.mxu0 0
        %1532 = vmatprep.subr.bf16.mxu0 0
        %1533 = vmatpush2.bf16.xpose.msra.mxu0 0
        %1534 = vmatprep.mubr.bf16.mxu0 0
        %1535 = vmatmul.mubr.bf16.gmra.mxu0 %v1455
        %v1536 = vpop.f32.mrf.mxu0
        %v1537 = vadd.f32 0.0, %v1536
        %v1538 = vpop.f32.mrf.mxu0
        %v1539 = vpop.f32.mrf.mxu0
        %v1540 = vadd.f32 0.0, %v1539
        %v1541 = vpop.f32.mrf.mxu0
        %1542 = vmatprep.mubr.bf16.mxu0 0
        %1543 = vmatmul.mubr.bf16.gmra.mxu0 %v1458
        %v1544 = vpop.f32.mrf.mxu0
        %v1545 = vadd.f32 0.0, %v1544
        %v1546 = vpop.f32.mrf.mxu0
        %v1547 = vpop.f32.mrf.mxu0
        %v1548 = vadd.f32 0.0, %v1547
        %v1549 = vpop.f32.mrf.mxu0
        %1550 = vmatprep.mubr.bf16.mxu0 0
        %1551 = vmatmul.mubr.bf16.gmra.mxu0 %v1461
        %v1552 = vpop.f32.mrf.mxu0
        %v1553 = vadd.f32 0.0, %v1552
        %v1554 = vpop.f32.mrf.mxu0
        %v1555 = vpop.f32.mrf.mxu0
        %v1556 = vadd.f32 0.0, %v1555
        %v1557 = vpop.f32.mrf.mxu0
        %1558 = vmatprep.mubr.bf16.mxu0 0
        %1559 = vmatmul.mubr.bf16.gmra.mxu0 %v1464
        %v1560 = vpop.f32.mrf.mxu0
        %v1561 = vadd.f32 0.0, %v1560
        %v1562 = vpop.f32.mrf.mxu0
        %v1563 = vpop.f32.mrf.mxu0
        %v1564 = vadd.f32 0.0, %v1563
        %v1565 = vpop.f32.mrf.mxu0
        %1566 = vmatprep.mubr.bf16.mxu0 0
        %1567 = vmatmul.mubr.bf16.gmra.mxu0 %v1467
        %v1568 = vpop.f32.mrf.mxu0
        %v1569 = vadd.f32 0.0, %v1568
        %v1570 = vpop.f32.mrf.mxu0
        %v1571 = vpop.f32.mrf.mxu0
        %v1572 = vadd.f32 0.0, %v1571
        %v1573 = vpop.f32.mrf.mxu0
        %1574 = vmatprep.mubr.bf16.mxu0 0
        %1575 = vmatmul.mubr.bf16.gmra.mxu0 %v1470
        %v1576 = vpop.f32.mrf.mxu0
        %v1577 = vadd.f32 0.0, %v1576
        %v1578 = vpop.f32.mrf.mxu0
        %v1579 = vpop.f32.mrf.mxu0
        %v1580 = vadd.f32 0.0, %v1579
        %v1581 = vpop.f32.mrf.mxu0
        %1582 = vmatprep.mubr.bf16.mxu0 0
        %1583 = vmatmul.mubr.bf16.gmra.mxu0 %v1473
        %v1584 = vpop.f32.mrf.mxu0
        %v1585 = vadd.f32 0.0, %v1584
        %v1586 = vpop.f32.mrf.mxu0
        %v1587 = vpop.f32.mrf.mxu0
        %v1588 = vadd.f32 0.0, %v1587
        %v1589 = vpop.f32.mrf.mxu0
        %1590 = vmatprep.mubr.bf16.mxu0 0
        %1591 = vmatmul.mubr.bf16.gmra.mxu0 %v1476
        %v1592 = vpop.f32.mrf.mxu0
        %v1593 = vadd.f32 0.0, %v1592
        %v1594 = vpop.f32.mrf.mxu0
        %v1595 = vpop.f32.mrf.mxu0
        %v1596 = vadd.f32 0.0, %v1595
        %v1597 = vpop.f32.mrf.mxu0
        %1598 = vdwg.mxu0
        %v1615 = vunpack.c.l.b16 %v1197
        %v1616 = vunpack.c.l.b16 %v1198
        %v1617 = vunpack.c.l.b16 %v1199
        %v1618 = vunpack.c.l.b16 %v1200
        %v1619 = vunpack.c.l.b16 %v1201
        %v1620 = vunpack.c.l.b16 %v1202
        %v1621 = vunpack.c.l.b16 %v1203
        %v1622 = vunpack.c.l.b16 %v1204
        %v1623 = vunpack.c.l.b16 %v1205
        %v1624 = vunpack.c.l.b16 %v1206
        %v1625 = vunpack.c.l.b16 %v1207
        %v1626 = vunpack.c.l.b16 %v1208
        %v1627 = vunpack.c.l.b16 %v1209
        %v1628 = vunpack.c.l.b16 %v1210
        %v1629 = vunpack.c.l.b16 %v1211
        %v1630 = vunpack.c.l.b16 %v1212
        %v1631 = vpack.c.b16 %v1616, %v1615
        %v1632 = vpack.c.b16 %v1618, %v1617
        %v1633 = vpack.c.b16 %v1620, %v1619
        %v1634 = vpack.c.b16 %v1622, %v1621
        %v1635 = vpack.c.b16 %v1624, %v1623
        %v1636 = vpack.c.b16 %v1626, %v1625
        %v1637 = vpack.c.b16 %v1628, %v1627
        %v1638 = vpack.c.b16 %v1630, %v1629
        %v1655 = vunpack.c.l.b16 %v1261
        %v1656 = vunpack.c.l.b16 %v1262
        %v1657 = vunpack.c.l.b16 %v1263
        %v1658 = vunpack.c.l.b16 %v1264
        %v1659 = vunpack.c.l.b16 %v1265
        %v1660 = vunpack.c.l.b16 %v1266
        %v1661 = vunpack.c.l.b16 %v1267
        %v1662 = vunpack.c.l.b16 %v1268
        %v1663 = vunpack.c.l.b16 %v1269
        %v1664 = vunpack.c.l.b16 %v1270
        %v1665 = vunpack.c.l.b16 %v1271
        %v1666 = vunpack.c.l.b16 %v1272
        %v1667 = vunpack.c.l.b16 %v1273
        %v1668 = vunpack.c.l.b16 %v1274
        %v1669 = vunpack.c.l.b16 %v1275
        %v1670 = vunpack.c.l.b16 %v1276
        %v1671 = vpack.c.b16 %v1656, %v1655
        %v1672 = vpack.c.b16 %v1658, %v1657
        %v1673 = vpack.c.b16 %v1660, %v1659
        %v1674 = vpack.c.b16 %v1662, %v1661
        %v1675 = vpack.c.b16 %v1664, %v1663
        %v1676 = vpack.c.b16 %v1666, %v1665
        %v1677 = vpack.c.b16 %v1668, %v1667
        %v1678 = vpack.c.b16 %v1670, %v1669
        %v1680 = vsel %vm1453, %v1631, 0
        %v1683 = vsel %vm1453, %v1632, 0
        %v1686 = vsel %vm1453, %v1633, 0
        %v1689 = vsel %vm1453, %v1634, 0
        %v1692 = vsel %vm1453, %v1635, 0
        %v1695 = vsel %vm1453, %v1636, 0
        %v1698 = vsel %vm1453, %v1637, 0
        %v1701 = vsel %vm1453, %v1638, 0
        %v1704 = vsel %vm1453, %v1671, 0
        %v1707 = vsel %vm1453, %v1672, 0
        %v1710 = vsel %vm1453, %v1673, 0
        %v1713 = vsel %vm1453, %v1674, 0
        %v1716 = vsel %vm1453, %v1675, 0
        %v1719 = vsel %vm1453, %v1676, 0
        %v1722 = vsel %vm1453, %v1677, 0
        %v1725 = vsel %vm1453, %v1678, 0
        %1727 = vmatprep.subr.bf16.mxu0 0
        %1728 = vmatpush1.bf16.xpose.msra.mxu0 %v1725
        %1729 = vmatprep.subr.bf16.mxu0 0
        %1730 = vmatpush1.bf16.xpose.msra.mxu0 %v1722
        %1731 = vmatprep.subr.bf16.mxu0 0
        %1732 = vmatpush1.bf16.xpose.msra.mxu0 %v1719
        %1733 = vmatprep.subr.bf16.mxu0 0
        %1734 = vmatpush1.bf16.xpose.msra.mxu0 %v1716
        %1735 = vmatprep.subr.bf16.mxu0 0
        %1736 = vmatpush1.bf16.xpose.msra.mxu0 %v1713
        %1737 = vmatprep.subr.bf16.mxu0 0
        %1738 = vmatpush1.bf16.xpose.msra.mxu0 %v1710
        %1739 = vmatprep.subr.bf16.mxu0 0
        %1740 = vmatpush1.bf16.xpose.msra.mxu0 %v1707
        %1741 = vmatprep.subr.bf16.mxu0 0
        %1742 = vmatpush1.bf16.xpose.msra.mxu0 %v1704
        %1743 = vmatprep.subr.bf16.mxu0 0
        %1744 = vmatpush2.bf16.xpose.msra.mxu0 0
        %1745 = vmatprep.subr.bf16.mxu0 0
        %1746 = vmatpush2.bf16.xpose.msra.mxu0 0
        %1747 = vmatprep.subr.bf16.mxu0 0
        %1748 = vmatpush2.bf16.xpose.msra.mxu0 0
        %1749 = vmatprep.subr.bf16.mxu0 0
        %1750 = vmatpush2.bf16.xpose.msra.mxu0 0
        %1751 = vmatprep.subr.bf16.mxu0 0
        %1752 = vmatpush2.bf16.xpose.msra.mxu0 0
        %1753 = vmatprep.subr.bf16.mxu0 0
        %1754 = vmatpush2.bf16.xpose.msra.mxu0 0
        %1755 = vmatprep.subr.bf16.mxu0 0
        %1756 = vmatpush2.bf16.xpose.msra.mxu0 0
        %1757 = vmatprep.subr.bf16.mxu0 0
        %1758 = vmatpush2.bf16.xpose.msra.mxu0 0
        %1759 = vmatprep.mubr.bf16.mxu0 0
        %1760 = vmatmul.mubr.bf16.gmra.mxu0 %v1680
        %v1761 = vpop.f32.mrf.mxu0
        %v1762 = vadd.f32 0.0, %v1761
        %v1763 = vpop.f32.mrf.mxu0
        %v1764 = vpop.f32.mrf.mxu0
        %v1765 = vadd.f32 0.0, %v1764
        %v1766 = vpop.f32.mrf.mxu0
        %1767 = vmatprep.mubr.bf16.mxu0 0
        %1768 = vmatmul.mubr.bf16.gmra.mxu0 %v1683
        %v1769 = vpop.f32.mrf.mxu0
        %v1770 = vadd.f32 0.0, %v1769
        %v1771 = vpop.f32.mrf.mxu0
        %v1772 = vpop.f32.mrf.mxu0
        %v1773 = vadd.f32 0.0, %v1772
        %v1774 = vpop.f32.mrf.mxu0
        %1775 = vmatprep.mubr.bf16.mxu0 0
        %1776 = vmatmul.mubr.bf16.gmra.mxu0 %v1686
        %v1777 = vpop.f32.mrf.mxu0
        %v1778 = vadd.f32 0.0, %v1777
        %v1779 = vpop.f32.mrf.mxu0
        %v1780 = vpop.f32.mrf.mxu0
        %v1781 = vadd.f32 0.0, %v1780
        %v1782 = vpop.f32.mrf.mxu0
        %1783 = vmatprep.mubr.bf16.mxu0 0
        %1784 = vmatmul.mubr.bf16.gmra.mxu0 %v1689
        %v1785 = vpop.f32.mrf.mxu0
        %v1786 = vadd.f32 0.0, %v1785
        %v1787 = vpop.f32.mrf.mxu0
        %v1788 = vpop.f32.mrf.mxu0
        %v1789 = vadd.f32 0.0, %v1788
        %v1790 = vpop.f32.mrf.mxu0
        %1791 = vmatprep.mubr.bf16.mxu0 0
        %1792 = vmatmul.mubr.bf16.gmra.mxu0 %v1692
        %v1793 = vpop.f32.mrf.mxu0
        %v1794 = vadd.f32 0.0, %v1793
        %v1795 = vpop.f32.mrf.mxu0
        %v1796 = vpop.f32.mrf.mxu0
        %v1797 = vadd.f32 0.0, %v1796
        %v1798 = vpop.f32.mrf.mxu0
        %1799 = vmatprep.mubr.bf16.mxu0 0
        %1800 = vmatmul.mubr.bf16.gmra.mxu0 %v1695
        %v1801 = vpop.f32.mrf.mxu0
        %v1802 = vadd.f32 0.0, %v1801
        %v1803 = vpop.f32.mrf.mxu0
        %v1804 = vpop.f32.mrf.mxu0
        %v1805 = vadd.f32 0.0, %v1804
        %v1806 = vpop.f32.mrf.mxu0
        %1807 = vmatprep.mubr.bf16.mxu0 0
        %1808 = vmatmul.mubr.bf16.gmra.mxu0 %v1698
        %v1809 = vpop.f32.mrf.mxu0
        %v1810 = vadd.f32 0.0, %v1809
        %v1811 = vpop.f32.mrf.mxu0
        %v1812 = vpop.f32.mrf.mxu0
        %v1813 = vadd.f32 0.0, %v1812
        %v1814 = vpop.f32.mrf.mxu0
        %1815 = vmatprep.mubr.bf16.mxu0 0
        %1816 = vmatmul.mubr.bf16.gmra.mxu0 %v1701
        %v1817 = vpop.f32.mrf.mxu0
        %v1818 = vadd.f32 0.0, %v1817
        %v1819 = vpop.f32.mrf.mxu0
        %v1820 = vpop.f32.mrf.mxu0
        %v1821 = vadd.f32 0.0, %v1820
        %v1822 = vpop.f32.mrf.mxu0
        %1823 = vdwg.mxu0
        %v1840 = vunpack.c.l.b16 %v1213
        %v1841 = vunpack.c.l.b16 %v1214
        %v1842 = vunpack.c.l.b16 %v1215
        %v1843 = vunpack.c.l.b16 %v1216
        %v1844 = vunpack.c.l.b16 %v1217
        %v1845 = vunpack.c.l.b16 %v1218
        %v1846 = vunpack.c.l.b16 %v1219
        %v1847 = vunpack.c.l.b16 %v1220
        %v1848 = vunpack.c.l.b16 %v1221
        %v1849 = vunpack.c.l.b16 %v1222
        %v1850 = vunpack.c.l.b16 %v1223
        %v1851 = vunpack.c.l.b16 %v1224
        %v1852 = vunpack.c.l.b16 %v1225
        %v1853 = vunpack.c.l.b16 %v1226
        %v1854 = vunpack.c.l.b16 %v1227
        %v1855 = vunpack.c.l.b16 %v1228
        %v1856 = vpack.c.b16 %v1841, %v1840
        %v1857 = vpack.c.b16 %v1843, %v1842
        %v1858 = vpack.c.b16 %v1845, %v1844
        %v1859 = vpack.c.b16 %v1847, %v1846
        %v1860 = vpack.c.b16 %v1849, %v1848
        %v1861 = vpack.c.b16 %v1851, %v1850
        %v1862 = vpack.c.b16 %v1853, %v1852
        %v1863 = vpack.c.b16 %v1855, %v1854
        %v1880 = vunpack.c.l.b16 %v1277
        %v1881 = vunpack.c.l.b16 %v1278
        %v1882 = vunpack.c.l.b16 %v1279
        %v1883 = vunpack.c.l.b16 %v1280
        %v1884 = vunpack.c.l.b16 %v1281
        %v1885 = vunpack.c.l.b16 %v1282
        %v1886 = vunpack.c.l.b16 %v1283
        %v1887 = vunpack.c.l.b16 %v1284
        %v1888 = vunpack.c.l.b16 %v1285
        %v1889 = vunpack.c.l.b16 %v1286
        %v1890 = vunpack.c.l.b16 %v1287
        %v1891 = vunpack.c.l.b16 %v1288
        %v1892 = vunpack.c.l.b16 %v1289
        %v1893 = vunpack.c.l.b16 %v1290
        %v1894 = vunpack.c.l.b16 %v1291
        %v1895 = vunpack.c.l.b16 %v1292
        %v1896 = vpack.c.b16 %v1881, %v1880
        %v1897 = vpack.c.b16 %v1883, %v1882
        %v1898 = vpack.c.b16 %v1885, %v1884
        %v1899 = vpack.c.b16 %v1887, %v1886
        %v1900 = vpack.c.b16 %v1889, %v1888
        %v1901 = vpack.c.b16 %v1891, %v1890
        %v1902 = vpack.c.b16 %v1893, %v1892
        %v1903 = vpack.c.b16 %v1895, %v1894
        %v1905 = vsel %vm1453, %v1856, 0
        %v1908 = vsel %vm1453, %v1857, 0
        %v1911 = vsel %vm1453, %v1858, 0
        %v1914 = vsel %vm1453, %v1859, 0
        %v1917 = vsel %vm1453, %v1860, 0
        %v1920 = vsel %vm1453, %v1861, 0
        %v1923 = vsel %vm1453, %v1862, 0
        %v1926 = vsel %vm1453, %v1863, 0
        %v1929 = vsel %vm1453, %v1896, 0
        %v1932 = vsel %vm1453, %v1897, 0
        %v1935 = vsel %vm1453, %v1898, 0
        %v1938 = vsel %vm1453, %v1899, 0
        %v1941 = vsel %vm1453, %v1900, 0
        %v1944 = vsel %vm1453, %v1901, 0
        %v1947 = vsel %vm1453, %v1902, 0
        %v1950 = vsel %vm1453, %v1903, 0
        %1952 = vmatprep.subr.bf16.mxu0 0
        %1953 = vmatpush1.bf16.xpose.msra.mxu0 %v1950
        %1954 = vmatprep.subr.bf16.mxu0 0
        %1955 = vmatpush1.bf16.xpose.msra.mxu0 %v1947
        %1956 = vmatprep.subr.bf16.mxu0 0
        %1957 = vmatpush1.bf16.xpose.msra.mxu0 %v1944
        %1958 = vmatprep.subr.bf16.mxu0 0
        %1959 = vmatpush1.bf16.xpose.msra.mxu0 %v1941
        %1960 = vmatprep.subr.bf16.mxu0 0
        %1961 = vmatpush1.bf16.xpose.msra.mxu0 %v1938
        %1962 = vmatprep.subr.bf16.mxu0 0
        %1963 = vmatpush1.bf16.xpose.msra.mxu0 %v1935
        %1964 = vmatprep.subr.bf16.mxu0 0
        %1965 = vmatpush1.bf16.xpose.msra.mxu0 %v1932
        %1966 = vmatprep.subr.bf16.mxu0 0
        %1967 = vmatpush1.bf16.xpose.msra.mxu0 %v1929
        %1968 = vmatprep.subr.bf16.mxu0 0
        %1969 = vmatpush2.bf16.xpose.msra.mxu0 0
        %1970 = vmatprep.subr.bf16.mxu0 0
        %1971 = vmatpush2.bf16.xpose.msra.mxu0 0
        %1972 = vmatprep.subr.bf16.mxu0 0
        %1973 = vmatpush2.bf16.xpose.msra.mxu0 0
        %1974 = vmatprep.subr.bf16.mxu0 0
        %1975 = vmatpush2.bf16.xpose.msra.mxu0 0
        %1976 = vmatprep.subr.bf16.mxu0 0
        %1977 = vmatpush2.bf16.xpose.msra.mxu0 0
        %1978 = vmatprep.subr.bf16.mxu0 0
        %1979 = vmatpush2.bf16.xpose.msra.mxu0 0
        %1980 = vmatprep.subr.bf16.mxu0 0
        %1981 = vmatpush2.bf16.xpose.msra.mxu0 0
        %1982 = vmatprep.subr.bf16.mxu0 0
        %1983 = vmatpush2.bf16.xpose.msra.mxu0 0
        %1984 = vmatprep.mubr.bf16.mxu0 0
        %1985 = vmatmul.mubr.bf16.gmra.mxu0 %v1905
        %v1986 = vpop.f32.mrf.mxu0
        %v1987 = vadd.f32 0.0, %v1986
        %v1988 = vpop.f32.mrf.mxu0
        %v1989 = vpop.f32.mrf.mxu0
        %v1990 = vadd.f32 0.0, %v1989
        %v1991 = vpop.f32.mrf.mxu0
        %1992 = vmatprep.mubr.bf16.mxu0 0
        %1993 = vmatmul.mubr.bf16.gmra.mxu0 %v1908
        %v1994 = vpop.f32.mrf.mxu0
        %v1995 = vadd.f32 0.0, %v1994
        %v1996 = vpop.f32.mrf.mxu0
        %v1997 = vpop.f32.mrf.mxu0
        %v1998 = vadd.f32 0.0, %v1997
        %v1999 = vpop.f32.mrf.mxu0
        %2000 = vmatprep.mubr.bf16.mxu0 0
        %2001 = vmatmul.mubr.bf16.gmra.mxu0 %v1911
        %v2002 = vpop.f32.mrf.mxu0
        %v2003 = vadd.f32 0.0, %v2002
        %v2004 = vpop.f32.mrf.mxu0
        %v2005 = vpop.f32.mrf.mxu0
        %v2006 = vadd.f32 0.0, %v2005
        %v2007 = vpop.f32.mrf.mxu0
        %2008 = vmatprep.mubr.bf16.mxu0 0
        %2009 = vmatmul.mubr.bf16.gmra.mxu0 %v1914
        %v2010 = vpop.f32.mrf.mxu0
        %v2011 = vadd.f32 0.0, %v2010
        %v2012 = vpop.f32.mrf.mxu0
        %v2013 = vpop.f32.mrf.mxu0
        %v2014 = vadd.f32 0.0, %v2013
        %v2015 = vpop.f32.mrf.mxu0
        %2016 = vmatprep.mubr.bf16.mxu0 0
        %2017 = vmatmul.mubr.bf16.gmra.mxu0 %v1917
        %v2018 = vpop.f32.mrf.mxu0
        %v2019 = vadd.f32 0.0, %v2018
        %v2020 = vpop.f32.mrf.mxu0
        %v2021 = vpop.f32.mrf.mxu0
        %v2022 = vadd.f32 0.0, %v2021
        %v2023 = vpop.f32.mrf.mxu0
        %2024 = vmatprep.mubr.bf16.mxu0 0
        %2025 = vmatmul.mubr.bf16.gmra.mxu0 %v1920
        %v2026 = vpop.f32.mrf.mxu0
        %v2027 = vadd.f32 0.0, %v2026
        %v2028 = vpop.f32.mrf.mxu0
        %v2029 = vpop.f32.mrf.mxu0
        %v2030 = vadd.f32 0.0, %v2029
        %v2031 = vpop.f32.mrf.mxu0
        %2032 = vmatprep.mubr.bf16.mxu0 0
        %2033 = vmatmul.mubr.bf16.gmra.mxu0 %v1923
        %v2034 = vpop.f32.mrf.mxu0
        %v2035 = vadd.f32 0.0, %v2034
        %v2036 = vpop.f32.mrf.mxu0
        %v2037 = vpop.f32.mrf.mxu0
        %v2038 = vadd.f32 0.0, %v2037
        %v2039 = vpop.f32.mrf.mxu0
        %2040 = vmatprep.mubr.bf16.mxu0 0
        %2041 = vmatmul.mubr.bf16.gmra.mxu0 %v1926
        %v2042 = vpop.f32.mrf.mxu0
        %v2043 = vadd.f32 0.0, %v2042
        %v2044 = vpop.f32.mrf.mxu0
        %v2045 = vpop.f32.mrf.mxu0
        %v2046 = vadd.f32 0.0, %v2045
        %v2047 = vpop.f32.mrf.mxu0
        %2048 = vdwg.mxu0
        %v2065 = vunpack.c.l.b16 %v1229
        %v2066 = vunpack.c.l.b16 %v1230
        %v2067 = vunpack.c.l.b16 %v1231
        %v2068 = vunpack.c.l.b16 %v1232
        %v2069 = vunpack.c.l.b16 %v1233
        %v2070 = vunpack.c.l.b16 %v1234
        %v2071 = vunpack.c.l.b16 %v1235
        %v2072 = vunpack.c.l.b16 %v1236
        %v2073 = vunpack.c.l.b16 %v1237
        %v2074 = vunpack.c.l.b16 %v1238
        %v2075 = vunpack.c.l.b16 %v1239
        %v2076 = vunpack.c.l.b16 %v1240
        %v2077 = vunpack.c.l.b16 %v1241
        %v2078 = vunpack.c.l.b16 %v1242
        %v2079 = vunpack.c.l.b16 %v1243
        %v2080 = vunpack.c.l.b16 %v1244
        %v2081 = vpack.c.b16 %v2066, %v2065
        %v2082 = vpack.c.b16 %v2068, %v2067
        %v2083 = vpack.c.b16 %v2070, %v2069
        %v2084 = vpack.c.b16 %v2072, %v2071
        %v2085 = vpack.c.b16 %v2074, %v2073
        %v2086 = vpack.c.b16 %v2076, %v2075
        %v2087 = vpack.c.b16 %v2078, %v2077
        %v2088 = vpack.c.b16 %v2080, %v2079
        %v2105 = vunpack.c.l.b16 %v1293
        %v2106 = vunpack.c.l.b16 %v1294
        %v2107 = vunpack.c.l.b16 %v1295
        %v2108 = vunpack.c.l.b16 %v1296
        %v2109 = vunpack.c.l.b16 %v1297
        %v2110 = vunpack.c.l.b16 %v1298
        %v2111 = vunpack.c.l.b16 %v1299
        %v2112 = vunpack.c.l.b16 %v1300
        %v2113 = vunpack.c.l.b16 %v1301
        %v2114 = vunpack.c.l.b16 %v1302
        %v2115 = vunpack.c.l.b16 %v1303
        %v2116 = vunpack.c.l.b16 %v1304
        %v2117 = vunpack.c.l.b16 %v1305
        %v2118 = vunpack.c.l.b16 %v1306
        %v2119 = vunpack.c.l.b16 %v1307
        %v2120 = vunpack.c.l.b16 %v1308
        %v2121 = vpack.c.b16 %v2106, %v2105
        %v2122 = vpack.c.b16 %v2108, %v2107
        %v2123 = vpack.c.b16 %v2110, %v2109
        %v2124 = vpack.c.b16 %v2112, %v2111
        %v2125 = vpack.c.b16 %v2114, %v2113
        %v2126 = vpack.c.b16 %v2116, %v2115
        %v2127 = vpack.c.b16 %v2118, %v2117
        %v2128 = vpack.c.b16 %v2120, %v2119
        %v2130 = vsel %vm1453, %v2081, 0
        %v2133 = vsel %vm1453, %v2082, 0
        %v2136 = vsel %vm1453, %v2083, 0
        %v2139 = vsel %vm1453, %v2084, 0
        %v2142 = vsel %vm1453, %v2085, 0
        %v2145 = vsel %vm1453, %v2086, 0
        %v2148 = vsel %vm1453, %v2087, 0
        %v2151 = vsel %vm1453, %v2088, 0
        %v2154 = vsel %vm1453, %v2121, 0
        %v2157 = vsel %vm1453, %v2122, 0
        %v2160 = vsel %vm1453, %v2123, 0
        %v2163 = vsel %vm1453, %v2124, 0
        %v2166 = vsel %vm1453, %v2125, 0
        %v2169 = vsel %vm1453, %v2126, 0
        %v2172 = vsel %vm1453, %v2127, 0
        %v2175 = vsel %vm1453, %v2128, 0
        %2177 = vmatprep.subr.bf16.mxu0 0
        %2178 = vmatpush1.bf16.xpose.msra.mxu0 %v2175
        %2179 = vmatprep.subr.bf16.mxu0 0
        %2180 = vmatpush1.bf16.xpose.msra.mxu0 %v2172
        %2181 = vmatprep.subr.bf16.mxu0 0
        %2182 = vmatpush1.bf16.xpose.msra.mxu0 %v2169
        %2183 = vmatprep.subr.bf16.mxu0 0
        %2184 = vmatpush1.bf16.xpose.msra.mxu0 %v2166
        %2185 = vmatprep.subr.bf16.mxu0 0
        %2186 = vmatpush1.bf16.xpose.msra.mxu0 %v2163
        %2187 = vmatprep.subr.bf16.mxu0 0
        %2188 = vmatpush1.bf16.xpose.msra.mxu0 %v2160
        %2189 = vmatprep.subr.bf16.mxu0 0
        %2190 = vmatpush1.bf16.xpose.msra.mxu0 %v2157
        %2191 = vmatprep.subr.bf16.mxu0 0
        %2192 = vmatpush1.bf16.xpose.msra.mxu0 %v2154
        %2193 = vmatprep.subr.bf16.mxu0 0
        %2194 = vmatpush2.bf16.xpose.msra.mxu0 0
        %2195 = vmatprep.subr.bf16.mxu0 0
        %2196 = vmatpush2.bf16.xpose.msra.mxu0 0
        %2197 = vmatprep.subr.bf16.mxu0 0
        %2198 = vmatpush2.bf16.xpose.msra.mxu0 0
        %2199 = vmatprep.subr.bf16.mxu0 0
        %2200 = vmatpush2.bf16.xpose.msra.mxu0 0
        %2201 = vmatprep.subr.bf16.mxu0 0
        %2202 = vmatpush2.bf16.xpose.msra.mxu0 0
        %2203 = vmatprep.subr.bf16.mxu0 0
        %2204 = vmatpush2.bf16.xpose.msra.mxu0 0
        %2205 = vmatprep.subr.bf16.mxu0 0
        %2206 = vmatpush2.bf16.xpose.msra.mxu0 0
        %2207 = vmatprep.subr.bf16.mxu0 0
        %2208 = vmatpush2.bf16.xpose.msra.mxu0 0
        %2209 = vmatprep.mubr.bf16.mxu0 0
        %2210 = vmatmul.mubr.bf16.gmra.mxu0 %v2130
        %v2211 = vpop.f32.mrf.mxu0
        %v2212 = vadd.f32 0.0, %v2211
        %v2213 = vpop.f32.mrf.mxu0
        %v2214 = vpop.f32.mrf.mxu0
        %v2215 = vadd.f32 0.0, %v2214
        %v2216 = vpop.f32.mrf.mxu0
        %2217 = vmatprep.mubr.bf16.mxu0 0
        %2218 = vmatmul.mubr.bf16.gmra.mxu0 %v2133
        %v2219 = vpop.f32.mrf.mxu0
        %v2220 = vadd.f32 0.0, %v2219
        %v2221 = vpop.f32.mrf.mxu0
        %v2222 = vpop.f32.mrf.mxu0
        %v2223 = vadd.f32 0.0, %v2222
        %v2224 = vpop.f32.mrf.mxu0
        %2225 = vmatprep.mubr.bf16.mxu0 0
        %2226 = vmatmul.mubr.bf16.gmra.mxu0 %v2136
        %v2227 = vpop.f32.mrf.mxu0
        %v2228 = vadd.f32 0.0, %v2227
        %v2229 = vpop.f32.mrf.mxu0
        %v2230 = vpop.f32.mrf.mxu0
        %v2231 = vadd.f32 0.0, %v2230
        %v2232 = vpop.f32.mrf.mxu0
        %2233 = vmatprep.mubr.bf16.mxu0 0
        %2234 = vmatmul.mubr.bf16.gmra.mxu0 %v2139
        %v2235 = vpop.f32.mrf.mxu0
        %v2236 = vadd.f32 0.0, %v2235
        %v2237 = vpop.f32.mrf.mxu0
        %v2238 = vpop.f32.mrf.mxu0
        %v2239 = vadd.f32 0.0, %v2238
        %v2240 = vpop.f32.mrf.mxu0
        %2241 = vmatprep.mubr.bf16.mxu0 0
        %2242 = vmatmul.mubr.bf16.gmra.mxu0 %v2142
        %v2243 = vpop.f32.mrf.mxu0
        %v2244 = vadd.f32 0.0, %v2243
        %v2245 = vpop.f32.mrf.mxu0
        %v2246 = vpop.f32.mrf.mxu0
        %v2247 = vadd.f32 0.0, %v2246
        %v2248 = vpop.f32.mrf.mxu0
        %2249 = vmatprep.mubr.bf16.mxu0 0
        %2250 = vmatmul.mubr.bf16.gmra.mxu0 %v2145
        %v2251 = vpop.f32.mrf.mxu0
        %v2252 = vadd.f32 0.0, %v2251
        %v2253 = vpop.f32.mrf.mxu0
        %v2254 = vpop.f32.mrf.mxu0
        %v2255 = vadd.f32 0.0, %v2254
        %v2256 = vpop.f32.mrf.mxu0
        %2257 = vmatprep.mubr.bf16.mxu0 0
        %2258 = vmatmul.mubr.bf16.gmra.mxu0 %v2148
        %v2259 = vpop.f32.mrf.mxu0
        %v2260 = vadd.f32 0.0, %v2259
        %v2261 = vpop.f32.mrf.mxu0
        %v2262 = vpop.f32.mrf.mxu0
        %v2263 = vadd.f32 0.0, %v2262
        %v2264 = vpop.f32.mrf.mxu0
        %2265 = vmatprep.mubr.bf16.mxu0 0
        %2266 = vmatmul.mubr.bf16.gmra.mxu0 %v2151
        %v2267 = vpop.f32.mrf.mxu0
        %v2268 = vadd.f32 0.0, %v2267
        %v2269 = vpop.f32.mrf.mxu0
        %v2270 = vpop.f32.mrf.mxu0
        %v2271 = vadd.f32 0.0, %v2270
        %v2272 = vpop.f32.mrf.mxu0
        %2273 = vdwg.mxu0
        %v2274 = vmul.f32 %v1537, 0.17677669
        %v2275 = vmul.f32 %v1540, 0.17677669
        %v2276 = vmul.f32 %v1545, 0.17677669
        %v2277 = vmul.f32 %v1548, 0.17677669
        %v2278 = vmul.f32 %v1553, 0.17677669
        %v2279 = vmul.f32 %v1556, 0.17677669
        %v2280 = vmul.f32 %v1561, 0.17677669
        %v2281 = vmul.f32 %v1564, 0.17677669
        %v2282 = vmul.f32 %v1569, 0.17677669
        %v2283 = vmul.f32 %v1572, 0.17677669
        %v2284 = vmul.f32 %v1577, 0.17677669
        %v2285 = vmul.f32 %v1580, 0.17677669
        %v2286 = vmul.f32 %v1585, 0.17677669
        %v2287 = vmul.f32 %v1588, 0.17677669
        %v2288 = vmul.f32 %v1593, 0.17677669
        %v2289 = vmul.f32 %v1596, 0.17677669
        %v2290 = vmul.f32 %v1762, 0.17677669
        %v2291 = vmul.f32 %v1765, 0.17677669
        %v2292 = vmul.f32 %v1770, 0.17677669
        %v2293 = vmul.f32 %v1773, 0.17677669
        %v2294 = vmul.f32 %v1778, 0.17677669
        %v2295 = vmul.f32 %v1781, 0.17677669
        %v2296 = vmul.f32 %v1786, 0.17677669
        %v2297 = vmul.f32 %v1789, 0.17677669
        %v2298 = vmul.f32 %v1794, 0.17677669
        %v2299 = vmul.f32 %v1797, 0.17677669
        %v2300 = vmul.f32 %v1802, 0.17677669
        %v2301 = vmul.f32 %v1805, 0.17677669
        %v2302 = vmul.f32 %v1810, 0.17677669
        %v2303 = vmul.f32 %v1813, 0.17677669
        %v2304 = vmul.f32 %v1818, 0.17677669
        %v2305 = vmul.f32 %v1821, 0.17677669
        %v2306 = vmul.f32 %v1987, 0.17677669
        %v2307 = vmul.f32 %v1990, 0.17677669
        %v2308 = vmul.f32 %v1995, 0.17677669
        %v2309 = vmul.f32 %v1998, 0.17677669
        %v2310 = vmul.f32 %v2003, 0.17677669
        %v2311 = vmul.f32 %v2006, 0.17677669
        %v2312 = vmul.f32 %v2011, 0.17677669
        %v2313 = vmul.f32 %v2014, 0.17677669
        %v2314 = vmul.f32 %v2019, 0.17677669
        %v2315 = vmul.f32 %v2022, 0.17677669
        %v2316 = vmul.f32 %v2027, 0.17677669
        %v2317 = vmul.f32 %v2030, 0.17677669
        %v2318 = vmul.f32 %v2035, 0.17677669
        %v2319 = vmul.f32 %v2038, 0.17677669
        %v2320 = vmul.f32 %v2043, 0.17677669
        %v2321 = vmul.f32 %v2046, 0.17677669
        %v2322 = vmul.f32 %v2212, 0.17677669
        %v2323 = vmul.f32 %v2215, 0.17677669
        %v2324 = vmul.f32 %v2220, 0.17677669
        %v2325 = vmul.f32 %v2223, 0.17677669
        %v2326 = vmul.f32 %v2228, 0.17677669
        %v2327 = vmul.f32 %v2231, 0.17677669
        %v2328 = vmul.f32 %v2236, 0.17677669
        %v2329 = vmul.f32 %v2239, 0.17677669
        %v2330 = vmul.f32 %v2244, 0.17677669
        %v2331 = vmul.f32 %v2247, 0.17677669
        %v2332 = vmul.f32 %v2252, 0.17677669
        %v2333 = vmul.f32 %v2255, 0.17677669
        %v2334 = vmul.f32 %v2260, 0.17677669
        %v2335 = vmul.f32 %v2263, 0.17677669
        %v2336 = vmul.f32 %v2268, 0.17677669
        %v2337 = vmul.f32 %v2271, 0.17677669
        %v2338 = vld [vmem:[%s3] sm:$0xff]
        %v2339 = vld [vmem:[%s3 + $0x8] sm:$0xff]
        %v2340 = vld [vmem:[%s3 + $0x10] sm:$0xff]
        %v2341 = vld [vmem:[%s3 + $0x18] sm:$0xff]
        %v2342 = vld [vmem:[%s3 + $0x20] sm:$0xff]
        %v2343 = vld [vmem:[%s3 + $0x28] sm:$0xff]
        %v2344 = vld [vmem:[%s3 + $0x30] sm:$0xff]
        %v2345 = vld [vmem:[%s3 + $0x38] sm:$0xff]
        %v2346 = vld [vmem:[%s3 + $0x40] sm:$0xff]
        %v2347 = vld [vmem:[%s3 + $0x48] sm:$0xff]
        %v2348 = vld [vmem:[%s3 + $0x50] sm:$0xff]
        %v2349 = vld [vmem:[%s3 + $0x58] sm:$0xff]
        %v2350 = vld [vmem:[%s3 + $0x60] sm:$0xff]
        %v2351 = vld [vmem:[%s3 + $0x68] sm:$0xff]
        %v2352 = vld [vmem:[%s3 + $0x70] sm:$0xff]
        %v2353 = vld [vmem:[%s3 + $0x78] sm:$0xff]
        %v2354 = vld [vmem:[%s3 + $0x80] sm:$0xff]
        %v2355 = vld [vmem:[%s3 + $0x88] sm:$0xff]
        %v2356 = vld [vmem:[%s3 + $0x90] sm:$0xff]
        %v2357 = vld [vmem:[%s3 + $0x98] sm:$0xff]
        %v2358 = vld [vmem:[%s3 + $0xa0] sm:$0xff]
        %v2359 = vld [vmem:[%s3 + $0xa8] sm:$0xff]
        %v2360 = vld [vmem:[%s3 + $0xb0] sm:$0xff]
        %v2361 = vld [vmem:[%s3 + $0xb8] sm:$0xff]
        %v2362 = vld [vmem:[%s3 + $0xc0] sm:$0xff]
        %v2363 = vld [vmem:[%s3 + $0xc8] sm:$0xff]
        %v2364 = vld [vmem:[%s3 + $0xd0] sm:$0xff]
        %v2365 = vld [vmem:[%s3 + $0xd8] sm:$0xff]
        %v2366 = vld [vmem:[%s3 + $0xe0] sm:$0xff]
        %v2367 = vld [vmem:[%s3 + $0xe8] sm:$0xff]
        %v2368 = vld [vmem:[%s3 + $0xf0] sm:$0xff]
        %v2369 = vld [vmem:[%s3 + $0xf8] sm:$0xff]
        %v2370 = vld [vmem:[%s3 + $0x100] sm:$0xff]
        %v2371 = vld [vmem:[%s3 + $0x108] sm:$0xff]
        %v2372 = vld [vmem:[%s3 + $0x110] sm:$0xff]
        %v2373 = vld [vmem:[%s3 + $0x118] sm:$0xff]
        %v2374 = vld [vmem:[%s3 + $0x120] sm:$0xff]
        %v2375 = vld [vmem:[%s3 + $0x128] sm:$0xff]
        %v2376 = vld [vmem:[%s3 + $0x130] sm:$0xff]
        %v2377 = vld [vmem:[%s3 + $0x138] sm:$0xff]
        %v2378 = vld [vmem:[%s3 + $0x140] sm:$0xff]
        %v2379 = vld [vmem:[%s3 + $0x148] sm:$0xff]
        %v2380 = vld [vmem:[%s3 + $0x150] sm:$0xff]
        %v2381 = vld [vmem:[%s3 + $0x158] sm:$0xff]
        %v2382 = vld [vmem:[%s3 + $0x160] sm:$0xff]
        %v2383 = vld [vmem:[%s3 + $0x168] sm:$0xff]
        %v2384 = vld [vmem:[%s3 + $0x170] sm:$0xff]
        %v2385 = vld [vmem:[%s3 + $0x178] sm:$0xff]
        %v2386 = vld [vmem:[%s3 + $0x180] sm:$0xff]
        %v2387 = vld [vmem:[%s3 + $0x188] sm:$0xff]
        %v2388 = vld [vmem:[%s3 + $0x190] sm:$0xff]
        %v2389 = vld [vmem:[%s3 + $0x198] sm:$0xff]
        %v2390 = vld [vmem:[%s3 + $0x1a0] sm:$0xff]
        %v2391 = vld [vmem:[%s3 + $0x1a8] sm:$0xff]
        %v2392 = vld [vmem:[%s3 + $0x1b0] sm:$0xff]
        %v2393 = vld [vmem:[%s3 + $0x1b8] sm:$0xff]
        %v2394 = vld [vmem:[%s3 + $0x1c0] sm:$0xff]
        %v2395 = vld [vmem:[%s3 + $0x1c8] sm:$0xff]
        %v2396 = vld [vmem:[%s3 + $0x1d0] sm:$0xff]
        %v2397 = vld [vmem:[%s3 + $0x1d8] sm:$0xff]
        %v2398 = vld [vmem:[%s3 + $0x1e0] sm:$0xff]
        %v2399 = vld [vmem:[%s3 + $0x1e8] sm:$0xff]
        %v2400 = vld [vmem:[%s3 + $0x1f0] sm:$0xff]
        %v2401 = vld [vmem:[%s3 + $0x1f8] sm:$0xff]
        %v2402 = vadd.f32 %v2274, %v2338
        %v2403 = vadd.f32 %v2275, %v2339
        %v2404 = vadd.f32 %v2276, %v2340
        %v2405 = vadd.f32 %v2277, %v2341
        %v2406 = vadd.f32 %v2278, %v2342
        %v2407 = vadd.f32 %v2279, %v2343
        %v2408 = vadd.f32 %v2280, %v2344
        %v2409 = vadd.f32 %v2281, %v2345
        %v2410 = vadd.f32 %v2282, %v2346
        %v2411 = vadd.f32 %v2283, %v2347
        %v2412 = vadd.f32 %v2284, %v2348
        %v2413 = vadd.f32 %v2285, %v2349
        %v2414 = vadd.f32 %v2286, %v2350
        %v2415 = vadd.f32 %v2287, %v2351
        %v2416 = vadd.f32 %v2288, %v2352
        %v2417 = vadd.f32 %v2289, %v2353
        %v2418 = vadd.f32 %v2290, %v2354
        %v2419 = vadd.f32 %v2291, %v2355
        %v2420 = vadd.f32 %v2292, %v2356
        %v2421 = vadd.f32 %v2293, %v2357
        %v2422 = vadd.f32 %v2294, %v2358
        %v2423 = vadd.f32 %v2295, %v2359
        %v2424 = vadd.f32 %v2296, %v2360
        %v2425 = vadd.f32 %v2297, %v2361
        %v2426 = vadd.f32 %v2298, %v2362
        %v2427 = vadd.f32 %v2299, %v2363
        %v2428 = vadd.f32 %v2300, %v2364
        %v2429 = vadd.f32 %v2301, %v2365
        %v2430 = vadd.f32 %v2302, %v2366
        %v2431 = vadd.f32 %v2303, %v2367
        %v2432 = vadd.f32 %v2304, %v2368
        %v2433 = vadd.f32 %v2305, %v2369
        %v2434 = vadd.f32 %v2306, %v2370
        %v2435 = vadd.f32 %v2307, %v2371
        %v2436 = vadd.f32 %v2308, %v2372
        %v2437 = vadd.f32 %v2309, %v2373
        %v2438 = vadd.f32 %v2310, %v2374
        %v2439 = vadd.f32 %v2311, %v2375
        %v2440 = vadd.f32 %v2312, %v2376
        %v2441 = vadd.f32 %v2313, %v2377
        %v2442 = vadd.f32 %v2314, %v2378
        %v2443 = vadd.f32 %v2315, %v2379
        %v2444 = vadd.f32 %v2316, %v2380
        %v2445 = vadd.f32 %v2317, %v2381
        %v2446 = vadd.f32 %v2318, %v2382
        %v2447 = vadd.f32 %v2319, %v2383
        %v2448 = vadd.f32 %v2320, %v2384
        %v2449 = vadd.f32 %v2321, %v2385
        %v2450 = vadd.f32 %v2322, %v2386
        %v2451 = vadd.f32 %v2323, %v2387
        %v2452 = vadd.f32 %v2324, %v2388
        %v2453 = vadd.f32 %v2325, %v2389
        %v2454 = vadd.f32 %v2326, %v2390
        %v2455 = vadd.f32 %v2327, %v2391
        %v2456 = vadd.f32 %v2328, %v2392
        %v2457 = vadd.f32 %v2329, %v2393
        %v2458 = vadd.f32 %v2330, %v2394
        %v2459 = vadd.f32 %v2331, %v2395
        %v2460 = vadd.f32 %v2332, %v2396
        %v2461 = vadd.f32 %v2333, %v2397
        %v2462 = vadd.f32 %v2334, %v2398
        %v2463 = vadd.f32 %v2335, %v2399
        %v2464 = vadd.f32 %v2336, %v2400
        %v2465 = vadd.f32 %v2337, %v2401
        %2466 = vmax.xlane.f32.xlu0 %v2402
        %v2467 = vpop.xlane.xlu0 %2466
        %2468 = vmax.xlane.f32.xlu0 %v2403
        %v2469 = vpop.xlane.xlu0 %2468
        %2470 = vmax.xlane.f32.xlu0 %v2404
        %v2471 = vpop.xlane.xlu0 %2470
        %2472 = vmax.xlane.f32.xlu0 %v2405
        %v2473 = vpop.xlane.xlu0 %2472
        %2474 = vmax.xlane.f32.xlu0 %v2406
        %v2475 = vpop.xlane.xlu0 %2474
        %2476 = vmax.xlane.f32.xlu0 %v2407
        %v2477 = vpop.xlane.xlu0 %2476
        %2478 = vmax.xlane.f32.xlu0 %v2408
        %v2479 = vpop.xlane.xlu0 %2478
        %2480 = vmax.xlane.f32.xlu0 %v2409
        %v2481 = vpop.xlane.xlu0 %2480
        %2482 = vmax.xlane.f32.xlu0 %v2410
        %v2483 = vpop.xlane.xlu0 %2482
        %2484 = vmax.xlane.f32.xlu0 %v2411
        %v2485 = vpop.xlane.xlu0 %2484
        %2486 = vmax.xlane.f32.xlu0 %v2412
        %v2487 = vpop.xlane.xlu0 %2486
        %2488 = vmax.xlane.f32.xlu0 %v2413
        %v2489 = vpop.xlane.xlu0 %2488
        %2490 = vmax.xlane.f32.xlu0 %v2414
        %v2491 = vpop.xlane.xlu0 %2490
        %2492 = vmax.xlane.f32.xlu0 %v2415
        %v2493 = vpop.xlane.xlu0 %2492
        %2494 = vmax.xlane.f32.xlu0 %v2416
        %v2495 = vpop.xlane.xlu0 %2494
        %2496 = vmax.xlane.f32.xlu0 %v2417
        %v2497 = vpop.xlane.xlu0 %2496
        %2498 = vmax.xlane.f32.xlu0 %v2418
        %v2499 = vpop.xlane.xlu0 %2498
        %2500 = vmax.xlane.f32.xlu0 %v2419
        %v2501 = vpop.xlane.xlu0 %2500
        %2502 = vmax.xlane.f32.xlu0 %v2420
        %v2503 = vpop.xlane.xlu0 %2502
        %2504 = vmax.xlane.f32.xlu0 %v2421
        %v2505 = vpop.xlane.xlu0 %2504
        %2506 = vmax.xlane.f32.xlu0 %v2422
        %v2507 = vpop.xlane.xlu0 %2506
        %2508 = vmax.xlane.f32.xlu0 %v2423
        %v2509 = vpop.xlane.xlu0 %2508
        %2510 = vmax.xlane.f32.xlu0 %v2424
        %v2511 = vpop.xlane.xlu0 %2510
        %2512 = vmax.xlane.f32.xlu0 %v2425
        %v2513 = vpop.xlane.xlu0 %2512
        %2514 = vmax.xlane.f32.xlu0 %v2426
        %v2515 = vpop.xlane.xlu0 %2514
        %2516 = vmax.xlane.f32.xlu0 %v2427
        %v2517 = vpop.xlane.xlu0 %2516
        %2518 = vmax.xlane.f32.xlu0 %v2428
        %v2519 = vpop.xlane.xlu0 %2518
        %2520 = vmax.xlane.f32.xlu0 %v2429
        %v2521 = vpop.xlane.xlu0 %2520
        %2522 = vmax.xlane.f32.xlu0 %v2430
        %v2523 = vpop.xlane.xlu0 %2522
        %2524 = vmax.xlane.f32.xlu0 %v2431
        %v2525 = vpop.xlane.xlu0 %2524
        %2526 = vmax.xlane.f32.xlu0 %v2432
        %v2527 = vpop.xlane.xlu0 %2526
        %2528 = vmax.xlane.f32.xlu0 %v2433
        %v2529 = vpop.xlane.xlu0 %2528
        %2530 = vmax.xlane.f32.xlu0 %v2434
        %v2531 = vpop.xlane.xlu0 %2530
        %2532 = vmax.xlane.f32.xlu0 %v2435
        %v2533 = vpop.xlane.xlu0 %2532
        %2534 = vmax.xlane.f32.xlu0 %v2436
        %v2535 = vpop.xlane.xlu0 %2534
        %2536 = vmax.xlane.f32.xlu0 %v2437
        %v2537 = vpop.xlane.xlu0 %2536
        %2538 = vmax.xlane.f32.xlu0 %v2438
        %v2539 = vpop.xlane.xlu0 %2538
        %2540 = vmax.xlane.f32.xlu0 %v2439
        %v2541 = vpop.xlane.xlu0 %2540
        %2542 = vmax.xlane.f32.xlu0 %v2440
        %v2543 = vpop.xlane.xlu0 %2542
        %2544 = vmax.xlane.f32.xlu0 %v2441
        %v2545 = vpop.xlane.xlu0 %2544
        %2546 = vmax.xlane.f32.xlu0 %v2442
        %v2547 = vpop.xlane.xlu0 %2546
        %2548 = vmax.xlane.f32.xlu0 %v2443
        %v2549 = vpop.xlane.xlu0 %2548
        %2550 = vmax.xlane.f32.xlu0 %v2444
        %v2551 = vpop.xlane.xlu0 %2550
        %2552 = vmax.xlane.f32.xlu0 %v2445
        %v2553 = vpop.xlane.xlu0 %2552
        %2554 = vmax.xlane.f32.xlu0 %v2446
        %v2555 = vpop.xlane.xlu0 %2554
        %2556 = vmax.xlane.f32.xlu0 %v2447
        %v2557 = vpop.xlane.xlu0 %2556
        %2558 = vmax.xlane.f32.xlu0 %v2448
        %v2559 = vpop.xlane.xlu0 %2558
        %2560 = vmax.xlane.f32.xlu0 %v2449
        %v2561 = vpop.xlane.xlu0 %2560
        %2562 = vmax.xlane.f32.xlu0 %v2450
        %v2563 = vpop.xlane.xlu0 %2562
        %2564 = vmax.xlane.f32.xlu0 %v2451
        %v2565 = vpop.xlane.xlu0 %2564
        %2566 = vmax.xlane.f32.xlu0 %v2452
        %v2567 = vpop.xlane.xlu0 %2566
        %2568 = vmax.xlane.f32.xlu0 %v2453
        %v2569 = vpop.xlane.xlu0 %2568
        %2570 = vmax.xlane.f32.xlu0 %v2454
        %v2571 = vpop.xlane.xlu0 %2570
        %2572 = vmax.xlane.f32.xlu0 %v2455
        %v2573 = vpop.xlane.xlu0 %2572
        %2574 = vmax.xlane.f32.xlu0 %v2456
        %v2575 = vpop.xlane.xlu0 %2574
        %2576 = vmax.xlane.f32.xlu0 %v2457
        %v2577 = vpop.xlane.xlu0 %2576
        %2578 = vmax.xlane.f32.xlu0 %v2458
        %v2579 = vpop.xlane.xlu0 %2578
        %2580 = vmax.xlane.f32.xlu0 %v2459
        %v2581 = vpop.xlane.xlu0 %2580
        %2582 = vmax.xlane.f32.xlu0 %v2460
        %v2583 = vpop.xlane.xlu0 %2582
        %2584 = vmax.xlane.f32.xlu0 %v2461
        %v2585 = vpop.xlane.xlu0 %2584
        %2586 = vmax.xlane.f32.xlu0 %v2462
        %v2587 = vpop.xlane.xlu0 %2586
        %2588 = vmax.xlane.f32.xlu0 %v2463
        %v2589 = vpop.xlane.xlu0 %2588
        %2590 = vmax.xlane.f32.xlu0 %v2464
        %v2591 = vpop.xlane.xlu0 %2590
        %2592 = vmax.xlane.f32.xlu0 %v2465
        %v2593 = vpop.xlane.xlu0 %2592
        %v2594 = vsub.f32 %v2402, %v2467
        %v2595 = vsub.f32 %v2403, %v2469
        %v2596 = vsub.f32 %v2404, %v2471
        %v2597 = vsub.f32 %v2405, %v2473
        %v2598 = vsub.f32 %v2406, %v2475
        %v2599 = vsub.f32 %v2407, %v2477
        %v2600 = vsub.f32 %v2408, %v2479
        %v2601 = vsub.f32 %v2409, %v2481
        %v2602 = vsub.f32 %v2410, %v2483
        %v2603 = vsub.f32 %v2411, %v2485
        %v2604 = vsub.f32 %v2412, %v2487
        %v2605 = vsub.f32 %v2413, %v2489
        %v2606 = vsub.f32 %v2414, %v2491
        %v2607 = vsub.f32 %v2415, %v2493
        %v2608 = vsub.f32 %v2416, %v2495
        %v2609 = vsub.f32 %v2417, %v2497
        %v2610 = vsub.f32 %v2418, %v2499
        %v2611 = vsub.f32 %v2419, %v2501
        %v2612 = vsub.f32 %v2420, %v2503
        %v2613 = vsub.f32 %v2421, %v2505
        %v2614 = vsub.f32 %v2422, %v2507
        %v2615 = vsub.f32 %v2423, %v2509
        %v2616 = vsub.f32 %v2424, %v2511
        %v2617 = vsub.f32 %v2425, %v2513
        %v2618 = vsub.f32 %v2426, %v2515
        %v2619 = vsub.f32 %v2427, %v2517
        %v2620 = vsub.f32 %v2428, %v2519
        %v2621 = vsub.f32 %v2429, %v2521
        %v2622 = vsub.f32 %v2430, %v2523
        %v2623 = vsub.f32 %v2431, %v2525
        %v2624 = vsub.f32 %v2432, %v2527
        %v2625 = vsub.f32 %v2433, %v2529
        %v2626 = vsub.f32 %v2434, %v2531
        %v2627 = vsub.f32 %v2435, %v2533
        %v2628 = vsub.f32 %v2436, %v2535
        %v2629 = vsub.f32 %v2437, %v2537
        %v2630 = vsub.f32 %v2438, %v2539
        %v2631 = vsub.f32 %v2439, %v2541
        %v2632 = vsub.f32 %v2440, %v2543
        %v2633 = vsub.f32 %v2441, %v2545
        %v2634 = vsub.f32 %v2442, %v2547
        %v2635 = vsub.f32 %v2443, %v2549
        %v2636 = vsub.f32 %v2444, %v2551
        %v2637 = vsub.f32 %v2445, %v2553
        %v2638 = vsub.f32 %v2446, %v2555
        %v2639 = vsub.f32 %v2447, %v2557
        %v2640 = vsub.f32 %v2448, %v2559
        %v2641 = vsub.f32 %v2449, %v2561
        %v2642 = vsub.f32 %v2450, %v2563
        %v2643 = vsub.f32 %v2451, %v2565
        %v2644 = vsub.f32 %v2452, %v2567
        %v2645 = vsub.f32 %v2453, %v2569
        %v2646 = vsub.f32 %v2454, %v2571
        %v2647 = vsub.f32 %v2455, %v2573
        %v2648 = vsub.f32 %v2456, %v2575
        %v2649 = vsub.f32 %v2457, %v2577
        %v2650 = vsub.f32 %v2458, %v2579
        %v2651 = vsub.f32 %v2459, %v2581
        %v2652 = vsub.f32 %v2460, %v2583
        %v2653 = vsub.f32 %v2461, %v2585
        %v2654 = vsub.f32 %v2462, %v2587
        %v2655 = vsub.f32 %v2463, %v2589
        %v2656 = vsub.f32 %v2464, %v2591
        %v2657 = vsub.f32 %v2465, %v2593
        %v2658 = vmul.f32 %v2594, 1.442695
        %v2659 = vpow.pop %v2658
        %v2660 = vmul.f32 %v2595, 1.442695
        %v2661 = vpow.pop %v2660
        %v2662 = vmul.f32 %v2596, 1.442695
        %v2663 = vpow.pop %v2662
        %v2664 = vmul.f32 %v2597, 1.442695
        %v2665 = vpow.pop %v2664
        %v2666 = vmul.f32 %v2598, 1.442695
        %v2667 = vpow.pop %v2666
        %v2668 = vmul.f32 %v2599, 1.442695
        %v2669 = vpow.pop %v2668
        %v2670 = vmul.f32 %v2600, 1.442695
        %v2671 = vpow.pop %v2670
        %v2672 = vmul.f32 %v2601, 1.442695
        %v2673 = vpow.pop %v2672
        %v2674 = vmul.f32 %v2602, 1.442695
        %v2675 = vpow.pop %v2674
        %v2676 = vmul.f32 %v2603, 1.442695
        %v2677 = vpow.pop %v2676
        %v2678 = vmul.f32 %v2604, 1.442695
        %v2679 = vpow.pop %v2678
        %v2680 = vmul.f32 %v2605, 1.442695
        %v2681 = vpow.pop %v2680
        %v2682 = vmul.f32 %v2606, 1.442695
        %v2683 = vpow.pop %v2682
        %v2684 = vmul.f32 %v2607, 1.442695
        %v2685 = vpow.pop %v2684
        %v2686 = vmul.f32 %v2608, 1.442695
        %v2687 = vpow.pop %v2686
        %v2688 = vmul.f32 %v2609, 1.442695
        %v2689 = vpow.pop %v2688
        %v2690 = vmul.f32 %v2610, 1.442695
        %v2691 = vpow.pop %v2690
        %v2692 = vmul.f32 %v2611, 1.442695
        %v2693 = vpow.pop %v2692
        %v2694 = vmul.f32 %v2612, 1.442695
        %v2695 = vpow.pop %v2694
        %v2696 = vmul.f32 %v2613, 1.442695
        %v2697 = vpow.pop %v2696
        %v2698 = vmul.f32 %v2614, 1.442695
        %v2699 = vpow.pop %v2698
        %v2700 = vmul.f32 %v2615, 1.442695
        %v2701 = vpow.pop %v2700
        %v2702 = vmul.f32 %v2616, 1.442695
        %v2703 = vpow.pop %v2702
        %v2704 = vmul.f32 %v2617, 1.442695
        %v2705 = vpow.pop %v2704
        %v2706 = vmul.f32 %v2618, 1.442695
        %v2707 = vpow.pop %v2706
        %v2708 = vmul.f32 %v2619, 1.442695
        %v2709 = vpow.pop %v2708
        %v2710 = vmul.f32 %v2620, 1.442695
        %v2711 = vpow.pop %v2710
        %v2712 = vmul.f32 %v2621, 1.442695
        %v2713 = vpow.pop %v2712
        %v2714 = vmul.f32 %v2622, 1.442695
        %v2715 = vpow.pop %v2714
        %v2716 = vmul.f32 %v2623, 1.442695
        %v2717 = vpow.pop %v2716
        %v2718 = vmul.f32 %v2624, 1.442695
        %v2719 = vpow.pop %v2718
        %v2720 = vmul.f32 %v2625, 1.442695
        %v2721 = vpow.pop %v2720
        %v2722 = vmul.f32 %v2626, 1.442695
        %v2723 = vpow.pop %v2722
        %v2724 = vmul.f32 %v2627, 1.442695
        %v2725 = vpow.pop %v2724
        %v2726 = vmul.f32 %v2628, 1.442695
        %v2727 = vpow.pop %v2726
        %v2728 = vmul.f32 %v2629, 1.442695
        %v2729 = vpow.pop %v2728
        %v2730 = vmul.f32 %v2630, 1.442695
        %v2731 = vpow.pop %v2730
        %v2732 = vmul.f32 %v2631, 1.442695
        %v2733 = vpow.pop %v2732
        %v2734 = vmul.f32 %v2632, 1.442695
        %v2735 = vpow.pop %v2734
        %v2736 = vmul.f32 %v2633, 1.442695
        %v2737 = vpow.pop %v2736
        %v2738 = vmul.f32 %v2634, 1.442695
        %v2739 = vpow.pop %v2738
        %v2740 = vmul.f32 %v2635, 1.442695
        %v2741 = vpow.pop %v2740
        %v2742 = vmul.f32 %v2636, 1.442695
        %v2743 = vpow.pop %v2742
        %v2744 = vmul.f32 %v2637, 1.442695
        %v2745 = vpow.pop %v2744
        %v2746 = vmul.f32 %v2638, 1.442695
        %v2747 = vpow.pop %v2746
        %v2748 = vmul.f32 %v2639, 1.442695
        %v2749 = vpow.pop %v2748
        %v2750 = vmul.f32 %v2640, 1.442695
        %v2751 = vpow.pop %v2750
        %v2752 = vmul.f32 %v2641, 1.442695
        %v2753 = vpow.pop %v2752
        %v2754 = vmul.f32 %v2642, 1.442695
        %v2755 = vpow.pop %v2754
        %v2756 = vmul.f32 %v2643, 1.442695
        %v2757 = vpow.pop %v2756
        %v2758 = vmul.f32 %v2644, 1.442695
        %v2759 = vpow.pop %v2758
        %v2760 = vmul.f32 %v2645, 1.442695
        %v2761 = vpow.pop %v2760
        %v2762 = vmul.f32 %v2646, 1.442695
        %v2763 = vpow.pop %v2762
        %v2764 = vmul.f32 %v2647, 1.442695
        %v2765 = vpow.pop %v2764
        %v2766 = vmul.f32 %v2648, 1.442695
        %v2767 = vpow.pop %v2766
        %v2768 = vmul.f32 %v2649, 1.442695
        %v2769 = vpow.pop %v2768
        %v2770 = vmul.f32 %v2650, 1.442695
        %v2771 = vpow.pop %v2770
        %v2772 = vmul.f32 %v2651, 1.442695
        %v2773 = vpow.pop %v2772
        %v2774 = vmul.f32 %v2652, 1.442695
        %v2775 = vpow.pop %v2774
        %v2776 = vmul.f32 %v2653, 1.442695
        %v2777 = vpow.pop %v2776
        %v2778 = vmul.f32 %v2654, 1.442695
        %v2779 = vpow.pop %v2778
        %v2780 = vmul.f32 %v2655, 1.442695
        %v2781 = vpow.pop %v2780
        %v2782 = vmul.f32 %v2656, 1.442695
        %v2783 = vpow.pop %v2782
        %v2784 = vmul.f32 %v2657, 1.442695
        %v2785 = vpow.pop %v2784
        %2786 = vadd.xlane.f32.xlu0 %v2659
        %v2787 = vpop.xlane.xlu0 %2786
        %2788 = vadd.xlane.f32.xlu0 %v2661
        %v2789 = vpop.xlane.xlu0 %2788
        %2790 = vadd.xlane.f32.xlu0 %v2663
        %v2791 = vpop.xlane.xlu0 %2790
        %2792 = vadd.xlane.f32.xlu0 %v2665
        %v2793 = vpop.xlane.xlu0 %2792
        %2794 = vadd.xlane.f32.xlu0 %v2667
        %v2795 = vpop.xlane.xlu0 %2794
        %2796 = vadd.xlane.f32.xlu0 %v2669
        %v2797 = vpop.xlane.xlu0 %2796
        %2798 = vadd.xlane.f32.xlu0 %v2671
        %v2799 = vpop.xlane.xlu0 %2798
        %2800 = vadd.xlane.f32.xlu0 %v2673
        %v2801 = vpop.xlane.xlu0 %2800
        %2802 = vadd.xlane.f32.xlu0 %v2675
        %v2803 = vpop.xlane.xlu0 %2802
        %2804 = vadd.xlane.f32.xlu0 %v2677
        %v2805 = vpop.xlane.xlu0 %2804
        %2806 = vadd.xlane.f32.xlu0 %v2679
        %v2807 = vpop.xlane.xlu0 %2806
        %2808 = vadd.xlane.f32.xlu0 %v2681
        %v2809 = vpop.xlane.xlu0 %2808
        %2810 = vadd.xlane.f32.xlu0 %v2683
        %v2811 = vpop.xlane.xlu0 %2810
        %2812 = vadd.xlane.f32.xlu0 %v2685
        %v2813 = vpop.xlane.xlu0 %2812
        %2814 = vadd.xlane.f32.xlu0 %v2687
        %v2815 = vpop.xlane.xlu0 %2814
        %2816 = vadd.xlane.f32.xlu0 %v2689
        %v2817 = vpop.xlane.xlu0 %2816
        %2818 = vadd.xlane.f32.xlu0 %v2691
        %v2819 = vpop.xlane.xlu0 %2818
        %2820 = vadd.xlane.f32.xlu0 %v2693
        %v2821 = vpop.xlane.xlu0 %2820
        %2822 = vadd.xlane.f32.xlu0 %v2695
        %v2823 = vpop.xlane.xlu0 %2822
        %2824 = vadd.xlane.f32.xlu0 %v2697
        %v2825 = vpop.xlane.xlu0 %2824
        %2826 = vadd.xlane.f32.xlu0 %v2699
        %v2827 = vpop.xlane.xlu0 %2826
        %2828 = vadd.xlane.f32.xlu0 %v2701
        %v2829 = vpop.xlane.xlu0 %2828
        %2830 = vadd.xlane.f32.xlu0 %v2703
        %v2831 = vpop.xlane.xlu0 %2830
        %2832 = vadd.xlane.f32.xlu0 %v2705
        %v2833 = vpop.xlane.xlu0 %2832
        %2834 = vadd.xlane.f32.xlu0 %v2707
        %v2835 = vpop.xlane.xlu0 %2834
        %2836 = vadd.xlane.f32.xlu0 %v2709
        %v2837 = vpop.xlane.xlu0 %2836
        %2838 = vadd.xlane.f32.xlu0 %v2711
        %v2839 = vpop.xlane.xlu0 %2838
        %2840 = vadd.xlane.f32.xlu0 %v2713
        %v2841 = vpop.xlane.xlu0 %2840
        %2842 = vadd.xlane.f32.xlu0 %v2715
        %v2843 = vpop.xlane.xlu0 %2842
        %2844 = vadd.xlane.f32.xlu0 %v2717
        %v2845 = vpop.xlane.xlu0 %2844
        %2846 = vadd.xlane.f32.xlu0 %v2719
        %v2847 = vpop.xlane.xlu0 %2846
        %2848 = vadd.xlane.f32.xlu0 %v2721
        %v2849 = vpop.xlane.xlu0 %2848
        %2850 = vadd.xlane.f32.xlu0 %v2723
        %v2851 = vpop.xlane.xlu0 %2850
        %2852 = vadd.xlane.f32.xlu0 %v2725
        %v2853 = vpop.xlane.xlu0 %2852
        %2854 = vadd.xlane.f32.xlu0 %v2727
        %v2855 = vpop.xlane.xlu0 %2854
        %2856 = vadd.xlane.f32.xlu0 %v2729
        %v2857 = vpop.xlane.xlu0 %2856
        %2858 = vadd.xlane.f32.xlu0 %v2731
        %v2859 = vpop.xlane.xlu0 %2858
        %2860 = vadd.xlane.f32.xlu0 %v2733
        %v2861 = vpop.xlane.xlu0 %2860
        %2862 = vadd.xlane.f32.xlu0 %v2735
        %v2863 = vpop.xlane.xlu0 %2862
        %2864 = vadd.xlane.f32.xlu0 %v2737
        %v2865 = vpop.xlane.xlu0 %2864
        %2866 = vadd.xlane.f32.xlu0 %v2739
        %v2867 = vpop.xlane.xlu0 %2866
        %2868 = vadd.xlane.f32.xlu0 %v2741
        %v2869 = vpop.xlane.xlu0 %2868
        %2870 = vadd.xlane.f32.xlu0 %v2743
        %v2871 = vpop.xlane.xlu0 %2870
        %2872 = vadd.xlane.f32.xlu0 %v2745
        %v2873 = vpop.xlane.xlu0 %2872
        %2874 = vadd.xlane.f32.xlu0 %v2747
        %v2875 = vpop.xlane.xlu0 %2874
        %2876 = vadd.xlane.f32.xlu0 %v2749
        %v2877 = vpop.xlane.xlu0 %2876
        %2878 = vadd.xlane.f32.xlu0 %v2751
        %v2879 = vpop.xlane.xlu0 %2878
        %2880 = vadd.xlane.f32.xlu0 %v2753
        %v2881 = vpop.xlane.xlu0 %2880
        %2882 = vadd.xlane.f32.xlu0 %v2755
        %v2883 = vpop.xlane.xlu0 %2882
        %2884 = vadd.xlane.f32.xlu0 %v2757
        %v2885 = vpop.xlane.xlu0 %2884
        %2886 = vadd.xlane.f32.xlu0 %v2759
        %v2887 = vpop.xlane.xlu0 %2886
        %2888 = vadd.xlane.f32.xlu0 %v2761
        %v2889 = vpop.xlane.xlu0 %2888
        %2890 = vadd.xlane.f32.xlu0 %v2763
        %v2891 = vpop.xlane.xlu0 %2890
        %2892 = vadd.xlane.f32.xlu0 %v2765
        %v2893 = vpop.xlane.xlu0 %2892
        %2894 = vadd.xlane.f32.xlu0 %v2767
        %v2895 = vpop.xlane.xlu0 %2894
        %2896 = vadd.xlane.f32.xlu0 %v2769
        %v2897 = vpop.xlane.xlu0 %2896
        %2898 = vadd.xlane.f32.xlu0 %v2771
        %v2899 = vpop.xlane.xlu0 %2898
        %2900 = vadd.xlane.f32.xlu0 %v2773
        %v2901 = vpop.xlane.xlu0 %2900
        %2902 = vadd.xlane.f32.xlu0 %v2775
        %v2903 = vpop.xlane.xlu0 %2902
        %2904 = vadd.xlane.f32.xlu0 %v2777
        %v2905 = vpop.xlane.xlu0 %2904
        %2906 = vadd.xlane.f32.xlu0 %v2779
        %v2907 = vpop.xlane.xlu0 %2906
        %2908 = vadd.xlane.f32.xlu0 %v2781
        %v2909 = vpop.xlane.xlu0 %2908
        %2910 = vadd.xlane.f32.xlu0 %v2783
        %v2911 = vpop.xlane.xlu0 %2910
        %2912 = vadd.xlane.f32.xlu0 %v2785
        %v2913 = vpop.xlane.xlu0 %2912
        %v2914 = vrcp.pop %v2787
        %v2915 = vrcp.pop %v2789
        %v2916 = vrcp.pop %v2791
        %v2917 = vrcp.pop %v2793
        %v2918 = vrcp.pop %v2795
        %v2919 = vrcp.pop %v2797
        %v2920 = vrcp.pop %v2799
        %v2921 = vrcp.pop %v2801
        %v2922 = vrcp.pop %v2803
        %v2923 = vrcp.pop %v2805
        %v2924 = vrcp.pop %v2807
        %v2925 = vrcp.pop %v2809
        %v2926 = vrcp.pop %v2811
        %v2927 = vrcp.pop %v2813
        %v2928 = vrcp.pop %v2815
        %v2929 = vrcp.pop %v2817
        %v2930 = vrcp.pop %v2819
        %v2931 = vrcp.pop %v2821
        %v2932 = vrcp.pop %v2823
        %v2933 = vrcp.pop %v2825
        %v2934 = vrcp.pop %v2827
        %v2935 = vrcp.pop %v2829
        %v2936 = vrcp.pop %v2831
        %v2937 = vrcp.pop %v2833
        %v2938 = vrcp.pop %v2835
        %v2939 = vrcp.pop %v2837
        %v2940 = vrcp.pop %v2839
        %v2941 = vrcp.pop %v2841
        %v2942 = vrcp.pop %v2843
        %v2943 = vrcp.pop %v2845
        %v2944 = vrcp.pop %v2847
        %v2945 = vrcp.pop %v2849
        %v2946 = vrcp.pop %v2851
        %v2947 = vrcp.pop %v2853
        %v2948 = vrcp.pop %v2855
        %v2949 = vrcp.pop %v2857
        %v2950 = vrcp.pop %v2859
        %v2951 = vrcp.pop %v2861
        %v2952 = vrcp.pop %v2863
        %v2953 = vrcp.pop %v2865
        %v2954 = vrcp.pop %v2867
        %v2955 = vrcp.pop %v2869
        %v2956 = vrcp.pop %v2871
        %v2957 = vrcp.pop %v2873
        %v2958 = vrcp.pop %v2875
        %v2959 = vrcp.pop %v2877
        %v2960 = vrcp.pop %v2879
        %v2961 = vrcp.pop %v2881
        %v2962 = vrcp.pop %v2883
        %v2963 = vrcp.pop %v2885
        %v2964 = vrcp.pop %v2887
        %v2965 = vrcp.pop %v2889
        %v2966 = vrcp.pop %v2891
        %v2967 = vrcp.pop %v2893
        %v2968 = vrcp.pop %v2895
        %v2969 = vrcp.pop %v2897
        %v2970 = vrcp.pop %v2899
        %v2971 = vrcp.pop %v2901
        %v2972 = vrcp.pop %v2903
        %v2973 = vrcp.pop %v2905
        %v2974 = vrcp.pop %v2907
        %v2975 = vrcp.pop %v2909
        %v2976 = vrcp.pop %v2911
        %v2977 = vrcp.pop %v2913
        %v2978 = vmul.f32 %v2659, %v2914
        %v2979 = vmul.f32 %v2661, %v2915
        %v2980 = vmul.f32 %v2663, %v2916
        %v2981 = vmul.f32 %v2665, %v2917
        %v2982 = vmul.f32 %v2667, %v2918
        %v2983 = vmul.f32 %v2669, %v2919
        %v2984 = vmul.f32 %v2671, %v2920
        %v2985 = vmul.f32 %v2673, %v2921
        %v2986 = vmul.f32 %v2675, %v2922
        %v2987 = vmul.f32 %v2677, %v2923
        %v2988 = vmul.f32 %v2679, %v2924
        %v2989 = vmul.f32 %v2681, %v2925
        %v2990 = vmul.f32 %v2683, %v2926
        %v2991 = vmul.f32 %v2685, %v2927
        %v2992 = vmul.f32 %v2687, %v2928
        %v2993 = vmul.f32 %v2689, %v2929
        %v2994 = vmul.f32 %v2691, %v2930
        %v2995 = vmul.f32 %v2693, %v2931
        %v2996 = vmul.f32 %v2695, %v2932
        %v2997 = vmul.f32 %v2697, %v2933
        %v2998 = vmul.f32 %v2699, %v2934
        %v2999 = vmul.f32 %v2701, %v2935
        %v3000 = vmul.f32 %v2703, %v2936
        %v3001 = vmul.f32 %v2705, %v2937
        %v3002 = vmul.f32 %v2707, %v2938
        %v3003 = vmul.f32 %v2709, %v2939
        %v3004 = vmul.f32 %v2711, %v2940
        %v3005 = vmul.f32 %v2713, %v2941
        %v3006 = vmul.f32 %v2715, %v2942
        %v3007 = vmul.f32 %v2717, %v2943
        %v3008 = vmul.f32 %v2719, %v2944
        %v3009 = vmul.f32 %v2721, %v2945
        %v3010 = vmul.f32 %v2723, %v2946
        %v3011 = vmul.f32 %v2725, %v2947
        %v3012 = vmul.f32 %v2727, %v2948
        %v3013 = vmul.f32 %v2729, %v2949
        %v3014 = vmul.f32 %v2731, %v2950
        %v3015 = vmul.f32 %v2733, %v2951
        %v3016 = vmul.f32 %v2735, %v2952
        %v3017 = vmul.f32 %v2737, %v2953
        %v3018 = vmul.f32 %v2739, %v2954
        %v3019 = vmul.f32 %v2741, %v2955
        %v3020 = vmul.f32 %v2743, %v2956
        %v3021 = vmul.f32 %v2745, %v2957
        %v3022 = vmul.f32 %v2747, %v2958
        %v3023 = vmul.f32 %v2749, %v2959
        %v3024 = vmul.f32 %v2751, %v2960
        %v3025 = vmul.f32 %v2753, %v2961
        %v3026 = vmul.f32 %v2755, %v2962
        %v3027 = vmul.f32 %v2757, %v2963
        %v3028 = vmul.f32 %v2759, %v2964
        %v3029 = vmul.f32 %v2761, %v2965
        %v3030 = vmul.f32 %v2763, %v2966
        %v3031 = vmul.f32 %v2765, %v2967
        %v3032 = vmul.f32 %v2767, %v2968
        %v3033 = vmul.f32 %v2769, %v2969
        %v3034 = vmul.f32 %v2771, %v2970
        %v3035 = vmul.f32 %v2773, %v2971
        %v3036 = vmul.f32 %v2775, %v2972
        %v3037 = vmul.f32 %v2777, %v2973
        %v3038 = vmul.f32 %v2779, %v2974
        %v3039 = vmul.f32 %v2781, %v2975
        %v3040 = vmul.f32 %v2783, %v2976
        %v3041 = vmul.f32 %v2785, %v2977
        %v3042 = vpack.c.bf16 %v2979, %v2978
        %v3043 = vpack.c.bf16 %v2981, %v2980
        %v3044 = vpack.c.bf16 %v2983, %v2982
        %v3045 = vpack.c.bf16 %v2985, %v2984
        %v3046 = vpack.c.bf16 %v2987, %v2986
        %v3047 = vpack.c.bf16 %v2989, %v2988
        %v3048 = vpack.c.bf16 %v2991, %v2990
        %v3049 = vpack.c.bf16 %v2993, %v2992
        %v3050 = vpack.c.bf16 %v2995, %v2994
        %v3051 = vpack.c.bf16 %v2997, %v2996
        %v3052 = vpack.c.bf16 %v2999, %v2998
        %v3053 = vpack.c.bf16 %v3001, %v3000
        %v3054 = vpack.c.bf16 %v3003, %v3002
        %v3055 = vpack.c.bf16 %v3005, %v3004
        %v3056 = vpack.c.bf16 %v3007, %v3006
        %v3057 = vpack.c.bf16 %v3009, %v3008
        %v3058 = vpack.c.bf16 %v3011, %v3010
        %v3059 = vpack.c.bf16 %v3013, %v3012
        %v3060 = vpack.c.bf16 %v3015, %v3014
        %v3061 = vpack.c.bf16 %v3017, %v3016
        %v3062 = vpack.c.bf16 %v3019, %v3018
        %v3063 = vpack.c.bf16 %v3021, %v3020
        %v3064 = vpack.c.bf16 %v3023, %v3022
        %v3065 = vpack.c.bf16 %v3025, %v3024
        %v3066 = vpack.c.bf16 %v3027, %v3026
        %v3067 = vpack.c.bf16 %v3029, %v3028
        %v3068 = vpack.c.bf16 %v3031, %v3030
        %v3069 = vpack.c.bf16 %v3033, %v3032
        %v3070 = vpack.c.bf16 %v3035, %v3034
        %v3071 = vpack.c.bf16 %v3037, %v3036
        %v3072 = vpack.c.bf16 %v3039, %v3038
        %v3073 = vpack.c.bf16 %v3041, %v3040
        %v3090 = vunpack.c.l.b16 %v1309
        %v3091 = vunpack.c.l.b16 %v1310
        %v3092 = vunpack.c.l.b16 %v1311
        %v3093 = vunpack.c.l.b16 %v1312
        %v3094 = vunpack.c.l.b16 %v1313
        %v3095 = vunpack.c.l.b16 %v1314
        %v3096 = vunpack.c.l.b16 %v1315
        %v3097 = vunpack.c.l.b16 %v1316
        %v3098 = vunpack.c.l.b16 %v1317
        %v3099 = vunpack.c.l.b16 %v1318
        %v3100 = vunpack.c.l.b16 %v1319
        %v3101 = vunpack.c.l.b16 %v1320
        %v3102 = vunpack.c.l.b16 %v1321
        %v3103 = vunpack.c.l.b16 %v1322
        %v3104 = vunpack.c.l.b16 %v1323
        %v3105 = vunpack.c.l.b16 %v1324
        %v3106 = vpack.c.b16 %v3091, %v3090
        %v3107 = vpack.c.b16 %v3093, %v3092
        %v3108 = vpack.c.b16 %v3095, %v3094
        %v3109 = vpack.c.b16 %v3097, %v3096
        %v3110 = vpack.c.b16 %v3099, %v3098
        %v3111 = vpack.c.b16 %v3101, %v3100
        %v3112 = vpack.c.b16 %v3103, %v3102
        %v3113 = vpack.c.b16 %v3105, %v3104
        %3122 = vmatprep.subr.bf16.mxu0 0
        %3123 = vmatpush1.bf16.msra.mxu0 %v3113
        %3124 = vmatprep.subr.bf16.mxu0 0
        %3125 = vmatpush1.bf16.msra.mxu0 %v3112
        %3126 = vmatprep.subr.bf16.mxu0 0
        %3127 = vmatpush1.bf16.msra.mxu0 %v3111
        %3128 = vmatprep.subr.bf16.mxu0 0
        %3129 = vmatpush1.bf16.msra.mxu0 %v3110
        %3130 = vmatprep.subr.bf16.mxu0 0
        %3131 = vmatpush1.bf16.msra.mxu0 %v3109
        %3132 = vmatprep.subr.bf16.mxu0 0
        %3133 = vmatpush1.bf16.msra.mxu0 %v3108
        %3134 = vmatprep.subr.bf16.mxu0 0
        %3135 = vmatpush1.bf16.msra.mxu0 %v3107
        %3136 = vmatprep.subr.bf16.mxu0 0
        %3137 = vmatpush1.bf16.msra.mxu0 %v3106
        %3138 = vmatprep.subr.bf16.mxu0 0
        %3139 = vmatpush2.bf16.msra.mxu0 0
        %3140 = vmatprep.subr.bf16.mxu0 0
        %3141 = vmatpush2.bf16.msra.mxu0 0
        %3142 = vmatprep.subr.bf16.mxu0 0
        %3143 = vmatpush2.bf16.msra.mxu0 0
        %3144 = vmatprep.subr.bf16.mxu0 0
        %3145 = vmatpush2.bf16.msra.mxu0 0
        %3146 = vmatprep.subr.bf16.mxu0 0
        %3147 = vmatpush2.bf16.msra.mxu0 0
        %3148 = vmatprep.subr.bf16.mxu0 0
        %3149 = vmatpush2.bf16.msra.mxu0 0
        %3150 = vmatprep.subr.bf16.mxu0 0
        %3151 = vmatpush2.bf16.msra.mxu0 0
        %3152 = vmatprep.subr.bf16.mxu0 0
        %3153 = vmatpush2.bf16.msra.mxu0 0
        %3154 = vmatprep.mubr.bf16.mxu0 0
        %3155 = vmatmul.mubr.bf16.gmra.mxu0 %v3042
        %v3156 = vpop.f32.mrf.mxu0
        %v3157 = vadd.f32 0.0, %v3156
        %v3158 = vpop.f32.mrf.mxu0
        %v3159 = vpop.f32.mrf.mxu0
        %v3160 = vadd.f32 0.0, %v3159
        %v3161 = vpop.f32.mrf.mxu0
        %3162 = vmatprep.mubr.bf16.mxu0 0
        %3163 = vmatmul.mubr.bf16.gmra.mxu0 %v3043
        %v3164 = vpop.f32.mrf.mxu0
        %v3165 = vadd.f32 0.0, %v3164
        %v3166 = vpop.f32.mrf.mxu0
        %v3167 = vpop.f32.mrf.mxu0
        %v3168 = vadd.f32 0.0, %v3167
        %v3169 = vpop.f32.mrf.mxu0
        %3170 = vmatprep.mubr.bf16.mxu0 0
        %3171 = vmatmul.mubr.bf16.gmra.mxu0 %v3044
        %v3172 = vpop.f32.mrf.mxu0
        %v3173 = vadd.f32 0.0, %v3172
        %v3174 = vpop.f32.mrf.mxu0
        %v3175 = vpop.f32.mrf.mxu0
        %v3176 = vadd.f32 0.0, %v3175
        %v3177 = vpop.f32.mrf.mxu0
        %3178 = vmatprep.mubr.bf16.mxu0 0
        %3179 = vmatmul.mubr.bf16.gmra.mxu0 %v3045
        %v3180 = vpop.f32.mrf.mxu0
        %v3181 = vadd.f32 0.0, %v3180
        %v3182 = vpop.f32.mrf.mxu0
        %v3183 = vpop.f32.mrf.mxu0
        %v3184 = vadd.f32 0.0, %v3183
        %v3185 = vpop.f32.mrf.mxu0
        %3186 = vmatprep.mubr.bf16.mxu0 0
        %3187 = vmatmul.mubr.bf16.gmra.mxu0 %v3046
        %v3188 = vpop.f32.mrf.mxu0
        %v3189 = vadd.f32 0.0, %v3188
        %v3190 = vpop.f32.mrf.mxu0
        %v3191 = vpop.f32.mrf.mxu0
        %v3192 = vadd.f32 0.0, %v3191
        %v3193 = vpop.f32.mrf.mxu0
        %3194 = vmatprep.mubr.bf16.mxu0 0
        %3195 = vmatmul.mubr.bf16.gmra.mxu0 %v3047
        %v3196 = vpop.f32.mrf.mxu0
        %v3197 = vadd.f32 0.0, %v3196
        %v3198 = vpop.f32.mrf.mxu0
        %v3199 = vpop.f32.mrf.mxu0
        %v3200 = vadd.f32 0.0, %v3199
        %v3201 = vpop.f32.mrf.mxu0
        %3202 = vmatprep.mubr.bf16.mxu0 0
        %3203 = vmatmul.mubr.bf16.gmra.mxu0 %v3048
        %v3204 = vpop.f32.mrf.mxu0
        %v3205 = vadd.f32 0.0, %v3204
        %v3206 = vpop.f32.mrf.mxu0
        %v3207 = vpop.f32.mrf.mxu0
        %v3208 = vadd.f32 0.0, %v3207
        %v3209 = vpop.f32.mrf.mxu0
        %3210 = vmatprep.mubr.bf16.mxu0 0
        %3211 = vmatmul.mubr.bf16.gmra.mxu0 %v3049
        %v3212 = vpop.f32.mrf.mxu0
        %v3213 = vadd.f32 0.0, %v3212
        %v3214 = vpop.f32.mrf.mxu0
        %v3215 = vpop.f32.mrf.mxu0
        %v3216 = vadd.f32 0.0, %v3215
        %v3217 = vpop.f32.mrf.mxu0
        %3218 = vdwg.mxu0
        %v3235 = vunpack.c.l.b16 %v1325
        %v3236 = vunpack.c.l.b16 %v1326
        %v3237 = vunpack.c.l.b16 %v1327
        %v3238 = vunpack.c.l.b16 %v1328
        %v3239 = vunpack.c.l.b16 %v1329
        %v3240 = vunpack.c.l.b16 %v1330
        %v3241 = vunpack.c.l.b16 %v1331
        %v3242 = vunpack.c.l.b16 %v1332
        %v3243 = vunpack.c.l.b16 %v1333
        %v3244 = vunpack.c.l.b16 %v1334
        %v3245 = vunpack.c.l.b16 %v1335
        %v3246 = vunpack.c.l.b16 %v1336
        %v3247 = vunpack.c.l.b16 %v1337
        %v3248 = vunpack.c.l.b16 %v1338
        %v3249 = vunpack.c.l.b16 %v1339
        %v3250 = vunpack.c.l.b16 %v1340
        %v3251 = vpack.c.b16 %v3236, %v3235
        %v3252 = vpack.c.b16 %v3238, %v3237
        %v3253 = vpack.c.b16 %v3240, %v3239
        %v3254 = vpack.c.b16 %v3242, %v3241
        %v3255 = vpack.c.b16 %v3244, %v3243
        %v3256 = vpack.c.b16 %v3246, %v3245
        %v3257 = vpack.c.b16 %v3248, %v3247
        %v3258 = vpack.c.b16 %v3250, %v3249
        %3267 = vmatprep.subr.bf16.mxu0 0
        %3268 = vmatpush1.bf16.msra.mxu0 %v3258
        %3269 = vmatprep.subr.bf16.mxu0 0
        %3270 = vmatpush1.bf16.msra.mxu0 %v3257
        %3271 = vmatprep.subr.bf16.mxu0 0
        %3272 = vmatpush1.bf16.msra.mxu0 %v3256
        %3273 = vmatprep.subr.bf16.mxu0 0
        %3274 = vmatpush1.bf16.msra.mxu0 %v3255
        %3275 = vmatprep.subr.bf16.mxu0 0
        %3276 = vmatpush1.bf16.msra.mxu0 %v3254
        %3277 = vmatprep.subr.bf16.mxu0 0
        %3278 = vmatpush1.bf16.msra.mxu0 %v3253
        %3279 = vmatprep.subr.bf16.mxu0 0
        %3280 = vmatpush1.bf16.msra.mxu0 %v3252
        %3281 = vmatprep.subr.bf16.mxu0 0
        %3282 = vmatpush1.bf16.msra.mxu0 %v3251
        %3283 = vmatprep.subr.bf16.mxu0 0
        %3284 = vmatpush2.bf16.msra.mxu0 0
        %3285 = vmatprep.subr.bf16.mxu0 0
        %3286 = vmatpush2.bf16.msra.mxu0 0
        %3287 = vmatprep.subr.bf16.mxu0 0
        %3288 = vmatpush2.bf16.msra.mxu0 0
        %3289 = vmatprep.subr.bf16.mxu0 0
        %3290 = vmatpush2.bf16.msra.mxu0 0
        %3291 = vmatprep.subr.bf16.mxu0 0
        %3292 = vmatpush2.bf16.msra.mxu0 0
        %3293 = vmatprep.subr.bf16.mxu0 0
        %3294 = vmatpush2.bf16.msra.mxu0 0
        %3295 = vmatprep.subr.bf16.mxu0 0
        %3296 = vmatpush2.bf16.msra.mxu0 0
        %3297 = vmatprep.subr.bf16.mxu0 0
        %3298 = vmatpush2.bf16.msra.mxu0 0
        %3299 = vmatprep.mubr.bf16.mxu0 0
        %3300 = vmatmul.mubr.bf16.gmra.mxu0 %v3050
        %v3301 = vpop.f32.mrf.mxu0
        %v3302 = vadd.f32 0.0, %v3301
        %v3303 = vpop.f32.mrf.mxu0
        %v3304 = vpop.f32.mrf.mxu0
        %v3305 = vadd.f32 0.0, %v3304
        %v3306 = vpop.f32.mrf.mxu0
        %3307 = vmatprep.mubr.bf16.mxu0 0
        %3308 = vmatmul.mubr.bf16.gmra.mxu0 %v3051
        %v3309 = vpop.f32.mrf.mxu0
        %v3310 = vadd.f32 0.0, %v3309
        %v3311 = vpop.f32.mrf.mxu0
        %v3312 = vpop.f32.mrf.mxu0
        %v3313 = vadd.f32 0.0, %v3312
        %v3314 = vpop.f32.mrf.mxu0
        %3315 = vmatprep.mubr.bf16.mxu0 0
        %3316 = vmatmul.mubr.bf16.gmra.mxu0 %v3052
        %v3317 = vpop.f32.mrf.mxu0
        %v3318 = vadd.f32 0.0, %v3317
        %v3319 = vpop.f32.mrf.mxu0
        %v3320 = vpop.f32.mrf.mxu0
        %v3321 = vadd.f32 0.0, %v3320
        %v3322 = vpop.f32.mrf.mxu0
        %3323 = vmatprep.mubr.bf16.mxu0 0
        %3324 = vmatmul.mubr.bf16.gmra.mxu0 %v3053
        %v3325 = vpop.f32.mrf.mxu0
        %v3326 = vadd.f32 0.0, %v3325
        %v3327 = vpop.f32.mrf.mxu0
        %v3328 = vpop.f32.mrf.mxu0
        %v3329 = vadd.f32 0.0, %v3328
        %v3330 = vpop.f32.mrf.mxu0
        %3331 = vmatprep.mubr.bf16.mxu0 0
        %3332 = vmatmul.mubr.bf16.gmra.mxu0 %v3054
        %v3333 = vpop.f32.mrf.mxu0
        %v3334 = vadd.f32 0.0, %v3333
        %v3335 = vpop.f32.mrf.mxu0
        %v3336 = vpop.f32.mrf.mxu0
        %v3337 = vadd.f32 0.0, %v3336
        %v3338 = vpop.f32.mrf.mxu0
        %3339 = vmatprep.mubr.bf16.mxu0 0
        %3340 = vmatmul.mubr.bf16.gmra.mxu0 %v3055
        %v3341 = vpop.f32.mrf.mxu0
        %v3342 = vadd.f32 0.0, %v3341
        %v3343 = vpop.f32.mrf.mxu0
        %v3344 = vpop.f32.mrf.mxu0
        %v3345 = vadd.f32 0.0, %v3344
        %v3346 = vpop.f32.mrf.mxu0
        %3347 = vmatprep.mubr.bf16.mxu0 0
        %3348 = vmatmul.mubr.bf16.gmra.mxu0 %v3056
        %v3349 = vpop.f32.mrf.mxu0
        %v3350 = vadd.f32 0.0, %v3349
        %v3351 = vpop.f32.mrf.mxu0
        %v3352 = vpop.f32.mrf.mxu0
        %v3353 = vadd.f32 0.0, %v3352
        %v3354 = vpop.f32.mrf.mxu0
        %3355 = vmatprep.mubr.bf16.mxu0 0
        %3356 = vmatmul.mubr.bf16.gmra.mxu0 %v3057
        %v3357 = vpop.f32.mrf.mxu0
        %v3358 = vadd.f32 0.0, %v3357
        %v3359 = vpop.f32.mrf.mxu0
        %v3360 = vpop.f32.mrf.mxu0
        %v3361 = vadd.f32 0.0, %v3360
        %v3362 = vpop.f32.mrf.mxu0
        %3363 = vdwg.mxu0
        %v3380 = vunpack.c.l.b16 %v1341
        %v3381 = vunpack.c.l.b16 %v1342
        %v3382 = vunpack.c.l.b16 %v1343
        %v3383 = vunpack.c.l.b16 %v1344
        %v3384 = vunpack.c.l.b16 %v1345
        %v3385 = vunpack.c.l.b16 %v1346
        %v3386 = vunpack.c.l.b16 %v1347
        %v3387 = vunpack.c.l.b16 %v1348
        %v3388 = vunpack.c.l.b16 %v1349
        %v3389 = vunpack.c.l.b16 %v1350
        %v3390 = vunpack.c.l.b16 %v1351
        %v3391 = vunpack.c.l.b16 %v1352
        %v3392 = vunpack.c.l.b16 %v1353
        %v3393 = vunpack.c.l.b16 %v1354
        %v3394 = vunpack.c.l.b16 %v1355
        %v3395 = vunpack.c.l.b16 %v1356
        %v3396 = vpack.c.b16 %v3381, %v3380
        %v3397 = vpack.c.b16 %v3383, %v3382
        %v3398 = vpack.c.b16 %v3385, %v3384
        %v3399 = vpack.c.b16 %v3387, %v3386
        %v3400 = vpack.c.b16 %v3389, %v3388
        %v3401 = vpack.c.b16 %v3391, %v3390
        %v3402 = vpack.c.b16 %v3393, %v3392
        %v3403 = vpack.c.b16 %v3395, %v3394
        %3412 = vmatprep.subr.bf16.mxu0 0
        %3413 = vmatpush1.bf16.msra.mxu0 %v3403
        %3414 = vmatprep.subr.bf16.mxu0 0
        %3415 = vmatpush1.bf16.msra.mxu0 %v3402
        %3416 = vmatprep.subr.bf16.mxu0 0
        %3417 = vmatpush1.bf16.msra.mxu0 %v3401
        %3418 = vmatprep.subr.bf16.mxu0 0
        %3419 = vmatpush1.bf16.msra.mxu0 %v3400
        %3420 = vmatprep.subr.bf16.mxu0 0
        %3421 = vmatpush1.bf16.msra.mxu0 %v3399
        %3422 = vmatprep.subr.bf16.mxu0 0
        %3423 = vmatpush1.bf16.msra.mxu0 %v3398
        %3424 = vmatprep.subr.bf16.mxu0 0
        %3425 = vmatpush1.bf16.msra.mxu0 %v3397
        %3426 = vmatprep.subr.bf16.mxu0 0
        %3427 = vmatpush1.bf16.msra.mxu0 %v3396
        %3428 = vmatprep.subr.bf16.mxu0 0
        %3429 = vmatpush2.bf16.msra.mxu0 0
        %3430 = vmatprep.subr.bf16.mxu0 0
        %3431 = vmatpush2.bf16.msra.mxu0 0
        %3432 = vmatprep.subr.bf16.mxu0 0
        %3433 = vmatpush2.bf16.msra.mxu0 0
        %3434 = vmatprep.subr.bf16.mxu0 0
        %3435 = vmatpush2.bf16.msra.mxu0 0
        %3436 = vmatprep.subr.bf16.mxu0 0
        %3437 = vmatpush2.bf16.msra.mxu0 0
        %3438 = vmatprep.subr.bf16.mxu0 0
        %3439 = vmatpush2.bf16.msra.mxu0 0
        %3440 = vmatprep.subr.bf16.mxu0 0
        %3441 = vmatpush2.bf16.msra.mxu0 0
        %3442 = vmatprep.subr.bf16.mxu0 0
        %3443 = vmatpush2.bf16.msra.mxu0 0
        %3444 = vmatprep.mubr.bf16.mxu0 0
        %3445 = vmatmul.mubr.bf16.gmra.mxu0 %v3058
        %v3446 = vpop.f32.mrf.mxu0
        %v3447 = vadd.f32 0.0, %v3446
        %v3448 = vpop.f32.mrf.mxu0
        %v3449 = vpop.f32.mrf.mxu0
        %v3450 = vadd.f32 0.0, %v3449
        %v3451 = vpop.f32.mrf.mxu0
        %3452 = vmatprep.mubr.bf16.mxu0 0
        %3453 = vmatmul.mubr.bf16.gmra.mxu0 %v3059
        %v3454 = vpop.f32.mrf.mxu0
        %v3455 = vadd.f32 0.0, %v3454
        %v3456 = vpop.f32.mrf.mxu0
        %v3457 = vpop.f32.mrf.mxu0
        %v3458 = vadd.f32 0.0, %v3457
        %v3459 = vpop.f32.mrf.mxu0
        %3460 = vmatprep.mubr.bf16.mxu0 0
        %3461 = vmatmul.mubr.bf16.gmra.mxu0 %v3060
        %v3462 = vpop.f32.mrf.mxu0
        %v3463 = vadd.f32 0.0, %v3462
        %v3464 = vpop.f32.mrf.mxu0
        %v3465 = vpop.f32.mrf.mxu0
        %v3466 = vadd.f32 0.0, %v3465
        %v3467 = vpop.f32.mrf.mxu0
        %3468 = vmatprep.mubr.bf16.mxu0 0
        %3469 = vmatmul.mubr.bf16.gmra.mxu0 %v3061
        %v3470 = vpop.f32.mrf.mxu0
        %v3471 = vadd.f32 0.0, %v3470
        %v3472 = vpop.f32.mrf.mxu0
        %v3473 = vpop.f32.mrf.mxu0
        %v3474 = vadd.f32 0.0, %v3473
        %v3475 = vpop.f32.mrf.mxu0
        %3476 = vmatprep.mubr.bf16.mxu0 0
        %3477 = vmatmul.mubr.bf16.gmra.mxu0 %v3062
        %v3478 = vpop.f32.mrf.mxu0
        %v3479 = vadd.f32 0.0, %v3478
        %v3480 = vpop.f32.mrf.mxu0
        %v3481 = vpop.f32.mrf.mxu0
        %v3482 = vadd.f32 0.0, %v3481
        %v3483 = vpop.f32.mrf.mxu0
        %3484 = vmatprep.mubr.bf16.mxu0 0
        %3485 = vmatmul.mubr.bf16.gmra.mxu0 %v3063
        %v3486 = vpop.f32.mrf.mxu0
        %v3487 = vadd.f32 0.0, %v3486
        %v3488 = vpop.f32.mrf.mxu0
        %v3489 = vpop.f32.mrf.mxu0
        %v3490 = vadd.f32 0.0, %v3489
        %v3491 = vpop.f32.mrf.mxu0
        %3492 = vmatprep.mubr.bf16.mxu0 0
        %3493 = vmatmul.mubr.bf16.gmra.mxu0 %v3064
        %v3494 = vpop.f32.mrf.mxu0
        %v3495 = vadd.f32 0.0, %v3494
        %v3496 = vpop.f32.mrf.mxu0
        %v3497 = vpop.f32.mrf.mxu0
        %v3498 = vadd.f32 0.0, %v3497
        %v3499 = vpop.f32.mrf.mxu0
        %3500 = vmatprep.mubr.bf16.mxu0 0
        %3501 = vmatmul.mubr.bf16.gmra.mxu0 %v3065
        %v3502 = vpop.f32.mrf.mxu0
        %v3503 = vadd.f32 0.0, %v3502
        %v3504 = vpop.f32.mrf.mxu0
        %v3505 = vpop.f32.mrf.mxu0
        %v3506 = vadd.f32 0.0, %v3505
        %v3507 = vpop.f32.mrf.mxu0
        %3508 = vdwg.mxu0
        %v3525 = vunpack.c.l.b16 %v1357
        %v3526 = vunpack.c.l.b16 %v1358
        %v3527 = vunpack.c.l.b16 %v1359
        %v3528 = vunpack.c.l.b16 %v1360
        %v3529 = vunpack.c.l.b16 %v1361
        %v3530 = vunpack.c.l.b16 %v1362
        %v3531 = vunpack.c.l.b16 %v1363
        %v3532 = vunpack.c.l.b16 %v1364
        %v3533 = vunpack.c.l.b16 %v1365
        %v3534 = vunpack.c.l.b16 %v1366
        %v3535 = vunpack.c.l.b16 %v1367
        %v3536 = vunpack.c.l.b16 %v1368
        %v3537 = vunpack.c.l.b16 %v1369
        %v3538 = vunpack.c.l.b16 %v1370
        %v3539 = vunpack.c.l.b16 %v1371
        %v3540 = vunpack.c.l.b16 %v1372
        %v3541 = vpack.c.b16 %v3526, %v3525
        %v3542 = vpack.c.b16 %v3528, %v3527
        %v3543 = vpack.c.b16 %v3530, %v3529
        %v3544 = vpack.c.b16 %v3532, %v3531
        %v3545 = vpack.c.b16 %v3534, %v3533
        %v3546 = vpack.c.b16 %v3536, %v3535
        %v3547 = vpack.c.b16 %v3538, %v3537
        %v3548 = vpack.c.b16 %v3540, %v3539
        %3557 = vmatprep.subr.bf16.mxu0 0
        %3558 = vmatpush1.bf16.msra.mxu0 %v3548
        %3559 = vmatprep.subr.bf16.mxu0 0
        %3560 = vmatpush1.bf16.msra.mxu0 %v3547
        %3561 = vmatprep.subr.bf16.mxu0 0
        %3562 = vmatpush1.bf16.msra.mxu0 %v3546
        %3563 = vmatprep.subr.bf16.mxu0 0
        %3564 = vmatpush1.bf16.msra.mxu0 %v3545
        %3565 = vmatprep.subr.bf16.mxu0 0
        %3566 = vmatpush1.bf16.msra.mxu0 %v3544
        %3567 = vmatprep.subr.bf16.mxu0 0
        %3568 = vmatpush1.bf16.msra.mxu0 %v3543
        %3569 = vmatprep.subr.bf16.mxu0 0
        %3570 = vmatpush1.bf16.msra.mxu0 %v3542
        %3571 = vmatprep.subr.bf16.mxu0 0
        %3572 = vmatpush1.bf16.msra.mxu0 %v3541
        %3573 = vmatprep.subr.bf16.mxu0 0
        %3574 = vmatpush2.bf16.msra.mxu0 0
        %3575 = vmatprep.subr.bf16.mxu0 0
        %3576 = vmatpush2.bf16.msra.mxu0 0
        %3577 = vmatprep.subr.bf16.mxu0 0
        %3578 = vmatpush2.bf16.msra.mxu0 0
        %3579 = vmatprep.subr.bf16.mxu0 0
        %3580 = vmatpush2.bf16.msra.mxu0 0
        %3581 = vmatprep.subr.bf16.mxu0 0
        %3582 = vmatpush2.bf16.msra.mxu0 0
        %3583 = vmatprep.subr.bf16.mxu0 0
        %3584 = vmatpush2.bf16.msra.mxu0 0
        %3585 = vmatprep.subr.bf16.mxu0 0
        %3586 = vmatpush2.bf16.msra.mxu0 0
        %3587 = vmatprep.subr.bf16.mxu0 0
        %3588 = vmatpush2.bf16.msra.mxu0 0
        %3589 = vmatprep.mubr.bf16.mxu0 0
        %3590 = vmatmul.mubr.bf16.gmra.mxu0 %v3066
        %v3591 = vpop.f32.mrf.mxu0
        %v3592 = vadd.f32 0.0, %v3591
        %v3593 = vpop.f32.mrf.mxu0
        %v3594 = vpop.f32.mrf.mxu0
        %v3595 = vadd.f32 0.0, %v3594
        %v3596 = vpop.f32.mrf.mxu0
        %3597 = vmatprep.mubr.bf16.mxu0 0
        %3598 = vmatmul.mubr.bf16.gmra.mxu0 %v3067
        %v3599 = vpop.f32.mrf.mxu0
        %v3600 = vadd.f32 0.0, %v3599
        %v3601 = vpop.f32.mrf.mxu0
        %v3602 = vpop.f32.mrf.mxu0
        %v3603 = vadd.f32 0.0, %v3602
        %v3604 = vpop.f32.mrf.mxu0
        %3605 = vmatprep.mubr.bf16.mxu0 0
        %3606 = vmatmul.mubr.bf16.gmra.mxu0 %v3068
        %v3607 = vpop.f32.mrf.mxu0
        %v3608 = vadd.f32 0.0, %v3607
        %v3609 = vpop.f32.mrf.mxu0
        %v3610 = vpop.f32.mrf.mxu0
        %v3611 = vadd.f32 0.0, %v3610
        %v3612 = vpop.f32.mrf.mxu0
        %3613 = vmatprep.mubr.bf16.mxu0 0
        %3614 = vmatmul.mubr.bf16.gmra.mxu0 %v3069
        %v3615 = vpop.f32.mrf.mxu0
        %v3616 = vadd.f32 0.0, %v3615
        %v3617 = vpop.f32.mrf.mxu0
        %v3618 = vpop.f32.mrf.mxu0
        %v3619 = vadd.f32 0.0, %v3618
        %v3620 = vpop.f32.mrf.mxu0
        %3621 = vmatprep.mubr.bf16.mxu0 0
        %3622 = vmatmul.mubr.bf16.gmra.mxu0 %v3070
        %v3623 = vpop.f32.mrf.mxu0
        %v3624 = vadd.f32 0.0, %v3623
        %v3625 = vpop.f32.mrf.mxu0
        %v3626 = vpop.f32.mrf.mxu0
        %v3627 = vadd.f32 0.0, %v3626
        %v3628 = vpop.f32.mrf.mxu0
        %3629 = vmatprep.mubr.bf16.mxu0 0
        %3630 = vmatmul.mubr.bf16.gmra.mxu0 %v3071
        %v3631 = vpop.f32.mrf.mxu0
        %v3632 = vadd.f32 0.0, %v3631
        %v3633 = vpop.f32.mrf.mxu0
        %v3634 = vpop.f32.mrf.mxu0
        %v3635 = vadd.f32 0.0, %v3634
        %v3636 = vpop.f32.mrf.mxu0
        %3637 = vmatprep.mubr.bf16.mxu0 0
        %3638 = vmatmul.mubr.bf16.gmra.mxu0 %v3072
        %v3639 = vpop.f32.mrf.mxu0
        %v3640 = vadd.f32 0.0, %v3639
        %v3641 = vpop.f32.mrf.mxu0
        %v3642 = vpop.f32.mrf.mxu0
        %v3643 = vadd.f32 0.0, %v3642
        %v3644 = vpop.f32.mrf.mxu0
        %3645 = vmatprep.mubr.bf16.mxu0 0
        %3646 = vmatmul.mubr.bf16.gmra.mxu0 %v3073
        %v3647 = vpop.f32.mrf.mxu0
        %v3648 = vadd.f32 0.0, %v3647
        %v3649 = vpop.f32.mrf.mxu0
        %v3650 = vpop.f32.mrf.mxu0
        %v3651 = vadd.f32 0.0, %v3650
        %v3652 = vpop.f32.mrf.mxu0
        %3653 = vdwg.mxu0
        %v3654 = vpack.c.bf16 %v3160, %v3157
        %v3655 = vpack.c.bf16 %v3168, %v3165
        %v3656 = vpack.c.bf16 %v3176, %v3173
        %v3657 = vpack.c.bf16 %v3184, %v3181
        %v3658 = vpack.c.bf16 %v3192, %v3189
        %v3659 = vpack.c.bf16 %v3200, %v3197
        %v3660 = vpack.c.bf16 %v3208, %v3205
        %v3661 = vpack.c.bf16 %v3216, %v3213
        %v3662 = vpack.c.bf16 %v3305, %v3302
        %v3663 = vpack.c.bf16 %v3313, %v3310
        %v3664 = vpack.c.bf16 %v3321, %v3318
        %v3665 = vpack.c.bf16 %v3329, %v3326
        %v3666 = vpack.c.bf16 %v3337, %v3334
        %v3667 = vpack.c.bf16 %v3345, %v3342
        %v3668 = vpack.c.bf16 %v3353, %v3350
        %v3669 = vpack.c.bf16 %v3361, %v3358
        %v3670 = vpack.c.bf16 %v3450, %v3447
        %v3671 = vpack.c.bf16 %v3458, %v3455
        %v3672 = vpack.c.bf16 %v3466, %v3463
        %v3673 = vpack.c.bf16 %v3474, %v3471
        %v3674 = vpack.c.bf16 %v3482, %v3479
        %v3675 = vpack.c.bf16 %v3490, %v3487
        %v3676 = vpack.c.bf16 %v3498, %v3495
        %v3677 = vpack.c.bf16 %v3506, %v3503
        %v3678 = vpack.c.bf16 %v3595, %v3592
        %v3679 = vpack.c.bf16 %v3603, %v3600
        %v3680 = vpack.c.bf16 %v3611, %v3608
        %v3681 = vpack.c.bf16 %v3619, %v3616
        %v3682 = vpack.c.bf16 %v3627, %v3624
        %v3683 = vpack.c.bf16 %v3635, %v3632
        %v3684 = vpack.c.bf16 %v3643, %v3640
        %v3685 = vpack.c.bf16 %v3651, %v3648
        %3694 = vrot.lane.b32.xlu0 %v3662, 32
        %v3695 = vpop.permute.xlu0 %3694
        %3696 = vrot.lane.b32.xlu0 %v3663, 32
        %v3697 = vpop.permute.xlu0 %3696
        %3698 = vrot.lane.b32.xlu0 %v3664, 32
        %v3699 = vpop.permute.xlu0 %3698
        %3700 = vrot.lane.b32.xlu0 %v3665, 32
        %v3701 = vpop.permute.xlu0 %3700
        %3702 = vrot.lane.b32.xlu0 %v3666, 32
        %v3703 = vpop.permute.xlu0 %3702
        %3704 = vrot.lane.b32.xlu0 %v3667, 32
        %v3705 = vpop.permute.xlu0 %3704
        %3706 = vrot.lane.b32.xlu0 %v3668, 32
        %v3707 = vpop.permute.xlu0 %3706
        %3708 = vrot.lane.b32.xlu0 %v3669, 32
        %v3709 = vpop.permute.xlu0 %3708
        %3718 = vrot.lane.b32.xlu0 %v3670, 64
        %v3719 = vpop.permute.xlu0 %3718
        %3720 = vrot.lane.b32.xlu0 %v3671, 64
        %v3721 = vpop.permute.xlu0 %3720
        %3722 = vrot.lane.b32.xlu0 %v3672, 64
        %v3723 = vpop.permute.xlu0 %3722
        %3724 = vrot.lane.b32.xlu0 %v3673, 64
        %v3725 = vpop.permute.xlu0 %3724
        %3726 = vrot.lane.b32.xlu0 %v3674, 64
        %v3727 = vpop.permute.xlu0 %3726
        %3728 = vrot.lane.b32.xlu0 %v3675, 64
        %v3729 = vpop.permute.xlu0 %3728
        %3730 = vrot.lane.b32.xlu0 %v3676, 64
        %v3731 = vpop.permute.xlu0 %3730
        %3732 = vrot.lane.b32.xlu0 %v3677, 64
        %v3733 = vpop.permute.xlu0 %3732
        %3742 = vrot.lane.b32.xlu0 %v3678, 96
        %v3743 = vpop.permute.xlu0 %3742
        %3744 = vrot.lane.b32.xlu0 %v3679, 96
        %v3745 = vpop.permute.xlu0 %3744
        %3746 = vrot.lane.b32.xlu0 %v3680, 96
        %v3747 = vpop.permute.xlu0 %3746
        %3748 = vrot.lane.b32.xlu0 %v3681, 96
        %v3749 = vpop.permute.xlu0 %3748
        %3750 = vrot.lane.b32.xlu0 %v3682, 96
        %v3751 = vpop.permute.xlu0 %3750
        %3752 = vrot.lane.b32.xlu0 %v3683, 96
        %v3753 = vpop.permute.xlu0 %3752
        %3754 = vrot.lane.b32.xlu0 %v3684, 96
        %v3755 = vpop.permute.xlu0 %3754
        %3756 = vrot.lane.b32.xlu0 %v3685, 96
        %v3757 = vpop.permute.xlu0 %3756
        %v3760 = vsel %vm1453, %v3654, %v3695
        %v3763 = vsel %vm1453, %v3655, %v3697
        %v3766 = vsel %vm1453, %v3656, %v3699
        %v3769 = vsel %vm1453, %v3657, %v3701
        %v3772 = vsel %vm1453, %v3658, %v3703
        %v3775 = vsel %vm1453, %v3659, %v3705
        %v3778 = vsel %vm1453, %v3660, %v3707
        %v3781 = vsel %vm1453, %v3661, %v3709
        %vm3782 = vcmask 523264
        %v3784 = vsel %vm3782, %v3760, %v3719
        %v3786 = vsel %vm3782, %v3763, %v3721
        %v3788 = vsel %vm3782, %v3766, %v3723
        %v3790 = vsel %vm3782, %v3769, %v3725
        %v3792 = vsel %vm3782, %v3772, %v3727
        %v3794 = vsel %vm3782, %v3775, %v3729
        %v3796 = vsel %vm3782, %v3778, %v3731
        %v3798 = vsel %vm3782, %v3781, %v3733
        %vm3799 = vcmask 785408
        %v3801 = vsel %vm3799, %v3784, %v3743
        %v3804 = vsel %vm3799, %v3786, %v3745
        %v3807 = vsel %vm3799, %v3788, %v3747
        %v3810 = vsel %vm3799, %v3790, %v3749
        %v3813 = vsel %vm3799, %v3792, %v3751
        %v3816 = vsel %vm3799, %v3794, %v3753
        %v3819 = vsel %vm3799, %v3796, %v3755
        %v3822 = vsel %vm3799, %v3798, %v3757
        %v3824 = vld [vmem:[%s4] sm:$0xf]
        %v3825 = vld [vmem:[%s4 + $0x4] sm:$0xf]
        %v3826 = vld [vmem:[%s4 + $0x8] sm:$0xf]
        %v3827 = vld [vmem:[%s4 + $0xc] sm:$0xf]
        %v3828 = vld [vmem:[%s4 + $0x10] sm:$0xf]
        %v3829 = vld [vmem:[%s4 + $0x14] sm:$0xf]
        %v3830 = vld [vmem:[%s4 + $0x18] sm:$0xf]
        %v3831 = vld [vmem:[%s4 + $0x1c] sm:$0xf]
        %v3832 = vld [vmem:[%s4 + $0x20] sm:$0xf]
        %v3833 = vld [vmem:[%s4 + $0x24] sm:$0xf]
        %v3834 = vld [vmem:[%s4 + $0x28] sm:$0xf]
        %v3835 = vld [vmem:[%s4 + $0x2c] sm:$0xf]
        %v3836 = vld [vmem:[%s4 + $0x30] sm:$0xf]
        %v3837 = vld [vmem:[%s4 + $0x34] sm:$0xf]
        %v3838 = vld [vmem:[%s4 + $0x38] sm:$0xf]
        %v3839 = vld [vmem:[%s4 + $0x3c] sm:$0xf]
        %v3840 = vld [vmem:[%s5] sm:$0x1]
        %v3842 = vlaneseq
        %v3843 = vshrl.u32 %v3842, 7
        %v3844 = vsub.s32 0, %v3843
        %v3845 = vrot.slane %v3840, %v3844
        %v3863 = vunpack.c.l.b16 %v3824
        %v3864 = vunpack.c.l.b16 %v3825
        %v3865 = vunpack.c.l.b16 %v3826
        %v3866 = vunpack.c.l.b16 %v3827
        %v3867 = vunpack.c.l.b16 %v3828
        %v3868 = vunpack.c.l.b16 %v3829
        %v3869 = vunpack.c.l.b16 %v3830
        %v3870 = vunpack.c.l.b16 %v3831
        %v3871 = vunpack.c.l.b16 %v3832
        %v3872 = vunpack.c.l.b16 %v3833
        %v3873 = vunpack.c.l.b16 %v3834
        %v3874 = vunpack.c.l.b16 %v3835
        %v3875 = vunpack.c.l.b16 %v3836
        %v3876 = vunpack.c.l.b16 %v3837
        %v3877 = vunpack.c.l.b16 %v3838
        %v3878 = vunpack.c.l.b16 %v3839
        %v3879 = vpack.c.b16 %v3864, %v3863
        %v3880 = vpack.c.b16 %v3866, %v3865
        %v3881 = vpack.c.b16 %v3868, %v3867
        %v3882 = vpack.c.b16 %v3870, %v3869
        %v3883 = vpack.c.b16 %v3872, %v3871
        %v3884 = vpack.c.b16 %v3874, %v3873
        %v3885 = vpack.c.b16 %v3876, %v3875
        %v3886 = vpack.c.b16 %v3878, %v3877
        %3895 = vmatprep.subr.bf16.mxu0 0
        %3896 = vmatpush1.bf16.msra.mxu0 %v3886
        %3897 = vmatprep.subr.bf16.mxu0 0
        %3898 = vmatpush1.bf16.msra.mxu0 %v3885
        %3899 = vmatprep.subr.bf16.mxu0 0
        %3900 = vmatpush1.bf16.msra.mxu0 %v3884
        %3901 = vmatprep.subr.bf16.mxu0 0
        %3902 = vmatpush1.bf16.msra.mxu0 %v3883
        %3903 = vmatprep.subr.bf16.mxu0 0
        %3904 = vmatpush1.bf16.msra.mxu0 %v3882
        %3905 = vmatprep.subr.bf16.mxu0 0
        %3906 = vmatpush1.bf16.msra.mxu0 %v3881
        %3907 = vmatprep.subr.bf16.mxu0 0
        %3908 = vmatpush1.bf16.msra.mxu0 %v3880
        %3909 = vmatprep.subr.bf16.mxu0 0
        %3910 = vmatpush1.bf16.msra.mxu0 %v3879
        %3911 = vmatprep.subr.bf16.mxu0 0
        %3912 = vmatpush2.bf16.msra.mxu0 0
        %3913 = vmatprep.subr.bf16.mxu0 0
        %3914 = vmatpush2.bf16.msra.mxu0 0
        %3915 = vmatprep.subr.bf16.mxu0 0
        %3916 = vmatpush2.bf16.msra.mxu0 0
        %3917 = vmatprep.subr.bf16.mxu0 0
        %3918 = vmatpush2.bf16.msra.mxu0 0
        %3919 = vmatprep.subr.bf16.mxu0 0
        %3920 = vmatpush2.bf16.msra.mxu0 0
        %3921 = vmatprep.subr.bf16.mxu0 0
        %3922 = vmatpush2.bf16.msra.mxu0 0
        %3923 = vmatprep.subr.bf16.mxu0 0
        %3924 = vmatpush2.bf16.msra.mxu0 0
        %3925 = vmatprep.subr.bf16.mxu0 0
        %3926 = vmatpush2.bf16.msra.mxu0 0
        %3927 = vmatprep.mubr.bf16.mxu0 0
        %3928 = vmatmul.mubr.bf16.gmra.mxu0 %v3801
        %v3929 = vpop.f32.mrf.mxu0
        %v3930 = vadd.f32 %v3845, %v3929
        %v3931 = vpop.f32.mrf.mxu0
        %v3932 = vpop.f32.mrf.mxu0
        %v3933 = vadd.f32 %v3845, %v3932
        %v3934 = vpop.f32.mrf.mxu0
        %3935 = vmatprep.mubr.bf16.mxu0 0
        %3936 = vmatmul.mubr.bf16.gmra.mxu0 %v3804
        %v3937 = vpop.f32.mrf.mxu0
        %v3938 = vadd.f32 %v3845, %v3937
        %v3939 = vpop.f32.mrf.mxu0
        %v3940 = vpop.f32.mrf.mxu0
        %v3941 = vadd.f32 %v3845, %v3940
        %v3942 = vpop.f32.mrf.mxu0
        %3943 = vmatprep.mubr.bf16.mxu0 0
        %3944 = vmatmul.mubr.bf16.gmra.mxu0 %v3807
        %v3945 = vpop.f32.mrf.mxu0
        %v3946 = vadd.f32 %v3845, %v3945
        %v3947 = vpop.f32.mrf.mxu0
        %v3948 = vpop.f32.mrf.mxu0
        %v3949 = vadd.f32 %v3845, %v3948
        %v3950 = vpop.f32.mrf.mxu0
        %3951 = vmatprep.mubr.bf16.mxu0 0
        %3952 = vmatmul.mubr.bf16.gmra.mxu0 %v3810
        %v3953 = vpop.f32.mrf.mxu0
        %v3954 = vadd.f32 %v3845, %v3953
        %v3955 = vpop.f32.mrf.mxu0
        %v3956 = vpop.f32.mrf.mxu0
        %v3957 = vadd.f32 %v3845, %v3956
        %v3958 = vpop.f32.mrf.mxu0
        %3959 = vmatprep.mubr.bf16.mxu0 0
        %3960 = vmatmul.mubr.bf16.gmra.mxu0 %v3813
        %v3961 = vpop.f32.mrf.mxu0
        %v3962 = vadd.f32 %v3845, %v3961
        %v3963 = vpop.f32.mrf.mxu0
        %v3964 = vpop.f32.mrf.mxu0
        %v3965 = vadd.f32 %v3845, %v3964
        %v3966 = vpop.f32.mrf.mxu0
        %3967 = vmatprep.mubr.bf16.mxu0 0
        %3968 = vmatmul.mubr.bf16.gmra.mxu0 %v3816
        %v3969 = vpop.f32.mrf.mxu0
        %v3970 = vadd.f32 %v3845, %v3969
        %v3971 = vpop.f32.mrf.mxu0
        %v3972 = vpop.f32.mrf.mxu0
        %v3973 = vadd.f32 %v3845, %v3972
        %v3974 = vpop.f32.mrf.mxu0
        %3975 = vmatprep.mubr.bf16.mxu0 0
        %3976 = vmatmul.mubr.bf16.gmra.mxu0 %v3819
        %v3977 = vpop.f32.mrf.mxu0
        %v3978 = vadd.f32 %v3845, %v3977
        %v3979 = vpop.f32.mrf.mxu0
        %v3980 = vpop.f32.mrf.mxu0
        %v3981 = vadd.f32 %v3845, %v3980
        %v3982 = vpop.f32.mrf.mxu0
        %3983 = vmatprep.mubr.bf16.mxu0 0
        %3984 = vmatmul.mubr.bf16.gmra.mxu0 %v3822
        %v3985 = vpop.f32.mrf.mxu0
        %v3986 = vadd.f32 %v3845, %v3985
        %v3987 = vpop.f32.mrf.mxu0
        %v3988 = vpop.f32.mrf.mxu0
        %v3989 = vadd.f32 %v3845, %v3988
        %v3990 = vpop.f32.mrf.mxu0
        %3991 = vdwg.mxu0
        %3992 = vst [vmem:[%s1179] sm:$0xff] %v3930
        %3993 = vst [vmem:[%s1179 + $0x8] sm:$0xff] %v3933
        %3994 = vst [vmem:[%s1179 + $0x10] sm:$0xff] %v3938
        %3995 = vst [vmem:[%s1179 + $0x18] sm:$0xff] %v3941
        %3996 = vst [vmem:[%s1179 + $0x20] sm:$0xff] %v3946
        %3997 = vst [vmem:[%s1179 + $0x28] sm:$0xff] %v3949
        %3998 = vst [vmem:[%s1179 + $0x30] sm:$0xff] %v3954
        %3999 = vst [vmem:[%s1179 + $0x38] sm:$0xff] %v3957
        %4000 = vst [vmem:[%s1179 + $0x40] sm:$0xff] %v3962
        %4001 = vst [vmem:[%s1179 + $0x48] sm:$0xff] %v3965
        %4002 = vst [vmem:[%s1179 + $0x50] sm:$0xff] %v3970
        %4003 = vst [vmem:[%s1179 + $0x58] sm:$0xff] %v3973
        %4004 = vst [vmem:[%s1179 + $0x60] sm:$0xff] %v3978
        %4005 = vst [vmem:[%s1179 + $0x68] sm:$0xff] %v3981
        %4006 = vst [vmem:[%s1179 + $0x70] sm:$0xff] %v3986
        %4007 = vst [vmem:[%s1179 + $0x78] sm:$0xff] %v3989
        %p4008 = scmp.lt.s32.totalorder %s17, 3
        %s4009 = scalar_select %p4008, %s17, 3
        %s4010 = smul.addr %s4009, 16
        %s4011 = smul.addr %s4010, 8
        %s4012 = scalar_lea.vmem %s6, %s4011
        // Predicated region
        $region168: #{deformable_window_attention_forward.3} parent=154 // pred_check
          %p4013 = pneg %p176
        $region169: #{deformable_window_attention_forward.3} parent=154 // pred_check_branch
          %4015 = sbr.rel (%p4013) target = $region171
        $region170: #{deformable_window_attention_forward.3} parent=154 // pred_region
          _
        $region171: #{deformable_window_attention_forward.3} parent=154 // pred_fallthru
          _
      $region155: #{deformable_window_attention_forward.3} parent=5 // pred_fallthru
        _
      %p4016 = scmp.le.s32.totalorder 2, %s12
      // Predicated region
      $region172: #{deformable_window_attention_forward.3} parent=5 // pred_check
        %p4017 = pneg %p4016
      $region173: #{deformable_window_attention_forward.3} parent=5 // pred_check_branch
        %4019 = sbr.rel (%p4017) target = $region175
      $region174: #{deformable_window_attention_forward.3} parent=5 // pred_region
        %s4020 = ssub.s32 %s12, 2
        // Predicated region
        $region176: #{deformable_window_attention_forward.3} parent=174 // pred_check
          %p4021 = pneg %p182
        $region177: #{deformable_window_attention_forward.3} parent=174 // pred_check_branch
          %4023 = sbr.rel (%p4021) target = $region179
        $region178: #{deformable_window_attention_forward.3} parent=174 // pred_region
          %p4024 = scmp.lt.s32.totalorder %s18, 3
          %s4025 = scalar_select %p4024, %s18, 3
          %s4026 = smul.addr %s4025, 16
          %s4027 = smul.addr %s4026, 8
          %s4028 = scalar_lea.vmem %s6, %s4027
        $region179: #{deformable_window_attention_forward.3} parent=174 // pred_fallthru
          _
      $region175: #{deformable_window_attention_forward.3} parent=5 // pred_fallthru
        _
    $region6: #{deformable_window_attention_forward.3} parent=1 // loop_footer
      %s16 = sadd.s32 1, %s12
    $region7: #{deformable_window_attention_forward.3} parent=1 // loop_footer_branch
      %11 = sbr.rel target = $region3
    $region8: #{deformable_window_attention_forward.3} parent=1 // loop_exit
      _

</llo_original>
